<compile_context>
chip_gen: v7x
topology: tpu7x:2x2x1
jax: 0.10.0
libtpu: 0.0.40
codegen_flags: <defaults>
</compile_context>

<pallas_src>
import math

import jax
import jax.numpy as jnp
from jax.experimental import pallas as pl
from jax.experimental.pallas import tpu as pltpu

NUMBER_F = 16
LEAKY_SLOPE = 0.01          # nn.LeakyReLU default negative_slope
PAD = 2                     # max dilation over all conv layers (e4/e5 use d=2)


def _round_up(v, m):
    return (v + m - 1) // m * m


# ---------------------------------------------------------------------------
# Fused forward kernel.  One grid step per batch element.
#
# Canvas layout: every activation is a (C, L) buffer holding a zero-padded
# (rows, Wp=W+4) raster flattened row-major; the image interior sits at rows
# [2, 2+H), cols [2, 2+W).  q0 is the flat index of interior pixel (0, 0).
# A 3x3 conv with dilation d over that raster is
#     y = W_stacked @ concat_tap( src[:, q0+off_tap : q0+off_tap+LQ] ),
#     off_tap = ((ky-1)*Wp + (kx-1)) * d,
# one matmul with K = 9*Cin_pad.  The per-row wrap-around ("junk") columns of
# y coincide with the pad columns of the destination canvas and are zeroed
# with a precomputed lane mask -- exactly the zero padding the next conv needs.
# ---------------------------------------------------------------------------
def _make_fused_kernel(H, W):
    Wp = W + 2 * PAD
    q0 = PAD * Wp + PAD          # flat canvas index of interior pixel (0, 0)
    Lv = H * Wp                  # flat span covering all interior rows
    LQ = _round_up(Lv, 128)      # lane-dense compute width
    P = H * W

    def kernel(mask_ref, x_ref, h_ref,
               gw1, gb1, gw2, gb2, gw3a, gw3b, gb3, gw4, gb4, gw5, gb5,
               ew1, eb1, ew2, eb2, ew3, eb3, ew4, eb4, ew5, eb5, ew6, eb6,
               ew7, eb7,
               o_ref,
               c_xin, c_x1, c_e3, c_x35, c_x4, c_x6):
        mask = mask_ref[...]                                    # (1, LQ) f32

        def leaky(v):
            return jnp.where(v >= 0, v, LEAKY_SLOPE * v)

        def lin(w, z, b):
            return jnp.dot(w[...], z, preferred_element_type=jnp.float32) + b[...]

        def conv3x3(src_ref, cin_pad, w_ref, b_ref, d, act):
            # Stack the 9 shifted tap slices into the contracting dimension
            # (one lane-shift copy per tap per layer) -> single MXU matmul.
            taps = []
            for ky in range(3):
                for kx in range(3):
                    s = q0 + ((ky - 1) * Wp + (kx - 1)) * d
                    taps.append(src_ref[0:cin_pad, s:s + LQ])
            xs = jnp.concatenate(taps, axis=0)                  # (9*cin_pad, LQ)
            y = jnp.dot(w_ref[...], xs,
                        preferred_element_type=jnp.float32) + b_ref[...]
            if act == "leaky":
                y = leaky(y)
            else:   # softplus, beta=1, threshold=20 (torch.nn.functional.softplus)
                y = jnp.where(y > 20.0, y,
                              jnp.log1p(jnp.exp(jnp.minimum(y, 20.0))))
            # Zero wrap-around columns -> they become the next layer's padding.
            return y * mask

        # ---- canvases start all-zero every step (pad rows/cols must be 0) ----
        for c in (c_xin, c_x1, c_e3, c_x35, c_x4, c_x6):
            c[...] = jnp.zeros_like(c)

        # ---------------- pointwise branch (all on-chip) ----------------------
        xs = x_ref[:, q0:q0 + LQ]                               # (3, LQ)
        hh = h_ref[:, q0:q0 + LQ]                               # (nbins+1, LQ)

        xv = jnp.max(xs, axis=0, keepdims=True)                 # x_V   (1, LQ)
        half = jnp.sum(xv * mask, axis=1, keepdims=True) * (0.5 / P)  # x_V_up/2

        g1 = leaky(lin(gw1, hh, gb1))
        g2 = leaky(lin(gw2, g1, gb2))
        g3 = leaky(jnp.dot(gw3a[...], g2, preferred_element_type=jnp.float32)
                   + jnp.dot(gw3b[...], hh, preferred_element_type=jnp.float32)
                   + gb3[...])
        g4 = leaky(lin(gw4, g3, gb4))
        g5 = leaky(lin(gw5, g4, gb5))                           # (7, LQ)

        v = xv                                                  # retouch on x_V
        for i in range(7):
            v = v + g5[i:i + 1, :] * (v - v * v)
        rt = v * mask

        # xin = cat([x - x_V_up/2, x_V_up/2], ch)  -> canvas channels 0:4
        c_xin[0:3, q0:q0 + LQ] = (xs - half) * mask
        c_xin[3:4, q0:q0 + LQ] = half * mask
        # e3 concat input canvas: [x2 (0:16, written below), x (16:19), rt (19)]
        c_e3[16:19, q0:q0 + LQ] = xs
        c_e3[19:20, q0:q0 + LQ] = rt

        # ---------------- e-branch: 7 convs, one matmul each -------------------
        c_x1[:, q0:q0 + LQ] = conv3x3(c_xin, 8, ew1, eb1, 1, "leaky")        # x1
        c_e3[0:16, q0:q0 + LQ] = conv3x3(c_x1, 16, ew2, eb2, 1, "leaky")     # x2
        c_x35[0:16, q0:q0 + LQ] = conv3x3(c_e3, 24, ew3, eb3, 1, "leaky")    # x3
        c_x4[:, q0:q0 + LQ] = conv3x3(c_x35, 16, ew4, eb4, 2, "leaky")       # x4
        c_x35[16:32, q0:q0 + LQ] = conv3x3(c_x4, 16, ew5, eb5, 2, "leaky")   # x5
        c_x6[:, q0:q0 + LQ] = conv3x3(c_x35, 32, ew6, eb6, 1, "leaky")       # x6
        o_ref[...] = conv3x3(c_x6, 16, ew7, eb7, 1, "softplus")

    return kernel


# ---------------------------------------------------------------------------
# Parameter preparation: torch-layout (Cout,Cin,3,3) -> tap-major stacked
# (Cout, 9*Cin_pad) with the Cin axis zero-padded to a multiple of 8.
# ---------------------------------------------------------------------------
def _prep_conv3x3(w, b):
    cout, cin = w.shape[0], w.shape[1]
    cin_pad = _round_up(cin, 8)
    wt = jnp.transpose(w, (0, 2, 3, 1)).reshape(cout, 9, cin)   # (cout, tap, cin)
    wt = jnp.pad(wt, ((0, 0), (0, 0), (0, cin_pad - cin)))
    return wt.reshape(cout, 9 * cin_pad), b.reshape(cout, 1)


# ---------------------------------------------------------------------------
# Forward pass (mirrors enhance_net_nopool.forward, scale_factor == 1)
# ---------------------------------------------------------------------------
def enhance_net_forward(params, x_nchw, hist_nchw, scale_factor=1):
    # TODO(synk): bilinear down/up-sample path for scale_factor != 1 not
    # implemented; this reproduces the scale_factor == 1 branch exactly.
    assert scale_factor == 1
    x = x_nchw.astype(jnp.float32)                              # (N, 3, H, W)
    hist = hist_nchw.astype(jnp.float32)                        # (N, nbins+1, H, W)
    N, _, H, W = x.shape
    Ch = hist.shape[1]
    nf = NUMBER_F

    Wp = W + 2 * PAD
    q0 = PAD * Wp + PAD
    Lv = H * Wp
    LQ = _round_up(Lv, 128)
    # Canvas length: covers the furthest tap slice (q0 + 2*Wp+2 + LQ), lane-dense.
    L = _round_up(2 * q0 + LQ, 128)

    # Pad the two network INPUTS once; intermediates never touch HBM.
    def to_canvas(z):
        zp = jnp.pad(z, ((0, 0), (0, 0), (PAD, PAD), (PAD, PAD)))
        zp = zp.reshape(N, z.shape[1], (H + 2 * PAD) * Wp)
        return jnp.pad(zp, ((0, 0), (0, 0), (0, L - (H + 2 * PAD) * Wp)))

    xc = to_canvas(x)
    hc = to_canvas(hist)

    # Valid-pixel lane mask over the flat compute window [q0, q0+LQ).
    j = jnp.arange(LQ)
    col = (q0 + j) % Wp
    mask = ((j < Lv) & (col >= PAD) & (col < PAD + W))
    mask = mask.astype(jnp.float32).reshape(1, LQ)

    # Kernel-layout parameters.
    g1w, g1b = params["g1"]
    g2w, g2b = params["g2"]
    g3w, g3b = params["g3"]
    g4w, g4b = params["g4"]
    g5w, g5b = params["g5"]
    e = {k: _prep_conv3x3(*params[k])
         for k in ("e1", "e2", "e3", "e4", "e5", "e6", "e7")}

    consts = [
        g1w, g1b.reshape(-1, 1), g2w, g2b.reshape(-1, 1),
        g3w[:, :nf], g3w[:, nf:], g3b.reshape(-1, 1),
        g4w, g4b.reshape(-1, 1), g5w, g5b.reshape(-1, 1),
    ]
    for k in ("e1", "e2", "e3", "e4", "e5", "e6", "e7"):
        consts += [e[k][0], e[k][1]]

    def batch_spec(c, l):
        return pl.BlockSpec((pl.Squeezed(), c, l), lambda n: (n, 0, 0))

    def const_spec(a):
        return pl.BlockSpec(a.shape, lambda n: (0, 0))

    in_specs = [const_spec(mask), batch_spec(3, L), batch_spec(Ch, L)]
    in_specs += [const_spec(a) for a in consts]

    out_flat = pl.pallas_call(
        _make_fused_kernel(H, W),
        out_shape=jax.ShapeDtypeStruct((N, 3, LQ), jnp.float32),
        grid=(N,),
        in_specs=in_specs,
        out_specs=batch_spec(3, LQ),
        scratch_shapes=[
            pltpu.VMEM((8, L), jnp.float32),    # xin   (4 real ch + 4 zero ch)
            pltpu.VMEM((16, L), jnp.float32),   # x1
            pltpu.VMEM((24, L), jnp.float32),   # [x2, x, retouch] (+4 zero ch)
            pltpu.VMEM((32, L), jnp.float32),   # [x3, x5]
            pltpu.VMEM((16, L), jnp.float32),   # x4
            pltpu.VMEM((16, L), jnp.float32),   # x6
        ],
        compiler_params=pltpu.CompilerParams(
            dimension_semantics=("parallel",),
            vmem_limit_bytes=48 * 1024 * 1024),
    )(mask, xc, hc, *consts)

    # Drop the wrap-around columns -> (N, 3, H, W).
    return out_flat[:, :, :Lv].reshape(N, 3, H, Wp)[:, :, :, :W]


# ---------------------------------------------------------------------------
# Deterministic parameter init (PyTorch Conv2d-style fan_in uniform bounds),
# kept in torch layout so the same params drive both kernel and reference.
# ---------------------------------------------------------------------------
def init_params(key, nbins):
    nf = NUMBER_F
    keys = jax.random.split(key, 12)

    def c3(k, cin, cout):
        kw, kb = jax.random.split(k)
        bound = 1.0 / math.sqrt(cin * 9)
        w = jax.random.uniform(kw, (cout, cin, 3, 3), jnp.float32, -bound, bound)
        b = jax.random.uniform(kb, (cout,), jnp.float32, -bound, bound)
        return w, b

    def c1(k, cin, cout):
        kw, kb = jax.random.split(k)
        bound = 1.0 / math.sqrt(cin)
        w = jax.random.uniform(kw, (cout, cin), jnp.float32, -bound, bound)
        b = jax.random.uniform(kb, (cout,), jnp.float32, -bound, bound)
        return w, b

    return {
        "e1": c3(keys[0], 4, nf),
        "e2": c3(keys[1], nf, nf),
        "e3": c3(keys[2], nf + 3 + 1, nf),
        "e4": c3(keys[3], nf, nf),           # dilation 2
        "e5": c3(keys[4], nf, nf),           # dilation 2
        "e6": c3(keys[5], nf * 2, nf),
        "e7": c3(keys[6], nf, 3),
        "g1": c1(keys[7], nbins + 1, nf),
        "g2": c1(keys[8], nf, nf),
        "g3": c1(keys[9], nf + nbins + 1, nf),
        "g4": c1(keys[10], nf, nf),
        "g5": c1(keys[11], nf, 7),
    }


# ---------------------------------------------------------------------------
# Pure-JAX reference (mirrors the PyTorch graph) for a numerical sanity check.
# ---------------------------------------------------------------------------
def _ref_forward(params, x, hist):
    def leaky(v):
        return jnp.where(v >= 0, v, LEAKY_SLOPE * v)

    def conv3(z, wb, d):
        w, b = wb
        y = jax.lax.conv_general_dilated(
            z, w, window_strides=(1, 1), padding=((d, d), (d, d)),
            rhs_dilation=(d, d), dimension_numbers=("NCHW", "OIHW", "NCHW"))
        return y + b.reshape(1, -1, 1, 1)

    def conv1(z, wb):
        w, b = wb
        return jnp.einsum("oc,nchw->nohw", w, z) + b.reshape(1, -1, 1, 1)

    xv = jnp.max(x, axis=1, keepdims=True)
    xvu = jnp.mean(xv, axis=(2, 3), keepdims=True) + xv * 0
    g1 = leaky(conv1(hist, params["g1"]))
    g2 = leaky(conv1(g1, params["g2"]))
    g3 = leaky(conv1(jnp.concatenate([g2, hist], 1), params["g3"]))
    g4 = leaky(conv1(g3, params["g4"]))
    g5 = leaky(conv1(g4, params["g5"]))
    v = xv
    for i in range(7):
        v = v + g5[:, i:i + 1] * (v - v * v)
    x1 = leaky(conv3(jnp.concatenate([x - xvu / 2, xvu / 2], 1), params["e1"], 1))
    x2 = leaky(conv3(x1, params["e2"], 1))
    x3 = leaky(conv3(jnp.concatenate([x2, x, v], 1), params["e3"], 1))
    x4 = leaky(conv3(x3, params["e4"], 2))
    x5 = leaky(conv3(x4, params["e5"], 2))
    x6 = leaky(conv3(jnp.concatenate([x3, x5], 1), params["e6"], 1))
    return jax.nn.softplus(conv3(x6, params["e7"], 1))


if __name__ == "__main__":
    N, H, W = 2, 16, 16
    nbins = 8                                # hist has nbins + 1 = 9 channels

    key = jax.random.PRNGKey(0)
    kx, kh, kp = jax.random.split(key, 3)
    x = jax.random.uniform(kx, (N, 3, H, W), jnp.float32)
    hist = jax.random.uniform(kh, (N, nbins + 1, H, W), jnp.float32)
    params = init_params(kp, nbins)

    fwd = jax.jit(lambda xx, hh: enhance_net_forward(params, xx, hh, scale_factor=1))
    out = fwd(x, hist)
    jax.block_until_ready(out)

    assert out.shape == (N, 3, H, W), out.shape
    assert out.dtype == jnp.float32
    assert bool(jnp.all(jnp.isfinite(out)))

    ref = _ref_forward(params, x, hist)
    max_err = float(jnp.max(jnp.abs(out - ref)))
    assert max_err < 2e-3, f"mismatch vs reference: max abs err = {max_err}"
    print("KERNEL_OK")
</pallas_src>

<mosaic_0001>
module attributes {stable_mosaic.version = 11 : i64} {
  func.func @kernel(%arg0: i32, %arg1: memref<1x384xf32, #tpu.memory_space<vmem>>, %arg2: memref<1x3x512xf32, #tpu.memory_space<vmem>>, %arg3: memref<1x9x512xf32, #tpu.memory_space<vmem>>, %arg4: memref<16x9xf32, #tpu.memory_space<vmem>>, %arg5: memref<16x1xf32, #tpu.memory_space<vmem>>, %arg6: memref<16x16xf32, #tpu.memory_space<vmem>>, %arg7: memref<16x1xf32, #tpu.memory_space<vmem>>, %arg8: memref<16x16xf32, #tpu.memory_space<vmem>>, %arg9: memref<16x9xf32, #tpu.memory_space<vmem>>, %arg10: memref<16x1xf32, #tpu.memory_space<vmem>>, %arg11: memref<16x16xf32, #tpu.memory_space<vmem>>, %arg12: memref<16x1xf32, #tpu.memory_space<vmem>>, %arg13: memref<7x16xf32, #tpu.memory_space<vmem>>, %arg14: memref<7x1xf32, #tpu.memory_space<vmem>>, %arg15: memref<16x72xf32, #tpu.memory_space<vmem>>, %arg16: memref<16x1xf32, #tpu.memory_space<vmem>>, %arg17: memref<16x144xf32, #tpu.memory_space<vmem>>, %arg18: memref<16x1xf32, #tpu.memory_space<vmem>>, %arg19: memref<16x216xf32, #tpu.memory_space<vmem>>, %arg20: memref<16x1xf32, #tpu.memory_space<vmem>>, %arg21: memref<16x144xf32, #tpu.memory_space<vmem>>, %arg22: memref<16x1xf32, #tpu.memory_space<vmem>>, %arg23: memref<16x144xf32, #tpu.memory_space<vmem>>, %arg24: memref<16x1xf32, #tpu.memory_space<vmem>>, %arg25: memref<16x288xf32, #tpu.memory_space<vmem>>, %arg26: memref<16x1xf32, #tpu.memory_space<vmem>>, %arg27: memref<3x144xf32, #tpu.memory_space<vmem>>, %arg28: memref<3x1xf32, #tpu.memory_space<vmem>>, %arg29: memref<1x3x384xf32, #tpu.memory_space<vmem>>, %arg30: memref<8x512xf32, #tpu.memory_space<vmem>>, %arg31: memref<16x512xf32, #tpu.memory_space<vmem>>, %arg32: memref<24x512xf32, #tpu.memory_space<vmem>>, %arg33: memref<32x512xf32, #tpu.memory_space<vmem>>, %arg34: memref<16x512xf32, #tpu.memory_space<vmem>>, %arg35: memref<16x512xf32, #tpu.memory_space<vmem>>) attributes {dimension_semantics = [#tpu.dimension_semantics<parallel>], iteration_bounds = array<i64: 2>, scalar_prefetch = 0 : i64, scratch_operands = 6 : i64, tpu.core_type = #tpu.core_type<tc>, window_params = [{pipeline_mode = #tpu.pipeline_mode<synchronous>, transform_indices = @transform_0, window_bounds = array<i64: 1, 384>}, {transform_indices = @transform_1, window_bounds = array<i64: 1, 3, 512>}, {transform_indices = @transform_2, window_bounds = array<i64: 1, 9, 512>}, {pipeline_mode = #tpu.pipeline_mode<synchronous>, transform_indices = @transform_3, window_bounds = array<i64: 16, 9>}, {pipeline_mode = #tpu.pipeline_mode<synchronous>, transform_indices = @transform_4, window_bounds = array<i64: 16, 1>}, {pipeline_mode = #tpu.pipeline_mode<synchronous>, transform_indices = @transform_5, window_bounds = array<i64: 16, 16>}, {pipeline_mode = #tpu.pipeline_mode<synchronous>, transform_indices = @transform_6, window_bounds = array<i64: 16, 1>}, {pipeline_mode = #tpu.pipeline_mode<synchronous>, transform_indices = @transform_7, window_bounds = array<i64: 16, 16>}, {pipeline_mode = #tpu.pipeline_mode<synchronous>, transform_indices = @transform_8, window_bounds = array<i64: 16, 9>}, {pipeline_mode = #tpu.pipeline_mode<synchronous>, transform_indices = @transform_9, window_bounds = array<i64: 16, 1>}, {pipeline_mode = #tpu.pipeline_mode<synchronous>, transform_indices = @transform_10, window_bounds = array<i64: 16, 16>}, {pipeline_mode = #tpu.pipeline_mode<synchronous>, transform_indices = @transform_11, window_bounds = array<i64: 16, 1>}, {pipeline_mode = #tpu.pipeline_mode<synchronous>, transform_indices = @transform_12, window_bounds = array<i64: 7, 16>}, {pipeline_mode = #tpu.pipeline_mode<synchronous>, transform_indices = @transform_13, window_bounds = array<i64: 7, 1>}, {pipeline_mode = #tpu.pipeline_mode<synchronous>, transform_indices = @transform_14, window_bounds = array<i64: 16, 72>}, {pipeline_mode = #tpu.pipeline_mode<synchronous>, transform_indices = @transform_15, window_bounds = array<i64: 16, 1>}, {pipeline_mode = #tpu.pipeline_mode<synchronous>, transform_indices = @transform_16, window_bounds = array<i64: 16, 144>}, {pipeline_mode = #tpu.pipeline_mode<synchronous>, transform_indices = @transform_17, window_bounds = array<i64: 16, 1>}, {pipeline_mode = #tpu.pipeline_mode<synchronous>, transform_indices = @transform_18, window_bounds = array<i64: 16, 216>}, {pipeline_mode = #tpu.pipeline_mode<synchronous>, transform_indices = @transform_19, window_bounds = array<i64: 16, 1>}, {pipeline_mode = #tpu.pipeline_mode<synchronous>, transform_indices = @transform_20, window_bounds = array<i64: 16, 144>}, {pipeline_mode = #tpu.pipeline_mode<synchronous>, transform_indices = @transform_21, window_bounds = array<i64: 16, 1>}, {pipeline_mode = #tpu.pipeline_mode<synchronous>, transform_indices = @transform_22, window_bounds = array<i64: 16, 144>}, {pipeline_mode = #tpu.pipeline_mode<synchronous>, transform_indices = @transform_23, window_bounds = array<i64: 16, 1>}, {pipeline_mode = #tpu.pipeline_mode<synchronous>, transform_indices = @transform_24, window_bounds = array<i64: 16, 288>}, {pipeline_mode = #tpu.pipeline_mode<synchronous>, transform_indices = @transform_25, window_bounds = array<i64: 16, 1>}, {pipeline_mode = #tpu.pipeline_mode<synchronous>, transform_indices = @transform_26, window_bounds = array<i64: 3, 144>}, {pipeline_mode = #tpu.pipeline_mode<synchronous>, transform_indices = @transform_27, window_bounds = array<i64: 3, 1>}, {transform_indices = @transform_28, window_bounds = array<i64: 1, 3, 384>}]} {
    %c0 = arith.constant 0 : index
    %c0_0 = arith.constant 0 : index
    %0 = vector.load %arg1[%c0, %c0_0] : memref<1x384xf32, #tpu.memory_space<vmem>>, vector<1x384xf32>
    %cst = arith.constant 0.000000e+00 : f32
    %1 = vector.broadcast %cst : f32 to vector<8x512xf32>
    %c0_1 = arith.constant 0 : index
    %c0_2 = arith.constant 0 : index
    %2 = vector.load %arg30[%c0_1, %c0_2] : memref<8x512xf32, #tpu.memory_space<vmem>>, vector<8x512xf32>
    tpu.vector_store %arg30[%c0_1, %c0_2], %1 {strides = array<i32>} : memref<8x512xf32, #tpu.memory_space<vmem>>, vector<8x512xf32>,
    %cst_3 = arith.constant 0.000000e+00 : f32
    %3 = vector.broadcast %cst_3 : f32 to vector<16x512xf32>
    %c0_4 = arith.constant 0 : index
    %c0_5 = arith.constant 0 : index
    %4 = vector.load %arg31[%c0_4, %c0_5] : memref<16x512xf32, #tpu.memory_space<vmem>>, vector<16x512xf32>
    tpu.vector_store %arg31[%c0_4, %c0_5], %3 {strides = array<i32>} : memref<16x512xf32, #tpu.memory_space<vmem>>, vector<16x512xf32>,
    %cst_6 = arith.constant 0.000000e+00 : f32
    %5 = vector.broadcast %cst_6 : f32 to vector<24x512xf32>
    %c0_7 = arith.constant 0 : index
    %c0_8 = arith.constant 0 : index
    %6 = vector.load %arg32[%c0_7, %c0_8] : memref<24x512xf32, #tpu.memory_space<vmem>>, vector<24x512xf32>
    tpu.vector_store %arg32[%c0_7, %c0_8], %5 {strides = array<i32>} : memref<24x512xf32, #tpu.memory_space<vmem>>, vector<24x512xf32>,
    %cst_9 = arith.constant 0.000000e+00 : f32
    %7 = vector.broadcast %cst_9 : f32 to vector<32x512xf32>
    %c0_10 = arith.constant 0 : index
    %c0_11 = arith.constant 0 : index
    %8 = vector.load %arg33[%c0_10, %c0_11] : memref<32x512xf32, #tpu.memory_space<vmem>>, vector<32x512xf32>
    tpu.vector_store %arg33[%c0_10, %c0_11], %7 {strides = array<i32>} : memref<32x512xf32, #tpu.memory_space<vmem>>, vector<32x512xf32>,
    %cst_12 = arith.constant 0.000000e+00 : f32
    %9 = vector.broadcast %cst_12 : f32 to vector<16x512xf32>
    %c0_13 = arith.constant 0 : index
    %c0_14 = arith.constant 0 : index
    %10 = vector.load %arg34[%c0_13, %c0_14] : memref<16x512xf32, #tpu.memory_space<vmem>>, vector<16x512xf32>
    tpu.vector_store %arg34[%c0_13, %c0_14], %9 {strides = array<i32>} : memref<16x512xf32, #tpu.memory_space<vmem>>, vector<16x512xf32>,
    %cst_15 = arith.constant 0.000000e+00 : f32
    %11 = vector.broadcast %cst_15 : f32 to vector<16x512xf32>
    %c0_16 = arith.constant 0 : index
    %c0_17 = arith.constant 0 : index
    %12 = vector.load %arg35[%c0_16, %c0_17] : memref<16x512xf32, #tpu.memory_space<vmem>>, vector<16x512xf32>
    tpu.vector_store %arg35[%c0_16, %c0_17], %11 {strides = array<i32>} : memref<16x512xf32, #tpu.memory_space<vmem>>, vector<16x512xf32>,
    %c0_18 = arith.constant 0 : index
    %c0_19 = arith.constant 0 : index
    %c42 = arith.constant 42 : index
    %13 = vector.load %arg2[%c0_18, %c0_19, %c42] : memref<1x3x512xf32, #tpu.memory_space<vmem>>, vector<1x3x384xf32>
    %14 = vector.shape_cast %13 : vector<1x3x384xf32> to vector<3x384xf32>
    %c0_20 = arith.constant 0 : index
    %c0_21 = arith.constant 0 : index
    %c42_22 = arith.constant 42 : index
    %15 = vector.load %arg3[%c0_20, %c0_21, %c42_22] : memref<1x9x512xf32, #tpu.memory_space<vmem>>, vector<1x9x384xf32>
    %16 = vector.shape_cast %15 : vector<1x9x384xf32> to vector<9x384xf32>
    %cst_23 = arith.constant dense<0xFF800000> : vector<384xf32>
    %17 = vector.multi_reduction <maximumf>, %14, %cst_23 [0] : vector<3x384xf32> to vector<384xf32>
    %18 = vector.shape_cast %17 : vector<384xf32> to vector<1x384xf32>
    %19 = arith.mulf %18, %0 : vector<1x384xf32>
    %cst_24 = arith.constant dense<0.000000e+00> : vector<1xf32>
    %20 = vector.multi_reduction <add>, %19, %cst_24 [1] : vector<1x384xf32> to vector<1xf32>
    %21 = vector.shape_cast %20 : vector<1xf32> to vector<1x1xf32>
    %cst_25 = arith.constant 0.001953125 : f32
    %22 = vector.broadcast %cst_25 : f32 to vector<1x1xf32>
    %23 = arith.mulf %21, %22 : vector<1x1xf32>
    %c0_26 = arith.constant 0 : index
    %c0_27 = arith.constant 0 : index
    %24 = vector.load %arg4[%c0_26, %c0_27] : memref<16x9xf32, #tpu.memory_space<vmem>>, vector<16x9xf32>
    %cst_28 = arith.constant dense<0.000000e+00> : vector<16x384xf32>
    %25 = tpu.matmul %24, %16, %cst_28 {dimension_numbers = #tpu.dot_dimension_numbers<[1], [0], [0], [1], [0, 0, 1, 1], [], []>} : vector<16x9xf32>, vector<9x384xf32>, vector<16x384xf32> -> vector<16x384xf32>
    %c0_29 = arith.constant 0 : index
    %c0_30 = arith.constant 0 : index
    %26 = vector.load %arg5[%c0_29, %c0_30] : memref<16x1xf32, #tpu.memory_space<vmem>>, vector<16x1xf32>
    %27 = vector.broadcast %26 : vector<16x1xf32> to vector<16x384xf32>
    %28 = arith.addf %25, %27 : vector<16x384xf32>
    %cst_31 = arith.constant 0.000000e+00 : f32
    %29 = vector.broadcast %cst_31 : f32 to vector<16x384xf32>
    %30 = arith.cmpf oge, %28, %29 : vector<16x384xf32>
    %cst_32 = arith.constant 0.00999999977 : f32
    %31 = vector.broadcast %cst_32 : f32 to vector<16x384xf32>
    %32 = arith.mulf %31, %28 : vector<16x384xf32>
    %33 = arith.select %30, %28, %32 : vector<16x384xi1>, vector<16x384xf32>
    %c0_33 = arith.constant 0 : index
    %c0_34 = arith.constant 0 : index
    %34 = vector.load %arg6[%c0_33, %c0_34] : memref<16x16xf32, #tpu.memory_space<vmem>>, vector<16x16xf32>
    %cst_35 = arith.constant dense<0.000000e+00> : vector<16x384xf32>
    %35 = tpu.matmul %34, %33, %cst_35 {dimension_numbers = #tpu.dot_dimension_numbers<[1], [0], [0], [1], [0, 0, 1, 1], [], []>} : vector<16x16xf32>, vector<16x384xf32>, vector<16x384xf32> -> vector<16x384xf32>
    %c0_36 = arith.constant 0 : index
    %c0_37 = arith.constant 0 : index
    %36 = vector.load %arg7[%c0_36, %c0_37] : memref<16x1xf32, #tpu.memory_space<vmem>>, vector<16x1xf32>
    %37 = vector.broadcast %36 : vector<16x1xf32> to vector<16x384xf32>
    %38 = arith.addf %35, %37 : vector<16x384xf32>
    %cst_38 = arith.constant 0.000000e+00 : f32
    %39 = vector.broadcast %cst_38 : f32 to vector<16x384xf32>
    %40 = arith.cmpf oge, %38, %39 : vector<16x384xf32>
    %cst_39 = arith.constant 0.00999999977 : f32
    %41 = vector.broadcast %cst_39 : f32 to vector<16x384xf32>
    %42 = arith.mulf %41, %38 : vector<16x384xf32>
    %43 = arith.select %40, %38, %42 : vector<16x384xi1>, vector<16x384xf32>
    %c0_40 = arith.constant 0 : index
    %c0_41 = arith.constant 0 : index
    %44 = vector.load %arg8[%c0_40, %c0_41] : memref<16x16xf32, #tpu.memory_space<vmem>>, vector<16x16xf32>
    %cst_42 = arith.constant dense<0.000000e+00> : vector<16x384xf32>
    %45 = tpu.matmul %44, %43, %cst_42 {dimension_numbers = #tpu.dot_dimension_numbers<[1], [0], [0], [1], [0, 0, 1, 1], [], []>} : vector<16x16xf32>, vector<16x384xf32>, vector<16x384xf32> -> vector<16x384xf32>
    %c0_43 = arith.constant 0 : index
    %c0_44 = arith.constant 0 : index
    %46 = vector.load %arg9[%c0_43, %c0_44] : memref<16x9xf32, #tpu.memory_space<vmem>>, vector<16x9xf32>
    %cst_45 = arith.constant dense<0.000000e+00> : vector<16x384xf32>
    %47 = tpu.matmul %46, %16, %cst_45 {dimension_numbers = #tpu.dot_dimension_numbers<[1], [0], [0], [1], [0, 0, 1, 1], [], []>} : vector<16x9xf32>, vector<9x384xf32>, vector<16x384xf32> -> vector<16x384xf32>
    %48 = arith.addf %45, %47 : vector<16x384xf32>
    %c0_46 = arith.constant 0 : index
    %c0_47 = arith.constant 0 : index
    %49 = vector.load %arg10[%c0_46, %c0_47] : memref<16x1xf32, #tpu.memory_space<vmem>>, vector<16x1xf32>
    %50 = vector.broadcast %49 : vector<16x1xf32> to vector<16x384xf32>
    %51 = arith.addf %48, %50 : vector<16x384xf32>
    %cst_48 = arith.constant 0.000000e+00 : f32
    %52 = vector.broadcast %cst_48 : f32 to vector<16x384xf32>
    %53 = arith.cmpf oge, %51, %52 : vector<16x384xf32>
    %cst_49 = arith.constant 0.00999999977 : f32
    %54 = vector.broadcast %cst_49 : f32 to vector<16x384xf32>
    %55 = arith.mulf %54, %51 : vector<16x384xf32>
    %56 = arith.select %53, %51, %55 : vector<16x384xi1>, vector<16x384xf32>
    %c0_50 = arith.constant 0 : index
    %c0_51 = arith.constant 0 : index
    %57 = vector.load %arg11[%c0_50, %c0_51] : memref<16x16xf32, #tpu.memory_space<vmem>>, vector<16x16xf32>
    %cst_52 = arith.constant dense<0.000000e+00> : vector<16x384xf32>
    %58 = tpu.matmul %57, %56, %cst_52 {dimension_numbers = #tpu.dot_dimension_numbers<[1], [0], [0], [1], [0, 0, 1, 1], [], []>} : vector<16x16xf32>, vector<16x384xf32>, vector<16x384xf32> -> vector<16x384xf32>
    %c0_53 = arith.constant 0 : index
    %c0_54 = arith.constant 0 : index
    %59 = vector.load %arg12[%c0_53, %c0_54] : memref<16x1xf32, #tpu.memory_space<vmem>>, vector<16x1xf32>
    %60 = vector.broadcast %59 : vector<16x1xf32> to vector<16x384xf32>
    %61 = arith.addf %58, %60 : vector<16x384xf32>
    %cst_55 = arith.constant 0.000000e+00 : f32
    %62 = vector.broadcast %cst_55 : f32 to vector<16x384xf32>
    %63 = arith.cmpf oge, %61, %62 : vector<16x384xf32>
    %cst_56 = arith.constant 0.00999999977 : f32
    %64 = vector.broadcast %cst_56 : f32 to vector<16x384xf32>
    %65 = arith.mulf %64, %61 : vector<16x384xf32>
    %66 = arith.select %63, %61, %65 : vector<16x384xi1>, vector<16x384xf32>
    %c0_57 = arith.constant 0 : index
    %c0_58 = arith.constant 0 : index
    %67 = vector.load %arg13[%c0_57, %c0_58] : memref<7x16xf32, #tpu.memory_space<vmem>>, vector<7x16xf32>
    %cst_59 = arith.constant dense<0.000000e+00> : vector<7x384xf32>
    %68 = tpu.matmul %67, %66, %cst_59 {dimension_numbers = #tpu.dot_dimension_numbers<[1], [0], [0], [1], [0, 0, 1, 1], [], []>} : vector<7x16xf32>, vector<16x384xf32>, vector<7x384xf32> -> vector<7x384xf32>
    %c0_60 = arith.constant 0 : index
    %c0_61 = arith.constant 0 : index
    %69 = vector.load %arg14[%c0_60, %c0_61] : memref<7x1xf32, #tpu.memory_space<vmem>>, vector<7x1xf32>
    %70 = vector.broadcast %69 : vector<7x1xf32> to vector<7x384xf32>
    %71 = arith.addf %68, %70 : vector<7x384xf32>
    %cst_62 = arith.constant 0.000000e+00 : f32
    %72 = vector.broadcast %cst_62 : f32 to vector<7x384xf32>
    %73 = arith.cmpf oge, %71, %72 : vector<7x384xf32>
    %cst_63 = arith.constant 0.00999999977 : f32
    %74 = vector.broadcast %cst_63 : f32 to vector<7x384xf32>
    %75 = arith.mulf %74, %71 : vector<7x384xf32>
    %76 = arith.select %73, %71, %75 : vector<7x384xi1>, vector<7x384xf32>
    %77 = vector.extract_strided_slice %76 {offsets = [0, 0], sizes = [1, 384], strides = [1, 1]} : vector<7x384xf32> to vector<1x384xf32>
    %78 = arith.mulf %18, %18 : vector<1x384xf32>
    %79 = arith.subf %18, %78 : vector<1x384xf32>
    %80 = arith.mulf %77, %79 : vector<1x384xf32>
    %81 = arith.addf %18, %80 : vector<1x384xf32>
    %82 = vector.extract_strided_slice %76 {offsets = [1, 0], sizes = [1, 384], strides = [1, 1]} : vector<7x384xf32> to vector<1x384xf32>
    %83 = arith.mulf %81, %81 : vector<1x384xf32>
    %84 = arith.subf %81, %83 : vector<1x384xf32>
    %85 = arith.mulf %82, %84 : vector<1x384xf32>
    %86 = arith.addf %81, %85 : vector<1x384xf32>
    %87 = vector.extract_strided_slice %76 {offsets = [2, 0], sizes = [1, 384], strides = [1, 1]} : vector<7x384xf32> to vector<1x384xf32>
    %88 = arith.mulf %86, %86 : vector<1x384xf32>
    %89 = arith.subf %86, %88 : vector<1x384xf32>
    %90 = arith.mulf %87, %89 : vector<1x384xf32>
    %91 = arith.addf %86, %90 : vector<1x384xf32>
    %92 = vector.extract_strided_slice %76 {offsets = [3, 0], sizes = [1, 384], strides = [1, 1]} : vector<7x384xf32> to vector<1x384xf32>
    %93 = arith.mulf %91, %91 : vector<1x384xf32>
    %94 = arith.subf %91, %93 : vector<1x384xf32>
    %95 = arith.mulf %92, %94 : vector<1x384xf32>
    %96 = arith.addf %91, %95 : vector<1x384xf32>
    %97 = vector.extract_strided_slice %76 {offsets = [4, 0], sizes = [1, 384], strides = [1, 1]} : vector<7x384xf32> to vector<1x384xf32>
    %98 = arith.mulf %96, %96 : vector<1x384xf32>
    %99 = arith.subf %96, %98 : vector<1x384xf32>
    %100 = arith.mulf %97, %99 : vector<1x384xf32>
    %101 = arith.addf %96, %100 : vector<1x384xf32>
    %102 = vector.extract_strided_slice %76 {offsets = [5, 0], sizes = [1, 384], strides = [1, 1]} : vector<7x384xf32> to vector<1x384xf32>
    %103 = arith.mulf %101, %101 : vector<1x384xf32>
    %104 = arith.subf %101, %103 : vector<1x384xf32>
    %105 = arith.mulf %102, %104 : vector<1x384xf32>
    %106 = arith.addf %101, %105 : vector<1x384xf32>
    %107 = vector.extract_strided_slice %76 {offsets = [6, 0], sizes = [1, 384], strides = [1, 1]} : vector<7x384xf32> to vector<1x384xf32>
    %108 = arith.mulf %106, %106 : vector<1x384xf32>
    %109 = arith.subf %106, %108 : vector<1x384xf32>
    %110 = arith.mulf %107, %109 : vector<1x384xf32>
    %111 = arith.addf %106, %110 : vector<1x384xf32>
    %112 = arith.mulf %111, %0 : vector<1x384xf32>
    %113 = vector.broadcast %23 : vector<1x1xf32> to vector<3x384xf32>
    %114 = arith.subf %14, %113 : vector<3x384xf32>
    %115 = vector.broadcast %0 : vector<1x384xf32> to vector<3x384xf32>
    %116 = arith.mulf %114, %115 : vector<3x384xf32>
    %c0_64 = arith.constant 0 : index
    %c42_65 = arith.constant 42 : index
    %117 = vector.load %arg30[%c0_64, %c42_65] : memref<8x512xf32, #tpu.memory_space<vmem>>, vector<3x384xf32>
    tpu.vector_store %arg30[%c0_64, %c42_65], %116 {strides = array<i32>} : memref<8x512xf32, #tpu.memory_space<vmem>>, vector<3x384xf32>,
    %118 = vector.broadcast %23 : vector<1x1xf32> to vector<1x384xf32>
    %119 = arith.mulf %118, %0 : vector<1x384xf32>
    %c3 = arith.constant 3 : index
    %c42_66 = arith.constant 42 : index
    %120 = vector.load %arg30[%c3, %c42_66] : memref<8x512xf32, #tpu.memory_space<vmem>>, vector<1x384xf32>
    tpu.vector_store %arg30[%c3, %c42_66], %119 {strides = array<i32>} : memref<8x512xf32, #tpu.memory_space<vmem>>, vector<1x384xf32>,
    %c16 = arith.constant 16 : index
    %c42_67 = arith.constant 42 : index
    %121 = vector.load %arg32[%c16, %c42_67] : memref<24x512xf32, #tpu.memory_space<vmem>>, vector<3x384xf32>
    tpu.vector_store %arg32[%c16, %c42_67], %14 {strides = array<i32>} : memref<24x512xf32, #tpu.memory_space<vmem>>, vector<3x384xf32>,
    %c19 = arith.constant 19 : index
    %c42_68 = arith.constant 42 : index
    %122 = vector.load %arg32[%c19, %c42_68] : memref<24x512xf32, #tpu.memory_space<vmem>>, vector<1x384xf32>
    tpu.vector_store %arg32[%c19, %c42_68], %112 {strides = array<i32>} : memref<24x512xf32, #tpu.memory_space<vmem>>, vector<1x384xf32>,
    %c0_69 = arith.constant 0 : index
    %c21 = arith.constant 21 : index
    %123 = vector.load %arg30[%c0_69, %c21] : memref<8x512xf32, #tpu.memory_space<vmem>>, vector<8x384xf32>
    %c0_70 = arith.constant 0 : index
    %c22 = arith.constant 22 : index
    %124 = vector.load %arg30[%c0_70, %c22] : memref<8x512xf32, #tpu.memory_space<vmem>>, vector<8x384xf32>
    %c0_71 = arith.constant 0 : index
    %c23 = arith.constant 23 : index
    %125 = vector.load %arg30[%c0_71, %c23] : memref<8x512xf32, #tpu.memory_space<vmem>>, vector<8x384xf32>
    %c0_72 = arith.constant 0 : index
    %c41 = arith.constant 41 : index
    %126 = vector.load %arg30[%c0_72, %c41] : memref<8x512xf32, #tpu.memory_space<vmem>>, vector<8x384xf32>
    %c0_73 = arith.constant 0 : index
    %c42_74 = arith.constant 42 : index
    %127 = vector.load %arg30[%c0_73, %c42_74] : memref<8x512xf32, #tpu.memory_space<vmem>>, vector<8x384xf32>
    %c0_75 = arith.constant 0 : index
    %c43 = arith.constant 43 : index
    %128 = vector.load %arg30[%c0_75, %c43] : memref<8x512xf32, #tpu.memory_space<vmem>>, vector<8x384xf32>
    %c0_76 = arith.constant 0 : index
    %c61 = arith.constant 61 : index
    %129 = vector.load %arg30[%c0_76, %c61] : memref<8x512xf32, #tpu.memory_space<vmem>>, vector<8x384xf32>
    %c0_77 = arith.constant 0 : index
    %c62 = arith.constant 62 : index
    %130 = vector.load %arg30[%c0_77, %c62] : memref<8x512xf32, #tpu.memory_space<vmem>>, vector<8x384xf32>
    %c0_78 = arith.constant 0 : index
    %c63 = arith.constant 63 : index
    %131 = vector.load %arg30[%c0_78, %c63] : memref<8x512xf32, #tpu.memory_space<vmem>>, vector<8x384xf32>
    %132 = tpu.concatenate %123, %124, %125, %126, %127, %128, %129, %130, %131 in 0 : vector<8x384xf32>, vector<8x384xf32>, vector<8x384xf32>, vector<8x384xf32>, vector<8x384xf32>, vector<8x384xf32>, vector<8x384xf32>, vector<8x384xf32>, vector<8x384xf32> -> vector<72x384xf32>
    %c0_79 = arith.constant 0 : index
    %c0_80 = arith.constant 0 : index
    %133 = vector.load %arg15[%c0_79, %c0_80] : memref<16x72xf32, #tpu.memory_space<vmem>>, vector<16x72xf32>
    %cst_81 = arith.constant dense<0.000000e+00> : vector<16x384xf32>
    %134 = tpu.matmul %133, %132, %cst_81 {dimension_numbers = #tpu.dot_dimension_numbers<[1], [0], [0], [1], [0, 0, 1, 1], [], []>} : vector<16x72xf32>, vector<72x384xf32>, vector<16x384xf32> -> vector<16x384xf32>
    %c0_82 = arith.constant 0 : index
    %c0_83 = arith.constant 0 : index
    %135 = vector.load %arg16[%c0_82, %c0_83] : memref<16x1xf32, #tpu.memory_space<vmem>>, vector<16x1xf32>
    %136 = vector.broadcast %135 : vector<16x1xf32> to vector<16x384xf32>
    %137 = arith.addf %134, %136 : vector<16x384xf32>
    %cst_84 = arith.constant 0.000000e+00 : f32
    %138 = vector.broadcast %cst_84 : f32 to vector<16x384xf32>
    %139 = arith.cmpf oge, %137, %138 : vector<16x384xf32>
    %cst_85 = arith.constant 0.00999999977 : f32
    %140 = vector.broadcast %cst_85 : f32 to vector<16x384xf32>
    %141 = arith.mulf %140, %137 : vector<16x384xf32>
    %142 = arith.select %139, %137, %141 : vector<16x384xi1>, vector<16x384xf32>
    %143 = vector.broadcast %0 : vector<1x384xf32> to vector<16x384xf32>
    %144 = arith.mulf %142, %143 : vector<16x384xf32>
    %c0_86 = arith.constant 0 : index
    %c42_87 = arith.constant 42 : index
    %145 = vector.load %arg31[%c0_86, %c42_87] : memref<16x512xf32, #tpu.memory_space<vmem>>, vector<16x384xf32>
    tpu.vector_store %arg31[%c0_86, %c42_87], %144 {strides = array<i32>} : memref<16x512xf32, #tpu.memory_space<vmem>>, vector<16x384xf32>,
    %c0_88 = arith.constant 0 : index
    %c21_89 = arith.constant 21 : index
    %146 = vector.load %arg31[%c0_88, %c21_89] : memref<16x512xf32, #tpu.memory_space<vmem>>, vector<16x384xf32>
    %c0_90 = arith.constant 0 : index
    %c22_91 = arith.constant 22 : index
    %147 = vector.load %arg31[%c0_90, %c22_91] : memref<16x512xf32, #tpu.memory_space<vmem>>, vector<16x384xf32>
    %c0_92 = arith.constant 0 : index
    %c23_93 = arith.constant 23 : index
    %148 = vector.load %arg31[%c0_92, %c23_93] : memref<16x512xf32, #tpu.memory_space<vmem>>, vector<16x384xf32>
    %c0_94 = arith.constant 0 : index
    %c41_95 = arith.constant 41 : index
    %149 = vector.load %arg31[%c0_94, %c41_95] : memref<16x512xf32, #tpu.memory_space<vmem>>, vector<16x384xf32>
    %c0_96 = arith.constant 0 : index
    %c42_97 = arith.constant 42 : index
    %150 = vector.load %arg31[%c0_96, %c42_97] : memref<16x512xf32, #tpu.memory_space<vmem>>, vector<16x384xf32>
    %c0_98 = arith.constant 0 : index
    %c43_99 = arith.constant 43 : index
    %151 = vector.load %arg31[%c0_98, %c43_99] : memref<16x512xf32, #tpu.memory_space<vmem>>, vector<16x384xf32>
    %c0_100 = arith.constant 0 : index
    %c61_101 = arith.constant 61 : index
    %152 = vector.load %arg31[%c0_100, %c61_101] : memref<16x512xf32, #tpu.memory_space<vmem>>, vector<16x384xf32>
    %c0_102 = arith.constant 0 : index
    %c62_103 = arith.constant 62 : index
    %153 = vector.load %arg31[%c0_102, %c62_103] : memref<16x512xf32, #tpu.memory_space<vmem>>, vector<16x384xf32>
    %c0_104 = arith.constant 0 : index
    %c63_105 = arith.constant 63 : index
    %154 = vector.load %arg31[%c0_104, %c63_105] : memref<16x512xf32, #tpu.memory_space<vmem>>, vector<16x384xf32>
    %155 = tpu.concatenate %146, %147, %148, %149, %150, %151, %152, %153, %154 in 0 : vector<16x384xf32>, vector<16x384xf32>, vector<16x384xf32>, vector<16x384xf32>, vector<16x384xf32>, vector<16x384xf32>, vector<16x384xf32>, vector<16x384xf32>, vector<16x384xf32> -> vector<144x384xf32>
    %c0_106 = arith.constant 0 : index
    %c0_107 = arith.constant 0 : index
    %156 = vector.load %arg17[%c0_106, %c0_107] : memref<16x144xf32, #tpu.memory_space<vmem>>, vector<16x144xf32>
    %cst_108 = arith.constant dense<0.000000e+00> : vector<16x384xf32>
    %157 = tpu.matmul %156, %155, %cst_108 {dimension_numbers = #tpu.dot_dimension_numbers<[1], [0], [0], [1], [0, 0, 1, 1], [], []>} : vector<16x144xf32>, vector<144x384xf32>, vector<16x384xf32> -> vector<16x384xf32>
    %c0_109 = arith.constant 0 : index
    %c0_110 = arith.constant 0 : index
    %158 = vector.load %arg18[%c0_109, %c0_110] : memref<16x1xf32, #tpu.memory_space<vmem>>, vector<16x1xf32>
    %159 = vector.broadcast %158 : vector<16x1xf32> to vector<16x384xf32>
    %160 = arith.addf %157, %159 : vector<16x384xf32>
    %cst_111 = arith.constant 0.000000e+00 : f32
    %161 = vector.broadcast %cst_111 : f32 to vector<16x384xf32>
    %162 = arith.cmpf oge, %160, %161 : vector<16x384xf32>
    %cst_112 = arith.constant 0.00999999977 : f32
    %163 = vector.broadcast %cst_112 : f32 to vector<16x384xf32>
    %164 = arith.mulf %163, %160 : vector<16x384xf32>
    %165 = arith.select %162, %160, %164 : vector<16x384xi1>, vector<16x384xf32>
    %166 = vector.broadcast %0 : vector<1x384xf32> to vector<16x384xf32>
    %167 = arith.mulf %165, %166 : vector<16x384xf32>
    %c0_113 = arith.constant 0 : index
    %c42_114 = arith.constant 42 : index
    %168 = vector.load %arg32[%c0_113, %c42_114] : memref<24x512xf32, #tpu.memory_space<vmem>>, vector<16x384xf32>
    tpu.vector_store %arg32[%c0_113, %c42_114], %167 {strides = array<i32>} : memref<24x512xf32, #tpu.memory_space<vmem>>, vector<16x384xf32>,
    %c0_115 = arith.constant 0 : index
    %c21_116 = arith.constant 21 : index
    %169 = vector.load %arg32[%c0_115, %c21_116] : memref<24x512xf32, #tpu.memory_space<vmem>>, vector<24x384xf32>
    %c0_117 = arith.constant 0 : index
    %c22_118 = arith.constant 22 : index
    %170 = vector.load %arg32[%c0_117, %c22_118] : memref<24x512xf32, #tpu.memory_space<vmem>>, vector<24x384xf32>
    %c0_119 = arith.constant 0 : index
    %c23_120 = arith.constant 23 : index
    %171 = vector.load %arg32[%c0_119, %c23_120] : memref<24x512xf32, #tpu.memory_space<vmem>>, vector<24x384xf32>
    %c0_121 = arith.constant 0 : index
    %c41_122 = arith.constant 41 : index
    %172 = vector.load %arg32[%c0_121, %c41_122] : memref<24x512xf32, #tpu.memory_space<vmem>>, vector<24x384xf32>
    %c0_123 = arith.constant 0 : index
    %c42_124 = arith.constant 42 : index
    %173 = vector.load %arg32[%c0_123, %c42_124] : memref<24x512xf32, #tpu.memory_space<vmem>>, vector<24x384xf32>
    %c0_125 = arith.constant 0 : index
    %c43_126 = arith.constant 43 : index
    %174 = vector.load %arg32[%c0_125, %c43_126] : memref<24x512xf32, #tpu.memory_space<vmem>>, vector<24x384xf32>
    %c0_127 = arith.constant 0 : index
    %c61_128 = arith.constant 61 : index
    %175 = vector.load %arg32[%c0_127, %c61_128] : memref<24x512xf32, #tpu.memory_space<vmem>>, vector<24x384xf32>
    %c0_129 = arith.constant 0 : index
    %c62_130 = arith.constant 62 : index
    %176 = vector.load %arg32[%c0_129, %c62_130] : memref<24x512xf32, #tpu.memory_space<vmem>>, vector<24x384xf32>
    %c0_131 = arith.constant 0 : index
    %c63_132 = arith.constant 63 : index
    %177 = vector.load %arg32[%c0_131, %c63_132] : memref<24x512xf32, #tpu.memory_space<vmem>>, vector<24x384xf32>
    %178 = tpu.concatenate %169, %170, %171, %172, %173, %174, %175, %176, %177 in 0 : vector<24x384xf32>, vector<24x384xf32>, vector<24x384xf32>, vector<24x384xf32>, vector<24x384xf32>, vector<24x384xf32>, vector<24x384xf32>, vector<24x384xf32>, vector<24x384xf32> -> vector<216x384xf32>
    %c0_133 = arith.constant 0 : index
    %c0_134 = arith.constant 0 : index
    %179 = vector.load %arg19[%c0_133, %c0_134] : memref<16x216xf32, #tpu.memory_space<vmem>>, vector<16x216xf32>
    %cst_135 = arith.constant dense<0.000000e+00> : vector<16x384xf32>
    %180 = tpu.matmul %179, %178, %cst_135 {dimension_numbers = #tpu.dot_dimension_numbers<[1], [0], [0], [1], [0, 0, 1, 1], [], []>} : vector<16x216xf32>, vector<216x384xf32>, vector<16x384xf32> -> vector<16x384xf32>
    %c0_136 = arith.constant 0 : index
    %c0_137 = arith.constant 0 : index
    %181 = vector.load %arg20[%c0_136, %c0_137] : memref<16x1xf32, #tpu.memory_space<vmem>>, vector<16x1xf32>
    %182 = vector.broadcast %181 : vector<16x1xf32> to vector<16x384xf32>
    %183 = arith.addf %180, %182 : vector<16x384xf32>
    %cst_138 = arith.constant 0.000000e+00 : f32
    %184 = vector.broadcast %cst_138 : f32 to vector<16x384xf32>
    %185 = arith.cmpf oge, %183, %184 : vector<16x384xf32>
    %cst_139 = arith.constant 0.00999999977 : f32
    %186 = vector.broadcast %cst_139 : f32 to vector<16x384xf32>
    %187 = arith.mulf %186, %183 : vector<16x384xf32>
    %188 = arith.select %185, %183, %187 : vector<16x384xi1>, vector<16x384xf32>
    %189 = vector.broadcast %0 : vector<1x384xf32> to vector<16x384xf32>
    %190 = arith.mulf %188, %189 : vector<16x384xf32>
    %c0_140 = arith.constant 0 : index
    %c42_141 = arith.constant 42 : index
    %191 = vector.load %arg33[%c0_140, %c42_141] : memref<32x512xf32, #tpu.memory_space<vmem>>, vector<16x384xf32>
    tpu.vector_store %arg33[%c0_140, %c42_141], %190 {strides = array<i32>} : memref<32x512xf32, #tpu.memory_space<vmem>>, vector<16x384xf32>,
    %c0_142 = arith.constant 0 : index
    %c0_143 = arith.constant 0 : index
    %192 = vector.load %arg33[%c0_142, %c0_143] : memref<32x512xf32, #tpu.memory_space<vmem>>, vector<16x384xf32>
    %c0_144 = arith.constant 0 : index
    %c2 = arith.constant 2 : index
    %193 = vector.load %arg33[%c0_144, %c2] : memref<32x512xf32, #tpu.memory_space<vmem>>, vector<16x384xf32>
    %c0_145 = arith.constant 0 : index
    %c4 = arith.constant 4 : index
    %194 = vector.load %arg33[%c0_145, %c4] : memref<32x512xf32, #tpu.memory_space<vmem>>, vector<16x384xf32>
    %c0_146 = arith.constant 0 : index
    %c40 = arith.constant 40 : index
    %195 = vector.load %arg33[%c0_146, %c40] : memref<32x512xf32, #tpu.memory_space<vmem>>, vector<16x384xf32>
    %c0_147 = arith.constant 0 : index
    %c42_148 = arith.constant 42 : index
    %196 = vector.load %arg33[%c0_147, %c42_148] : memref<32x512xf32, #tpu.memory_space<vmem>>, vector<16x384xf32>
    %c0_149 = arith.constant 0 : index
    %c44 = arith.constant 44 : index
    %197 = vector.load %arg33[%c0_149, %c44] : memref<32x512xf32, #tpu.memory_space<vmem>>, vector<16x384xf32>
    %c0_150 = arith.constant 0 : index
    %c80 = arith.constant 80 : index
    %198 = vector.load %arg33[%c0_150, %c80] : memref<32x512xf32, #tpu.memory_space<vmem>>, vector<16x384xf32>
    %c0_151 = arith.constant 0 : index
    %c82 = arith.constant 82 : index
    %199 = vector.load %arg33[%c0_151, %c82] : memref<32x512xf32, #tpu.memory_space<vmem>>, vector<16x384xf32>
    %c0_152 = arith.constant 0 : index
    %c84 = arith.constant 84 : index
    %200 = vector.load %arg33[%c0_152, %c84] : memref<32x512xf32, #tpu.memory_space<vmem>>, vector<16x384xf32>
    %201 = tpu.concatenate %192, %193, %194, %195, %196, %197, %198, %199, %200 in 0 : vector<16x384xf32>, vector<16x384xf32>, vector<16x384xf32>, vector<16x384xf32>, vector<16x384xf32>, vector<16x384xf32>, vector<16x384xf32>, vector<16x384xf32>, vector<16x384xf32> -> vector<144x384xf32>
    %c0_153 = arith.constant 0 : index
    %c0_154 = arith.constant 0 : index
    %202 = vector.load %arg21[%c0_153, %c0_154] : memref<16x144xf32, #tpu.memory_space<vmem>>, vector<16x144xf32>
    %cst_155 = arith.constant dense<0.000000e+00> : vector<16x384xf32>
    %203 = tpu.matmul %202, %201, %cst_155 {dimension_numbers = #tpu.dot_dimension_numbers<[1], [0], [0], [1], [0, 0, 1, 1], [], []>} : vector<16x144xf32>, vector<144x384xf32>, vector<16x384xf32> -> vector<16x384xf32>
    %c0_156 = arith.constant 0 : index
    %c0_157 = arith.constant 0 : index
    %204 = vector.load %arg22[%c0_156, %c0_157] : memref<16x1xf32, #tpu.memory_space<vmem>>, vector<16x1xf32>
    %205 = vector.broadcast %204 : vector<16x1xf32> to vector<16x384xf32>
    %206 = arith.addf %203, %205 : vector<16x384xf32>
    %cst_158 = arith.constant 0.000000e+00 : f32
    %207 = vector.broadcast %cst_158 : f32 to vector<16x384xf32>
    %208 = arith.cmpf oge, %206, %207 : vector<16x384xf32>
    %cst_159 = arith.constant 0.00999999977 : f32
    %209 = vector.broadcast %cst_159 : f32 to vector<16x384xf32>
    %210 = arith.mulf %209, %206 : vector<16x384xf32>
    %211 = arith.select %208, %206, %210 : vector<16x384xi1>, vector<16x384xf32>
    %212 = vector.broadcast %0 : vector<1x384xf32> to vector<16x384xf32>
    %213 = arith.mulf %211, %212 : vector<16x384xf32>
    %c0_160 = arith.constant 0 : index
    %c42_161 = arith.constant 42 : index
    %214 = vector.load %arg34[%c0_160, %c42_161] : memref<16x512xf32, #tpu.memory_space<vmem>>, vector<16x384xf32>
    tpu.vector_store %arg34[%c0_160, %c42_161], %213 {strides = array<i32>} : memref<16x512xf32, #tpu.memory_space<vmem>>, vector<16x384xf32>,
    %c0_162 = arith.constant 0 : index
    %c0_163 = arith.constant 0 : index
    %215 = vector.load %arg34[%c0_162, %c0_163] : memref<16x512xf32, #tpu.memory_space<vmem>>, vector<16x384xf32>
    %c0_164 = arith.constant 0 : index
    %c2_165 = arith.constant 2 : index
    %216 = vector.load %arg34[%c0_164, %c2_165] : memref<16x512xf32, #tpu.memory_space<vmem>>, vector<16x384xf32>
    %c0_166 = arith.constant 0 : index
    %c4_167 = arith.constant 4 : index
    %217 = vector.load %arg34[%c0_166, %c4_167] : memref<16x512xf32, #tpu.memory_space<vmem>>, vector<16x384xf32>
    %c0_168 = arith.constant 0 : index
    %c40_169 = arith.constant 40 : index
    %218 = vector.load %arg34[%c0_168, %c40_169] : memref<16x512xf32, #tpu.memory_space<vmem>>, vector<16x384xf32>
    %c0_170 = arith.constant 0 : index
    %c42_171 = arith.constant 42 : index
    %219 = vector.load %arg34[%c0_170, %c42_171] : memref<16x512xf32, #tpu.memory_space<vmem>>, vector<16x384xf32>
    %c0_172 = arith.constant 0 : index
    %c44_173 = arith.constant 44 : index
    %220 = vector.load %arg34[%c0_172, %c44_173] : memref<16x512xf32, #tpu.memory_space<vmem>>, vector<16x384xf32>
    %c0_174 = arith.constant 0 : index
    %c80_175 = arith.constant 80 : index
    %221 = vector.load %arg34[%c0_174, %c80_175] : memref<16x512xf32, #tpu.memory_space<vmem>>, vector<16x384xf32>
    %c0_176 = arith.constant 0 : index
    %c82_177 = arith.constant 82 : index
    %222 = vector.load %arg34[%c0_176, %c82_177] : memref<16x512xf32, #tpu.memory_space<vmem>>, vector<16x384xf32>
    %c0_178 = arith.constant 0 : index
    %c84_179 = arith.constant 84 : index
    %223 = vector.load %arg34[%c0_178, %c84_179] : memref<16x512xf32, #tpu.memory_space<vmem>>, vector<16x384xf32>
    %224 = tpu.concatenate %215, %216, %217, %218, %219, %220, %221, %222, %223 in 0 : vector<16x384xf32>, vector<16x384xf32>, vector<16x384xf32>, vector<16x384xf32>, vector<16x384xf32>, vector<16x384xf32>, vector<16x384xf32>, vector<16x384xf32>, vector<16x384xf32> -> vector<144x384xf32>
    %c0_180 = arith.constant 0 : index
    %c0_181 = arith.constant 0 : index
    %225 = vector.load %arg23[%c0_180, %c0_181] : memref<16x144xf32, #tpu.memory_space<vmem>>, vector<16x144xf32>
    %cst_182 = arith.constant dense<0.000000e+00> : vector<16x384xf32>
    %226 = tpu.matmul %225, %224, %cst_182 {dimension_numbers = #tpu.dot_dimension_numbers<[1], [0], [0], [1], [0, 0, 1, 1], [], []>} : vector<16x144xf32>, vector<144x384xf32>, vector<16x384xf32> -> vector<16x384xf32>
    %c0_183 = arith.constant 0 : index
    %c0_184 = arith.constant 0 : index
    %227 = vector.load %arg24[%c0_183, %c0_184] : memref<16x1xf32, #tpu.memory_space<vmem>>, vector<16x1xf32>
    %228 = vector.broadcast %227 : vector<16x1xf32> to vector<16x384xf32>
    %229 = arith.addf %226, %228 : vector<16x384xf32>
    %cst_185 = arith.constant 0.000000e+00 : f32
    %230 = vector.broadcast %cst_185 : f32 to vector<16x384xf32>
    %231 = arith.cmpf oge, %229, %230 : vector<16x384xf32>
    %cst_186 = arith.constant 0.00999999977 : f32
    %232 = vector.broadcast %cst_186 : f32 to vector<16x384xf32>
    %233 = arith.mulf %232, %229 : vector<16x384xf32>
    %234 = arith.select %231, %229, %233 : vector<16x384xi1>, vector<16x384xf32>
    %235 = vector.broadcast %0 : vector<1x384xf32> to vector<16x384xf32>
    %236 = arith.mulf %234, %235 : vector<16x384xf32>
    %c16_187 = arith.constant 16 : index
    %c42_188 = arith.constant 42 : index
    %237 = vector.load %arg33[%c16_187, %c42_188] : memref<32x512xf32, #tpu.memory_space<vmem>>, vector<16x384xf32>
    tpu.vector_store %arg33[%c16_187, %c42_188], %236 {strides = array<i32>} : memref<32x512xf32, #tpu.memory_space<vmem>>, vector<16x384xf32>,
    %c0_189 = arith.constant 0 : index
    %c21_190 = arith.constant 21 : index
    %238 = vector.load %arg33[%c0_189, %c21_190] : memref<32x512xf32, #tpu.memory_space<vmem>>, vector<32x384xf32>
    %c0_191 = arith.constant 0 : index
    %c22_192 = arith.constant 22 : index
    %239 = vector.load %arg33[%c0_191, %c22_192] : memref<32x512xf32, #tpu.memory_space<vmem>>, vector<32x384xf32>
    %c0_193 = arith.constant 0 : index
    %c23_194 = arith.constant 23 : index
    %240 = vector.load %arg33[%c0_193, %c23_194] : memref<32x512xf32, #tpu.memory_space<vmem>>, vector<32x384xf32>
    %c0_195 = arith.constant 0 : index
    %c41_196 = arith.constant 41 : index
    %241 = vector.load %arg33[%c0_195, %c41_196] : memref<32x512xf32, #tpu.memory_space<vmem>>, vector<32x384xf32>
    %c0_197 = arith.constant 0 : index
    %c42_198 = arith.constant 42 : index
    %242 = vector.load %arg33[%c0_197, %c42_198] : memref<32x512xf32, #tpu.memory_space<vmem>>, vector<32x384xf32>
    %c0_199 = arith.constant 0 : index
    %c43_200 = arith.constant 43 : index
    %243 = vector.load %arg33[%c0_199, %c43_200] : memref<32x512xf32, #tpu.memory_space<vmem>>, vector<32x384xf32>
    %c0_201 = arith.constant 0 : index
    %c61_202 = arith.constant 61 : index
    %244 = vector.load %arg33[%c0_201, %c61_202] : memref<32x512xf32, #tpu.memory_space<vmem>>, vector<32x384xf32>
    %c0_203 = arith.constant 0 : index
    %c62_204 = arith.constant 62 : index
    %245 = vector.load %arg33[%c0_203, %c62_204] : memref<32x512xf32, #tpu.memory_space<vmem>>, vector<32x384xf32>
    %c0_205 = arith.constant 0 : index
    %c63_206 = arith.constant 63 : index
    %246 = vector.load %arg33[%c0_205, %c63_206] : memref<32x512xf32, #tpu.memory_space<vmem>>, vector<32x384xf32>
    %247 = tpu.concatenate %238, %239, %240, %241, %242, %243, %244, %245, %246 in 0 : vector<32x384xf32>, vector<32x384xf32>, vector<32x384xf32>, vector<32x384xf32>, vector<32x384xf32>, vector<32x384xf32>, vector<32x384xf32>, vector<32x384xf32>, vector<32x384xf32> -> vector<288x384xf32>
    %c0_207 = arith.constant 0 : index
    %c0_208 = arith.constant 0 : index
    %248 = vector.load %arg25[%c0_207, %c0_208] : memref<16x288xf32, #tpu.memory_space<vmem>>, vector<16x288xf32>
    %cst_209 = arith.constant dense<0.000000e+00> : vector<16x384xf32>
    %249 = tpu.matmul %248, %247, %cst_209 {dimension_numbers = #tpu.dot_dimension_numbers<[1], [0], [0], [1], [0, 0, 1, 1], [], []>} : vector<16x288xf32>, vector<288x384xf32>, vector<16x384xf32> -> vector<16x384xf32>
    %c0_210 = arith.constant 0 : index
    %c0_211 = arith.constant 0 : index
    %250 = vector.load %arg26[%c0_210, %c0_211] : memref<16x1xf32, #tpu.memory_space<vmem>>, vector<16x1xf32>
    %251 = vector.broadcast %250 : vector<16x1xf32> to vector<16x384xf32>
    %252 = arith.addf %249, %251 : vector<16x384xf32>
    %cst_212 = arith.constant 0.000000e+00 : f32
    %253 = vector.broadcast %cst_212 : f32 to vector<16x384xf32>
    %254 = arith.cmpf oge, %252, %253 : vector<16x384xf32>
    %cst_213 = arith.constant 0.00999999977 : f32
    %255 = vector.broadcast %cst_213 : f32 to vector<16x384xf32>
    %256 = arith.mulf %255, %252 : vector<16x384xf32>
    %257 = arith.select %254, %252, %256 : vector<16x384xi1>, vector<16x384xf32>
    %258 = vector.broadcast %0 : vector<1x384xf32> to vector<16x384xf32>
    %259 = arith.mulf %257, %258 : vector<16x384xf32>
    %c0_214 = arith.constant 0 : index
    %c42_215 = arith.constant 42 : index
    %260 = vector.load %arg35[%c0_214, %c42_215] : memref<16x512xf32, #tpu.memory_space<vmem>>, vector<16x384xf32>
    tpu.vector_store %arg35[%c0_214, %c42_215], %259 {strides = array<i32>} : memref<16x512xf32, #tpu.memory_space<vmem>>, vector<16x384xf32>,
    %c0_216 = arith.constant 0 : index
    %c21_217 = arith.constant 21 : index
    %261 = vector.load %arg35[%c0_216, %c21_217] : memref<16x512xf32, #tpu.memory_space<vmem>>, vector<16x384xf32>
    %c0_218 = arith.constant 0 : index
    %c22_219 = arith.constant 22 : index
    %262 = vector.load %arg35[%c0_218, %c22_219] : memref<16x512xf32, #tpu.memory_space<vmem>>, vector<16x384xf32>
    %c0_220 = arith.constant 0 : index
    %c23_221 = arith.constant 23 : index
    %263 = vector.load %arg35[%c0_220, %c23_221] : memref<16x512xf32, #tpu.memory_space<vmem>>, vector<16x384xf32>
    %c0_222 = arith.constant 0 : index
    %c41_223 = arith.constant 41 : index
    %264 = vector.load %arg35[%c0_222, %c41_223] : memref<16x512xf32, #tpu.memory_space<vmem>>, vector<16x384xf32>
    %c0_224 = arith.constant 0 : index
    %c42_225 = arith.constant 42 : index
    %265 = vector.load %arg35[%c0_224, %c42_225] : memref<16x512xf32, #tpu.memory_space<vmem>>, vector<16x384xf32>
    %c0_226 = arith.constant 0 : index
    %c43_227 = arith.constant 43 : index
    %266 = vector.load %arg35[%c0_226, %c43_227] : memref<16x512xf32, #tpu.memory_space<vmem>>, vector<16x384xf32>
    %c0_228 = arith.constant 0 : index
    %c61_229 = arith.constant 61 : index
    %267 = vector.load %arg35[%c0_228, %c61_229] : memref<16x512xf32, #tpu.memory_space<vmem>>, vector<16x384xf32>
    %c0_230 = arith.constant 0 : index
    %c62_231 = arith.constant 62 : index
    %268 = vector.load %arg35[%c0_230, %c62_231] : memref<16x512xf32, #tpu.memory_space<vmem>>, vector<16x384xf32>
    %c0_232 = arith.constant 0 : index
    %c63_233 = arith.constant 63 : index
    %269 = vector.load %arg35[%c0_232, %c63_233] : memref<16x512xf32, #tpu.memory_space<vmem>>, vector<16x384xf32>
    %270 = tpu.concatenate %261, %262, %263, %264, %265, %266, %267, %268, %269 in 0 : vector<16x384xf32>, vector<16x384xf32>, vector<16x384xf32>, vector<16x384xf32>, vector<16x384xf32>, vector<16x384xf32>, vector<16x384xf32>, vector<16x384xf32>, vector<16x384xf32> -> vector<144x384xf32>
    %c0_234 = arith.constant 0 : index
    %c0_235 = arith.constant 0 : index
    %271 = vector.load %arg27[%c0_234, %c0_235] : memref<3x144xf32, #tpu.memory_space<vmem>>, vector<3x144xf32>
    %cst_236 = arith.constant dense<0.000000e+00> : vector<3x384xf32>
    %272 = tpu.matmul %271, %270, %cst_236 {dimension_numbers = #tpu.dot_dimension_numbers<[1], [0], [0], [1], [0, 0, 1, 1], [], []>} : vector<3x144xf32>, vector<144x384xf32>, vector<3x384xf32> -> vector<3x384xf32>
    %c0_237 = arith.constant 0 : index
    %c0_238 = arith.constant 0 : index
    %273 = vector.load %arg28[%c0_237, %c0_238] : memref<3x1xf32, #tpu.memory_space<vmem>>, vector<3x1xf32>
    %274 = vector.broadcast %273 : vector<3x1xf32> to vector<3x384xf32>
    %275 = arith.addf %272, %274 : vector<3x384xf32>
    %cst_239 = arith.constant 2.000000e+01 : f32
    %276 = vector.broadcast %cst_239 : f32 to vector<3x384xf32>
    %277 = arith.cmpf ogt, %275, %276 : vector<3x384xf32>
    %cst_240 = arith.constant 2.000000e+01 : f32
    %278 = vector.broadcast %cst_240 : f32 to vector<3x384xf32>
    %279 = arith.minimumf %275, %278 : vector<3x384xf32>
    %280 = math.exp %279 : vector<3x384xf32>
    %281 = math.log1p %280 : vector<3x384xf32>
    %282 = arith.select %277, %275, %281 : vector<3x384xi1>, vector<3x384xf32>
    %283 = vector.broadcast %0 : vector<1x384xf32> to vector<3x384xf32>
    %284 = arith.mulf %282, %283 : vector<3x384xf32>
    %c0_241 = arith.constant 0 : index
    %c0_242 = arith.constant 0 : index
    %c0_243 = arith.constant 0 : index
    %285 = vector.load %arg29[%c0_241, %c0_242, %c0_243] : memref<1x3x384xf32, #tpu.memory_space<vmem>>, vector<1x3x384xf32>
    %286 = vector.shape_cast %285 : vector<1x3x384xf32> to vector<3x384xf32>
    %287 = vector.shape_cast %284 : vector<3x384xf32> to vector<1x3x384xf32>
    tpu.vector_store %arg29[%c0_241, %c0_242, %c0_243], %287 {strides = array<i32>} : memref<1x3x384xf32, #tpu.memory_space<vmem>>, vector<1x3x384xf32>,
    return
  }
  func.func @transform_0(%arg0: i32) -> (i32, i32) {
    %c0_i32 = arith.constant 0 : i32
    %c0_i32_0 = arith.constant 0 : i32
    %c0_i32_1 = arith.constant 0 : i32
    return %c0_i32, %c0_i32_0 : i32, i32
  }
  func.func @transform_1(%arg0: i32) -> (i32, i32, i32) {
    %c0_i32 = arith.constant 0 : i32
    %c0_i32_0 = arith.constant 0 : i32
    %c0_i32_1 = arith.constant 0 : i32
    return %arg0, %c0_i32, %c0_i32_0 : i32, i32, i32
  }
  func.func @transform_2(%arg0: i32) -> (i32, i32, i32) {
    %c0_i32 = arith.constant 0 : i32
    %c0_i32_0 = arith.constant 0 : i32
    %c0_i32_1 = arith.constant 0 : i32
    return %arg0, %c0_i32, %c0_i32_0 : i32, i32, i32
  }
  func.func @transform_3(%arg0: i32) -> (i32, i32) {
    %c0_i32 = arith.constant 0 : i32
    %c0_i32_0 = arith.constant 0 : i32
    %c0_i32_1 = arith.constant 0 : i32
    return %c0_i32, %c0_i32_0 : i32, i32
  }
  func.func @transform_4(%arg0: i32) -> (i32, i32) {
    %c0_i32 = arith.constant 0 : i32
    %c0_i32_0 = arith.constant 0 : i32
    %c0_i32_1 = arith.constant 0 : i32
    return %c0_i32, %c0_i32_0 : i32, i32
  }
  func.func @transform_5(%arg0: i32) -> (i32, i32) {
    %c0_i32 = arith.constant 0 : i32
    %c0_i32_0 = arith.constant 0 : i32
    %c0_i32_1 = arith.constant 0 : i32
    return %c0_i32, %c0_i32_0 : i32, i32
  }
  func.func @transform_6(%arg0: i32) -> (i32, i32) {
    %c0_i32 = arith.constant 0 : i32
    %c0_i32_0 = arith.constant 0 : i32
    %c0_i32_1 = arith.constant 0 : i32
    return %c0_i32, %c0_i32_0 : i32, i32
  }
  func.func @transform_7(%arg0: i32) -> (i32, i32) {
    %c0_i32 = arith.constant 0 : i32
    %c0_i32_0 = arith.constant 0 : i32
    %c0_i32_1 = arith.constant 0 : i32
    return %c0_i32, %c0_i32_0 : i32, i32
  }
  func.func @transform_8(%arg0: i32) -> (i32, i32) {
    %c0_i32 = arith.constant 0 : i32
    %c0_i32_0 = arith.constant 0 : i32
    %c0_i32_1 = arith.constant 0 : i32
    return %c0_i32, %c0_i32_0 : i32, i32
  }
  func.func @transform_9(%arg0: i32) -> (i32, i32) {
    %c0_i32 = arith.constant 0 : i32
    %c0_i32_0 = arith.constant 0 : i32
    %c0_i32_1 = arith.constant 0 : i32
    return %c0_i32, %c0_i32_0 : i32, i32
  }
  func.func @transform_10(%arg0: i32) -> (i32, i32) {
    %c0_i32 = arith.constant 0 : i32
    %c0_i32_0 = arith.constant 0 : i32
    %c0_i32_1 = arith.constant 0 : i32
    return %c0_i32, %c0_i32_0 : i32, i32
  }
  func.func @transform_11(%arg0: i32) -> (i32, i32) {
    %c0_i32 = arith.constant 0 : i32
    %c0_i32_0 = arith.constant 0 : i32
    %c0_i32_1 = arith.constant 0 : i32
    return %c0_i32, %c0_i32_0 : i32, i32
  }
  func.func @transform_12(%arg0: i32) -> (i32, i32) {
    %c0_i32 = arith.constant 0 : i32
    %c0_i32_0 = arith.constant 0 : i32
    %c0_i32_1 = arith.constant 0 : i32
    return %c0_i32, %c0_i32_0 : i32, i32
  }
  func.func @transform_13(%arg0: i32) -> (i32, i32) {
    %c0_i32 = arith.constant 0 : i32
    %c0_i32_0 = arith.constant 0 : i32
    %c0_i32_1 = arith.constant 0 : i32
    return %c0_i32, %c0_i32_0 : i32, i32
  }
  func.func @transform_14(%arg0: i32) -> (i32, i32) {
    %c0_i32 = arith.constant 0 : i32
    %c0_i32_0 = arith.constant 0 : i32
    %c0_i32_1 = arith.constant 0 : i32
    return %c0_i32, %c0_i32_0 : i32, i32
  }
  func.func @transform_15(%arg0: i32) -> (i32, i32) {
    %c0_i32 = arith.constant 0 : i32
    %c0_i32_0 = arith.constant 0 : i32
    %c0_i32_1 = arith.constant 0 : i32
    return %c0_i32, %c0_i32_0 : i32, i32
  }
  func.func @transform_16(%arg0: i32) -> (i32, i32) {
    %c0_i32 = arith.constant 0 : i32
    %c0_i32_0 = arith.constant 0 : i32
    %c0_i32_1 = arith.constant 0 : i32
    return %c0_i32, %c0_i32_0 : i32, i32
  }
  func.func @transform_17(%arg0: i32) -> (i32, i32) {
    %c0_i32 = arith.constant 0 : i32
    %c0_i32_0 = arith.constant 0 : i32
    %c0_i32_1 = arith.constant 0 : i32
    return %c0_i32, %c0_i32_0 : i32, i32
  }
  func.func @transform_18(%arg0: i32) -> (i32, i32) {
    %c0_i32 = arith.constant 0 : i32
    %c0_i32_0 = arith.constant 0 : i32
    %c0_i32_1 = arith.constant 0 : i32
    return %c0_i32, %c0_i32_0 : i32, i32
  }
  func.func @transform_19(%arg0: i32) -> (i32, i32) {
    %c0_i32 = arith.constant 0 : i32
    %c0_i32_0 = arith.constant 0 : i32
    %c0_i32_1 = arith.constant 0 : i32
    return %c0_i32, %c0_i32_0 : i32, i32
  }
  func.func @transform_20(%arg0: i32) -> (i32, i32) {
    %c0_i32 = arith.constant 0 : i32
    %c0_i32_0 = arith.constant 0 : i32
    %c0_i32_1 = arith.constant 0 : i32
    return %c0_i32, %c0_i32_0 : i32, i32
  }
  func.func @transform_21(%arg0: i32) -> (i32, i32) {
    %c0_i32 = arith.constant 0 : i32
    %c0_i32_0 = arith.constant 0 : i32
    %c0_i32_1 = arith.constant 0 : i32
    return %c0_i32, %c0_i32_0 : i32, i32
  }
  func.func @transform_22(%arg0: i32) -> (i32, i32) {
    %c0_i32 = arith.constant 0 : i32
    %c0_i32_0 = arith.constant 0 : i32
    %c0_i32_1 = arith.constant 0 : i32
    return %c0_i32, %c0_i32_0 : i32, i32
  }
  func.func @transform_23(%arg0: i32) -> (i32, i32) {
    %c0_i32 = arith.constant 0 : i32
    %c0_i32_0 = arith.constant 0 : i32
    %c0_i32_1 = arith.constant 0 : i32
    return %c0_i32, %c0_i32_0 : i32, i32
  }
  func.func @transform_24(%arg0: i32) -> (i32, i32) {
    %c0_i32 = arith.constant 0 : i32
    %c0_i32_0 = arith.constant 0 : i32
    %c0_i32_1 = arith.constant 0 : i32
    return %c0_i32, %c0_i32_0 : i32, i32
  }
  func.func @transform_25(%arg0: i32) -> (i32, i32) {
    %c0_i32 = arith.constant 0 : i32
    %c0_i32_0 = arith.constant 0 : i32
    %c0_i32_1 = arith.constant 0 : i32
    return %c0_i32, %c0_i32_0 : i32, i32
  }
  func.func @transform_26(%arg0: i32) -> (i32, i32) {
    %c0_i32 = arith.constant 0 : i32
    %c0_i32_0 = arith.constant 0 : i32
    %c0_i32_1 = arith.constant 0 : i32
    return %c0_i32, %c0_i32_0 : i32, i32
  }
  func.func @transform_27(%arg0: i32) -> (i32, i32) {
    %c0_i32 = arith.constant 0 : i32
    %c0_i32_0 = arith.constant 0 : i32
    %c0_i32_1 = arith.constant 0 : i32
    return %c0_i32, %c0_i32_0 : i32, i32
  }
  func.func @transform_28(%arg0: i32) -> (i32, i32, i32) {
    %c0_i32 = arith.constant 0 : i32
    %c0_i32_0 = arith.constant 0 : i32
    %c0_i32_1 = arith.constant 0 : i32
    return %arg0, %c0_i32, %c0_i32_0 : i32, i32, i32
  }
}

</mosaic_0001>

<llo_original>
// kernel: _lambda_.1
$region0: #{_lambda_.1}
  #allocation0 [shape = 'u32[]', space=smem, size = 0x4, offset = 0x4, fixed_abs, tag = 'smem constant byte address 0x4 - core index']
  #allocation1 [shape = 'u32[144,128]{1,0:T(1,128)}', space=vmem, size = 0x12000, scoped, tag = 'internal scratch']
  #allocation2 [shape = 'f32[8,512]{1,0:T(8,128)}', space=vmem, size = 0x4000, scoped, tag = 'scratch operand']
  #allocation3 [shape = 'f32[16,512]{1,0:T(8,128)}', space=vmem, size = 0x8000, scoped, tag = 'scratch operand']
  #allocation4 [shape = 'f32[24,512]{1,0:T(8,128)}', space=vmem, size = 0xc000, scoped, tag = 'scratch operand']
  #allocation5 [shape = 'f32[32,512]{1,0:T(8,128)}', space=vmem, size = 0x10000, scoped, tag = 'scratch operand']
  #allocation6 [shape = 'f32[16,512]{1,0:T(8,128)}', space=vmem, size = 0x8000, scoped, tag = 'scratch operand']
  #allocation7 [shape = 'f32[16,512]{1,0:T(8,128)}', space=vmem, size = 0x8000, scoped, tag = 'scratch operand']
  %s0 = inlined_call_operand.vmem [shape: f32[1,384], index: 0, kind: input, shape index: {}]
  %s1 = inlined_call_operand.vmem [shape: f32[2,3,512], index: 1, kind: input, shape index: {}]
  %s2 = inlined_call_operand.vmem [shape: f32[2,9,512], index: 2, kind: input, shape index: {}]
  %s3 = inlined_call_operand.vmem [shape: f32[16,9], index: 3, kind: input, shape index: {}]
  %s4 = inlined_call_operand.vmem [shape: f32[16,1], index: 4, kind: input, shape index: {}]
  %s5 = inlined_call_operand.vmem [shape: f32[16,16], index: 5, kind: input, shape index: {}]
  %s6 = inlined_call_operand.vmem [shape: f32[16,1], index: 6, kind: input, shape index: {}]
  %s7 = inlined_call_operand.vmem [shape: f32[16,16], index: 7, kind: input, shape index: {}]
  %s8 = inlined_call_operand.vmem [shape: f32[16,9], index: 8, kind: input, shape index: {}]
  %s9 = inlined_call_operand.vmem [shape: f32[16,1], index: 9, kind: input, shape index: {}]
  %s10 = inlined_call_operand.vmem [shape: f32[16,16], index: 10, kind: input, shape index: {}]
  %s11 = inlined_call_operand.vmem [shape: f32[16,1], index: 11, kind: input, shape index: {}]
  %s12 = inlined_call_operand.vmem [shape: f32[7,16], index: 12, kind: input, shape index: {}]
  %s13 = inlined_call_operand.vmem [shape: f32[7,1], index: 13, kind: input, shape index: {}]
  %s14 = inlined_call_operand.vmem [shape: f32[16,72], index: 14, kind: input, shape index: {}]
  %s15 = inlined_call_operand.vmem [shape: f32[16,1], index: 15, kind: input, shape index: {}]
  %s16 = inlined_call_operand.vmem [shape: f32[16,144], index: 16, kind: input, shape index: {}]
  %s17 = inlined_call_operand.vmem [shape: f32[16,1], index: 17, kind: input, shape index: {}]
  %s18 = inlined_call_operand.vmem [shape: f32[16,216], index: 18, kind: input, shape index: {}]
  %s19 = inlined_call_operand.vmem [shape: f32[16,1], index: 19, kind: input, shape index: {}]
  %s20 = inlined_call_operand.vmem [shape: f32[16,144], index: 20, kind: input, shape index: {}]
  %s21 = inlined_call_operand.vmem [shape: f32[16,1], index: 21, kind: input, shape index: {}]
  %s22 = inlined_call_operand.vmem [shape: f32[16,144], index: 22, kind: input, shape index: {}]
  %s23 = inlined_call_operand.vmem [shape: f32[16,1], index: 23, kind: input, shape index: {}]
  %s24 = inlined_call_operand.vmem [shape: f32[16,288], index: 24, kind: input, shape index: {}]
  %s25 = inlined_call_operand.vmem [shape: f32[16,1], index: 25, kind: input, shape index: {}]
  %s26 = inlined_call_operand.vmem [shape: f32[3,144], index: 26, kind: input, shape index: {}]
  %s27 = inlined_call_operand.vmem [shape: f32[3,1], index: 27, kind: input, shape index: {}]
  %s28 = inlined_call_operand.vmem [shape: f32[2,3,384], index: 28, kind: output, shape index: {}]
  %s29 = sld [smem:[#allocation0]]
  $region145: #{_lambda_.1} parent=0
    _
  %s31 = ssub.s32 1, %s29
  %s32 = scalar_select 0, %s31, %s29
  loop: start=0, step=1, limit=4
  $region2: #{_lambda_.1} parent=0 // loop_pre_header
    _
  $region3: #{_lambda_.1} parent=0 // loop_header
    %s34 = sphi 0, %s38
    %p35 = scmp.ge.s32.totalorder %s34, 4
    %s42 = sphi 0, %s42
    %s44 = sphi 0, %s42
    %s45 = sphi 0, %s44
    %s59 = sphi 0, %s45
    %s65 = sphi 0, %s67
    %s68 = sphi 0, %s65
    %s69 = sphi 0, %s68
    %s85 = sphi 0, %s69
    %s91 = sphi 0, %s93
    %s94 = sphi 0, %s91
    %s95 = sphi 0, %s94
    %s111 = sphi 0, %s95
    %s115 = sphi 0, %s115
    %s117 = sphi 0, %s115
    %s118 = sphi 0, %s117
    %s132 = sphi 0, %s118
    %s136 = sphi 0, %s136
    %s138 = sphi 0, %s136
    %s139 = sphi 0, %s138
    %s153 = sphi 0, %s139
    %s157 = sphi 0, %s157
    %s159 = sphi 0, %s157
    %s160 = sphi 0, %s159
    %s174 = sphi 0, %s160
    %s178 = sphi 0, %s178
    %s180 = sphi 0, %s178
    %s181 = sphi 0, %s180
    %s195 = sphi 0, %s181
    %s199 = sphi 0, %s199
    %s201 = sphi 0, %s199
    %s202 = sphi 0, %s201
    %s216 = sphi 0, %s202
    %s220 = sphi 0, %s220
    %s222 = sphi 0, %s220
    %s223 = sphi 0, %s222
    %s237 = sphi 0, %s223
    %s241 = sphi 0, %s241
    %s243 = sphi 0, %s241
    %s244 = sphi 0, %s243
    %s258 = sphi 0, %s244
    %s262 = sphi 0, %s262
    %s264 = sphi 0, %s262
    %s265 = sphi 0, %s264
    %s279 = sphi 0, %s265
    %s283 = sphi 0, %s283
    %s285 = sphi 0, %s283
    %s286 = sphi 0, %s285
    %s300 = sphi 0, %s286
    %s304 = sphi 0, %s304
    %s306 = sphi 0, %s304
    %s307 = sphi 0, %s306
    %s321 = sphi 0, %s307
    %s325 = sphi 0, %s325
    %s327 = sphi 0, %s325
    %s328 = sphi 0, %s327
    %s342 = sphi 0, %s328
    %s346 = sphi 0, %s346
    %s348 = sphi 0, %s346
    %s349 = sphi 0, %s348
    %s363 = sphi 0, %s349
    %s367 = sphi 0, %s367
    %s369 = sphi 0, %s367
    %s370 = sphi 0, %s369
    %s384 = sphi 0, %s370
    %s388 = sphi 0, %s388
    %s390 = sphi 0, %s388
    %s391 = sphi 0, %s390
    %s405 = sphi 0, %s391
    %s409 = sphi 0, %s409
    %s411 = sphi 0, %s409
    %s412 = sphi 0, %s411
    %s426 = sphi 0, %s412
    %s430 = sphi 0, %s430
    %s432 = sphi 0, %s430
    %s433 = sphi 0, %s432
    %s447 = sphi 0, %s433
    %s451 = sphi 0, %s451
    %s453 = sphi 0, %s451
    %s454 = sphi 0, %s453
    %s468 = sphi 0, %s454
    %s472 = sphi 0, %s472
    %s474 = sphi 0, %s472
    %s475 = sphi 0, %s474
    %s489 = sphi 0, %s475
    %s493 = sphi 0, %s493
    %s495 = sphi 0, %s493
    %s496 = sphi 0, %s495
    %s510 = sphi 0, %s496
    %s514 = sphi 0, %s514
    %s516 = sphi 0, %s514
    %s517 = sphi 0, %s516
    %s531 = sphi 0, %s517
    %s535 = sphi 0, %s535
    %s537 = sphi 0, %s535
    %s538 = sphi 0, %s537
    %s552 = sphi 0, %s538
    %s556 = sphi 0, %s556
    %s558 = sphi 0, %s556
    %s559 = sphi 0, %s558
    %s573 = sphi 0, %s559
    %s577 = sphi 0, %s577
    %s579 = sphi 0, %s577
    %s580 = sphi 0, %s579
    %s594 = sphi 0, %s580
    %s598 = sphi 0, %s598
    %s600 = sphi 0, %s598
    %s601 = sphi 0, %s600
    %s615 = sphi 0, %s601
    %s619 = sphi 0, %s619
    %s621 = sphi 0, %s619
    %s622 = sphi 0, %s621
    %s636 = sphi 0, %s622
    %s642 = sphi 0, %s644
    %s645 = sphi 0, %s642
    %s646 = sphi 0, %s645
    %s662 = sphi 0, %s646
  $region4: #{_lambda_.1} parent=0 // loop_header_branch
    %37 = sbr.rel (%p35) target = $region8
  $region5: #{_lambda_.1} parent=0 // loop_body
    %s39 = ssub.s32 %s34, 1
    %s40 = ssub.s32 %s34, 2
    %s41 = sadd.s32 %s34, 1
    %s43 = sadd.s32 %s42, 1
    %p46 = scmp.eq.s32.totalorder %s34, 1
    %p47 = scmp.ne.s32.totalorder %s42, %s44
    %p48 = scmp.eq.s32.totalorder %s34, 0
    %p49 = por %p47, %p48
    %p50 = scmp.ne.s32.totalorder %s42, %s44
    %p51 = scmp.eq.s32.totalorder %s39, 1
    %p52 = por %p50, %p51
    %p53 = scmp.ne.s32.totalorder %s44, %s45
    %p54 = scmp.eq.s32.totalorder %s39, 0
    %p55 = por %p53, %p54
    %p56 = scmp.ne.s32.totalorder %s44, %s45
    %p57 = scmp.eq.s32.totalorder %s40, 1
    %p58 = por %p56, %p57
    %p60 = scmp.ne.s32.totalorder %s45, %s59
    %p61 = scmp.eq.s32.totalorder %s40, 0
    %p62 = por %p60, %p61
    %s63 = ssub.s32 %s34, %s41
    %p64 = scmp.eq.s32.totalorder %s63, 0
    %s66 = sadd.s32 %s65, 1
    %s67 = scalar_select %p64, %s65, %s66
    %p70 = pneg %p64
    %p71 = scmp.eq.s32.totalorder %s34, 1
    %p72 = por %p70, %p71
    %p73 = scmp.ne.s32.totalorder %s65, %s68
    %p74 = scmp.eq.s32.totalorder %s34, 0
    %p75 = por %p73, %p74
    %p76 = scmp.ne.s32.totalorder %s65, %s68
    %p77 = scmp.eq.s32.totalorder %s39, 1
    %p78 = por %p76, %p77
    %p79 = scmp.ne.s32.totalorder %s68, %s69
    %p80 = scmp.eq.s32.totalorder %s39, 0
    %p81 = por %p79, %p80
    %p82 = scmp.ne.s32.totalorder %s68, %s69
    %p83 = scmp.eq.s32.totalorder %s40, 1
    %p84 = por %p82, %p83
    %p86 = scmp.ne.s32.totalorder %s69, %s85
    %p87 = scmp.eq.s32.totalorder %s40, 0
    %p88 = por %p86, %p87
    %s89 = ssub.s32 %s34, %s41
    %p90 = scmp.eq.s32.totalorder %s89, 0
    %s92 = sadd.s32 %s91, 1
    %s93 = scalar_select %p90, %s91, %s92
    %p96 = pneg %p90
    %p97 = scmp.eq.s32.totalorder %s34, 1
    %p98 = por %p96, %p97
    %p99 = scmp.ne.s32.totalorder %s91, %s94
    %p100 = scmp.eq.s32.totalorder %s34, 0
    %p101 = por %p99, %p100
    %p102 = scmp.ne.s32.totalorder %s91, %s94
    %p103 = scmp.eq.s32.totalorder %s39, 1
    %p104 = por %p102, %p103
    %p105 = scmp.ne.s32.totalorder %s94, %s95
    %p106 = scmp.eq.s32.totalorder %s39, 0
    %p107 = por %p105, %p106
    %p108 = scmp.ne.s32.totalorder %s94, %s95
    %p109 = scmp.eq.s32.totalorder %s40, 1
    %p110 = por %p108, %p109
    %p112 = scmp.ne.s32.totalorder %s95, %s111
    %p113 = scmp.eq.s32.totalorder %s40, 0
    %p114 = por %p112, %p113
    %s116 = sadd.s32 %s115, 1
    %p119 = scmp.eq.s32.totalorder %s34, 1
    %p120 = scmp.ne.s32.totalorder %s115, %s117
    %p121 = scmp.eq.s32.totalorder %s34, 0
    %p122 = por %p120, %p121
    %p123 = scmp.ne.s32.totalorder %s115, %s117
    %p124 = scmp.eq.s32.totalorder %s39, 1
    %p125 = por %p123, %p124
    %p126 = scmp.ne.s32.totalorder %s117, %s118
    %p127 = scmp.eq.s32.totalorder %s39, 0
    %p128 = por %p126, %p127
    %p129 = scmp.ne.s32.totalorder %s117, %s118
    %p130 = scmp.eq.s32.totalorder %s40, 1
    %p131 = por %p129, %p130
    %p133 = scmp.ne.s32.totalorder %s118, %s132
    %p134 = scmp.eq.s32.totalorder %s40, 0
    %p135 = por %p133, %p134
    %s137 = sadd.s32 %s136, 1
    %p140 = scmp.eq.s32.totalorder %s34, 1
    %p141 = scmp.ne.s32.totalorder %s136, %s138
    %p142 = scmp.eq.s32.totalorder %s34, 0
    %p143 = por %p141, %p142
    %p144 = scmp.ne.s32.totalorder %s136, %s138
    %p145 = scmp.eq.s32.totalorder %s39, 1
    %p146 = por %p144, %p145
    %p147 = scmp.ne.s32.totalorder %s138, %s139
    %p148 = scmp.eq.s32.totalorder %s39, 0
    %p149 = por %p147, %p148
    %p150 = scmp.ne.s32.totalorder %s138, %s139
    %p151 = scmp.eq.s32.totalorder %s40, 1
    %p152 = por %p150, %p151
    %p154 = scmp.ne.s32.totalorder %s139, %s153
    %p155 = scmp.eq.s32.totalorder %s40, 0
    %p156 = por %p154, %p155
    %s158 = sadd.s32 %s157, 1
    %p161 = scmp.eq.s32.totalorder %s34, 1
    %p162 = scmp.ne.s32.totalorder %s157, %s159
    %p163 = scmp.eq.s32.totalorder %s34, 0
    %p164 = por %p162, %p163
    %p165 = scmp.ne.s32.totalorder %s157, %s159
    %p166 = scmp.eq.s32.totalorder %s39, 1
    %p167 = por %p165, %p166
    %p168 = scmp.ne.s32.totalorder %s159, %s160
    %p169 = scmp.eq.s32.totalorder %s39, 0
    %p170 = por %p168, %p169
    %p171 = scmp.ne.s32.totalorder %s159, %s160
    %p172 = scmp.eq.s32.totalorder %s40, 1
    %p173 = por %p171, %p172
    %p175 = scmp.ne.s32.totalorder %s160, %s174
    %p176 = scmp.eq.s32.totalorder %s40, 0
    %p177 = por %p175, %p176
    %s179 = sadd.s32 %s178, 1
    %p182 = scmp.eq.s32.totalorder %s34, 1
    %p183 = scmp.ne.s32.totalorder %s178, %s180
    %p184 = scmp.eq.s32.totalorder %s34, 0
    %p185 = por %p183, %p184
    %p186 = scmp.ne.s32.totalorder %s178, %s180
    %p187 = scmp.eq.s32.totalorder %s39, 1
    %p188 = por %p186, %p187
    %p189 = scmp.ne.s32.totalorder %s180, %s181
    %p190 = scmp.eq.s32.totalorder %s39, 0
    %p191 = por %p189, %p190
    %p192 = scmp.ne.s32.totalorder %s180, %s181
    %p193 = scmp.eq.s32.totalorder %s40, 1
    %p194 = por %p192, %p193
    %p196 = scmp.ne.s32.totalorder %s181, %s195
    %p197 = scmp.eq.s32.totalorder %s40, 0
    %p198 = por %p196, %p197
    %s200 = sadd.s32 %s199, 1
    %p203 = scmp.eq.s32.totalorder %s34, 1
    %p204 = scmp.ne.s32.totalorder %s199, %s201
    %p205 = scmp.eq.s32.totalorder %s34, 0
    %p206 = por %p204, %p205
    %p207 = scmp.ne.s32.totalorder %s199, %s201
    %p208 = scmp.eq.s32.totalorder %s39, 1
    %p209 = por %p207, %p208
    %p210 = scmp.ne.s32.totalorder %s201, %s202
    %p211 = scmp.eq.s32.totalorder %s39, 0
    %p212 = por %p210, %p211
    %p213 = scmp.ne.s32.totalorder %s201, %s202
    %p214 = scmp.eq.s32.totalorder %s40, 1
    %p215 = por %p213, %p214
    %p217 = scmp.ne.s32.totalorder %s202, %s216
    %p218 = scmp.eq.s32.totalorder %s40, 0
    %p219 = por %p217, %p218
    %s221 = sadd.s32 %s220, 1
    %p224 = scmp.eq.s32.totalorder %s34, 1
    %p225 = scmp.ne.s32.totalorder %s220, %s222
    %p226 = scmp.eq.s32.totalorder %s34, 0
    %p227 = por %p225, %p226
    %p228 = scmp.ne.s32.totalorder %s220, %s222
    %p229 = scmp.eq.s32.totalorder %s39, 1
    %p230 = por %p228, %p229
    %p231 = scmp.ne.s32.totalorder %s222, %s223
    %p232 = scmp.eq.s32.totalorder %s39, 0
    %p233 = por %p231, %p232
    %p234 = scmp.ne.s32.totalorder %s222, %s223
    %p235 = scmp.eq.s32.totalorder %s40, 1
    %p236 = por %p234, %p235
    %p238 = scmp.ne.s32.totalorder %s223, %s237
    %p239 = scmp.eq.s32.totalorder %s40, 0
    %p240 = por %p238, %p239
    %s242 = sadd.s32 %s241, 1
    %p245 = scmp.eq.s32.totalorder %s34, 1
    %p246 = scmp.ne.s32.totalorder %s241, %s243
    %p247 = scmp.eq.s32.totalorder %s34, 0
    %p248 = por %p246, %p247
    %p249 = scmp.ne.s32.totalorder %s241, %s243
    %p250 = scmp.eq.s32.totalorder %s39, 1
    %p251 = por %p249, %p250
    %p252 = scmp.ne.s32.totalorder %s243, %s244
    %p253 = scmp.eq.s32.totalorder %s39, 0
    %p254 = por %p252, %p253
    %p255 = scmp.ne.s32.totalorder %s243, %s244
    %p256 = scmp.eq.s32.totalorder %s40, 1
    %p257 = por %p255, %p256
    %p259 = scmp.ne.s32.totalorder %s244, %s258
    %p260 = scmp.eq.s32.totalorder %s40, 0
    %p261 = por %p259, %p260
    %s263 = sadd.s32 %s262, 1
    %p266 = scmp.eq.s32.totalorder %s34, 1
    %p267 = scmp.ne.s32.totalorder %s262, %s264
    %p268 = scmp.eq.s32.totalorder %s34, 0
    %p269 = por %p267, %p268
    %p270 = scmp.ne.s32.totalorder %s262, %s264
    %p271 = scmp.eq.s32.totalorder %s39, 1
    %p272 = por %p270, %p271
    %p273 = scmp.ne.s32.totalorder %s264, %s265
    %p274 = scmp.eq.s32.totalorder %s39, 0
    %p275 = por %p273, %p274
    %p276 = scmp.ne.s32.totalorder %s264, %s265
    %p277 = scmp.eq.s32.totalorder %s40, 1
    %p278 = por %p276, %p277
    %p280 = scmp.ne.s32.totalorder %s265, %s279
    %p281 = scmp.eq.s32.totalorder %s40, 0
    %p282 = por %p280, %p281
    %s284 = sadd.s32 %s283, 1
    %p287 = scmp.eq.s32.totalorder %s34, 1
    %p288 = scmp.ne.s32.totalorder %s283, %s285
    %p289 = scmp.eq.s32.totalorder %s34, 0
    %p290 = por %p288, %p289
    %p291 = scmp.ne.s32.totalorder %s283, %s285
    %p292 = scmp.eq.s32.totalorder %s39, 1
    %p293 = por %p291, %p292
    %p294 = scmp.ne.s32.totalorder %s285, %s286
    %p295 = scmp.eq.s32.totalorder %s39, 0
    %p296 = por %p294, %p295
    %p297 = scmp.ne.s32.totalorder %s285, %s286
    %p298 = scmp.eq.s32.totalorder %s40, 1
    %p299 = por %p297, %p298
    %p301 = scmp.ne.s32.totalorder %s286, %s300
    %p302 = scmp.eq.s32.totalorder %s40, 0
    %p303 = por %p301, %p302
    %s305 = sadd.s32 %s304, 1
    %p308 = scmp.eq.s32.totalorder %s34, 1
    %p309 = scmp.ne.s32.totalorder %s304, %s306
    %p310 = scmp.eq.s32.totalorder %s34, 0
    %p311 = por %p309, %p310
    %p312 = scmp.ne.s32.totalorder %s304, %s306
    %p313 = scmp.eq.s32.totalorder %s39, 1
    %p314 = por %p312, %p313
    %p315 = scmp.ne.s32.totalorder %s306, %s307
    %p316 = scmp.eq.s32.totalorder %s39, 0
    %p317 = por %p315, %p316
    %p318 = scmp.ne.s32.totalorder %s306, %s307
    %p319 = scmp.eq.s32.totalorder %s40, 1
    %p320 = por %p318, %p319
    %p322 = scmp.ne.s32.totalorder %s307, %s321
    %p323 = scmp.eq.s32.totalorder %s40, 0
    %p324 = por %p322, %p323
    %s326 = sadd.s32 %s325, 1
    %p329 = scmp.eq.s32.totalorder %s34, 1
    %p330 = scmp.ne.s32.totalorder %s325, %s327
    %p331 = scmp.eq.s32.totalorder %s34, 0
    %p332 = por %p330, %p331
    %p333 = scmp.ne.s32.totalorder %s325, %s327
    %p334 = scmp.eq.s32.totalorder %s39, 1
    %p335 = por %p333, %p334
    %p336 = scmp.ne.s32.totalorder %s327, %s328
    %p337 = scmp.eq.s32.totalorder %s39, 0
    %p338 = por %p336, %p337
    %p339 = scmp.ne.s32.totalorder %s327, %s328
    %p340 = scmp.eq.s32.totalorder %s40, 1
    %p341 = por %p339, %p340
    %p343 = scmp.ne.s32.totalorder %s328, %s342
    %p344 = scmp.eq.s32.totalorder %s40, 0
    %p345 = por %p343, %p344
    %s347 = sadd.s32 %s346, 1
    %p350 = scmp.eq.s32.totalorder %s34, 1
    %p351 = scmp.ne.s32.totalorder %s346, %s348
    %p352 = scmp.eq.s32.totalorder %s34, 0
    %p353 = por %p351, %p352
    %p354 = scmp.ne.s32.totalorder %s346, %s348
    %p355 = scmp.eq.s32.totalorder %s39, 1
    %p356 = por %p354, %p355
    %p357 = scmp.ne.s32.totalorder %s348, %s349
    %p358 = scmp.eq.s32.totalorder %s39, 0
    %p359 = por %p357, %p358
    %p360 = scmp.ne.s32.totalorder %s348, %s349
    %p361 = scmp.eq.s32.totalorder %s40, 1
    %p362 = por %p360, %p361
    %p364 = scmp.ne.s32.totalorder %s349, %s363
    %p365 = scmp.eq.s32.totalorder %s40, 0
    %p366 = por %p364, %p365
    %s368 = sadd.s32 %s367, 1
    %p371 = scmp.eq.s32.totalorder %s34, 1
    %p372 = scmp.ne.s32.totalorder %s367, %s369
    %p373 = scmp.eq.s32.totalorder %s34, 0
    %p374 = por %p372, %p373
    %p375 = scmp.ne.s32.totalorder %s367, %s369
    %p376 = scmp.eq.s32.totalorder %s39, 1
    %p377 = por %p375, %p376
    %p378 = scmp.ne.s32.totalorder %s369, %s370
    %p379 = scmp.eq.s32.totalorder %s39, 0
    %p380 = por %p378, %p379
    %p381 = scmp.ne.s32.totalorder %s369, %s370
    %p382 = scmp.eq.s32.totalorder %s40, 1
    %p383 = por %p381, %p382
    %p385 = scmp.ne.s32.totalorder %s370, %s384
    %p386 = scmp.eq.s32.totalorder %s40, 0
    %p387 = por %p385, %p386
    %s389 = sadd.s32 %s388, 1
    %p392 = scmp.eq.s32.totalorder %s34, 1
    %p393 = scmp.ne.s32.totalorder %s388, %s390
    %p394 = scmp.eq.s32.totalorder %s34, 0
    %p395 = por %p393, %p394
    %p396 = scmp.ne.s32.totalorder %s388, %s390
    %p397 = scmp.eq.s32.totalorder %s39, 1
    %p398 = por %p396, %p397
    %p399 = scmp.ne.s32.totalorder %s390, %s391
    %p400 = scmp.eq.s32.totalorder %s39, 0
    %p401 = por %p399, %p400
    %p402 = scmp.ne.s32.totalorder %s390, %s391
    %p403 = scmp.eq.s32.totalorder %s40, 1
    %p404 = por %p402, %p403
    %p406 = scmp.ne.s32.totalorder %s391, %s405
    %p407 = scmp.eq.s32.totalorder %s40, 0
    %p408 = por %p406, %p407
    %s410 = sadd.s32 %s409, 1
    %p413 = scmp.eq.s32.totalorder %s34, 1
    %p414 = scmp.ne.s32.totalorder %s409, %s411
    %p415 = scmp.eq.s32.totalorder %s34, 0
    %p416 = por %p414, %p415
    %p417 = scmp.ne.s32.totalorder %s409, %s411
    %p418 = scmp.eq.s32.totalorder %s39, 1
    %p419 = por %p417, %p418
    %p420 = scmp.ne.s32.totalorder %s411, %s412
    %p421 = scmp.eq.s32.totalorder %s39, 0
    %p422 = por %p420, %p421
    %p423 = scmp.ne.s32.totalorder %s411, %s412
    %p424 = scmp.eq.s32.totalorder %s40, 1
    %p425 = por %p423, %p424
    %p427 = scmp.ne.s32.totalorder %s412, %s426
    %p428 = scmp.eq.s32.totalorder %s40, 0
    %p429 = por %p427, %p428
    %s431 = sadd.s32 %s430, 1
    %p434 = scmp.eq.s32.totalorder %s34, 1
    %p435 = scmp.ne.s32.totalorder %s430, %s432
    %p436 = scmp.eq.s32.totalorder %s34, 0
    %p437 = por %p435, %p436
    %p438 = scmp.ne.s32.totalorder %s430, %s432
    %p439 = scmp.eq.s32.totalorder %s39, 1
    %p440 = por %p438, %p439
    %p441 = scmp.ne.s32.totalorder %s432, %s433
    %p442 = scmp.eq.s32.totalorder %s39, 0
    %p443 = por %p441, %p442
    %p444 = scmp.ne.s32.totalorder %s432, %s433
    %p445 = scmp.eq.s32.totalorder %s40, 1
    %p446 = por %p444, %p445
    %p448 = scmp.ne.s32.totalorder %s433, %s447
    %p449 = scmp.eq.s32.totalorder %s40, 0
    %p450 = por %p448, %p449
    %s452 = sadd.s32 %s451, 1
    %p455 = scmp.eq.s32.totalorder %s34, 1
    %p456 = scmp.ne.s32.totalorder %s451, %s453
    %p457 = scmp.eq.s32.totalorder %s34, 0
    %p458 = por %p456, %p457
    %p459 = scmp.ne.s32.totalorder %s451, %s453
    %p460 = scmp.eq.s32.totalorder %s39, 1
    %p461 = por %p459, %p460
    %p462 = scmp.ne.s32.totalorder %s453, %s454
    %p463 = scmp.eq.s32.totalorder %s39, 0
    %p464 = por %p462, %p463
    %p465 = scmp.ne.s32.totalorder %s453, %s454
    %p466 = scmp.eq.s32.totalorder %s40, 1
    %p467 = por %p465, %p466
    %p469 = scmp.ne.s32.totalorder %s454, %s468
    %p470 = scmp.eq.s32.totalorder %s40, 0
    %p471 = por %p469, %p470
    %s473 = sadd.s32 %s472, 1
    %p476 = scmp.eq.s32.totalorder %s34, 1
    %p477 = scmp.ne.s32.totalorder %s472, %s474
    %p478 = scmp.eq.s32.totalorder %s34, 0
    %p479 = por %p477, %p478
    %p480 = scmp.ne.s32.totalorder %s472, %s474
    %p481 = scmp.eq.s32.totalorder %s39, 1
    %p482 = por %p480, %p481
    %p483 = scmp.ne.s32.totalorder %s474, %s475
    %p484 = scmp.eq.s32.totalorder %s39, 0
    %p485 = por %p483, %p484
    %p486 = scmp.ne.s32.totalorder %s474, %s475
    %p487 = scmp.eq.s32.totalorder %s40, 1
    %p488 = por %p486, %p487
    %p490 = scmp.ne.s32.totalorder %s475, %s489
    %p491 = scmp.eq.s32.totalorder %s40, 0
    %p492 = por %p490, %p491
    %s494 = sadd.s32 %s493, 1
    %p497 = scmp.eq.s32.totalorder %s34, 1
    %p498 = scmp.ne.s32.totalorder %s493, %s495
    %p499 = scmp.eq.s32.totalorder %s34, 0
    %p500 = por %p498, %p499
    %p501 = scmp.ne.s32.totalorder %s493, %s495
    %p502 = scmp.eq.s32.totalorder %s39, 1
    %p503 = por %p501, %p502
    %p504 = scmp.ne.s32.totalorder %s495, %s496
    %p505 = scmp.eq.s32.totalorder %s39, 0
    %p506 = por %p504, %p505
    %p507 = scmp.ne.s32.totalorder %s495, %s496
    %p508 = scmp.eq.s32.totalorder %s40, 1
    %p509 = por %p507, %p508
    %p511 = scmp.ne.s32.totalorder %s496, %s510
    %p512 = scmp.eq.s32.totalorder %s40, 0
    %p513 = por %p511, %p512
    %s515 = sadd.s32 %s514, 1
    %p518 = scmp.eq.s32.totalorder %s34, 1
    %p519 = scmp.ne.s32.totalorder %s514, %s516
    %p520 = scmp.eq.s32.totalorder %s34, 0
    %p521 = por %p519, %p520
    %p522 = scmp.ne.s32.totalorder %s514, %s516
    %p523 = scmp.eq.s32.totalorder %s39, 1
    %p524 = por %p522, %p523
    %p525 = scmp.ne.s32.totalorder %s516, %s517
    %p526 = scmp.eq.s32.totalorder %s39, 0
    %p527 = por %p525, %p526
    %p528 = scmp.ne.s32.totalorder %s516, %s517
    %p529 = scmp.eq.s32.totalorder %s40, 1
    %p530 = por %p528, %p529
    %p532 = scmp.ne.s32.totalorder %s517, %s531
    %p533 = scmp.eq.s32.totalorder %s40, 0
    %p534 = por %p532, %p533
    %s536 = sadd.s32 %s535, 1
    %p539 = scmp.eq.s32.totalorder %s34, 1
    %p540 = scmp.ne.s32.totalorder %s535, %s537
    %p541 = scmp.eq.s32.totalorder %s34, 0
    %p542 = por %p540, %p541
    %p543 = scmp.ne.s32.totalorder %s535, %s537
    %p544 = scmp.eq.s32.totalorder %s39, 1
    %p545 = por %p543, %p544
    %p546 = scmp.ne.s32.totalorder %s537, %s538
    %p547 = scmp.eq.s32.totalorder %s39, 0
    %p548 = por %p546, %p547
    %p549 = scmp.ne.s32.totalorder %s537, %s538
    %p550 = scmp.eq.s32.totalorder %s40, 1
    %p551 = por %p549, %p550
    %p553 = scmp.ne.s32.totalorder %s538, %s552
    %p554 = scmp.eq.s32.totalorder %s40, 0
    %p555 = por %p553, %p554
    %s557 = sadd.s32 %s556, 1
    %p560 = scmp.eq.s32.totalorder %s34, 1
    %p561 = scmp.ne.s32.totalorder %s556, %s558
    %p562 = scmp.eq.s32.totalorder %s34, 0
    %p563 = por %p561, %p562
    %p564 = scmp.ne.s32.totalorder %s556, %s558
    %p565 = scmp.eq.s32.totalorder %s39, 1
    %p566 = por %p564, %p565
    %p567 = scmp.ne.s32.totalorder %s558, %s559
    %p568 = scmp.eq.s32.totalorder %s39, 0
    %p569 = por %p567, %p568
    %p570 = scmp.ne.s32.totalorder %s558, %s559
    %p571 = scmp.eq.s32.totalorder %s40, 1
    %p572 = por %p570, %p571
    %p574 = scmp.ne.s32.totalorder %s559, %s573
    %p575 = scmp.eq.s32.totalorder %s40, 0
    %p576 = por %p574, %p575
    %s578 = sadd.s32 %s577, 1
    %p581 = scmp.eq.s32.totalorder %s34, 1
    %p582 = scmp.ne.s32.totalorder %s577, %s579
    %p583 = scmp.eq.s32.totalorder %s34, 0
    %p584 = por %p582, %p583
    %p585 = scmp.ne.s32.totalorder %s577, %s579
    %p586 = scmp.eq.s32.totalorder %s39, 1
    %p587 = por %p585, %p586
    %p588 = scmp.ne.s32.totalorder %s579, %s580
    %p589 = scmp.eq.s32.totalorder %s39, 0
    %p590 = por %p588, %p589
    %p591 = scmp.ne.s32.totalorder %s579, %s580
    %p592 = scmp.eq.s32.totalorder %s40, 1
    %p593 = por %p591, %p592
    %p595 = scmp.ne.s32.totalorder %s580, %s594
    %p596 = scmp.eq.s32.totalorder %s40, 0
    %p597 = por %p595, %p596
    %s599 = sadd.s32 %s598, 1
    %p602 = scmp.eq.s32.totalorder %s34, 1
    %p603 = scmp.ne.s32.totalorder %s598, %s600
    %p604 = scmp.eq.s32.totalorder %s34, 0
    %p605 = por %p603, %p604
    %p606 = scmp.ne.s32.totalorder %s598, %s600
    %p607 = scmp.eq.s32.totalorder %s39, 1
    %p608 = por %p606, %p607
    %p609 = scmp.ne.s32.totalorder %s600, %s601
    %p610 = scmp.eq.s32.totalorder %s39, 0
    %p611 = por %p609, %p610
    %p612 = scmp.ne.s32.totalorder %s600, %s601
    %p613 = scmp.eq.s32.totalorder %s40, 1
    %p614 = por %p612, %p613
    %p616 = scmp.ne.s32.totalorder %s601, %s615
    %p617 = scmp.eq.s32.totalorder %s40, 0
    %p618 = por %p616, %p617
    %s620 = sadd.s32 %s619, 1
    %p623 = scmp.eq.s32.totalorder %s34, 1
    %p624 = scmp.ne.s32.totalorder %s619, %s621
    %p625 = scmp.eq.s32.totalorder %s34, 0
    %p626 = por %p624, %p625
    %p627 = scmp.ne.s32.totalorder %s619, %s621
    %p628 = scmp.eq.s32.totalorder %s39, 1
    %p629 = por %p627, %p628
    %p630 = scmp.ne.s32.totalorder %s621, %s622
    %p631 = scmp.eq.s32.totalorder %s39, 0
    %p632 = por %p630, %p631
    %p633 = scmp.ne.s32.totalorder %s621, %s622
    %p634 = scmp.eq.s32.totalorder %s40, 1
    %p635 = por %p633, %p634
    %p637 = scmp.ne.s32.totalorder %s622, %s636
    %p638 = scmp.eq.s32.totalorder %s40, 0
    %p639 = por %p637, %p638
    %s640 = ssub.s32 %s34, %s41
    %p641 = scmp.eq.s32.totalorder %s640, 0
    %s643 = sadd.s32 %s642, 1
    %s644 = scalar_select %p641, %s642, %s643
    %p647 = pneg %p641
    %p648 = scmp.eq.s32.totalorder %s34, 1
    %p649 = por %p647, %p648
    %p650 = scmp.ne.s32.totalorder %s642, %s645
    %p651 = scmp.eq.s32.totalorder %s34, 0
    %p652 = por %p650, %p651
    %p653 = scmp.ne.s32.totalorder %s642, %s645
    %p654 = scmp.eq.s32.totalorder %s39, 1
    %p655 = por %p653, %p654
    %p656 = scmp.ne.s32.totalorder %s645, %s646
    %p657 = scmp.eq.s32.totalorder %s39, 0
    %p658 = por %p656, %p657
    %p659 = scmp.ne.s32.totalorder %s645, %s646
    %p660 = scmp.eq.s32.totalorder %s40, 1
    %p661 = por %p659, %p660
    %p663 = scmp.ne.s32.totalorder %s646, %s662
    %p664 = scmp.eq.s32.totalorder %s40, 0
    %p665 = por %p663, %p664
    %p666 = scmp.le.s32.totalorder 1, %s34
    %p667 = scmp.lt.s32.totalorder %s34, 3
    %p668 = pnand %p666, %p667
    %p669 = pneg %p668
    // Predicated region
    $region9: #{_lambda_.1} parent=5 // pred_check
      _
    $region10: #{_lambda_.1} parent=5 // pred_check_branch
      %671 = sbr.rel (%p668) target = $region12
    $region11: #{_lambda_.1} parent=5 // pred_region
      %s672 = ssub.s32 %s34, 1
      // Predicated region
      $region13: #{_lambda_.1} parent=11 // pred_check
        %p673 = pneg %p55
      $region14: #{_lambda_.1} parent=11 // pred_check_branch
        %675 = sbr.rel (%p673) target = $region16
      $region15: #{_lambda_.1} parent=11 // pred_region
        _
      $region16: #{_lambda_.1} parent=11 // pred_fallthru
        _
      // Predicated region
      $region17: #{_lambda_.1} parent=11 // pred_check
        %p676 = pneg %p128
      $region18: #{_lambda_.1} parent=11 // pred_check_branch
        %678 = sbr.rel (%p676) target = $region20
      $region19: #{_lambda_.1} parent=11 // pred_region
        _
      $region20: #{_lambda_.1} parent=11 // pred_fallthru
        _
      // Predicated region
      $region21: #{_lambda_.1} parent=11 // pred_check
        %p679 = pneg %p149
      $region22: #{_lambda_.1} parent=11 // pred_check_branch
        %681 = sbr.rel (%p679) target = $region24
      $region23: #{_lambda_.1} parent=11 // pred_region
        _
      $region24: #{_lambda_.1} parent=11 // pred_fallthru
        _
      // Predicated region
      $region25: #{_lambda_.1} parent=11 // pred_check
        %p682 = pneg %p170
      $region26: #{_lambda_.1} parent=11 // pred_check_branch
        %684 = sbr.rel (%p682) target = $region28
      $region27: #{_lambda_.1} parent=11 // pred_region
        _
      $region28: #{_lambda_.1} parent=11 // pred_fallthru
        _
      // Predicated region
      $region29: #{_lambda_.1} parent=11 // pred_check
        %p685 = pneg %p191
      $region30: #{_lambda_.1} parent=11 // pred_check_branch
        %687 = sbr.rel (%p685) target = $region32
      $region31: #{_lambda_.1} parent=11 // pred_region
        _
      $region32: #{_lambda_.1} parent=11 // pred_fallthru
        _
      // Predicated region
      $region33: #{_lambda_.1} parent=11 // pred_check
        %p688 = pneg %p212
      $region34: #{_lambda_.1} parent=11 // pred_check_branch
        %690 = sbr.rel (%p688) target = $region36
      $region35: #{_lambda_.1} parent=11 // pred_region
        _
      $region36: #{_lambda_.1} parent=11 // pred_fallthru
        _
      // Predicated region
      $region37: #{_lambda_.1} parent=11 // pred_check
        %p691 = pneg %p233
      $region38: #{_lambda_.1} parent=11 // pred_check_branch
        %693 = sbr.rel (%p691) target = $region40
      $region39: #{_lambda_.1} parent=11 // pred_region
        _
      $region40: #{_lambda_.1} parent=11 // pred_fallthru
        _
      // Predicated region
      $region41: #{_lambda_.1} parent=11 // pred_check
        %p694 = pneg %p254
      $region42: #{_lambda_.1} parent=11 // pred_check_branch
        %696 = sbr.rel (%p694) target = $region44
      $region43: #{_lambda_.1} parent=11 // pred_region
        _
      $region44: #{_lambda_.1} parent=11 // pred_fallthru
        _
      // Predicated region
      $region45: #{_lambda_.1} parent=11 // pred_check
        %p697 = pneg %p275
      $region46: #{_lambda_.1} parent=11 // pred_check_branch
        %699 = sbr.rel (%p697) target = $region48
      $region47: #{_lambda_.1} parent=11 // pred_region
        _
      $region48: #{_lambda_.1} parent=11 // pred_fallthru
        _
      // Predicated region
      $region49: #{_lambda_.1} parent=11 // pred_check
        %p700 = pneg %p296
      $region50: #{_lambda_.1} parent=11 // pred_check_branch
        %702 = sbr.rel (%p700) target = $region52
      $region51: #{_lambda_.1} parent=11 // pred_region
        _
      $region52: #{_lambda_.1} parent=11 // pred_fallthru
        _
      // Predicated region
      $region53: #{_lambda_.1} parent=11 // pred_check
        %p703 = pneg %p317
      $region54: #{_lambda_.1} parent=11 // pred_check_branch
        %705 = sbr.rel (%p703) target = $region56
      $region55: #{_lambda_.1} parent=11 // pred_region
        _
      $region56: #{_lambda_.1} parent=11 // pred_fallthru
        _
      // Predicated region
      $region57: #{_lambda_.1} parent=11 // pred_check
        %p706 = pneg %p338
      $region58: #{_lambda_.1} parent=11 // pred_check_branch
        %708 = sbr.rel (%p706) target = $region60
      $region59: #{_lambda_.1} parent=11 // pred_region
        _
      $region60: #{_lambda_.1} parent=11 // pred_fallthru
        _
      // Predicated region
      $region61: #{_lambda_.1} parent=11 // pred_check
        %p709 = pneg %p359
      $region62: #{_lambda_.1} parent=11 // pred_check_branch
        %711 = sbr.rel (%p709) target = $region64
      $region63: #{_lambda_.1} parent=11 // pred_region
        _
      $region64: #{_lambda_.1} parent=11 // pred_fallthru
        _
      // Predicated region
      $region65: #{_lambda_.1} parent=11 // pred_check
        %p712 = pneg %p380
      $region66: #{_lambda_.1} parent=11 // pred_check_branch
        %714 = sbr.rel (%p712) target = $region68
      $region67: #{_lambda_.1} parent=11 // pred_region
        _
      $region68: #{_lambda_.1} parent=11 // pred_fallthru
        _
      // Predicated region
      $region69: #{_lambda_.1} parent=11 // pred_check
        %p715 = pneg %p401
      $region70: #{_lambda_.1} parent=11 // pred_check_branch
        %717 = sbr.rel (%p715) target = $region72
      $region71: #{_lambda_.1} parent=11 // pred_region
        _
      $region72: #{_lambda_.1} parent=11 // pred_fallthru
        _
      // Predicated region
      $region73: #{_lambda_.1} parent=11 // pred_check
        %p718 = pneg %p422
      $region74: #{_lambda_.1} parent=11 // pred_check_branch
        %720 = sbr.rel (%p718) target = $region76
      $region75: #{_lambda_.1} parent=11 // pred_region
        _
      $region76: #{_lambda_.1} parent=11 // pred_fallthru
        _
      // Predicated region
      $region77: #{_lambda_.1} parent=11 // pred_check
        %p721 = pneg %p443
      $region78: #{_lambda_.1} parent=11 // pred_check_branch
        %723 = sbr.rel (%p721) target = $region80
      $region79: #{_lambda_.1} parent=11 // pred_region
        _
      $region80: #{_lambda_.1} parent=11 // pred_fallthru
        _
      // Predicated region
      $region81: #{_lambda_.1} parent=11 // pred_check
        %p724 = pneg %p464
      $region82: #{_lambda_.1} parent=11 // pred_check_branch
        %726 = sbr.rel (%p724) target = $region84
      $region83: #{_lambda_.1} parent=11 // pred_region
        _
      $region84: #{_lambda_.1} parent=11 // pred_fallthru
        _
      // Predicated region
      $region85: #{_lambda_.1} parent=11 // pred_check
        %p727 = pneg %p485
      $region86: #{_lambda_.1} parent=11 // pred_check_branch
        %729 = sbr.rel (%p727) target = $region88
      $region87: #{_lambda_.1} parent=11 // pred_region
        _
      $region88: #{_lambda_.1} parent=11 // pred_fallthru
        _
      // Predicated region
      $region89: #{_lambda_.1} parent=11 // pred_check
        %p730 = pneg %p506
      $region90: #{_lambda_.1} parent=11 // pred_check_branch
        %732 = sbr.rel (%p730) target = $region92
      $region91: #{_lambda_.1} parent=11 // pred_region
        _
      $region92: #{_lambda_.1} parent=11 // pred_fallthru
        _
      // Predicated region
      $region93: #{_lambda_.1} parent=11 // pred_check
        %p733 = pneg %p527
      $region94: #{_lambda_.1} parent=11 // pred_check_branch
        %735 = sbr.rel (%p733) target = $region96
      $region95: #{_lambda_.1} parent=11 // pred_region
        _
      $region96: #{_lambda_.1} parent=11 // pred_fallthru
        _
      // Predicated region
      $region97: #{_lambda_.1} parent=11 // pred_check
        %p736 = pneg %p548
      $region98: #{_lambda_.1} parent=11 // pred_check_branch
        %738 = sbr.rel (%p736) target = $region100
      $region99: #{_lambda_.1} parent=11 // pred_region
        _
      $region100: #{_lambda_.1} parent=11 // pred_fallthru
        _
      // Predicated region
      $region101: #{_lambda_.1} parent=11 // pred_check
        %p739 = pneg %p569
      $region102: #{_lambda_.1} parent=11 // pred_check_branch
        %741 = sbr.rel (%p739) target = $region104
      $region103: #{_lambda_.1} parent=11 // pred_region
        _
      $region104: #{_lambda_.1} parent=11 // pred_fallthru
        _
      // Predicated region
      $region105: #{_lambda_.1} parent=11 // pred_check
        %p742 = pneg %p590
      $region106: #{_lambda_.1} parent=11 // pred_check_branch
        %744 = sbr.rel (%p742) target = $region108
      $region107: #{_lambda_.1} parent=11 // pred_region
        _
      $region108: #{_lambda_.1} parent=11 // pred_fallthru
        _
      // Predicated region
      $region109: #{_lambda_.1} parent=11 // pred_check
        %p745 = pneg %p611
      $region110: #{_lambda_.1} parent=11 // pred_check_branch
        %747 = sbr.rel (%p745) target = $region112
      $region111: #{_lambda_.1} parent=11 // pred_region
        _
      $region112: #{_lambda_.1} parent=11 // pred_fallthru
        _
      // Predicated region
      $region113: #{_lambda_.1} parent=11 // pred_check
        %p748 = pneg %p632
      $region114: #{_lambda_.1} parent=11 // pred_check_branch
        %750 = sbr.rel (%p748) target = $region116
      $region115: #{_lambda_.1} parent=11 // pred_region
        _
      $region116: #{_lambda_.1} parent=11 // pred_fallthru
        _
    $region12: #{_lambda_.1} parent=5 // pred_fallthru
      _
    %p751 = scmp.lt.s32.totalorder %s34, 2
    // Predicated region
    $region117: #{_lambda_.1} parent=5 // pred_check
      %p752 = pneg %p751
    $region118: #{_lambda_.1} parent=5 // pred_check_branch
      %754 = sbr.rel (%p752) target = $region120
    $region119: #{_lambda_.1} parent=5 // pred_region
      // Predicated region
      $region121: #{_lambda_.1} parent=119 // pred_check
        %p755 = pneg %p75
      $region122: #{_lambda_.1} parent=119 // pred_check_branch
        %757 = sbr.rel (%p755) target = $region124
      $region123: #{_lambda_.1} parent=119 // pred_region
        %p758 = scmp.lt.s32.totalorder %s34, 1
        %s759 = scalar_select %p758, %s34, 1
        %s760 = smul.addr %s759, 4
        %s761 = smul.addr %s760, 4
        %s762 = scalar_lea.vmem %s1, %s761
      $region124: #{_lambda_.1} parent=119 // pred_fallthru
        _
      // Predicated region
      $region125: #{_lambda_.1} parent=119 // pred_check
        %p763 = pneg %p101
      $region126: #{_lambda_.1} parent=119 // pred_check_branch
        %765 = sbr.rel (%p763) target = $region128
      $region127: #{_lambda_.1} parent=119 // pred_region
        %p766 = scmp.lt.s32.totalorder %s34, 1
        %s767 = scalar_select %p766, %s34, 1
        %s768 = smul.addr %s767, 8
        %s769 = smul.addr %s768, 8
        %s770 = scalar_lea.vmem %s2, %s769
      $region128: #{_lambda_.1} parent=119 // pred_fallthru
        _
    $region120: #{_lambda_.1} parent=5 // pred_fallthru
      _
    %p771 = scmp.le.s32.totalorder 1, %s34
    %p772 = scmp.lt.s32.totalorder %s34, 3
    %p773 = pnand %p771, %p772
    %p774 = pneg %p773
    // Predicated region
    $region129: #{_lambda_.1} parent=5 // pred_check
      _
    $region130: #{_lambda_.1} parent=5 // pred_check_branch
      %776 = sbr.rel (%p773) target = $region132
    $region131: #{_lambda_.1} parent=5 // pred_region
      %s777 = ssub.s32 %s34, 1
      %p778 = pneg %p55
      %p779 = pneg %p52
      %p780 = scmp.lt.s32.totalorder %s39, 1
      %s781 = scalar_select %p780, %s39, 1
      %s782 = smul.addr %s781, 4
      %s783 = smul.addr %s782, 4
      %s784 = scalar_lea.vmem %s1, %s783
      %p785 = pneg %p81
      %p786 = pneg %p78
      %p787 = scmp.lt.s32.totalorder %s39, 1
      %s788 = scalar_select %p787, %s39, 1
      %s789 = smul.addr %s788, 8
      %s790 = smul.addr %s789, 8
      %s791 = scalar_lea.vmem %s2, %s790
      %p792 = pneg %p107
      %p793 = pneg %p104
      %p794 = pneg %p128
      %p795 = pneg %p125
      %p796 = pneg %p149
      %p797 = pneg %p146
      %p798 = pneg %p170
      %p799 = pneg %p167
      %p800 = pneg %p191
      %p801 = pneg %p188
      %p802 = pneg %p212
      %p803 = pneg %p209
      %p804 = pneg %p233
      %p805 = pneg %p230
      %p806 = pneg %p254
      %p807 = pneg %p251
      %p808 = pneg %p275
      %p809 = pneg %p272
      %p810 = pneg %p296
      %p811 = pneg %p293
      %p812 = pneg %p317
      %p813 = pneg %p314
      %p814 = pneg %p338
      %p815 = pneg %p335
      %p816 = pneg %p359
      %p817 = pneg %p356
      %p818 = pneg %p380
      %p819 = pneg %p377
      %p820 = pneg %p401
      %p821 = pneg %p398
      %p822 = pneg %p422
      %p823 = pneg %p419
      %p824 = pneg %p443
      %p825 = pneg %p440
      %p826 = pneg %p464
      %p827 = pneg %p461
      %p828 = pneg %p485
      %p829 = pneg %p482
      %p830 = pneg %p506
      %p831 = pneg %p503
      %p832 = pneg %p527
      %p833 = pneg %p524
      %p834 = pneg %p548
      %p835 = pneg %p545
      %p836 = pneg %p569
      %p837 = pneg %p566
      %p838 = pneg %p590
      %p839 = pneg %p587
      %p840 = pneg %p611
      %p841 = pneg %p608
      %p842 = pneg %p632
      %p843 = pneg %p629
      %p844 = pneg %p658
      %p845 = pneg %p655
      %p846 = scmp.lt.s32.totalorder %s39, 1
      %s847 = scalar_select %p846, %s39, 1
      %s848 = smul.addr %s847, 3
      %s849 = smul.addr %s848, 4
      %s850 = scalar_lea.vmem %s28, %s849
      %p851 = scmp.lt.s32.totalorder %s39, 1
      %s852 = scalar_select %p851, %s39, 1
      %s853 = smul.addr %s852, 4
      %s854 = smul.addr %s853, 4
      %s855 = scalar_lea.vmem %s1, %s854
      %p856 = scmp.lt.s32.totalorder %s39, 1
      %s857 = scalar_select %p856, %s39, 1
      %s858 = smul.addr %s857, 8
      %s859 = smul.addr %s858, 8
      %s860 = scalar_lea.vmem %s2, %s859
      %p861 = scmp.lt.s32.totalorder %s39, 1
      %s862 = scalar_select %p861, %s39, 1
      %s863 = smul.addr %s862, 3
      %s864 = smul.addr %s863, 4
      %s865 = scalar_lea.vmem %s28, %s864
      %v866 = vld [vmem:[%s0] sm:$0x7]
      %867 = vst [vmem:[#allocation2] sm:$0xff] 0.0
      %868 = vst [vmem:[#allocation2 + $0x8] sm:$0xff] 0.0
      %869 = vst [vmem:[#allocation2 + $0x10] sm:$0xff] 0.0
      %870 = vst [vmem:[#allocation2 + $0x18] sm:$0xff] 0.0
      %871 = vst [vmem:[#allocation3] sm:$0xff] 0.0
      %872 = vst [vmem:[#allocation3 + $0x8] sm:$0xff] 0.0
      %873 = vst [vmem:[#allocation3 + $0x10] sm:$0xff] 0.0
      %874 = vst [vmem:[#allocation3 + $0x18] sm:$0xff] 0.0
      %875 = vst [vmem:[#allocation3 + $0x20] sm:$0xff] 0.0
      %876 = vst [vmem:[#allocation3 + $0x28] sm:$0xff] 0.0
      %877 = vst [vmem:[#allocation3 + $0x30] sm:$0xff] 0.0
      %878 = vst [vmem:[#allocation3 + $0x38] sm:$0xff] 0.0
      %879 = vst [vmem:[#allocation4] sm:$0xff] 0.0
      %880 = vst [vmem:[#allocation4 + $0x8] sm:$0xff] 0.0
      %881 = vst [vmem:[#allocation4 + $0x10] sm:$0xff] 0.0
      %882 = vst [vmem:[#allocation4 + $0x18] sm:$0xff] 0.0
      %883 = vst [vmem:[#allocation4 + $0x20] sm:$0xff] 0.0
      %884 = vst [vmem:[#allocation4 + $0x28] sm:$0xff] 0.0
      %885 = vst [vmem:[#allocation4 + $0x30] sm:$0xff] 0.0
      %886 = vst [vmem:[#allocation4 + $0x38] sm:$0xff] 0.0
      %887 = vst [vmem:[#allocation4 + $0x40] sm:$0xff] 0.0
      %888 = vst [vmem:[#allocation4 + $0x48] sm:$0xff] 0.0
      %889 = vst [vmem:[#allocation4 + $0x50] sm:$0xff] 0.0
      %890 = vst [vmem:[#allocation4 + $0x58] sm:$0xff] 0.0
      %891 = vst [vmem:[#allocation5] sm:$0xff] 0.0
      %892 = vst [vmem:[#allocation5 + $0x8] sm:$0xff] 0.0
      %893 = vst [vmem:[#allocation5 + $0x10] sm:$0xff] 0.0
      %894 = vst [vmem:[#allocation5 + $0x18] sm:$0xff] 0.0
      %895 = vst [vmem:[#allocation5 + $0x20] sm:$0xff] 0.0
      %896 = vst [vmem:[#allocation5 + $0x28] sm:$0xff] 0.0
      %897 = vst [vmem:[#allocation5 + $0x30] sm:$0xff] 0.0
      %898 = vst [vmem:[#allocation5 + $0x38] sm:$0xff] 0.0
      %899 = vst [vmem:[#allocation5 + $0x40] sm:$0xff] 0.0
      %900 = vst [vmem:[#allocation5 + $0x48] sm:$0xff] 0.0
      %901 = vst [vmem:[#allocation5 + $0x50] sm:$0xff] 0.0
      %902 = vst [vmem:[#allocation5 + $0x58] sm:$0xff] 0.0
      %903 = vst [vmem:[#allocation5 + $0x60] sm:$0xff] 0.0
      %904 = vst [vmem:[#allocation5 + $0x68] sm:$0xff] 0.0
      %905 = vst [vmem:[#allocation5 + $0x70] sm:$0xff] 0.0
      %906 = vst [vmem:[#allocation5 + $0x78] sm:$0xff] 0.0
      %907 = vst [vmem:[#allocation6] sm:$0xff] 0.0
      %908 = vst [vmem:[#allocation6 + $0x8] sm:$0xff] 0.0
      %909 = vst [vmem:[#allocation6 + $0x10] sm:$0xff] 0.0
      %910 = vst [vmem:[#allocation6 + $0x18] sm:$0xff] 0.0
      %911 = vst [vmem:[#allocation6 + $0x20] sm:$0xff] 0.0
      %912 = vst [vmem:[#allocation6 + $0x28] sm:$0xff] 0.0
      %913 = vst [vmem:[#allocation6 + $0x30] sm:$0xff] 0.0
      %914 = vst [vmem:[#allocation6 + $0x38] sm:$0xff] 0.0
      %915 = vst [vmem:[#allocation7] sm:$0xff] 0.0
      %916 = vst [vmem:[#allocation7 + $0x8] sm:$0xff] 0.0
      %917 = vst [vmem:[#allocation7 + $0x10] sm:$0xff] 0.0
      %918 = vst [vmem:[#allocation7 + $0x18] sm:$0xff] 0.0
      %919 = vst [vmem:[#allocation7 + $0x20] sm:$0xff] 0.0
      %920 = vst [vmem:[#allocation7 + $0x28] sm:$0xff] 0.0
      %921 = vst [vmem:[#allocation7 + $0x30] sm:$0xff] 0.0
      %922 = vst [vmem:[#allocation7 + $0x38] sm:$0xff] 0.0
      %v923 = vld [vmem:[%s855] sm:$0x77]
      %v924 = vld [vmem:[%s855 + $0x8] sm:$0x77]
      %v925 = vld [vmem:[%s860] sm:$0xff]
      %v926 = vld [vmem:[%s860 + $0x8] sm:$0xff]
      %v927 = vld [vmem:[%s860 + $0x10] sm:$0xff]
      %v928 = vld [vmem:[%s860 + $0x18] sm:$0xff]
      %v929 = vld [vmem:[%s860 + $0x20] sm:$0x1]
      %v930 = vld [vmem:[%s860 + $0x28] sm:$0x1]
      %v931 = vld [vmem:[%s860 + $0x30] sm:$0x1]
      %v932 = vld [vmem:[%s860 + $0x38] sm:$0x1]
      %v935 = vcombine.high %v923, %v923
      %v936 = vcombine.high %v924, %v924
      %vm939 = vcmask 1042768
      %v940 = vsel %vm939, %v923, -inf
      %v941 = vrot.slane %v940, 4
      %v942 = vmax.f32 %v940, %v941
      %v943 = vrot.slane %v942, 2
      %v944 = vmax.f32 %v942, %v943
      %v945 = vrot.slane %v944, 1
      %v946 = vmax.f32 %v944, %v945
      %vm947 = vcmask 1042432
      %v948 = vsel %vm947, %v935, -inf
      %v949 = vrot.slane %v948, 4
      %v950 = vmax.f32 %v948, %v949
      %v951 = vrot.slane %v950, 2
      %v952 = vmax.f32 %v950, %v951
      %v953 = vrot.slane %v952, 1
      %v954 = vmax.f32 %v952, %v953
      %v955 = vsel %vm947, %v924, -inf
      %v956 = vrot.slane %v955, 4
      %v957 = vmax.f32 %v955, %v956
      %v958 = vrot.slane %v957, 2
      %v959 = vmax.f32 %v957, %v958
      %v960 = vrot.slane %v959, 1
      %v961 = vmax.f32 %v959, %v960
      %vm962 = vcmask 337920
      %v963 = vsel %vm962, %v936, -inf
      %v964 = vrot.slane %v963, 4
      %v965 = vmax.f32 %v963, %v964
      %v966 = vrot.slane %v965, 2
      %v967 = vmax.f32 %v965, %v966
      %v968 = vrot.slane %v967, 1
      %v969 = vmax.f32 %v967, %v968
      %v971 = vlaneseq
      %v972 = vshrl.u32 %v971, 7
      %v973 = vsub.s32 0, %v972
      %v974 = vrot.slane %v866, %v973
      %v975 = vlaneseq
      %v976 = vshrl.u32 %v975, 7
      %v977 = vsub.s32 1, %v976
      %v978 = vrot.slane %v866, %v977
      %v979 = vlaneseq
      %v980 = vshrl.u32 %v979, 7
      %v981 = vsub.s32 2, %v980
      %v982 = vrot.slane %v866, %v981
      %983 = vrot.lane.b32.xlu0 %v974, 42
      %v984 = vpop.permute.xlu0 %983
      %985 = vrot.lane.b32.xlu0 %v978, 42
      %v986 = vpop.permute.xlu0 %985
      %987 = vrot.lane.b32.xlu0 %v982, 42
      %v988 = vpop.permute.xlu0 %987
      %vm989 = vcmask 343040
      %v990 = vsel %vm989, %v984, %v986
      %v991 = vsel %vm989, %v986, %v988
      %v996 = vmul.f32 %v946, %v984
      %v997 = vmul.f32 %v954, %v990
      %v998 = vmul.f32 %v961, %v991
      %v999 = vmul.f32 %v969, %v988
      %1004 = vrot.lane.b32.xlu0 %v996, 86
      %v1005 = vpop.permute.xlu0 %1004
      %1006 = vrot.lane.b32.xlu0 %v997, 86
      %v1007 = vpop.permute.xlu0 %1006
      %1008 = vrot.lane.b32.xlu0 %v998, 86
      %v1009 = vpop.permute.xlu0 %1008
      %1010 = vrot.lane.b32.xlu0 %v999, 86
      %v1011 = vpop.permute.xlu0 %1010
      %vm1012 = vcmask 703488
      %v1013 = vsel %vm1012, %v1005, %v1007
      %v1014 = vsel %vm1012, %v1007, %v1009
      %v1015 = vsel %vm1012, %v1009, %v1011
      %vm1019 = vcmask 1040384
      %v1020 = vsel %vm1019, %v1013, 0.0
      %v1021 = vsel %vm1019, %v1014, 0.0
      %v1022 = vadd.f32 %v1020, %v1021
      %v1023 = vsel %vm1019, %v1015, 0.0
      %v1024 = vadd.f32 %v1022, %v1023
      %1025 = vadd.xlane.f32.xlu0 %v1024
      %v1026 = vpop.xlane.xlu0 %1025
      %v1027 = vmul.f32 %v1026, 0.001953125
      %v1028 = vld [vmem:[%s3] sm:$0xff]
      %v1029 = vld [vmem:[%s3 + $0x8] sm:$0xff]
      %v1030 = vld [vmem:[%s4] sm:$0xff]
      %v1031 = vld [vmem:[%s4 + $0x8] sm:$0xff]
      %1033 = vset.pattern.permute.xlu0 0
      %1034 = vperm.xlu0 %1033, %v1030
      %v1035 = vpop.permute.xlu0 %1034
      %1038 = vset.pattern.permute.xlu0 0
      %1039 = vperm.xlu0 %1038, %v1031
      %v1040 = vpop.permute.xlu0 %1039
      %1050 = vrot.lane.b32.xlu0 %v925, 86
      %v1051 = vpop.permute.xlu0 %1050
      %1052 = vrot.lane.b32.xlu0 %v926, 86
      %v1053 = vpop.permute.xlu0 %1052
      %1054 = vrot.lane.b32.xlu0 %v927, 86
      %v1055 = vpop.permute.xlu0 %1054
      %1056 = vrot.lane.b32.xlu0 %v928, 86
      %v1057 = vpop.permute.xlu0 %1056
      %1058 = vrot.lane.b32.xlu0 %v929, 86
      %v1059 = vpop.permute.xlu0 %1058
      %1060 = vrot.lane.b32.xlu0 %v930, 86
      %v1061 = vpop.permute.xlu0 %1060
      %1062 = vrot.lane.b32.xlu0 %v931, 86
      %v1063 = vpop.permute.xlu0 %1062
      %1064 = vrot.lane.b32.xlu0 %v932, 86
      %v1065 = vpop.permute.xlu0 %1064
      %v1066 = vsel %vm1012, %v1051, %v1053
      %v1067 = vsel %vm1012, %v1053, %v1055
      %v1068 = vsel %vm1012, %v1055, %v1057
      %v1069 = vsel %vm1012, %v1059, %v1061
      %v1070 = vsel %vm1012, %v1061, %v1063
      %v1071 = vsel %vm1012, %v1063, %v1065
      %vm1075 = vcmask 72704
      %v1077 = vsel %vm1075, %v1028, 0
      %v1080 = vsel %vm1075, %v1029, 0
      %v1082 = vsel %vm1019, %v1069, 0
      %v1084 = vsel %vm1019, %v1070, 0
      %v1086 = vsel %vm1019, %v1071, 0
      %1088 = vmatprep.subr.mxu0 %v1067
      %1089 = vmatpush1.msra.mxu0 %v1066
      %1090 = vmatprep.subr.mxu0 %v1084
      %1091 = vmatpush1.msra.mxu0 %v1082
      %1092 = vmatprep.subr.mxu0 0.0
      %1093 = vmatpush1.msra.mxu0 0.0
      %1094 = vmatprep.subr.mxu0 0.0
      %1095 = vmatpush1.msra.mxu0 0.0
      %1096 = vmatprep.subr.mxu0 0.0
      %1097 = vmatpush1.msra.mxu0 0.0
      %1098 = vmatprep.subr.mxu0 0.0
      %1099 = vmatpush1.msra.mxu0 0.0
      %1100 = vmatprep.subr.mxu0 0.0
      %1101 = vmatpush1.msra.mxu0 0.0
      %1102 = vmatprep.subr.mxu0 0.0
      %1103 = vmatpush1.msra.mxu0 0.0
      %1104 = vmatprep.subr.mxu0 0.0
      %1105 = vmatpush1.msra.mxu0 0.0
      %1106 = vmatprep.subr.mxu0 0.0
      %1107 = vmatpush1.msra.mxu0 0.0
      %1108 = vmatprep.subr.mxu0 0.0
      %1109 = vmatpush1.msra.mxu0 0.0
      %1110 = vmatprep.subr.mxu0 0.0
      %1111 = vmatpush1.msra.mxu0 0.0
      %1112 = vmatprep.subr.mxu0 0.0
      %1113 = vmatpush1.msra.mxu0 0.0
      %1114 = vmatprep.subr.mxu0 0.0
      %1115 = vmatpush1.msra.mxu0 0.0
      %1116 = vmatprep.subr.mxu0 0.0
      %1117 = vmatpush1.msra.mxu0 0.0
      %1118 = vmatprep.subr.mxu0 0.0
      %1119 = vmatpush1.msra.mxu0 0.0
      %1120 = vmatprep.subr.mxu0 0.0
      %1121 = vmatpush1.msra.mxu0 0.0
      %1122 = vmatprep.subr.mxu0 0.0
      %1123 = vmatpush1.msra.mxu0 0.0
      %1124 = vmatprep.subr.mxu0 0.0
      %1125 = vmatpush1.msra.mxu0 0.0
      %1126 = vmatprep.subr.mxu0 0.0
      %1127 = vmatpush1.msra.mxu0 0.0
      %1128 = vmatprep.subr.mxu0 0.0
      %1129 = vmatpush1.msra.mxu0 0.0
      %1130 = vmatprep.subr.mxu0 0.0
      %1131 = vmatpush1.msra.mxu0 0.0
      %1132 = vmatprep.subr.mxu0 0.0
      %1133 = vmatpush1.msra.mxu0 0.0
      %1134 = vmatprep.subr.mxu0 0.0
      %1135 = vmatpush1.msra.mxu0 0.0
      %1136 = vmatprep.subr.mxu0 0.0
      %1137 = vmatpush1.msra.mxu0 0.0
      %1138 = vmatprep.subr.mxu0 0.0
      %1139 = vmatpush1.msra.mxu0 0.0
      %1140 = vmatprep.subr.mxu0 0.0
      %1141 = vmatpush1.msra.mxu0 0.0
      %1142 = vmatprep.subr.mxu0 0.0
      %1143 = vmatpush1.msra.mxu0 0.0
      %1144 = vmatprep.subr.mxu0 0.0
      %1145 = vmatpush1.msra.mxu0 0.0
      %1146 = vmatprep.subr.mxu0 0.0
      %1147 = vmatpush1.msra.mxu0 0.0
      %1148 = vmatprep.subr.mxu0 0.0
      %1149 = vmatpush1.msra.mxu0 0.0
      %1150 = vmatprep.subr.mxu0 0.0
      %1151 = vmatpush1.msra.mxu0 0.0
      %1152 = vmatprep.mubr.f32.mxu0 0.0
      %1153 = vmatmul.mubr.f32.gmra.mrb[0].mxu0 %v1077
      %v1154 = vpop.f32.mrb[0].mxu0
      %v1155 = vadd.f32 %v1035, %v1154
      %v1156 = vpop.f32.mrb[0].mxu0
      %v1157 = vadd.f32 %v1035, %v1156
      %1158 = vmatprep.mubr.f32.mxu0 0.0
      %1159 = vmatmul.mubr.f32.gmra.mrb[0].mxu0 %v1080
      %v1160 = vpop.f32.mrb[0].mxu0
      %v1161 = vadd.f32 %v1040, %v1160
      %v1162 = vpop.f32.mrb[0].mxu0
      %v1163 = vadd.f32 %v1040, %v1162
      %1164 = vdwg.mxu0
      %1165 = vmatprep.subr.mxu0 0.0
      %1166 = vmatpush1.msra.mxu0 %v1068
      %1167 = vmatprep.subr.mxu0 0.0
      %1168 = vmatpush1.msra.mxu0 %v1086
      %1169 = vmatprep.subr.mxu0 0.0
      %1170 = vmatpush1.msra.mxu0 0.0
      %1171 = vmatprep.subr.mxu0 0.0
      %1172 = vmatpush1.msra.mxu0 0.0
      %1173 = vmatprep.subr.mxu0 0.0
      %1174 = vmatpush1.msra.mxu0 0.0
      %1175 = vmatprep.subr.mxu0 0.0
      %1176 = vmatpush1.msra.mxu0 0.0
      %1177 = vmatprep.subr.mxu0 0.0
      %1178 = vmatpush1.msra.mxu0 0.0
      %1179 = vmatprep.subr.mxu0 0.0
      %1180 = vmatpush1.msra.mxu0 0.0
      %1181 = vmatprep.subr.mxu0 0.0
      %1182 = vmatpush1.msra.mxu0 0.0
      %1183 = vmatprep.subr.mxu0 0.0
      %1184 = vmatpush1.msra.mxu0 0.0
      %1185 = vmatprep.subr.mxu0 0.0
      %1186 = vmatpush1.msra.mxu0 0.0
      %1187 = vmatprep.subr.mxu0 0.0
      %1188 = vmatpush1.msra.mxu0 0.0
      %1189 = vmatprep.subr.mxu0 0.0
      %1190 = vmatpush1.msra.mxu0 0.0
      %1191 = vmatprep.subr.mxu0 0.0
      %1192 = vmatpush1.msra.mxu0 0.0
      %1193 = vmatprep.subr.mxu0 0.0
      %1194 = vmatpush1.msra.mxu0 0.0
      %1195 = vmatprep.subr.mxu0 0.0
      %1196 = vmatpush1.msra.mxu0 0.0
      %1197 = vmatprep.subr.mxu0 0.0
      %1198 = vmatpush1.msra.mxu0 0.0
      %1199 = vmatprep.subr.mxu0 0.0
      %1200 = vmatpush1.msra.mxu0 0.0
      %1201 = vmatprep.subr.mxu0 0.0
      %1202 = vmatpush1.msra.mxu0 0.0
      %1203 = vmatprep.subr.mxu0 0.0
      %1204 = vmatpush1.msra.mxu0 0.0
      %1205 = vmatprep.subr.mxu0 0.0
      %1206 = vmatpush1.msra.mxu0 0.0
      %1207 = vmatprep.subr.mxu0 0.0
      %1208 = vmatpush1.msra.mxu0 0.0
      %1209 = vmatprep.subr.mxu0 0.0
      %1210 = vmatpush1.msra.mxu0 0.0
      %1211 = vmatprep.subr.mxu0 0.0
      %1212 = vmatpush1.msra.mxu0 0.0
      %1213 = vmatprep.subr.mxu0 0.0
      %1214 = vmatpush1.msra.mxu0 0.0
      %1215 = vmatprep.subr.mxu0 0.0
      %1216 = vmatpush1.msra.mxu0 0.0
      %1217 = vmatprep.subr.mxu0 0.0
      %1218 = vmatpush1.msra.mxu0 0.0
      %1219 = vmatprep.subr.mxu0 0.0
      %1220 = vmatpush1.msra.mxu0 0.0
      %1221 = vmatprep.subr.mxu0 0.0
      %1222 = vmatpush1.msra.mxu0 0.0
      %1223 = vmatprep.subr.mxu0 0.0
      %1224 = vmatpush1.msra.mxu0 0.0
      %1225 = vmatprep.subr.mxu0 0.0
      %1226 = vmatpush1.msra.mxu0 0.0
      %1227 = vmatprep.subr.mxu0 0.0
      %1228 = vmatpush1.msra.mxu0 0.0
      %1229 = vmatprep.mubr.f32.mxu0 0.0
      %1230 = vmatmul.mubr.f32.gmra.mrb[0].mxu0 %v1077
      %v1231 = vpop.f32.mrb[0].mxu0
      %v1232 = vadd.f32 %v1035, %v1231
      %v1233 = vpop.f32.mrb[0].mxu0
      %1234 = vmatprep.mubr.f32.mxu0 0.0
      %1235 = vmatmul.mubr.f32.gmra.mrb[0].mxu0 %v1080
      %v1236 = vpop.f32.mrb[0].mxu0
      %v1237 = vadd.f32 %v1040, %v1236
      %v1238 = vpop.f32.mrb[0].mxu0
      %1239 = vdwg.mxu0
      %vm1240 = vcmp.ge.f32.partialorder %v1155, 0.0
      %vm1241 = vcmp.ge.f32.partialorder %v1157, 0.0
      %vm1242 = vcmp.ge.f32.partialorder %v1232, 0.0
      %vm1243 = vcmp.ge.f32.partialorder %v1161, 0.0
      %vm1244 = vcmp.ge.f32.partialorder %v1163, 0.0
      %vm1245 = vcmp.ge.f32.partialorder %v1237, 0.0
      %v1246 = vmul.f32 %v1155, 0.01
      %v1247 = vmul.f32 %v1157, 0.01
      %v1248 = vmul.f32 %v1232, 0.01
      %v1249 = vmul.f32 %v1161, 0.01
      %v1250 = vmul.f32 %v1163, 0.01
      %v1251 = vmul.f32 %v1237, 0.01
      %v1252 = vsel %vm1240, %v1155, %v1246
      %v1253 = vsel %vm1241, %v1157, %v1247
      %v1254 = vsel %vm1242, %v1232, %v1248
      %v1255 = vsel %vm1243, %v1161, %v1249
      %v1256 = vsel %vm1244, %v1163, %v1250
      %v1257 = vsel %vm1245, %v1237, %v1251
      %v1258 = vld [vmem:[%s5] sm:$0xff]
      %v1259 = vld [vmem:[%s5 + $0x8] sm:$0xff]
      %v1260 = vld [vmem:[%s6] sm:$0xff]
      %v1261 = vld [vmem:[%s6 + $0x8] sm:$0xff]
      %1263 = vset.pattern.permute.xlu0 0
      %1264 = vperm.xlu0 %1263, %v1260
      %v1265 = vpop.permute.xlu0 %1264
      %1268 = vset.pattern.permute.xlu0 0
      %1269 = vperm.xlu0 %1268, %v1261
      %v1270 = vpop.permute.xlu0 %1269
      %vm1272 = vcmask 130048
      %v1274 = vsel %vm1272, %v1258, 0
      %v1277 = vsel %vm1272, %v1259, 0
      %1279 = vmatprep.subr.mxu0 %v1253
      %1280 = vmatpush1.msra.mxu0 %v1252
      %1281 = vmatprep.subr.mxu0 %v1256
      %1282 = vmatpush1.msra.mxu0 %v1255
      %1283 = vmatprep.subr.mxu0 0.0
      %1284 = vmatpush1.msra.mxu0 0.0
      %1285 = vmatprep.subr.mxu0 0.0
      %1286 = vmatpush1.msra.mxu0 0.0
      %1287 = vmatprep.subr.mxu0 0.0
      %1288 = vmatpush1.msra.mxu0 0.0
      %1289 = vmatprep.subr.mxu0 0.0
      %1290 = vmatpush1.msra.mxu0 0.0
      %1291 = vmatprep.subr.mxu0 0.0
      %1292 = vmatpush1.msra.mxu0 0.0
      %1293 = vmatprep.subr.mxu0 0.0
      %1294 = vmatpush1.msra.mxu0 0.0
      %1295 = vmatprep.subr.mxu0 0.0
      %1296 = vmatpush1.msra.mxu0 0.0
      %1297 = vmatprep.subr.mxu0 0.0
      %1298 = vmatpush1.msra.mxu0 0.0
      %1299 = vmatprep.subr.mxu0 0.0
      %1300 = vmatpush1.msra.mxu0 0.0
      %1301 = vmatprep.subr.mxu0 0.0
      %1302 = vmatpush1.msra.mxu0 0.0
      %1303 = vmatprep.subr.mxu0 0.0
      %1304 = vmatpush1.msra.mxu0 0.0
      %1305 = vmatprep.subr.mxu0 0.0
      %1306 = vmatpush1.msra.mxu0 0.0
      %1307 = vmatprep.subr.mxu0 0.0
      %1308 = vmatpush1.msra.mxu0 0.0
      %1309 = vmatprep.subr.mxu0 0.0
      %1310 = vmatpush1.msra.mxu0 0.0
      %1311 = vmatprep.subr.mxu0 0.0
      %1312 = vmatpush1.msra.mxu0 0.0
      %1313 = vmatprep.subr.mxu0 0.0
      %1314 = vmatpush1.msra.mxu0 0.0
      %1315 = vmatprep.subr.mxu0 0.0
      %1316 = vmatpush1.msra.mxu0 0.0
      %1317 = vmatprep.subr.mxu0 0.0
      %1318 = vmatpush1.msra.mxu0 0.0
      %1319 = vmatprep.subr.mxu0 0.0
      %1320 = vmatpush1.msra.mxu0 0.0
      %1321 = vmatprep.subr.mxu0 0.0
      %1322 = vmatpush1.msra.mxu0 0.0
      %1323 = vmatprep.subr.mxu0 0.0
      %1324 = vmatpush1.msra.mxu0 0.0
      %1325 = vmatprep.subr.mxu0 0.0
      %1326 = vmatpush1.msra.mxu0 0.0
      %1327 = vmatprep.subr.mxu0 0.0
      %1328 = vmatpush1.msra.mxu0 0.0
      %1329 = vmatprep.subr.mxu0 0.0
      %1330 = vmatpush1.msra.mxu0 0.0
      %1331 = vmatprep.subr.mxu0 0.0
      %1332 = vmatpush1.msra.mxu0 0.0
      %1333 = vmatprep.subr.mxu0 0.0
      %1334 = vmatpush1.msra.mxu0 0.0
      %1335 = vmatprep.subr.mxu0 0.0
      %1336 = vmatpush1.msra.mxu0 0.0
      %1337 = vmatprep.subr.mxu0 0.0
      %1338 = vmatpush1.msra.mxu0 0.0
      %1339 = vmatprep.subr.mxu0 0.0
      %1340 = vmatpush1.msra.mxu0 0.0
      %1341 = vmatprep.subr.mxu0 0.0
      %1342 = vmatpush1.msra.mxu0 0.0
      %1343 = vmatprep.mubr.f32.mxu0 0.0
      %1344 = vmatmul.mubr.f32.gmra.mrb[0].mxu0 %v1274
      %v1345 = vpop.f32.mrb[0].mxu0
      %v1346 = vadd.f32 %v1265, %v1345
      %v1347 = vpop.f32.mrb[0].mxu0
      %v1348 = vadd.f32 %v1265, %v1347
      %1349 = vmatprep.mubr.f32.mxu0 0.0
      %1350 = vmatmul.mubr.f32.gmra.mrb[0].mxu0 %v1277
      %v1351 = vpop.f32.mrb[0].mxu0
      %v1352 = vadd.f32 %v1270, %v1351
      %v1353 = vpop.f32.mrb[0].mxu0
      %v1354 = vadd.f32 %v1270, %v1353
      %1355 = vdwg.mxu0
      %1356 = vmatprep.subr.mxu0 0.0
      %1357 = vmatpush1.msra.mxu0 %v1254
      %1358 = vmatprep.subr.mxu0 0.0
      %1359 = vmatpush1.msra.mxu0 %v1257
      %1360 = vmatprep.subr.mxu0 0.0
      %1361 = vmatpush1.msra.mxu0 0.0
      %1362 = vmatprep.subr.mxu0 0.0
      %1363 = vmatpush1.msra.mxu0 0.0
      %1364 = vmatprep.subr.mxu0 0.0
      %1365 = vmatpush1.msra.mxu0 0.0
      %1366 = vmatprep.subr.mxu0 0.0
      %1367 = vmatpush1.msra.mxu0 0.0
      %1368 = vmatprep.subr.mxu0 0.0
      %1369 = vmatpush1.msra.mxu0 0.0
      %1370 = vmatprep.subr.mxu0 0.0
      %1371 = vmatpush1.msra.mxu0 0.0
      %1372 = vmatprep.subr.mxu0 0.0
      %1373 = vmatpush1.msra.mxu0 0.0
      %1374 = vmatprep.subr.mxu0 0.0
      %1375 = vmatpush1.msra.mxu0 0.0
      %1376 = vmatprep.subr.mxu0 0.0
      %1377 = vmatpush1.msra.mxu0 0.0
      %1378 = vmatprep.subr.mxu0 0.0
      %1379 = vmatpush1.msra.mxu0 0.0
      %1380 = vmatprep.subr.mxu0 0.0
      %1381 = vmatpush1.msra.mxu0 0.0
      %1382 = vmatprep.subr.mxu0 0.0
      %1383 = vmatpush1.msra.mxu0 0.0
      %1384 = vmatprep.subr.mxu0 0.0
      %1385 = vmatpush1.msra.mxu0 0.0
      %1386 = vmatprep.subr.mxu0 0.0
      %1387 = vmatpush1.msra.mxu0 0.0
      %1388 = vmatprep.subr.mxu0 0.0
      %1389 = vmatpush1.msra.mxu0 0.0
      %1390 = vmatprep.subr.mxu0 0.0
      %1391 = vmatpush1.msra.mxu0 0.0
      %1392 = vmatprep.subr.mxu0 0.0
      %1393 = vmatpush1.msra.mxu0 0.0
      %1394 = vmatprep.subr.mxu0 0.0
      %1395 = vmatpush1.msra.mxu0 0.0
      %1396 = vmatprep.subr.mxu0 0.0
      %1397 = vmatpush1.msra.mxu0 0.0
      %1398 = vmatprep.subr.mxu0 0.0
      %1399 = vmatpush1.msra.mxu0 0.0
      %1400 = vmatprep.subr.mxu0 0.0
      %1401 = vmatpush1.msra.mxu0 0.0
      %1402 = vmatprep.subr.mxu0 0.0
      %1403 = vmatpush1.msra.mxu0 0.0
      %1404 = vmatprep.subr.mxu0 0.0
      %1405 = vmatpush1.msra.mxu0 0.0
      %1406 = vmatprep.subr.mxu0 0.0
      %1407 = vmatpush1.msra.mxu0 0.0
      %1408 = vmatprep.subr.mxu0 0.0
      %1409 = vmatpush1.msra.mxu0 0.0
      %1410 = vmatprep.subr.mxu0 0.0
      %1411 = vmatpush1.msra.mxu0 0.0
      %1412 = vmatprep.subr.mxu0 0.0
      %1413 = vmatpush1.msra.mxu0 0.0
      %1414 = vmatprep.subr.mxu0 0.0
      %1415 = vmatpush1.msra.mxu0 0.0
      %1416 = vmatprep.subr.mxu0 0.0
      %1417 = vmatpush1.msra.mxu0 0.0
      %1418 = vmatprep.subr.mxu0 0.0
      %1419 = vmatpush1.msra.mxu0 0.0
      %1420 = vmatprep.mubr.f32.mxu0 0.0
      %1421 = vmatmul.mubr.f32.gmra.mrb[0].mxu0 %v1274
      %v1422 = vpop.f32.mrb[0].mxu0
      %v1423 = vadd.f32 %v1265, %v1422
      %v1424 = vpop.f32.mrb[0].mxu0
      %1425 = vmatprep.mubr.f32.mxu0 0.0
      %1426 = vmatmul.mubr.f32.gmra.mrb[0].mxu0 %v1277
      %v1427 = vpop.f32.mrb[0].mxu0
      %v1428 = vadd.f32 %v1270, %v1427
      %v1429 = vpop.f32.mrb[0].mxu0
      %1430 = vdwg.mxu0
      %vm1431 = vcmp.ge.f32.partialorder %v1346, 0.0
      %vm1432 = vcmp.ge.f32.partialorder %v1348, 0.0
      %vm1433 = vcmp.ge.f32.partialorder %v1423, 0.0
      %vm1434 = vcmp.ge.f32.partialorder %v1352, 0.0
      %vm1435 = vcmp.ge.f32.partialorder %v1354, 0.0
      %vm1436 = vcmp.ge.f32.partialorder %v1428, 0.0
      %v1437 = vmul.f32 %v1346, 0.01
      %v1438 = vmul.f32 %v1348, 0.01
      %v1439 = vmul.f32 %v1423, 0.01
      %v1440 = vmul.f32 %v1352, 0.01
      %v1441 = vmul.f32 %v1354, 0.01
      %v1442 = vmul.f32 %v1428, 0.01
      %v1443 = vsel %vm1431, %v1346, %v1437
      %v1444 = vsel %vm1432, %v1348, %v1438
      %v1445 = vsel %vm1433, %v1423, %v1439
      %v1446 = vsel %vm1434, %v1352, %v1440
      %v1447 = vsel %vm1435, %v1354, %v1441
      %v1448 = vsel %vm1436, %v1428, %v1442
      %v1449 = vld [vmem:[%s7] sm:$0xff]
      %v1450 = vld [vmem:[%s7 + $0x8] sm:$0xff]
      %v1451 = vld [vmem:[%s8] sm:$0xff]
      %v1452 = vld [vmem:[%s8 + $0x8] sm:$0xff]
      %v1454 = vsel %vm1075, %v1451, 0
      %v1457 = vsel %vm1075, %v1452, 0
      %1459 = vmatprep.subr.mxu0 %v1067
      %1460 = vmatpush1.msra.mxu0 %v1066
      %1461 = vmatprep.subr.mxu0 %v1084
      %1462 = vmatpush1.msra.mxu0 %v1082
      %1463 = vmatprep.subr.mxu0 0.0
      %1464 = vmatpush1.msra.mxu0 0.0
      %1465 = vmatprep.subr.mxu0 0.0
      %1466 = vmatpush1.msra.mxu0 0.0
      %1467 = vmatprep.subr.mxu0 0.0
      %1468 = vmatpush1.msra.mxu0 0.0
      %1469 = vmatprep.subr.mxu0 0.0
      %1470 = vmatpush1.msra.mxu0 0.0
      %1471 = vmatprep.subr.mxu0 0.0
      %1472 = vmatpush1.msra.mxu0 0.0
      %1473 = vmatprep.subr.mxu0 0.0
      %1474 = vmatpush1.msra.mxu0 0.0
      %1475 = vmatprep.subr.mxu0 0.0
      %1476 = vmatpush1.msra.mxu0 0.0
      %1477 = vmatprep.subr.mxu0 0.0
      %1478 = vmatpush1.msra.mxu0 0.0
      %1479 = vmatprep.subr.mxu0 0.0
      %1480 = vmatpush1.msra.mxu0 0.0
      %1481 = vmatprep.subr.mxu0 0.0
      %1482 = vmatpush1.msra.mxu0 0.0
      %1483 = vmatprep.subr.mxu0 0.0
      %1484 = vmatpush1.msra.mxu0 0.0
      %1485 = vmatprep.subr.mxu0 0.0
      %1486 = vmatpush1.msra.mxu0 0.0
      %1487 = vmatprep.subr.mxu0 0.0
      %1488 = vmatpush1.msra.mxu0 0.0
      %1489 = vmatprep.subr.mxu0 0.0
      %1490 = vmatpush1.msra.mxu0 0.0
      %1491 = vmatprep.subr.mxu0 0.0
      %1492 = vmatpush1.msra.mxu0 0.0
      %1493 = vmatprep.subr.mxu0 0.0
      %1494 = vmatpush1.msra.mxu0 0.0
      %1495 = vmatprep.subr.mxu0 0.0
      %1496 = vmatpush1.msra.mxu0 0.0
      %1497 = vmatprep.subr.mxu0 0.0
      %1498 = vmatpush1.msra.mxu0 0.0
      %1499 = vmatprep.subr.mxu0 0.0
      %1500 = vmatpush1.msra.mxu0 0.0
      %1501 = vmatprep.subr.mxu0 0.0
      %1502 = vmatpush1.msra.mxu0 0.0
      %1503 = vmatprep.subr.mxu0 0.0
      %1504 = vmatpush1.msra.mxu0 0.0
      %1505 = vmatprep.subr.mxu0 0.0
      %1506 = vmatpush1.msra.mxu0 0.0
      %1507 = vmatprep.subr.mxu0 0.0
      %1508 = vmatpush1.msra.mxu0 0.0
      %1509 = vmatprep.subr.mxu0 0.0
      %1510 = vmatpush1.msra.mxu0 0.0
      %1511 = vmatprep.subr.mxu0 0.0
      %1512 = vmatpush1.msra.mxu0 0.0
      %1513 = vmatprep.subr.mxu0 0.0
      %1514 = vmatpush1.msra.mxu0 0.0
      %1515 = vmatprep.subr.mxu0 0.0
      %1516 = vmatpush1.msra.mxu0 0.0
      %1517 = vmatprep.subr.mxu0 0.0
      %1518 = vmatpush1.msra.mxu0 0.0
      %1519 = vmatprep.subr.mxu0 0.0
      %1520 = vmatpush1.msra.mxu0 0.0
      %1521 = vmatprep.subr.mxu0 0.0
      %1522 = vmatpush1.msra.mxu0 0.0
      %1523 = vmatprep.mubr.f32.mxu0 0.0
      %1524 = vmatmul.mubr.f32.gmra.mrb[0].mxu0 %v1454
      %v1525 = vpop.f32.mrb[0].mxu0
      %v1526 = vadd.f32 0.0, %v1525
      %v1527 = vpop.f32.mrb[0].mxu0
      %v1528 = vadd.f32 0.0, %v1527
      %1529 = vmatprep.mubr.f32.mxu0 0.0
      %1530 = vmatmul.mubr.f32.gmra.mrb[0].mxu0 %v1457
      %v1531 = vpop.f32.mrb[0].mxu0
      %v1532 = vadd.f32 0.0, %v1531
      %v1533 = vpop.f32.mrb[0].mxu0
      %v1534 = vadd.f32 0.0, %v1533
      %1535 = vdwg.mxu0
      %1536 = vmatprep.subr.mxu0 0.0
      %1537 = vmatpush1.msra.mxu0 %v1068
      %1538 = vmatprep.subr.mxu0 0.0
      %1539 = vmatpush1.msra.mxu0 %v1086
      %1540 = vmatprep.subr.mxu0 0.0
      %1541 = vmatpush1.msra.mxu0 0.0
      %1542 = vmatprep.subr.mxu0 0.0
      %1543 = vmatpush1.msra.mxu0 0.0
      %1544 = vmatprep.subr.mxu0 0.0
      %1545 = vmatpush1.msra.mxu0 0.0
      %1546 = vmatprep.subr.mxu0 0.0
      %1547 = vmatpush1.msra.mxu0 0.0
      %1548 = vmatprep.subr.mxu0 0.0
      %1549 = vmatpush1.msra.mxu0 0.0
      %1550 = vmatprep.subr.mxu0 0.0
      %1551 = vmatpush1.msra.mxu0 0.0
      %1552 = vmatprep.subr.mxu0 0.0
      %1553 = vmatpush1.msra.mxu0 0.0
      %1554 = vmatprep.subr.mxu0 0.0
      %1555 = vmatpush1.msra.mxu0 0.0
      %1556 = vmatprep.subr.mxu0 0.0
      %1557 = vmatpush1.msra.mxu0 0.0
      %1558 = vmatprep.subr.mxu0 0.0
      %1559 = vmatpush1.msra.mxu0 0.0
      %1560 = vmatprep.subr.mxu0 0.0
      %1561 = vmatpush1.msra.mxu0 0.0
      %1562 = vmatprep.subr.mxu0 0.0
      %1563 = vmatpush1.msra.mxu0 0.0
      %1564 = vmatprep.subr.mxu0 0.0
      %1565 = vmatpush1.msra.mxu0 0.0
      %1566 = vmatprep.subr.mxu0 0.0
      %1567 = vmatpush1.msra.mxu0 0.0
      %1568 = vmatprep.subr.mxu0 0.0
      %1569 = vmatpush1.msra.mxu0 0.0
      %1570 = vmatprep.subr.mxu0 0.0
      %1571 = vmatpush1.msra.mxu0 0.0
      %1572 = vmatprep.subr.mxu0 0.0
      %1573 = vmatpush1.msra.mxu0 0.0
      %1574 = vmatprep.subr.mxu0 0.0
      %1575 = vmatpush1.msra.mxu0 0.0
      %1576 = vmatprep.subr.mxu0 0.0
      %1577 = vmatpush1.msra.mxu0 0.0
      %1578 = vmatprep.subr.mxu0 0.0
      %1579 = vmatpush1.msra.mxu0 0.0
      %1580 = vmatprep.subr.mxu0 0.0
      %1581 = vmatpush1.msra.mxu0 0.0
      %1582 = vmatprep.subr.mxu0 0.0
      %1583 = vmatpush1.msra.mxu0 0.0
      %1584 = vmatprep.subr.mxu0 0.0
      %1585 = vmatpush1.msra.mxu0 0.0
      %1586 = vmatprep.subr.mxu0 0.0
      %1587 = vmatpush1.msra.mxu0 0.0
      %1588 = vmatprep.subr.mxu0 0.0
      %1589 = vmatpush1.msra.mxu0 0.0
      %1590 = vmatprep.subr.mxu0 0.0
      %1591 = vmatpush1.msra.mxu0 0.0
      %1592 = vmatprep.subr.mxu0 0.0
      %1593 = vmatpush1.msra.mxu0 0.0
      %1594 = vmatprep.subr.mxu0 0.0
      %1595 = vmatpush1.msra.mxu0 0.0
      %1596 = vmatprep.subr.mxu0 0.0
      %1597 = vmatpush1.msra.mxu0 0.0
      %1598 = vmatprep.subr.mxu0 0.0
      %1599 = vmatpush1.msra.mxu0 0.0
      %1600 = vmatprep.mubr.f32.mxu0 0.0
      %1601 = vmatmul.mubr.f32.gmra.mrb[0].mxu0 %v1454
      %v1602 = vpop.f32.mrb[0].mxu0
      %v1603 = vadd.f32 0.0, %v1602
      %v1604 = vpop.f32.mrb[0].mxu0
      %1605 = vmatprep.mubr.f32.mxu0 0.0
      %1606 = vmatmul.mubr.f32.gmra.mrb[0].mxu0 %v1457
      %v1607 = vpop.f32.mrb[0].mxu0
      %v1608 = vadd.f32 0.0, %v1607
      %v1609 = vpop.f32.mrb[0].mxu0
      %1610 = vdwg.mxu0
      %v1612 = vsel %vm1272, %v1449, 0
      %v1615 = vsel %vm1272, %v1450, 0
      %1617 = vmatprep.subr.mxu0 %v1444
      %1618 = vmatpush1.msra.mxu0 %v1443
      %1619 = vmatprep.subr.mxu0 %v1447
      %1620 = vmatpush1.msra.mxu0 %v1446
      %1621 = vmatprep.subr.mxu0 0.0
      %1622 = vmatpush1.msra.mxu0 0.0
      %1623 = vmatprep.subr.mxu0 0.0
      %1624 = vmatpush1.msra.mxu0 0.0
      %1625 = vmatprep.subr.mxu0 0.0
      %1626 = vmatpush1.msra.mxu0 0.0
      %1627 = vmatprep.subr.mxu0 0.0
      %1628 = vmatpush1.msra.mxu0 0.0
      %1629 = vmatprep.subr.mxu0 0.0
      %1630 = vmatpush1.msra.mxu0 0.0
      %1631 = vmatprep.subr.mxu0 0.0
      %1632 = vmatpush1.msra.mxu0 0.0
      %1633 = vmatprep.subr.mxu0 0.0
      %1634 = vmatpush1.msra.mxu0 0.0
      %1635 = vmatprep.subr.mxu0 0.0
      %1636 = vmatpush1.msra.mxu0 0.0
      %1637 = vmatprep.subr.mxu0 0.0
      %1638 = vmatpush1.msra.mxu0 0.0
      %1639 = vmatprep.subr.mxu0 0.0
      %1640 = vmatpush1.msra.mxu0 0.0
      %1641 = vmatprep.subr.mxu0 0.0
      %1642 = vmatpush1.msra.mxu0 0.0
      %1643 = vmatprep.subr.mxu0 0.0
      %1644 = vmatpush1.msra.mxu0 0.0
      %1645 = vmatprep.subr.mxu0 0.0
      %1646 = vmatpush1.msra.mxu0 0.0
      %1647 = vmatprep.subr.mxu0 0.0
      %1648 = vmatpush1.msra.mxu0 0.0
      %1649 = vmatprep.subr.mxu0 0.0
      %1650 = vmatpush1.msra.mxu0 0.0
      %1651 = vmatprep.subr.mxu0 0.0
      %1652 = vmatpush1.msra.mxu0 0.0
      %1653 = vmatprep.subr.mxu0 0.0
      %1654 = vmatpush1.msra.mxu0 0.0
      %1655 = vmatprep.subr.mxu0 0.0
      %1656 = vmatpush1.msra.mxu0 0.0
      %1657 = vmatprep.subr.mxu0 0.0
      %1658 = vmatpush1.msra.mxu0 0.0
      %1659 = vmatprep.subr.mxu0 0.0
      %1660 = vmatpush1.msra.mxu0 0.0
      %1661 = vmatprep.subr.mxu0 0.0
      %1662 = vmatpush1.msra.mxu0 0.0
      %1663 = vmatprep.subr.mxu0 0.0
      %1664 = vmatpush1.msra.mxu0 0.0
      %1665 = vmatprep.subr.mxu0 0.0
      %1666 = vmatpush1.msra.mxu0 0.0
      %1667 = vmatprep.subr.mxu0 0.0
      %1668 = vmatpush1.msra.mxu0 0.0
      %1669 = vmatprep.subr.mxu0 0.0
      %1670 = vmatpush1.msra.mxu0 0.0
      %1671 = vmatprep.subr.mxu0 0.0
      %1672 = vmatpush1.msra.mxu0 0.0
      %1673 = vmatprep.subr.mxu0 0.0
      %1674 = vmatpush1.msra.mxu0 0.0
      %1675 = vmatprep.subr.mxu0 0.0
      %1676 = vmatpush1.msra.mxu0 0.0
      %1677 = vmatprep.subr.mxu0 0.0
      %1678 = vmatpush1.msra.mxu0 0.0
      %1679 = vmatprep.subr.mxu0 0.0
      %1680 = vmatpush1.msra.mxu0 0.0
      %1681 = vmatprep.mubr.f32.mxu0 0.0
      %1682 = vmatmul.mubr.f32.gmra.mrb[0].mxu0 %v1612
      %v1683 = vpop.f32.mrb[0].mxu0
      %v1684 = vadd.f32 %v1526, %v1683
      %v1685 = vpop.f32.mrb[0].mxu0
      %v1686 = vadd.f32 %v1528, %v1685
      %1687 = vmatprep.mubr.f32.mxu0 0.0
      %1688 = vmatmul.mubr.f32.gmra.mrb[0].mxu0 %v1615
      %v1689 = vpop.f32.mrb[0].mxu0
      %v1690 = vadd.f32 %v1532, %v1689
      %v1691 = vpop.f32.mrb[0].mxu0
      %v1692 = vadd.f32 %v1534, %v1691
      %1693 = vdwg.mxu0
      %1694 = vmatprep.subr.mxu0 0.0
      %1695 = vmatpush1.msra.mxu0 %v1445
      %1696 = vmatprep.subr.mxu0 0.0
      %1697 = vmatpush1.msra.mxu0 %v1448
      %1698 = vmatprep.subr.mxu0 0.0
      %1699 = vmatpush1.msra.mxu0 0.0
      %1700 = vmatprep.subr.mxu0 0.0
      %1701 = vmatpush1.msra.mxu0 0.0
      %1702 = vmatprep.subr.mxu0 0.0
      %1703 = vmatpush1.msra.mxu0 0.0
      %1704 = vmatprep.subr.mxu0 0.0
      %1705 = vmatpush1.msra.mxu0 0.0
      %1706 = vmatprep.subr.mxu0 0.0
      %1707 = vmatpush1.msra.mxu0 0.0
      %1708 = vmatprep.subr.mxu0 0.0
      %1709 = vmatpush1.msra.mxu0 0.0
      %1710 = vmatprep.subr.mxu0 0.0
      %1711 = vmatpush1.msra.mxu0 0.0
      %1712 = vmatprep.subr.mxu0 0.0
      %1713 = vmatpush1.msra.mxu0 0.0
      %1714 = vmatprep.subr.mxu0 0.0
      %1715 = vmatpush1.msra.mxu0 0.0
      %1716 = vmatprep.subr.mxu0 0.0
      %1717 = vmatpush1.msra.mxu0 0.0
      %1718 = vmatprep.subr.mxu0 0.0
      %1719 = vmatpush1.msra.mxu0 0.0
      %1720 = vmatprep.subr.mxu0 0.0
      %1721 = vmatpush1.msra.mxu0 0.0
      %1722 = vmatprep.subr.mxu0 0.0
      %1723 = vmatpush1.msra.mxu0 0.0
      %1724 = vmatprep.subr.mxu0 0.0
      %1725 = vmatpush1.msra.mxu0 0.0
      %1726 = vmatprep.subr.mxu0 0.0
      %1727 = vmatpush1.msra.mxu0 0.0
      %1728 = vmatprep.subr.mxu0 0.0
      %1729 = vmatpush1.msra.mxu0 0.0
      %1730 = vmatprep.subr.mxu0 0.0
      %1731 = vmatpush1.msra.mxu0 0.0
      %1732 = vmatprep.subr.mxu0 0.0
      %1733 = vmatpush1.msra.mxu0 0.0
      %1734 = vmatprep.subr.mxu0 0.0
      %1735 = vmatpush1.msra.mxu0 0.0
      %1736 = vmatprep.subr.mxu0 0.0
      %1737 = vmatpush1.msra.mxu0 0.0
      %1738 = vmatprep.subr.mxu0 0.0
      %1739 = vmatpush1.msra.mxu0 0.0
      %1740 = vmatprep.subr.mxu0 0.0
      %1741 = vmatpush1.msra.mxu0 0.0
      %1742 = vmatprep.subr.mxu0 0.0
      %1743 = vmatpush1.msra.mxu0 0.0
      %1744 = vmatprep.subr.mxu0 0.0
      %1745 = vmatpush1.msra.mxu0 0.0
      %1746 = vmatprep.subr.mxu0 0.0
      %1747 = vmatpush1.msra.mxu0 0.0
      %1748 = vmatprep.subr.mxu0 0.0
      %1749 = vmatpush1.msra.mxu0 0.0
      %1750 = vmatprep.subr.mxu0 0.0
      %1751 = vmatpush1.msra.mxu0 0.0
      %1752 = vmatprep.subr.mxu0 0.0
      %1753 = vmatpush1.msra.mxu0 0.0
      %1754 = vmatprep.subr.mxu0 0.0
      %1755 = vmatpush1.msra.mxu0 0.0
      %1756 = vmatprep.subr.mxu0 0.0
      %1757 = vmatpush1.msra.mxu0 0.0
      %1758 = vmatprep.mubr.f32.mxu0 0.0
      %1759 = vmatmul.mubr.f32.gmra.mrb[0].mxu0 %v1612
      %v1760 = vpop.f32.mrb[0].mxu0
      %v1761 = vadd.f32 %v1603, %v1760
      %v1762 = vpop.f32.mrb[0].mxu0
      %1763 = vmatprep.mubr.f32.mxu0 0.0
      %1764 = vmatmul.mubr.f32.gmra.mrb[0].mxu0 %v1615
      %v1765 = vpop.f32.mrb[0].mxu0
      %v1766 = vadd.f32 %v1608, %v1765
      %v1767 = vpop.f32.mrb[0].mxu0
      %1768 = vdwg.mxu0
      %v1769 = vld [vmem:[%s9] sm:$0xff]
      %v1770 = vld [vmem:[%s9 + $0x8] sm:$0xff]
      %1772 = vset.pattern.permute.xlu0 0
      %1773 = vperm.xlu0 %1772, %v1769
      %v1774 = vpop.permute.xlu0 %1773
      %1777 = vset.pattern.permute.xlu0 0
      %1778 = vperm.xlu0 %1777, %v1770
      %v1779 = vpop.permute.xlu0 %1778
      %v1781 = vadd.f32 %v1684, %v1774
      %v1782 = vadd.f32 %v1686, %v1774
      %v1783 = vadd.f32 %v1761, %v1774
      %v1784 = vadd.f32 %v1690, %v1779
      %v1785 = vadd.f32 %v1692, %v1779
      %v1786 = vadd.f32 %v1766, %v1779
      %vm1787 = vcmp.ge.f32.partialorder %v1781, 0.0
      %vm1788 = vcmp.ge.f32.partialorder %v1782, 0.0
      %vm1789 = vcmp.ge.f32.partialorder %v1783, 0.0
      %vm1790 = vcmp.ge.f32.partialorder %v1784, 0.0
      %vm1791 = vcmp.ge.f32.partialorder %v1785, 0.0
      %vm1792 = vcmp.ge.f32.partialorder %v1786, 0.0
      %v1793 = vmul.f32 %v1781, 0.01
      %v1794 = vmul.f32 %v1782, 0.01
      %v1795 = vmul.f32 %v1783, 0.01
      %v1796 = vmul.f32 %v1784, 0.01
      %v1797 = vmul.f32 %v1785, 0.01
      %v1798 = vmul.f32 %v1786, 0.01
      %v1799 = vsel %vm1787, %v1781, %v1793
      %v1800 = vsel %vm1788, %v1782, %v1794
      %v1801 = vsel %vm1789, %v1783, %v1795
      %v1802 = vsel %vm1790, %v1784, %v1796
      %v1803 = vsel %vm1791, %v1785, %v1797
      %v1804 = vsel %vm1792, %v1786, %v1798
      %v1805 = vld [vmem:[%s10] sm:$0xff]
      %v1806 = vld [vmem:[%s10 + $0x8] sm:$0xff]
      %v1807 = vld [vmem:[%s11] sm:$0xff]
      %v1808 = vld [vmem:[%s11 + $0x8] sm:$0xff]
      %1810 = vset.pattern.permute.xlu0 0
      %1811 = vperm.xlu0 %1810, %v1807
      %v1812 = vpop.permute.xlu0 %1811
      %1815 = vset.pattern.permute.xlu0 0
      %1816 = vperm.xlu0 %1815, %v1808
      %v1817 = vpop.permute.xlu0 %1816
      %v1820 = vsel %vm1272, %v1805, 0
      %v1823 = vsel %vm1272, %v1806, 0
      %1825 = vmatprep.subr.mxu0 %v1800
      %1826 = vmatpush1.msra.mxu0 %v1799
      %1827 = vmatprep.subr.mxu0 %v1803
      %1828 = vmatpush1.msra.mxu0 %v1802
      %1829 = vmatprep.subr.mxu0 0.0
      %1830 = vmatpush1.msra.mxu0 0.0
      %1831 = vmatprep.subr.mxu0 0.0
      %1832 = vmatpush1.msra.mxu0 0.0
      %1833 = vmatprep.subr.mxu0 0.0
      %1834 = vmatpush1.msra.mxu0 0.0
      %1835 = vmatprep.subr.mxu0 0.0
      %1836 = vmatpush1.msra.mxu0 0.0
      %1837 = vmatprep.subr.mxu0 0.0
      %1838 = vmatpush1.msra.mxu0 0.0
      %1839 = vmatprep.subr.mxu0 0.0
      %1840 = vmatpush1.msra.mxu0 0.0
      %1841 = vmatprep.subr.mxu0 0.0
      %1842 = vmatpush1.msra.mxu0 0.0
      %1843 = vmatprep.subr.mxu0 0.0
      %1844 = vmatpush1.msra.mxu0 0.0
      %1845 = vmatprep.subr.mxu0 0.0
      %1846 = vmatpush1.msra.mxu0 0.0
      %1847 = vmatprep.subr.mxu0 0.0
      %1848 = vmatpush1.msra.mxu0 0.0
      %1849 = vmatprep.subr.mxu0 0.0
      %1850 = vmatpush1.msra.mxu0 0.0
      %1851 = vmatprep.subr.mxu0 0.0
      %1852 = vmatpush1.msra.mxu0 0.0
      %1853 = vmatprep.subr.mxu0 0.0
      %1854 = vmatpush1.msra.mxu0 0.0
      %1855 = vmatprep.subr.mxu0 0.0
      %1856 = vmatpush1.msra.mxu0 0.0
      %1857 = vmatprep.subr.mxu0 0.0
      %1858 = vmatpush1.msra.mxu0 0.0
      %1859 = vmatprep.subr.mxu0 0.0
      %1860 = vmatpush1.msra.mxu0 0.0
      %1861 = vmatprep.subr.mxu0 0.0
      %1862 = vmatpush1.msra.mxu0 0.0
      %1863 = vmatprep.subr.mxu0 0.0
      %1864 = vmatpush1.msra.mxu0 0.0
      %1865 = vmatprep.subr.mxu0 0.0
      %1866 = vmatpush1.msra.mxu0 0.0
      %1867 = vmatprep.subr.mxu0 0.0
      %1868 = vmatpush1.msra.mxu0 0.0
      %1869 = vmatprep.subr.mxu0 0.0
      %1870 = vmatpush1.msra.mxu0 0.0
      %1871 = vmatprep.subr.mxu0 0.0
      %1872 = vmatpush1.msra.mxu0 0.0
      %1873 = vmatprep.subr.mxu0 0.0
      %1874 = vmatpush1.msra.mxu0 0.0
      %1875 = vmatprep.subr.mxu0 0.0
      %1876 = vmatpush1.msra.mxu0 0.0
      %1877 = vmatprep.subr.mxu0 0.0
      %1878 = vmatpush1.msra.mxu0 0.0
      %1879 = vmatprep.subr.mxu0 0.0
      %1880 = vmatpush1.msra.mxu0 0.0
      %1881 = vmatprep.subr.mxu0 0.0
      %1882 = vmatpush1.msra.mxu0 0.0
      %1883 = vmatprep.subr.mxu0 0.0
      %1884 = vmatpush1.msra.mxu0 0.0
      %1885 = vmatprep.subr.mxu0 0.0
      %1886 = vmatpush1.msra.mxu0 0.0
      %1887 = vmatprep.subr.mxu0 0.0
      %1888 = vmatpush1.msra.mxu0 0.0
      %1889 = vmatprep.mubr.f32.mxu0 0.0
      %1890 = vmatmul.mubr.f32.gmra.mrb[0].mxu0 %v1820
      %v1891 = vpop.f32.mrb[0].mxu0
      %v1892 = vadd.f32 %v1812, %v1891
      %v1893 = vpop.f32.mrb[0].mxu0
      %v1894 = vadd.f32 %v1812, %v1893
      %1895 = vmatprep.mubr.f32.mxu0 0.0
      %1896 = vmatmul.mubr.f32.gmra.mrb[0].mxu0 %v1823
      %v1897 = vpop.f32.mrb[0].mxu0
      %v1898 = vadd.f32 %v1817, %v1897
      %v1899 = vpop.f32.mrb[0].mxu0
      %v1900 = vadd.f32 %v1817, %v1899
      %1901 = vdwg.mxu0
      %1902 = vmatprep.subr.mxu0 0.0
      %1903 = vmatpush1.msra.mxu0 %v1801
      %1904 = vmatprep.subr.mxu0 0.0
      %1905 = vmatpush1.msra.mxu0 %v1804
      %1906 = vmatprep.subr.mxu0 0.0
      %1907 = vmatpush1.msra.mxu0 0.0
      %1908 = vmatprep.subr.mxu0 0.0
      %1909 = vmatpush1.msra.mxu0 0.0
      %1910 = vmatprep.subr.mxu0 0.0
      %1911 = vmatpush1.msra.mxu0 0.0
      %1912 = vmatprep.subr.mxu0 0.0
      %1913 = vmatpush1.msra.mxu0 0.0
      %1914 = vmatprep.subr.mxu0 0.0
      %1915 = vmatpush1.msra.mxu0 0.0
      %1916 = vmatprep.subr.mxu0 0.0
      %1917 = vmatpush1.msra.mxu0 0.0
      %1918 = vmatprep.subr.mxu0 0.0
      %1919 = vmatpush1.msra.mxu0 0.0
      %1920 = vmatprep.subr.mxu0 0.0
      %1921 = vmatpush1.msra.mxu0 0.0
      %1922 = vmatprep.subr.mxu0 0.0
      %1923 = vmatpush1.msra.mxu0 0.0
      %1924 = vmatprep.subr.mxu0 0.0
      %1925 = vmatpush1.msra.mxu0 0.0
      %1926 = vmatprep.subr.mxu0 0.0
      %1927 = vmatpush1.msra.mxu0 0.0
      %1928 = vmatprep.subr.mxu0 0.0
      %1929 = vmatpush1.msra.mxu0 0.0
      %1930 = vmatprep.subr.mxu0 0.0
      %1931 = vmatpush1.msra.mxu0 0.0
      %1932 = vmatprep.subr.mxu0 0.0
      %1933 = vmatpush1.msra.mxu0 0.0
      %1934 = vmatprep.subr.mxu0 0.0
      %1935 = vmatpush1.msra.mxu0 0.0
      %1936 = vmatprep.subr.mxu0 0.0
      %1937 = vmatpush1.msra.mxu0 0.0
      %1938 = vmatprep.subr.mxu0 0.0
      %1939 = vmatpush1.msra.mxu0 0.0
      %1940 = vmatprep.subr.mxu0 0.0
      %1941 = vmatpush1.msra.mxu0 0.0
      %1942 = vmatprep.subr.mxu0 0.0
      %1943 = vmatpush1.msra.mxu0 0.0
      %1944 = vmatprep.subr.mxu0 0.0
      %1945 = vmatpush1.msra.mxu0 0.0
      %1946 = vmatprep.subr.mxu0 0.0
      %1947 = vmatpush1.msra.mxu0 0.0
      %1948 = vmatprep.subr.mxu0 0.0
      %1949 = vmatpush1.msra.mxu0 0.0
      %1950 = vmatprep.subr.mxu0 0.0
      %1951 = vmatpush1.msra.mxu0 0.0
      %1952 = vmatprep.subr.mxu0 0.0
      %1953 = vmatpush1.msra.mxu0 0.0
      %1954 = vmatprep.subr.mxu0 0.0
      %1955 = vmatpush1.msra.mxu0 0.0
      %1956 = vmatprep.subr.mxu0 0.0
      %1957 = vmatpush1.msra.mxu0 0.0
      %1958 = vmatprep.subr.mxu0 0.0
      %1959 = vmatpush1.msra.mxu0 0.0
      %1960 = vmatprep.subr.mxu0 0.0
      %1961 = vmatpush1.msra.mxu0 0.0
      %1962 = vmatprep.subr.mxu0 0.0
      %1963 = vmatpush1.msra.mxu0 0.0
      %1964 = vmatprep.subr.mxu0 0.0
      %1965 = vmatpush1.msra.mxu0 0.0
      %1966 = vmatprep.mubr.f32.mxu0 0.0
      %1967 = vmatmul.mubr.f32.gmra.mrb[0].mxu0 %v1820
      %v1968 = vpop.f32.mrb[0].mxu0
      %v1969 = vadd.f32 %v1812, %v1968
      %v1970 = vpop.f32.mrb[0].mxu0
      %1971 = vmatprep.mubr.f32.mxu0 0.0
      %1972 = vmatmul.mubr.f32.gmra.mrb[0].mxu0 %v1823
      %v1973 = vpop.f32.mrb[0].mxu0
      %v1974 = vadd.f32 %v1817, %v1973
      %v1975 = vpop.f32.mrb[0].mxu0
      %1976 = vdwg.mxu0
      %vm1977 = vcmp.ge.f32.partialorder %v1892, 0.0
      %vm1978 = vcmp.ge.f32.partialorder %v1894, 0.0
      %vm1979 = vcmp.ge.f32.partialorder %v1969, 0.0
      %vm1980 = vcmp.ge.f32.partialorder %v1898, 0.0
      %vm1981 = vcmp.ge.f32.partialorder %v1900, 0.0
      %vm1982 = vcmp.ge.f32.partialorder %v1974, 0.0
      %v1983 = vmul.f32 %v1892, 0.01
      %v1984 = vmul.f32 %v1894, 0.01
      %v1985 = vmul.f32 %v1969, 0.01
      %v1986 = vmul.f32 %v1898, 0.01
      %v1987 = vmul.f32 %v1900, 0.01
      %v1988 = vmul.f32 %v1974, 0.01
      %v1989 = vsel %vm1977, %v1892, %v1983
      %v1990 = vsel %vm1978, %v1894, %v1984
      %v1991 = vsel %vm1979, %v1969, %v1985
      %v1992 = vsel %vm1980, %v1898, %v1986
      %v1993 = vsel %vm1981, %v1900, %v1987
      %v1994 = vsel %vm1982, %v1974, %v1988
      %v1995 = vld [vmem:[%s12] sm:$0x7f]
      %v1996 = vld [vmem:[%s13] sm:$0x7f]
      %1998 = vset.pattern.permute.xlu0 0
      %1999 = vperm.xlu0 %1998, %v1996
      %v2000 = vpop.permute.xlu0 %1999
      %v2003 = vsel %vm1272, %v1995, 0
      %2005 = vmatprep.subr.mxu0 %v1990
      %2006 = vmatpush1.msra.mxu0 %v1989
      %2007 = vmatprep.subr.mxu0 %v1993
      %2008 = vmatpush1.msra.mxu0 %v1992
      %2009 = vmatprep.subr.mxu0 0.0
      %2010 = vmatpush1.msra.mxu0 0.0
      %2011 = vmatprep.subr.mxu0 0.0
      %2012 = vmatpush1.msra.mxu0 0.0
      %2013 = vmatprep.subr.mxu0 0.0
      %2014 = vmatpush1.msra.mxu0 0.0
      %2015 = vmatprep.subr.mxu0 0.0
      %2016 = vmatpush1.msra.mxu0 0.0
      %2017 = vmatprep.subr.mxu0 0.0
      %2018 = vmatpush1.msra.mxu0 0.0
      %2019 = vmatprep.subr.mxu0 0.0
      %2020 = vmatpush1.msra.mxu0 0.0
      %2021 = vmatprep.subr.mxu0 0.0
      %2022 = vmatpush1.msra.mxu0 0.0
      %2023 = vmatprep.subr.mxu0 0.0
      %2024 = vmatpush1.msra.mxu0 0.0
      %2025 = vmatprep.subr.mxu0 0.0
      %2026 = vmatpush1.msra.mxu0 0.0
      %2027 = vmatprep.subr.mxu0 0.0
      %2028 = vmatpush1.msra.mxu0 0.0
      %2029 = vmatprep.subr.mxu0 0.0
      %2030 = vmatpush1.msra.mxu0 0.0
      %2031 = vmatprep.subr.mxu0 0.0
      %2032 = vmatpush1.msra.mxu0 0.0
      %2033 = vmatprep.subr.mxu0 0.0
      %2034 = vmatpush1.msra.mxu0 0.0
      %2035 = vmatprep.subr.mxu0 0.0
      %2036 = vmatpush1.msra.mxu0 0.0
      %2037 = vmatprep.subr.mxu0 0.0
      %2038 = vmatpush1.msra.mxu0 0.0
      %2039 = vmatprep.subr.mxu0 0.0
      %2040 = vmatpush1.msra.mxu0 0.0
      %2041 = vmatprep.subr.mxu0 0.0
      %2042 = vmatpush1.msra.mxu0 0.0
      %2043 = vmatprep.subr.mxu0 0.0
      %2044 = vmatpush1.msra.mxu0 0.0
      %2045 = vmatprep.subr.mxu0 0.0
      %2046 = vmatpush1.msra.mxu0 0.0
      %2047 = vmatprep.subr.mxu0 0.0
      %2048 = vmatpush1.msra.mxu0 0.0
      %2049 = vmatprep.subr.mxu0 0.0
      %2050 = vmatpush1.msra.mxu0 0.0
      %2051 = vmatprep.subr.mxu0 0.0
      %2052 = vmatpush1.msra.mxu0 0.0
      %2053 = vmatprep.subr.mxu0 0.0
      %2054 = vmatpush1.msra.mxu0 0.0
      %2055 = vmatprep.subr.mxu0 0.0
      %2056 = vmatpush1.msra.mxu0 0.0
      %2057 = vmatprep.subr.mxu0 0.0
      %2058 = vmatpush1.msra.mxu0 0.0
      %2059 = vmatprep.subr.mxu0 0.0
      %2060 = vmatpush1.msra.mxu0 0.0
      %2061 = vmatprep.subr.mxu0 0.0
      %2062 = vmatpush1.msra.mxu0 0.0
      %2063 = vmatprep.subr.mxu0 0.0
      %2064 = vmatpush1.msra.mxu0 0.0
      %2065 = vmatprep.subr.mxu0 0.0
      %2066 = vmatpush1.msra.mxu0 0.0
      %2067 = vmatprep.subr.mxu0 0.0
      %2068 = vmatpush1.msra.mxu0 0.0
      %2069 = vmatprep.mubr.f32.mxu0 0.0
      %2070 = vmatmul.mubr.f32.gmra.mrb[0].mxu0 %v2003
      %v2071 = vpop.f32.mrb[0].mxu0
      %v2072 = vadd.f32 %v2000, %v2071
      %v2073 = vpop.f32.mrb[0].mxu0
      %v2074 = vadd.f32 %v2000, %v2073
      %2075 = vdwg.mxu0
      %2076 = vmatprep.subr.mxu0 0.0
      %2077 = vmatpush1.msra.mxu0 %v1991
      %2078 = vmatprep.subr.mxu0 0.0
      %2079 = vmatpush1.msra.mxu0 %v1994
      %2080 = vmatprep.subr.mxu0 0.0
      %2081 = vmatpush1.msra.mxu0 0.0
      %2082 = vmatprep.subr.mxu0 0.0
      %2083 = vmatpush1.msra.mxu0 0.0
      %2084 = vmatprep.subr.mxu0 0.0
      %2085 = vmatpush1.msra.mxu0 0.0
      %2086 = vmatprep.subr.mxu0 0.0
      %2087 = vmatpush1.msra.mxu0 0.0
      %2088 = vmatprep.subr.mxu0 0.0
      %2089 = vmatpush1.msra.mxu0 0.0
      %2090 = vmatprep.subr.mxu0 0.0
      %2091 = vmatpush1.msra.mxu0 0.0
      %2092 = vmatprep.subr.mxu0 0.0
      %2093 = vmatpush1.msra.mxu0 0.0
      %2094 = vmatprep.subr.mxu0 0.0
      %2095 = vmatpush1.msra.mxu0 0.0
      %2096 = vmatprep.subr.mxu0 0.0
      %2097 = vmatpush1.msra.mxu0 0.0
      %2098 = vmatprep.subr.mxu0 0.0
      %2099 = vmatpush1.msra.mxu0 0.0
      %2100 = vmatprep.subr.mxu0 0.0
      %2101 = vmatpush1.msra.mxu0 0.0
      %2102 = vmatprep.subr.mxu0 0.0
      %2103 = vmatpush1.msra.mxu0 0.0
      %2104 = vmatprep.subr.mxu0 0.0
      %2105 = vmatpush1.msra.mxu0 0.0
      %2106 = vmatprep.subr.mxu0 0.0
      %2107 = vmatpush1.msra.mxu0 0.0
      %2108 = vmatprep.subr.mxu0 0.0
      %2109 = vmatpush1.msra.mxu0 0.0
      %2110 = vmatprep.subr.mxu0 0.0
      %2111 = vmatpush1.msra.mxu0 0.0
      %2112 = vmatprep.subr.mxu0 0.0
      %2113 = vmatpush1.msra.mxu0 0.0
      %2114 = vmatprep.subr.mxu0 0.0
      %2115 = vmatpush1.msra.mxu0 0.0
      %2116 = vmatprep.subr.mxu0 0.0
      %2117 = vmatpush1.msra.mxu0 0.0
      %2118 = vmatprep.subr.mxu0 0.0
      %2119 = vmatpush1.msra.mxu0 0.0
      %2120 = vmatprep.subr.mxu0 0.0
      %2121 = vmatpush1.msra.mxu0 0.0
      %2122 = vmatprep.subr.mxu0 0.0
      %2123 = vmatpush1.msra.mxu0 0.0
      %2124 = vmatprep.subr.mxu0 0.0
      %2125 = vmatpush1.msra.mxu0 0.0
      %2126 = vmatprep.subr.mxu0 0.0
      %2127 = vmatpush1.msra.mxu0 0.0
      %2128 = vmatprep.subr.mxu0 0.0
      %2129 = vmatpush1.msra.mxu0 0.0
      %2130 = vmatprep.subr.mxu0 0.0
      %2131 = vmatpush1.msra.mxu0 0.0
      %2132 = vmatprep.subr.mxu0 0.0
      %2133 = vmatpush1.msra.mxu0 0.0
      %2134 = vmatprep.subr.mxu0 0.0
      %2135 = vmatpush1.msra.mxu0 0.0
      %2136 = vmatprep.subr.mxu0 0.0
      %2137 = vmatpush1.msra.mxu0 0.0
      %2138 = vmatprep.subr.mxu0 0.0
      %2139 = vmatpush1.msra.mxu0 0.0
      %2140 = vmatprep.mubr.f32.mxu0 0.0
      %2141 = vmatmul.mubr.f32.gmra.mrb[0].mxu0 %v2003
      %v2142 = vpop.f32.mrb[0].mxu0
      %v2143 = vadd.f32 %v2000, %v2142
      %v2144 = vpop.f32.mrb[0].mxu0
      %2145 = vdwg.mxu0
      %vm2146 = vcmp.ge.f32.partialorder %v2072, 0.0
      %vm2147 = vcmp.ge.f32.partialorder %v2074, 0.0
      %vm2148 = vcmp.ge.f32.partialorder %v2143, 0.0
      %v2149 = vmul.f32 %v2072, 0.01
      %v2150 = vmul.f32 %v2074, 0.01
      %v2151 = vmul.f32 %v2143, 0.01
      %v2152 = vsel %vm2146, %v2072, %v2149
      %v2153 = vsel %vm2147, %v2074, %v2150
      %v2154 = vsel %vm2148, %v2143, %v2151
      %v2155 = vmul.f32 %v946, %v946
      %v2156 = vmul.f32 %v954, %v954
      %v2157 = vmul.f32 %v961, %v961
      %v2158 = vmul.f32 %v969, %v969
      %v2159 = vsub.f32 %v946, %v2155
      %v2160 = vsub.f32 %v954, %v2156
      %v2161 = vsub.f32 %v961, %v2157
      %v2162 = vsub.f32 %v969, %v2158
      %2167 = vrot.lane.b32.xlu0 %v2159, 86
      %v2168 = vpop.permute.xlu0 %2167
      %2169 = vrot.lane.b32.xlu0 %v2160, 86
      %v2170 = vpop.permute.xlu0 %2169
      %2171 = vrot.lane.b32.xlu0 %v2161, 86
      %v2172 = vpop.permute.xlu0 %2171
      %2173 = vrot.lane.b32.xlu0 %v2162, 86
      %v2174 = vpop.permute.xlu0 %2173
      %v2175 = vsel %vm1012, %v2168, %v2170
      %v2176 = vsel %vm1012, %v2170, %v2172
      %v2177 = vsel %vm1012, %v2172, %v2174
      %v2181 = vmul.f32 %v2152, %v2175
      %v2182 = vmul.f32 %v2153, %v2176
      %v2183 = vmul.f32 %v2154, %v2177
      %2187 = vrot.lane.b32.xlu0 %v2181, 42
      %v2188 = vpop.permute.xlu0 %2187
      %2189 = vrot.lane.b32.xlu0 %v2182, 42
      %v2190 = vpop.permute.xlu0 %2189
      %2191 = vrot.lane.b32.xlu0 %v2183, 42
      %v2192 = vpop.permute.xlu0 %2191
      %v2193 = vsel %vm989, %v2188, %v2190
      %v2194 = vsel %vm989, %v2190, %v2192
      %v2199 = vadd.f32 %v946, %v2188
      %v2200 = vadd.f32 %v954, %v2193
      %v2201 = vadd.f32 %v961, %v2194
      %v2202 = vadd.f32 %v969, %v2192
      %v2203 = vmul.f32 %v2199, %v2199
      %v2204 = vmul.f32 %v2200, %v2200
      %v2205 = vmul.f32 %v2201, %v2201
      %v2206 = vmul.f32 %v2202, %v2202
      %v2207 = vsub.f32 %v2199, %v2203
      %v2208 = vsub.f32 %v2200, %v2204
      %v2209 = vsub.f32 %v2201, %v2205
      %v2210 = vsub.f32 %v2202, %v2206
      %v2215 = vrot.slane %v2207, 7
      %v2216 = vrot.slane %v2208, 7
      %v2217 = vrot.slane %v2209, 7
      %v2218 = vrot.slane %v2210, 7
      %2219 = vrot.lane.b32.xlu0 %v2215, 86
      %v2220 = vpop.permute.xlu0 %2219
      %2221 = vrot.lane.b32.xlu0 %v2216, 86
      %v2222 = vpop.permute.xlu0 %2221
      %2223 = vrot.lane.b32.xlu0 %v2217, 86
      %v2224 = vpop.permute.xlu0 %2223
      %2225 = vrot.lane.b32.xlu0 %v2218, 86
      %v2226 = vpop.permute.xlu0 %2225
      %v2227 = vsel %vm1012, %v2220, %v2222
      %v2228 = vsel %vm1012, %v2222, %v2224
      %v2229 = vsel %vm1012, %v2224, %v2226
      %v2233 = vmul.f32 %v2152, %v2227
      %v2234 = vmul.f32 %v2153, %v2228
      %v2235 = vmul.f32 %v2154, %v2229
      %v2239 = vrot.slane %v2233, 1
      %v2240 = vrot.slane %v2234, 1
      %v2241 = vrot.slane %v2235, 1
      %2242 = vrot.lane.b32.xlu0 %v2239, 42
      %v2243 = vpop.permute.xlu0 %2242
      %2244 = vrot.lane.b32.xlu0 %v2240, 42
      %v2245 = vpop.permute.xlu0 %2244
      %2246 = vrot.lane.b32.xlu0 %v2241, 42
      %v2247 = vpop.permute.xlu0 %2246
      %v2248 = vsel %vm989, %v2243, %v2245
      %v2249 = vsel %vm989, %v2245, %v2247
      %v2254 = vadd.f32 %v2199, %v2243
      %v2255 = vadd.f32 %v2200, %v2248
      %v2256 = vadd.f32 %v2201, %v2249
      %v2257 = vadd.f32 %v2202, %v2247
      %v2258 = vmul.f32 %v2254, %v2254
      %v2259 = vmul.f32 %v2255, %v2255
      %v2260 = vmul.f32 %v2256, %v2256
      %v2261 = vmul.f32 %v2257, %v2257
      %v2262 = vsub.f32 %v2254, %v2258
      %v2263 = vsub.f32 %v2255, %v2259
      %v2264 = vsub.f32 %v2256, %v2260
      %v2265 = vsub.f32 %v2257, %v2261
      %v2270 = vrot.slane %v2262, 6
      %v2271 = vrot.slane %v2263, 6
      %v2272 = vrot.slane %v2264, 6
      %v2273 = vrot.slane %v2265, 6
      %2274 = vrot.lane.b32.xlu0 %v2270, 86
      %v2275 = vpop.permute.xlu0 %2274
      %2276 = vrot.lane.b32.xlu0 %v2271, 86
      %v2277 = vpop.permute.xlu0 %2276
      %2278 = vrot.lane.b32.xlu0 %v2272, 86
      %v2279 = vpop.permute.xlu0 %2278
      %2280 = vrot.lane.b32.xlu0 %v2273, 86
      %v2281 = vpop.permute.xlu0 %2280
      %v2282 = vsel %vm1012, %v2275, %v2277
      %v2283 = vsel %vm1012, %v2277, %v2279
      %v2284 = vsel %vm1012, %v2279, %v2281
      %v2288 = vmul.f32 %v2152, %v2282
      %v2289 = vmul.f32 %v2153, %v2283
      %v2290 = vmul.f32 %v2154, %v2284
      %v2294 = vrot.slane %v2288, 2
      %v2295 = vrot.slane %v2289, 2
      %v2296 = vrot.slane %v2290, 2
      %2297 = vrot.lane.b32.xlu0 %v2294, 42
      %v2298 = vpop.permute.xlu0 %2297
      %2299 = vrot.lane.b32.xlu0 %v2295, 42
      %v2300 = vpop.permute.xlu0 %2299
      %2301 = vrot.lane.b32.xlu0 %v2296, 42
      %v2302 = vpop.permute.xlu0 %2301
      %v2303 = vsel %vm989, %v2298, %v2300
      %v2304 = vsel %vm989, %v2300, %v2302
      %v2309 = vadd.f32 %v2254, %v2298
      %v2310 = vadd.f32 %v2255, %v2303
      %v2311 = vadd.f32 %v2256, %v2304
      %v2312 = vadd.f32 %v2257, %v2302
      %v2313 = vmul.f32 %v2309, %v2309
      %v2314 = vmul.f32 %v2310, %v2310
      %v2315 = vmul.f32 %v2311, %v2311
      %v2316 = vmul.f32 %v2312, %v2312
      %v2317 = vsub.f32 %v2309, %v2313
      %v2318 = vsub.f32 %v2310, %v2314
      %v2319 = vsub.f32 %v2311, %v2315
      %v2320 = vsub.f32 %v2312, %v2316
      %v2325 = vrot.slane %v2317, 5
      %v2326 = vrot.slane %v2318, 5
      %v2327 = vrot.slane %v2319, 5
      %v2328 = vrot.slane %v2320, 5
      %2329 = vrot.lane.b32.xlu0 %v2325, 86
      %v2330 = vpop.permute.xlu0 %2329
      %2331 = vrot.lane.b32.xlu0 %v2326, 86
      %v2332 = vpop.permute.xlu0 %2331
      %2333 = vrot.lane.b32.xlu0 %v2327, 86
      %v2334 = vpop.permute.xlu0 %2333
      %2335 = vrot.lane.b32.xlu0 %v2328, 86
      %v2336 = vpop.permute.xlu0 %2335
      %v2337 = vsel %vm1012, %v2330, %v2332
      %v2338 = vsel %vm1012, %v2332, %v2334
      %v2339 = vsel %vm1012, %v2334, %v2336
      %v2343 = vmul.f32 %v2152, %v2337
      %v2344 = vmul.f32 %v2153, %v2338
      %v2345 = vmul.f32 %v2154, %v2339
      %v2349 = vrot.slane %v2343, 3
      %v2350 = vrot.slane %v2344, 3
      %v2351 = vrot.slane %v2345, 3
      %2352 = vrot.lane.b32.xlu0 %v2349, 42
      %v2353 = vpop.permute.xlu0 %2352
      %2354 = vrot.lane.b32.xlu0 %v2350, 42
      %v2355 = vpop.permute.xlu0 %2354
      %2356 = vrot.lane.b32.xlu0 %v2351, 42
      %v2357 = vpop.permute.xlu0 %2356
      %v2358 = vsel %vm989, %v2353, %v2355
      %v2359 = vsel %vm989, %v2355, %v2357
      %v2364 = vadd.f32 %v2309, %v2353
      %v2365 = vadd.f32 %v2310, %v2358
      %v2366 = vadd.f32 %v2311, %v2359
      %v2367 = vadd.f32 %v2312, %v2357
      %v2368 = vmul.f32 %v2364, %v2364
      %v2369 = vmul.f32 %v2365, %v2365
      %v2370 = vmul.f32 %v2366, %v2366
      %v2371 = vmul.f32 %v2367, %v2367
      %v2372 = vsub.f32 %v2364, %v2368
      %v2373 = vsub.f32 %v2365, %v2369
      %v2374 = vsub.f32 %v2366, %v2370
      %v2375 = vsub.f32 %v2367, %v2371
      %v2380 = vrot.slane %v2372, 4
      %v2381 = vrot.slane %v2373, 4
      %v2382 = vrot.slane %v2374, 4
      %v2383 = vrot.slane %v2375, 4
      %2384 = vrot.lane.b32.xlu0 %v2380, 86
      %v2385 = vpop.permute.xlu0 %2384
      %2386 = vrot.lane.b32.xlu0 %v2381, 86
      %v2387 = vpop.permute.xlu0 %2386
      %2388 = vrot.lane.b32.xlu0 %v2382, 86
      %v2389 = vpop.permute.xlu0 %2388
      %2390 = vrot.lane.b32.xlu0 %v2383, 86
      %v2391 = vpop.permute.xlu0 %2390
      %v2392 = vsel %vm1012, %v2385, %v2387
      %v2393 = vsel %vm1012, %v2387, %v2389
      %v2394 = vsel %vm1012, %v2389, %v2391
      %v2398 = vmul.f32 %v2152, %v2392
      %v2399 = vmul.f32 %v2153, %v2393
      %v2400 = vmul.f32 %v2154, %v2394
      %v2404 = vrot.slane %v2398, 4
      %v2405 = vrot.slane %v2399, 4
      %v2406 = vrot.slane %v2400, 4
      %2407 = vrot.lane.b32.xlu0 %v2404, 42
      %v2408 = vpop.permute.xlu0 %2407
      %2409 = vrot.lane.b32.xlu0 %v2405, 42
      %v2410 = vpop.permute.xlu0 %2409
      %2411 = vrot.lane.b32.xlu0 %v2406, 42
      %v2412 = vpop.permute.xlu0 %2411
      %v2413 = vsel %vm989, %v2408, %v2410
      %v2414 = vsel %vm989, %v2410, %v2412
      %v2419 = vadd.f32 %v2364, %v2408
      %v2420 = vadd.f32 %v2365, %v2413
      %v2421 = vadd.f32 %v2366, %v2414
      %v2422 = vadd.f32 %v2367, %v2412
      %v2423 = vmul.f32 %v2419, %v2419
      %v2424 = vmul.f32 %v2420, %v2420
      %v2425 = vmul.f32 %v2421, %v2421
      %v2426 = vmul.f32 %v2422, %v2422
      %v2427 = vsub.f32 %v2419, %v2423
      %v2428 = vsub.f32 %v2420, %v2424
      %v2429 = vsub.f32 %v2421, %v2425
      %v2430 = vsub.f32 %v2422, %v2426
      %v2435 = vrot.slane %v2427, 3
      %v2436 = vrot.slane %v2428, 3
      %v2437 = vrot.slane %v2429, 3
      %v2438 = vrot.slane %v2430, 3
      %2439 = vrot.lane.b32.xlu0 %v2435, 86
      %v2440 = vpop.permute.xlu0 %2439
      %2441 = vrot.lane.b32.xlu0 %v2436, 86
      %v2442 = vpop.permute.xlu0 %2441
      %2443 = vrot.lane.b32.xlu0 %v2437, 86
      %v2444 = vpop.permute.xlu0 %2443
      %2445 = vrot.lane.b32.xlu0 %v2438, 86
      %v2446 = vpop.permute.xlu0 %2445
      %v2447 = vsel %vm1012, %v2440, %v2442
      %v2448 = vsel %vm1012, %v2442, %v2444
      %v2449 = vsel %vm1012, %v2444, %v2446
      %v2453 = vmul.f32 %v2152, %v2447
      %v2454 = vmul.f32 %v2153, %v2448
      %v2455 = vmul.f32 %v2154, %v2449
      %v2459 = vrot.slane %v2453, 5
      %v2460 = vrot.slane %v2454, 5
      %v2461 = vrot.slane %v2455, 5
      %2462 = vrot.lane.b32.xlu0 %v2459, 42
      %v2463 = vpop.permute.xlu0 %2462
      %2464 = vrot.lane.b32.xlu0 %v2460, 42
      %v2465 = vpop.permute.xlu0 %2464
      %2466 = vrot.lane.b32.xlu0 %v2461, 42
      %v2467 = vpop.permute.xlu0 %2466
      %v2468 = vsel %vm989, %v2463, %v2465
      %v2469 = vsel %vm989, %v2465, %v2467
      %v2474 = vadd.f32 %v2419, %v2463
      %v2475 = vadd.f32 %v2420, %v2468
      %v2476 = vadd.f32 %v2421, %v2469
      %v2477 = vadd.f32 %v2422, %v2467
      %v2478 = vmul.f32 %v2474, %v2474
      %v2479 = vmul.f32 %v2475, %v2475
      %v2480 = vmul.f32 %v2476, %v2476
      %v2481 = vmul.f32 %v2477, %v2477
      %v2482 = vsub.f32 %v2474, %v2478
      %v2483 = vsub.f32 %v2475, %v2479
      %v2484 = vsub.f32 %v2476, %v2480
      %v2485 = vsub.f32 %v2477, %v2481
      %v2490 = vrot.slane %v2482, 2
      %v2491 = vrot.slane %v2483, 2
      %v2492 = vrot.slane %v2484, 2
      %v2493 = vrot.slane %v2485, 2
      %2494 = vrot.lane.b32.xlu0 %v2490, 86
      %v2495 = vpop.permute.xlu0 %2494
      %2496 = vrot.lane.b32.xlu0 %v2491, 86
      %v2497 = vpop.permute.xlu0 %2496
      %2498 = vrot.lane.b32.xlu0 %v2492, 86
      %v2499 = vpop.permute.xlu0 %2498
      %2500 = vrot.lane.b32.xlu0 %v2493, 86
      %v2501 = vpop.permute.xlu0 %2500
      %v2502 = vsel %vm1012, %v2495, %v2497
      %v2503 = vsel %vm1012, %v2497, %v2499
      %v2504 = vsel %vm1012, %v2499, %v2501
      %v2508 = vmul.f32 %v2152, %v2502
      %v2509 = vmul.f32 %v2153, %v2503
      %v2510 = vmul.f32 %v2154, %v2504
      %v2514 = vrot.slane %v2508, 6
      %v2515 = vrot.slane %v2509, 6
      %v2516 = vrot.slane %v2510, 6
      %2517 = vrot.lane.b32.xlu0 %v2514, 42
      %v2518 = vpop.permute.xlu0 %2517
      %2519 = vrot.lane.b32.xlu0 %v2515, 42
      %v2520 = vpop.permute.xlu0 %2519
      %2521 = vrot.lane.b32.xlu0 %v2516, 42
      %v2522 = vpop.permute.xlu0 %2521
      %v2523 = vsel %vm989, %v2518, %v2520
      %v2524 = vsel %vm989, %v2520, %v2522
      %v2529 = vadd.f32 %v2474, %v2518
      %v2530 = vadd.f32 %v2475, %v2523
      %v2531 = vadd.f32 %v2476, %v2524
      %v2532 = vadd.f32 %v2477, %v2522
      %v2533 = vmul.f32 %v2529, %v984
      %v2534 = vmul.f32 %v2530, %v990
      %v2535 = vmul.f32 %v2531, %v991
      %v2536 = vmul.f32 %v2532, %v988
      %v2537 = vlaneseq
      %v2538 = vshrl.u32 %v2537, 7
      %v2539 = vsub.s32 0, %v2538
      %v2540 = vrot.slane %v1027, %v2539
      %v2541 = vsub.f32 %v923, %v2540
      %v2542 = vsub.f32 %v924, %v2540
      %v2546 = vcombine.low %v974, %v978
      %2547 = vrot.lane.b32.xlu0 %v2546, 42
      %v2548 = vpop.permute.xlu0 %2547
      %v2549 = vrot.slane %v2548, 4
      %v2550 = vrot.slane %v988, 4
      %v2551 = vsel %vm989, %v2549, %v2548
      %vm2552 = vcmask 1043456
      %v2553 = vsel %vm2552, %v2549, %v2550
      %v2554 = vsel %vm989, %v2553, %v988
      %v2557 = vmul.f32 %v2541, %v2551
      %v2558 = vmul.f32 %v2542, %v2554
      %v2561 = vcombine.high %v2557, %v2557
      %v2562 = vcombine.high %v2558, %v2558
      %2565 = vst.msk [vmem:[#allocation2] sm:$0x7] %vm939, %v2557
      %2566 = vst [vmem:[#allocation2 + $0x8] sm:$0x7] %v2561
      %2567 = vst [vmem:[#allocation2 + $0x10] sm:$0x7] %v2558
      %2568 = vst.msk [vmem:[#allocation2 + $0x18] sm:$0x7] %vm962, %v2562
      %v2569 = vmul.f32 %v1027, %v974
      %v2570 = vmul.f32 %v1027, %v978
      %v2571 = vmul.f32 %v1027, %v982
      %v2575 = vcombine.low %v2569, %v2570
      %v2577 = vunpack.c.l.s4 1966171168
      %v2578 = vunpack.c.0.s8 %v2577
      %v2579 = vlaneseq
      %v2580 = vshrl.u32 %v2579, 7
      %v2581 = vsub.s32 %v2578, %v2580
      %v2582 = vrot.slane %v2575, %v2581
      %v2584 = vunpack.c.l.s4 1966171168
      %v2585 = vunpack.c.0.s8 %v2584
      %v2586 = vlaneseq
      %v2587 = vshrl.u32 %v2586, 7
      %v2588 = vsub.s32 %v2585, %v2587
      %v2589 = vrot.slane %v2571, %v2588
      %v2590 = vcombine.low %v2582, %v2589
      %v2592 = vunpack.c.l.s4 1966171168
      %v2593 = vunpack.c.0.s8 %v2592
      %v2594 = vlaneseq
      %v2595 = vshrl.u32 %v2594, 7
      %v2596 = vsub.s32 %v2593, %v2595
      %v2597 = vrot.slane %v2590, %v2596
      %2598 = vrot.lane.b32.xlu0 %v2597, 42
      %v2599 = vpop.permute.xlu0 %2598
      %v2600 = vrot.slane %v2599, 7
      %v2601 = vsel %vm989, %v2600, %v2599
      %v2603 = vlaneseq
      %vm2604 = vcmp.ge.s32.totalorder %v2603, 42
      %vm2605 = vcmp.lt.s32.totalorder %v2603, 426
      %vm2606 = vmand %vm2604, %vm2605
      %s2607 = scalar_lea.vmem [#allocation2], 3
      %2608 = vst.msk [vmem:[%s2607] ss:$8 sm:$0xf] %vm2606, %v2601
      %2609 = vst.msk [vmem:[%s2607] ss:$8 sm:$0x0] %vm2606, %v2601
      %2610 = vst.msk [vmem:[#allocation4 + $0x40] sm:$0x7] %vm939, %v923
      %2611 = vst [vmem:[#allocation4 + $0x48] sm:$0x7] %v935
      %2612 = vst [vmem:[#allocation4 + $0x50] sm:$0x7] %v924
      %2613 = vst.msk [vmem:[#allocation4 + $0x58] sm:$0x7] %vm962, %v936
      %v2618 = vcombine.low %v2533, %v2534
      %v2619 = vcombine.low %v2535, %v2536
      %v2621 = vunpack.c.l.s4 1966171168
      %v2622 = vunpack.c.0.s8 %v2621
      %v2623 = vlaneseq
      %v2624 = vshrl.u32 %v2623, 7
      %v2625 = vsub.s32 %v2622, %v2624
      %v2626 = vrot.slane %v2618, %v2625
      %v2628 = vunpack.c.l.s4 1966171168
      %v2629 = vunpack.c.0.s8 %v2628
      %v2630 = vlaneseq
      %v2631 = vshrl.u32 %v2630, 7
      %v2632 = vsub.s32 %v2629, %v2631
      %v2633 = vrot.slane %v2619, %v2632
      %v2634 = vcombine.low %v2626, %v2633
      %v2636 = vunpack.c.l.s4 1966171168
      %v2637 = vunpack.c.0.s8 %v2636
      %v2638 = vlaneseq
      %v2639 = vshrl.u32 %v2638, 7
      %v2640 = vsub.s32 %v2637, %v2639
      %v2641 = vrot.slane %v2634, %v2640
      %s2643 = scalar_lea.vmem [#allocation4], 67
      %2644 = vst.msk [vmem:[%s2643] ss:$8 sm:$0xf] %vm2606, %v2641
      %2645 = vst.msk [vmem:[%s2643] ss:$8 sm:$0x0] %vm2606, %v2641
      %v2646 = vld [vmem:[#allocation2] sm:$0xff]
      %v2647 = vld [vmem:[#allocation2 + $0x8] sm:$0xff]
      %v2648 = vld [vmem:[#allocation2 + $0x10] sm:$0xff]
      %v2649 = vld [vmem:[#allocation2 + $0x18] sm:$0xff]
      %2654 = vrot.lane.b32.xlu0 %v2646, 127
      %v2655 = vpop.permute.xlu0 %2654
      %2656 = vrot.lane.b32.xlu0 %v2647, 127
      %v2657 = vpop.permute.xlu0 %2656
      %2658 = vrot.lane.b32.xlu0 %v2648, 127
      %v2659 = vpop.permute.xlu0 %2658
      %2660 = vrot.lane.b32.xlu0 %v2649, 127
      %v2661 = vpop.permute.xlu0 %2660
      %vm2662 = vcmask 1039360
      %v2663 = vsel %vm2662, %v2655, %v2657
      %v2664 = vsel %vm2662, %v2657, %v2659
      %v2665 = vsel %vm2662, %v2659, %v2661
      %2666 = vrot.lane.b32.xlu0 %v2646, 126
      %v2667 = vpop.permute.xlu0 %2666
      %2668 = vrot.lane.b32.xlu0 %v2647, 126
      %v2669 = vpop.permute.xlu0 %2668
      %2670 = vrot.lane.b32.xlu0 %v2648, 126
      %v2671 = vpop.permute.xlu0 %2670
      %2672 = vrot.lane.b32.xlu0 %v2649, 126
      %v2673 = vpop.permute.xlu0 %2672
      %vm2674 = vcmask 1031168
      %v2675 = vsel %vm2674, %v2667, %v2669
      %v2676 = vsel %vm2674, %v2669, %v2671
      %v2677 = vsel %vm2674, %v2671, %v2673
      %2678 = vrot.lane.b32.xlu0 %v2646, 108
      %v2679 = vpop.permute.xlu0 %2678
      %2680 = vrot.lane.b32.xlu0 %v2647, 108
      %v2681 = vpop.permute.xlu0 %2680
      %2682 = vrot.lane.b32.xlu0 %v2648, 108
      %v2683 = vpop.permute.xlu0 %2682
      %2684 = vrot.lane.b32.xlu0 %v2649, 108
      %v2685 = vpop.permute.xlu0 %2684
      %vm2686 = vcmask 883712
      %v2687 = vsel %vm2686, %v2679, %v2681
      %v2688 = vsel %vm2686, %v2681, %v2683
      %v2689 = vsel %vm2686, %v2683, %v2685
      %2690 = vrot.lane.b32.xlu0 %v2646, 107
      %v2691 = vpop.permute.xlu0 %2690
      %2692 = vrot.lane.b32.xlu0 %v2647, 107
      %v2693 = vpop.permute.xlu0 %2692
      %2694 = vrot.lane.b32.xlu0 %v2648, 107
      %v2695 = vpop.permute.xlu0 %2694
      %2696 = vrot.lane.b32.xlu0 %v2649, 107
      %v2697 = vpop.permute.xlu0 %2696
      %vm2698 = vcmask 875520
      %v2699 = vsel %vm2698, %v2691, %v2693
      %v2700 = vsel %vm2698, %v2693, %v2695
      %v2701 = vsel %vm2698, %v2695, %v2697
      %2702 = vrot.lane.b32.xlu0 %v2646, 106
      %v2703 = vpop.permute.xlu0 %2702
      %2704 = vrot.lane.b32.xlu0 %v2647, 106
      %v2705 = vpop.permute.xlu0 %2704
      %2706 = vrot.lane.b32.xlu0 %v2648, 106
      %v2707 = vpop.permute.xlu0 %2706
      %2708 = vrot.lane.b32.xlu0 %v2649, 106
      %v2709 = vpop.permute.xlu0 %2708
      %vm2710 = vcmask 867328
      %v2711 = vsel %vm2710, %v2703, %v2705
      %v2712 = vsel %vm2710, %v2705, %v2707
      %v2713 = vsel %vm2710, %v2707, %v2709
      %2714 = vrot.lane.b32.xlu0 %v2646, 88
      %v2715 = vpop.permute.xlu0 %2714
      %2716 = vrot.lane.b32.xlu0 %v2647, 88
      %v2717 = vpop.permute.xlu0 %2716
      %2718 = vrot.lane.b32.xlu0 %v2648, 88
      %v2719 = vpop.permute.xlu0 %2718
      %2720 = vrot.lane.b32.xlu0 %v2649, 88
      %v2721 = vpop.permute.xlu0 %2720
      %vm2722 = vcmask 719872
      %v2723 = vsel %vm2722, %v2715, %v2717
      %v2724 = vsel %vm2722, %v2717, %v2719
      %v2725 = vsel %vm2722, %v2719, %v2721
      %2726 = vrot.lane.b32.xlu0 %v2646, 87
      %v2727 = vpop.permute.xlu0 %2726
      %2728 = vrot.lane.b32.xlu0 %v2647, 87
      %v2729 = vpop.permute.xlu0 %2728
      %2730 = vrot.lane.b32.xlu0 %v2648, 87
      %v2731 = vpop.permute.xlu0 %2730
      %2732 = vrot.lane.b32.xlu0 %v2649, 87
      %v2733 = vpop.permute.xlu0 %2732
      %vm2734 = vcmask 711680
      %v2735 = vsel %vm2734, %v2727, %v2729
      %v2736 = vsel %vm2734, %v2729, %v2731
      %v2737 = vsel %vm2734, %v2731, %v2733
      %2738 = vrot.lane.b32.xlu0 %v2646, 86
      %v2739 = vpop.permute.xlu0 %2738
      %2740 = vrot.lane.b32.xlu0 %v2647, 86
      %v2741 = vpop.permute.xlu0 %2740
      %2742 = vrot.lane.b32.xlu0 %v2648, 86
      %v2743 = vpop.permute.xlu0 %2742
      %2744 = vrot.lane.b32.xlu0 %v2649, 86
      %v2745 = vpop.permute.xlu0 %2744
      %v2746 = vsel %vm1012, %v2739, %v2741
      %v2747 = vsel %vm1012, %v2741, %v2743
      %v2748 = vsel %vm1012, %v2743, %v2745
      %v2749 = vld [vmem:[%s14] sm:$0xff]
      %v2750 = vld [vmem:[%s14 + $0x8] sm:$0xff]
      %v2751 = vld [vmem:[%s15] sm:$0xff]
      %v2752 = vld [vmem:[%s15 + $0x8] sm:$0xff]
      %2754 = vset.pattern.permute.xlu0 0
      %2755 = vperm.xlu0 %2754, %v2751
      %v2756 = vpop.permute.xlu0 %2755
      %2759 = vset.pattern.permute.xlu0 0
      %2760 = vperm.xlu0 %2759, %v2752
      %v2761 = vpop.permute.xlu0 %2760
      %2763 = vrot.lane.b32.xlu0 %v2663, 107
      %v2764 = vpop.permute.xlu0 %2763
      %2765 = vrot.lane.b32.xlu0 %v2664, 107
      %v2766 = vpop.permute.xlu0 %2765
      %2767 = vrot.lane.b32.xlu0 %v2665, 107
      %v2768 = vpop.permute.xlu0 %2767
      %2769 = vrot.lane.b32.xlu0 %v2661, 107
      %v2770 = vpop.permute.xlu0 %2769
      %2771 = vrot.lane.b32.xlu0 %v2675, 107
      %v2772 = vpop.permute.xlu0 %2771
      %2773 = vrot.lane.b32.xlu0 %v2676, 107
      %v2774 = vpop.permute.xlu0 %2773
      %2775 = vrot.lane.b32.xlu0 %v2677, 107
      %v2776 = vpop.permute.xlu0 %2775
      %2777 = vrot.lane.b32.xlu0 %v2673, 107
      %v2778 = vpop.permute.xlu0 %2777
      %2779 = vrot.lane.b32.xlu0 %v2687, 107
      %v2780 = vpop.permute.xlu0 %2779
      %2781 = vrot.lane.b32.xlu0 %v2688, 107
      %v2782 = vpop.permute.xlu0 %2781
      %2783 = vrot.lane.b32.xlu0 %v2689, 107
      %v2784 = vpop.permute.xlu0 %2783
      %2785 = vrot.lane.b32.xlu0 %v2685, 107
      %v2786 = vpop.permute.xlu0 %2785
      %2787 = vrot.lane.b32.xlu0 %v2699, 107
      %v2788 = vpop.permute.xlu0 %2787
      %2789 = vrot.lane.b32.xlu0 %v2700, 107
      %v2790 = vpop.permute.xlu0 %2789
      %2791 = vrot.lane.b32.xlu0 %v2701, 107
      %v2792 = vpop.permute.xlu0 %2791
      %2793 = vrot.lane.b32.xlu0 %v2697, 107
      %v2794 = vpop.permute.xlu0 %2793
      %2795 = vrot.lane.b32.xlu0 %v2711, 107
      %v2796 = vpop.permute.xlu0 %2795
      %2797 = vrot.lane.b32.xlu0 %v2712, 107
      %v2798 = vpop.permute.xlu0 %2797
      %2799 = vrot.lane.b32.xlu0 %v2713, 107
      %v2800 = vpop.permute.xlu0 %2799
      %2801 = vrot.lane.b32.xlu0 %v2709, 107
      %v2802 = vpop.permute.xlu0 %2801
      %2803 = vrot.lane.b32.xlu0 %v2723, 107
      %v2804 = vpop.permute.xlu0 %2803
      %2805 = vrot.lane.b32.xlu0 %v2724, 107
      %v2806 = vpop.permute.xlu0 %2805
      %2807 = vrot.lane.b32.xlu0 %v2725, 107
      %v2808 = vpop.permute.xlu0 %2807
      %2809 = vrot.lane.b32.xlu0 %v2721, 107
      %v2810 = vpop.permute.xlu0 %2809
      %2811 = vrot.lane.b32.xlu0 %v2735, 107
      %v2812 = vpop.permute.xlu0 %2811
      %2813 = vrot.lane.b32.xlu0 %v2736, 107
      %v2814 = vpop.permute.xlu0 %2813
      %2815 = vrot.lane.b32.xlu0 %v2737, 107
      %v2816 = vpop.permute.xlu0 %2815
      %2817 = vrot.lane.b32.xlu0 %v2733, 107
      %v2818 = vpop.permute.xlu0 %2817
      %2819 = vrot.lane.b32.xlu0 %v2746, 107
      %v2820 = vpop.permute.xlu0 %2819
      %2821 = vrot.lane.b32.xlu0 %v2747, 107
      %v2822 = vpop.permute.xlu0 %2821
      %2823 = vrot.lane.b32.xlu0 %v2748, 107
      %v2824 = vpop.permute.xlu0 %2823
      %2825 = vrot.lane.b32.xlu0 %v2745, 107
      %v2826 = vpop.permute.xlu0 %2825
      %v2827 = vsel %vm2698, %v2764, %v2766
      %v2828 = vsel %vm2698, %v2766, %v2768
      %v2829 = vsel %vm2698, %v2768, %v2770
      %v2830 = vsel %vm2698, %v2772, %v2774
      %v2831 = vsel %vm2698, %v2774, %v2776
      %v2832 = vsel %vm2698, %v2776, %v2778
      %v2833 = vsel %vm2698, %v2780, %v2782
      %v2834 = vsel %vm2698, %v2782, %v2784
      %v2835 = vsel %vm2698, %v2784, %v2786
      %v2836 = vsel %vm2698, %v2788, %v2790
      %v2837 = vsel %vm2698, %v2790, %v2792
      %v2838 = vsel %vm2698, %v2792, %v2794
      %v2839 = vsel %vm2698, %v2796, %v2798
      %v2840 = vsel %vm2698, %v2798, %v2800
      %v2841 = vsel %vm2698, %v2800, %v2802
      %v2842 = vsel %vm2698, %v2804, %v2806
      %v2843 = vsel %vm2698, %v2806, %v2808
      %v2844 = vsel %vm2698, %v2808, %v2810
      %v2845 = vsel %vm2698, %v2812, %v2814
      %v2846 = vsel %vm2698, %v2814, %v2816
      %v2847 = vsel %vm2698, %v2816, %v2818
      %v2848 = vsel %vm2698, %v2820, %v2822
      %v2849 = vsel %vm2698, %v2822, %v2824
      %v2850 = vsel %vm2698, %v2824, %v2826
      %vm2878 = vcmask 588800
      %v2880 = vsel %vm2878, %v2749, 0
      %v2883 = vsel %vm2878, %v2750, 0
      %2885 = vmatprep.subr.mxu0 %v2700
      %2886 = vmatpush1.msra.mxu0 %v2699
      %2887 = vmatprep.subr.mxu0 %v2828
      %2888 = vmatpush1.msra.mxu0 %v2827
      %2889 = vmatprep.subr.mxu0 %v2831
      %2890 = vmatpush1.msra.mxu0 %v2830
      %2891 = vmatprep.subr.mxu0 %v2834
      %2892 = vmatpush1.msra.mxu0 %v2833
      %2893 = vmatprep.subr.mxu0 %v2837
      %2894 = vmatpush1.msra.mxu0 %v2836
      %2895 = vmatprep.subr.mxu0 %v2840
      %2896 = vmatpush1.msra.mxu0 %v2839
      %2897 = vmatprep.subr.mxu0 %v2843
      %2898 = vmatpush1.msra.mxu0 %v2842
      %2899 = vmatprep.subr.mxu0 %v2846
      %2900 = vmatpush1.msra.mxu0 %v2845
      %2901 = vmatprep.subr.mxu0 %v2849
      %2902 = vmatpush1.msra.mxu0 %v2848
      %2903 = vmatprep.subr.mxu0 0.0
      %2904 = vmatpush1.msra.mxu0 0.0
      %2905 = vmatprep.subr.mxu0 0.0
      %2906 = vmatpush1.msra.mxu0 0.0
      %2907 = vmatprep.subr.mxu0 0.0
      %2908 = vmatpush1.msra.mxu0 0.0
      %2909 = vmatprep.subr.mxu0 0.0
      %2910 = vmatpush1.msra.mxu0 0.0
      %2911 = vmatprep.subr.mxu0 0.0
      %2912 = vmatpush1.msra.mxu0 0.0
      %2913 = vmatprep.subr.mxu0 0.0
      %2914 = vmatpush1.msra.mxu0 0.0
      %2915 = vmatprep.subr.mxu0 0.0
      %2916 = vmatpush1.msra.mxu0 0.0
      %2917 = vmatprep.subr.mxu0 0.0
      %2918 = vmatpush1.msra.mxu0 0.0
      %2919 = vmatprep.subr.mxu0 0.0
      %2920 = vmatpush1.msra.mxu0 0.0
      %2921 = vmatprep.subr.mxu0 0.0
      %2922 = vmatpush1.msra.mxu0 0.0
      %2923 = vmatprep.subr.mxu0 0.0
      %2924 = vmatpush1.msra.mxu0 0.0
      %2925 = vmatprep.subr.mxu0 0.0
      %2926 = vmatpush1.msra.mxu0 0.0
      %2927 = vmatprep.subr.mxu0 0.0
      %2928 = vmatpush1.msra.mxu0 0.0
      %2929 = vmatprep.subr.mxu0 0.0
      %2930 = vmatpush1.msra.mxu0 0.0
      %2931 = vmatprep.subr.mxu0 0.0
      %2932 = vmatpush1.msra.mxu0 0.0
      %2933 = vmatprep.subr.mxu0 0.0
      %2934 = vmatpush1.msra.mxu0 0.0
      %2935 = vmatprep.subr.mxu0 0.0
      %2936 = vmatpush1.msra.mxu0 0.0
      %2937 = vmatprep.subr.mxu0 0.0
      %2938 = vmatpush1.msra.mxu0 0.0
      %2939 = vmatprep.subr.mxu0 0.0
      %2940 = vmatpush1.msra.mxu0 0.0
      %2941 = vmatprep.subr.mxu0 0.0
      %2942 = vmatpush1.msra.mxu0 0.0
      %2943 = vmatprep.subr.mxu0 0.0
      %2944 = vmatpush1.msra.mxu0 0.0
      %2945 = vmatprep.subr.mxu0 0.0
      %2946 = vmatpush1.msra.mxu0 0.0
      %2947 = vmatprep.subr.mxu0 0.0
      %2948 = vmatpush1.msra.mxu0 0.0
      %2949 = vmatprep.mubr.f32.mxu0 0.0
      %2950 = vmatmul.mubr.f32.gmra.mrb[0].mxu0 %v2880
      %v2951 = vpop.f32.mrb[0].mxu0
      %v2952 = vadd.f32 %v2756, %v2951
      %v2953 = vpop.f32.mrb[0].mxu0
      %v2954 = vadd.f32 %v2756, %v2953
      %2955 = vmatprep.mubr.f32.mxu0 0.0
      %2956 = vmatmul.mubr.f32.gmra.mrb[0].mxu0 %v2883
      %v2957 = vpop.f32.mrb[0].mxu0
      %v2958 = vadd.f32 %v2761, %v2957
      %v2959 = vpop.f32.mrb[0].mxu0
      %v2960 = vadd.f32 %v2761, %v2959
      %2961 = vdwg.mxu0
      %2962 = vmatprep.subr.mxu0 0.0
      %2963 = vmatpush1.msra.mxu0 %v2701
      %2964 = vmatprep.subr.mxu0 0.0
      %2965 = vmatpush1.msra.mxu0 %v2829
      %2966 = vmatprep.subr.mxu0 0.0
      %2967 = vmatpush1.msra.mxu0 %v2832
      %2968 = vmatprep.subr.mxu0 0.0
      %2969 = vmatpush1.msra.mxu0 %v2835
      %2970 = vmatprep.subr.mxu0 0.0
      %2971 = vmatpush1.msra.mxu0 %v2838
      %2972 = vmatprep.subr.mxu0 0.0
      %2973 = vmatpush1.msra.mxu0 %v2841
      %2974 = vmatprep.subr.mxu0 0.0
      %2975 = vmatpush1.msra.mxu0 %v2844
      %2976 = vmatprep.subr.mxu0 0.0
      %2977 = vmatpush1.msra.mxu0 %v2847
      %2978 = vmatprep.subr.mxu0 0.0
      %2979 = vmatpush1.msra.mxu0 %v2850
      %2980 = vmatprep.subr.mxu0 0.0
      %2981 = vmatpush1.msra.mxu0 0.0
      %2982 = vmatprep.subr.mxu0 0.0
      %2983 = vmatpush1.msra.mxu0 0.0
      %2984 = vmatprep.subr.mxu0 0.0
      %2985 = vmatpush1.msra.mxu0 0.0
      %2986 = vmatprep.subr.mxu0 0.0
      %2987 = vmatpush1.msra.mxu0 0.0
      %2988 = vmatprep.subr.mxu0 0.0
      %2989 = vmatpush1.msra.mxu0 0.0
      %2990 = vmatprep.subr.mxu0 0.0
      %2991 = vmatpush1.msra.mxu0 0.0
      %2992 = vmatprep.subr.mxu0 0.0
      %2993 = vmatpush1.msra.mxu0 0.0
      %2994 = vmatprep.subr.mxu0 0.0
      %2995 = vmatpush1.msra.mxu0 0.0
      %2996 = vmatprep.subr.mxu0 0.0
      %2997 = vmatpush1.msra.mxu0 0.0
      %2998 = vmatprep.subr.mxu0 0.0
      %2999 = vmatpush1.msra.mxu0 0.0
      %3000 = vmatprep.subr.mxu0 0.0
      %3001 = vmatpush1.msra.mxu0 0.0
      %3002 = vmatprep.subr.mxu0 0.0
      %3003 = vmatpush1.msra.mxu0 0.0
      %3004 = vmatprep.subr.mxu0 0.0
      %3005 = vmatpush1.msra.mxu0 0.0
      %3006 = vmatprep.subr.mxu0 0.0
      %3007 = vmatpush1.msra.mxu0 0.0
      %3008 = vmatprep.subr.mxu0 0.0
      %3009 = vmatpush1.msra.mxu0 0.0
      %3010 = vmatprep.subr.mxu0 0.0
      %3011 = vmatpush1.msra.mxu0 0.0
      %3012 = vmatprep.subr.mxu0 0.0
      %3013 = vmatpush1.msra.mxu0 0.0
      %3014 = vmatprep.subr.mxu0 0.0
      %3015 = vmatpush1.msra.mxu0 0.0
      %3016 = vmatprep.subr.mxu0 0.0
      %3017 = vmatpush1.msra.mxu0 0.0
      %3018 = vmatprep.subr.mxu0 0.0
      %3019 = vmatpush1.msra.mxu0 0.0
      %3020 = vmatprep.subr.mxu0 0.0
      %3021 = vmatpush1.msra.mxu0 0.0
      %3022 = vmatprep.subr.mxu0 0.0
      %3023 = vmatpush1.msra.mxu0 0.0
      %3024 = vmatprep.subr.mxu0 0.0
      %3025 = vmatpush1.msra.mxu0 0.0
      %3026 = vmatprep.mubr.f32.mxu0 0.0
      %3027 = vmatmul.mubr.f32.gmra.mrb[0].mxu0 %v2880
      %v3028 = vpop.f32.mrb[0].mxu0
      %v3029 = vadd.f32 %v2756, %v3028
      %v3030 = vpop.f32.mrb[0].mxu0
      %3031 = vmatprep.mubr.f32.mxu0 0.0
      %3032 = vmatmul.mubr.f32.gmra.mrb[0].mxu0 %v2883
      %v3033 = vpop.f32.mrb[0].mxu0
      %v3034 = vadd.f32 %v2761, %v3033
      %v3035 = vpop.f32.mrb[0].mxu0
      %3036 = vdwg.mxu0
      %vm3037 = vcmp.ge.f32.partialorder %v2952, 0.0
      %vm3038 = vcmp.ge.f32.partialorder %v2954, 0.0
      %vm3039 = vcmp.ge.f32.partialorder %v3029, 0.0
      %vm3040 = vcmp.ge.f32.partialorder %v2958, 0.0
      %vm3041 = vcmp.ge.f32.partialorder %v2960, 0.0
      %vm3042 = vcmp.ge.f32.partialorder %v3034, 0.0
      %v3043 = vmul.f32 %v2952, 0.01
      %v3044 = vmul.f32 %v2954, 0.01
      %v3045 = vmul.f32 %v3029, 0.01
      %v3046 = vmul.f32 %v2958, 0.01
      %v3047 = vmul.f32 %v2960, 0.01
      %v3048 = vmul.f32 %v3034, 0.01
      %v3049 = vsel %vm3037, %v2952, %v3043
      %v3050 = vsel %vm3038, %v2954, %v3044
      %v3051 = vsel %vm3039, %v3029, %v3045
      %v3052 = vsel %vm3040, %v2958, %v3046
      %v3053 = vsel %vm3041, %v2960, %v3047
      %v3054 = vsel %vm3042, %v3034, %v3048
      %v3055 = vmul.f32 %v3049, %v974
      %v3056 = vmul.f32 %v3050, %v978
      %v3057 = vmul.f32 %v3051, %v982
      %v3058 = vmul.f32 %v3052, %v974
      %v3059 = vmul.f32 %v3053, %v978
      %v3060 = vmul.f32 %v3054, %v982
      %3067 = vrot.lane.b32.xlu0 %v3055, 42
      %v3068 = vpop.permute.xlu0 %3067
      %3069 = vrot.lane.b32.xlu0 %v3056, 42
      %v3070 = vpop.permute.xlu0 %3069
      %3071 = vrot.lane.b32.xlu0 %v3057, 42
      %v3072 = vpop.permute.xlu0 %3071
      %3073 = vrot.lane.b32.xlu0 %v3058, 42
      %v3074 = vpop.permute.xlu0 %3073
      %3075 = vrot.lane.b32.xlu0 %v3059, 42
      %v3076 = vpop.permute.xlu0 %3075
      %3077 = vrot.lane.b32.xlu0 %v3060, 42
      %v3078 = vpop.permute.xlu0 %3077
      %v3079 = vsel %vm989, %v3068, %v3070
      %v3080 = vsel %vm989, %v3070, %v3072
      %v3081 = vsel %vm989, %v3074, %v3076
      %v3082 = vsel %vm989, %v3076, %v3078
      %vm3091 = vcmask 1047888
      %3092 = vst.msk [vmem:[#allocation3] sm:$0xff] %vm3091, %v3068
      %3093 = vst [vmem:[#allocation3 + $0x8] sm:$0xff] %v3079
      %3094 = vst [vmem:[#allocation3 + $0x10] sm:$0xff] %v3080
      %3095 = vst.msk [vmem:[#allocation3 + $0x18] sm:$0xff] %vm989, %v3072
      %3096 = vst.msk [vmem:[#allocation3 + $0x20] sm:$0xff] %vm3091, %v3074
      %3097 = vst [vmem:[#allocation3 + $0x28] sm:$0xff] %v3081
      %3098 = vst [vmem:[#allocation3 + $0x30] sm:$0xff] %v3082
      %3099 = vst.msk [vmem:[#allocation3 + $0x38] sm:$0xff] %vm989, %v3078
      %v3100 = vld [vmem:[#allocation3] sm:$0xff]
      %v3101 = vld [vmem:[#allocation3 + $0x8] sm:$0xff]
      %v3102 = vld [vmem:[#allocation3 + $0x10] sm:$0xff]
      %v3103 = vld [vmem:[#allocation3 + $0x18] sm:$0xff]
      %v3104 = vld [vmem:[#allocation3 + $0x20] sm:$0xff]
      %v3105 = vld [vmem:[#allocation3 + $0x28] sm:$0xff]
      %v3106 = vld [vmem:[#allocation3 + $0x30] sm:$0xff]
      %v3107 = vld [vmem:[#allocation3 + $0x38] sm:$0xff]
      %3116 = vrot.lane.b32.xlu0 %v3100, 127
      %v3117 = vpop.permute.xlu0 %3116
      %3118 = vrot.lane.b32.xlu0 %v3101, 127
      %v3119 = vpop.permute.xlu0 %3118
      %3120 = vrot.lane.b32.xlu0 %v3102, 127
      %v3121 = vpop.permute.xlu0 %3120
      %3122 = vrot.lane.b32.xlu0 %v3103, 127
      %v3123 = vpop.permute.xlu0 %3122
      %3124 = vrot.lane.b32.xlu0 %v3104, 127
      %v3125 = vpop.permute.xlu0 %3124
      %3126 = vrot.lane.b32.xlu0 %v3105, 127
      %v3127 = vpop.permute.xlu0 %3126
      %3128 = vrot.lane.b32.xlu0 %v3106, 127
      %v3129 = vpop.permute.xlu0 %3128
      %3130 = vrot.lane.b32.xlu0 %v3107, 127
      %v3131 = vpop.permute.xlu0 %3130
      %v3132 = vsel %vm2662, %v3117, %v3119
      %v3133 = vsel %vm2662, %v3119, %v3121
      %v3134 = vsel %vm2662, %v3121, %v3123
      %v3135 = vsel %vm2662, %v3125, %v3127
      %v3136 = vsel %vm2662, %v3127, %v3129
      %v3137 = vsel %vm2662, %v3129, %v3131
      %3138 = vrot.lane.b32.xlu0 %v3100, 126
      %v3139 = vpop.permute.xlu0 %3138
      %3140 = vrot.lane.b32.xlu0 %v3101, 126
      %v3141 = vpop.permute.xlu0 %3140
      %3142 = vrot.lane.b32.xlu0 %v3102, 126
      %v3143 = vpop.permute.xlu0 %3142
      %3144 = vrot.lane.b32.xlu0 %v3103, 126
      %v3145 = vpop.permute.xlu0 %3144
      %3146 = vrot.lane.b32.xlu0 %v3104, 126
      %v3147 = vpop.permute.xlu0 %3146
      %3148 = vrot.lane.b32.xlu0 %v3105, 126
      %v3149 = vpop.permute.xlu0 %3148
      %3150 = vrot.lane.b32.xlu0 %v3106, 126
      %v3151 = vpop.permute.xlu0 %3150
      %3152 = vrot.lane.b32.xlu0 %v3107, 126
      %v3153 = vpop.permute.xlu0 %3152
      %v3154 = vsel %vm2674, %v3139, %v3141
      %v3155 = vsel %vm2674, %v3141, %v3143
      %v3156 = vsel %vm2674, %v3143, %v3145
      %v3157 = vsel %vm2674, %v3147, %v3149
      %v3158 = vsel %vm2674, %v3149, %v3151
      %v3159 = vsel %vm2674, %v3151, %v3153
      %3160 = vrot.lane.b32.xlu0 %v3100, 108
      %v3161 = vpop.permute.xlu0 %3160
      %3162 = vrot.lane.b32.xlu0 %v3101, 108
      %v3163 = vpop.permute.xlu0 %3162
      %3164 = vrot.lane.b32.xlu0 %v3102, 108
      %v3165 = vpop.permute.xlu0 %3164
      %3166 = vrot.lane.b32.xlu0 %v3103, 108
      %v3167 = vpop.permute.xlu0 %3166
      %3168 = vrot.lane.b32.xlu0 %v3104, 108
      %v3169 = vpop.permute.xlu0 %3168
      %3170 = vrot.lane.b32.xlu0 %v3105, 108
      %v3171 = vpop.permute.xlu0 %3170
      %3172 = vrot.lane.b32.xlu0 %v3106, 108
      %v3173 = vpop.permute.xlu0 %3172
      %3174 = vrot.lane.b32.xlu0 %v3107, 108
      %v3175 = vpop.permute.xlu0 %3174
      %v3176 = vsel %vm2686, %v3161, %v3163
      %v3177 = vsel %vm2686, %v3163, %v3165
      %v3178 = vsel %vm2686, %v3165, %v3167
      %v3179 = vsel %vm2686, %v3169, %v3171
      %v3180 = vsel %vm2686, %v3171, %v3173
      %v3181 = vsel %vm2686, %v3173, %v3175
      %3182 = vrot.lane.b32.xlu0 %v3100, 107
      %v3183 = vpop.permute.xlu0 %3182
      %3184 = vrot.lane.b32.xlu0 %v3101, 107
      %v3185 = vpop.permute.xlu0 %3184
      %3186 = vrot.lane.b32.xlu0 %v3102, 107
      %v3187 = vpop.permute.xlu0 %3186
      %3188 = vrot.lane.b32.xlu0 %v3103, 107
      %v3189 = vpop.permute.xlu0 %3188
      %3190 = vrot.lane.b32.xlu0 %v3104, 107
      %v3191 = vpop.permute.xlu0 %3190
      %3192 = vrot.lane.b32.xlu0 %v3105, 107
      %v3193 = vpop.permute.xlu0 %3192
      %3194 = vrot.lane.b32.xlu0 %v3106, 107
      %v3195 = vpop.permute.xlu0 %3194
      %3196 = vrot.lane.b32.xlu0 %v3107, 107
      %v3197 = vpop.permute.xlu0 %3196
      %v3198 = vsel %vm2698, %v3183, %v3185
      %v3199 = vsel %vm2698, %v3185, %v3187
      %v3200 = vsel %vm2698, %v3187, %v3189
      %v3201 = vsel %vm2698, %v3191, %v3193
      %v3202 = vsel %vm2698, %v3193, %v3195
      %v3203 = vsel %vm2698, %v3195, %v3197
      %3204 = vrot.lane.b32.xlu0 %v3100, 106
      %v3205 = vpop.permute.xlu0 %3204
      %3206 = vrot.lane.b32.xlu0 %v3101, 106
      %v3207 = vpop.permute.xlu0 %3206
      %3208 = vrot.lane.b32.xlu0 %v3102, 106
      %v3209 = vpop.permute.xlu0 %3208
      %3210 = vrot.lane.b32.xlu0 %v3103, 106
      %v3211 = vpop.permute.xlu0 %3210
      %3212 = vrot.lane.b32.xlu0 %v3104, 106
      %v3213 = vpop.permute.xlu0 %3212
      %3214 = vrot.lane.b32.xlu0 %v3105, 106
      %v3215 = vpop.permute.xlu0 %3214
      %3216 = vrot.lane.b32.xlu0 %v3106, 106
      %v3217 = vpop.permute.xlu0 %3216
      %3218 = vrot.lane.b32.xlu0 %v3107, 106
      %v3219 = vpop.permute.xlu0 %3218
      %v3220 = vsel %vm2710, %v3205, %v3207
      %v3221 = vsel %vm2710, %v3207, %v3209
      %v3222 = vsel %vm2710, %v3209, %v3211
      %v3223 = vsel %vm2710, %v3213, %v3215
      %v3224 = vsel %vm2710, %v3215, %v3217
      %v3225 = vsel %vm2710, %v3217, %v3219
      %3226 = vrot.lane.b32.xlu0 %v3100, 88
      %v3227 = vpop.permute.xlu0 %3226
      %3228 = vrot.lane.b32.xlu0 %v3101, 88
      %v3229 = vpop.permute.xlu0 %3228
      %3230 = vrot.lane.b32.xlu0 %v3102, 88
      %v3231 = vpop.permute.xlu0 %3230
      %3232 = vrot.lane.b32.xlu0 %v3103, 88
      %v3233 = vpop.permute.xlu0 %3232
      %3234 = vrot.lane.b32.xlu0 %v3104, 88
      %v3235 = vpop.permute.xlu0 %3234
      %3236 = vrot.lane.b32.xlu0 %v3105, 88
      %v3237 = vpop.permute.xlu0 %3236
      %3238 = vrot.lane.b32.xlu0 %v3106, 88
      %v3239 = vpop.permute.xlu0 %3238
      %3240 = vrot.lane.b32.xlu0 %v3107, 88
      %v3241 = vpop.permute.xlu0 %3240
      %v3242 = vsel %vm2722, %v3227, %v3229
      %v3243 = vsel %vm2722, %v3229, %v3231
      %v3244 = vsel %vm2722, %v3231, %v3233
      %v3245 = vsel %vm2722, %v3235, %v3237
      %v3246 = vsel %vm2722, %v3237, %v3239
      %v3247 = vsel %vm2722, %v3239, %v3241
      %3248 = vrot.lane.b32.xlu0 %v3100, 87
      %v3249 = vpop.permute.xlu0 %3248
      %3250 = vrot.lane.b32.xlu0 %v3101, 87
      %v3251 = vpop.permute.xlu0 %3250
      %3252 = vrot.lane.b32.xlu0 %v3102, 87
      %v3253 = vpop.permute.xlu0 %3252
      %3254 = vrot.lane.b32.xlu0 %v3103, 87
      %v3255 = vpop.permute.xlu0 %3254
      %3256 = vrot.lane.b32.xlu0 %v3104, 87
      %v3257 = vpop.permute.xlu0 %3256
      %3258 = vrot.lane.b32.xlu0 %v3105, 87
      %v3259 = vpop.permute.xlu0 %3258
      %3260 = vrot.lane.b32.xlu0 %v3106, 87
      %v3261 = vpop.permute.xlu0 %3260
      %3262 = vrot.lane.b32.xlu0 %v3107, 87
      %v3263 = vpop.permute.xlu0 %3262
      %v3264 = vsel %vm2734, %v3249, %v3251
      %v3265 = vsel %vm2734, %v3251, %v3253
      %v3266 = vsel %vm2734, %v3253, %v3255
      %v3267 = vsel %vm2734, %v3257, %v3259
      %v3268 = vsel %vm2734, %v3259, %v3261
      %v3269 = vsel %vm2734, %v3261, %v3263
      %3270 = vrot.lane.b32.xlu0 %v3100, 86
      %v3271 = vpop.permute.xlu0 %3270
      %3272 = vrot.lane.b32.xlu0 %v3101, 86
      %v3273 = vpop.permute.xlu0 %3272
      %3274 = vrot.lane.b32.xlu0 %v3102, 86
      %v3275 = vpop.permute.xlu0 %3274
      %3276 = vrot.lane.b32.xlu0 %v3103, 86
      %v3277 = vpop.permute.xlu0 %3276
      %3278 = vrot.lane.b32.xlu0 %v3104, 86
      %v3279 = vpop.permute.xlu0 %3278
      %3280 = vrot.lane.b32.xlu0 %v3105, 86
      %v3281 = vpop.permute.xlu0 %3280
      %3282 = vrot.lane.b32.xlu0 %v3106, 86
      %v3283 = vpop.permute.xlu0 %3282
      %3284 = vrot.lane.b32.xlu0 %v3107, 86
      %v3285 = vpop.permute.xlu0 %3284
      %v3286 = vsel %vm1012, %v3271, %v3273
      %v3287 = vsel %vm1012, %v3273, %v3275
      %v3288 = vsel %vm1012, %v3275, %v3277
      %v3289 = vsel %vm1012, %v3279, %v3281
      %v3290 = vsel %vm1012, %v3281, %v3283
      %v3291 = vsel %vm1012, %v3283, %v3285
      %v3292 = vld [vmem:[%s16] sm:$0xff]
      %v3293 = vld [vmem:[%s16 + $0x8] sm:$0xff]
      %v3294 = vld [vmem:[%s16 + $0x10] sm:$0xff]
      %v3295 = vld [vmem:[%s16 + $0x18] sm:$0xff]
      %v3296 = vld [vmem:[%s17] sm:$0xff]
      %v3297 = vld [vmem:[%s17 + $0x8] sm:$0xff]
      %3299 = vset.pattern.permute.xlu0 0
      %3300 = vperm.xlu0 %3299, %v3296
      %v3301 = vpop.permute.xlu0 %3300
      %3304 = vset.pattern.permute.xlu0 0
      %3305 = vperm.xlu0 %3304, %v3297
      %v3306 = vpop.permute.xlu0 %3305
      %3308 = vrot.lane.b32.xlu0 %v3132, 107
      %v3309 = vpop.permute.xlu0 %3308
      %3310 = vrot.lane.b32.xlu0 %v3133, 107
      %v3311 = vpop.permute.xlu0 %3310
      %3312 = vrot.lane.b32.xlu0 %v3134, 107
      %v3313 = vpop.permute.xlu0 %3312
      %3314 = vrot.lane.b32.xlu0 %v3123, 107
      %v3315 = vpop.permute.xlu0 %3314
      %3316 = vrot.lane.b32.xlu0 %v3135, 107
      %v3317 = vpop.permute.xlu0 %3316
      %3318 = vrot.lane.b32.xlu0 %v3136, 107
      %v3319 = vpop.permute.xlu0 %3318
      %3320 = vrot.lane.b32.xlu0 %v3137, 107
      %v3321 = vpop.permute.xlu0 %3320
      %3322 = vrot.lane.b32.xlu0 %v3131, 107
      %v3323 = vpop.permute.xlu0 %3322
      %3324 = vrot.lane.b32.xlu0 %v3154, 107
      %v3325 = vpop.permute.xlu0 %3324
      %3326 = vrot.lane.b32.xlu0 %v3155, 107
      %v3327 = vpop.permute.xlu0 %3326
      %3328 = vrot.lane.b32.xlu0 %v3156, 107
      %v3329 = vpop.permute.xlu0 %3328
      %3330 = vrot.lane.b32.xlu0 %v3145, 107
      %v3331 = vpop.permute.xlu0 %3330
      %3332 = vrot.lane.b32.xlu0 %v3157, 107
      %v3333 = vpop.permute.xlu0 %3332
      %3334 = vrot.lane.b32.xlu0 %v3158, 107
      %v3335 = vpop.permute.xlu0 %3334
      %3336 = vrot.lane.b32.xlu0 %v3159, 107
      %v3337 = vpop.permute.xlu0 %3336
      %3338 = vrot.lane.b32.xlu0 %v3153, 107
      %v3339 = vpop.permute.xlu0 %3338
      %3340 = vrot.lane.b32.xlu0 %v3176, 107
      %v3341 = vpop.permute.xlu0 %3340
      %3342 = vrot.lane.b32.xlu0 %v3177, 107
      %v3343 = vpop.permute.xlu0 %3342
      %3344 = vrot.lane.b32.xlu0 %v3178, 107
      %v3345 = vpop.permute.xlu0 %3344
      %3346 = vrot.lane.b32.xlu0 %v3167, 107
      %v3347 = vpop.permute.xlu0 %3346
      %3348 = vrot.lane.b32.xlu0 %v3179, 107
      %v3349 = vpop.permute.xlu0 %3348
      %3350 = vrot.lane.b32.xlu0 %v3180, 107
      %v3351 = vpop.permute.xlu0 %3350
      %3352 = vrot.lane.b32.xlu0 %v3181, 107
      %v3353 = vpop.permute.xlu0 %3352
      %3354 = vrot.lane.b32.xlu0 %v3175, 107
      %v3355 = vpop.permute.xlu0 %3354
      %3356 = vrot.lane.b32.xlu0 %v3198, 107
      %v3357 = vpop.permute.xlu0 %3356
      %3358 = vrot.lane.b32.xlu0 %v3199, 107
      %v3359 = vpop.permute.xlu0 %3358
      %3360 = vrot.lane.b32.xlu0 %v3200, 107
      %v3361 = vpop.permute.xlu0 %3360
      %3362 = vrot.lane.b32.xlu0 %v3189, 107
      %v3363 = vpop.permute.xlu0 %3362
      %3364 = vrot.lane.b32.xlu0 %v3201, 107
      %v3365 = vpop.permute.xlu0 %3364
      %3366 = vrot.lane.b32.xlu0 %v3202, 107
      %v3367 = vpop.permute.xlu0 %3366
      %3368 = vrot.lane.b32.xlu0 %v3203, 107
      %v3369 = vpop.permute.xlu0 %3368
      %3370 = vrot.lane.b32.xlu0 %v3197, 107
      %v3371 = vpop.permute.xlu0 %3370
      %3372 = vrot.lane.b32.xlu0 %v3220, 107
      %v3373 = vpop.permute.xlu0 %3372
      %3374 = vrot.lane.b32.xlu0 %v3221, 107
      %v3375 = vpop.permute.xlu0 %3374
      %3376 = vrot.lane.b32.xlu0 %v3222, 107
      %v3377 = vpop.permute.xlu0 %3376
      %3378 = vrot.lane.b32.xlu0 %v3211, 107
      %v3379 = vpop.permute.xlu0 %3378
      %3380 = vrot.lane.b32.xlu0 %v3223, 107
      %v3381 = vpop.permute.xlu0 %3380
      %3382 = vrot.lane.b32.xlu0 %v3224, 107
      %v3383 = vpop.permute.xlu0 %3382
      %3384 = vrot.lane.b32.xlu0 %v3225, 107
      %v3385 = vpop.permute.xlu0 %3384
      %3386 = vrot.lane.b32.xlu0 %v3219, 107
      %v3387 = vpop.permute.xlu0 %3386
      %3388 = vrot.lane.b32.xlu0 %v3242, 107
      %v3389 = vpop.permute.xlu0 %3388
      %3390 = vrot.lane.b32.xlu0 %v3243, 107
      %v3391 = vpop.permute.xlu0 %3390
      %3392 = vrot.lane.b32.xlu0 %v3244, 107
      %v3393 = vpop.permute.xlu0 %3392
      %3394 = vrot.lane.b32.xlu0 %v3233, 107
      %v3395 = vpop.permute.xlu0 %3394
      %3396 = vrot.lane.b32.xlu0 %v3245, 107
      %v3397 = vpop.permute.xlu0 %3396
      %3398 = vrot.lane.b32.xlu0 %v3246, 107
      %v3399 = vpop.permute.xlu0 %3398
      %3400 = vrot.lane.b32.xlu0 %v3247, 107
      %v3401 = vpop.permute.xlu0 %3400
      %3402 = vrot.lane.b32.xlu0 %v3241, 107
      %v3403 = vpop.permute.xlu0 %3402
      %3404 = vrot.lane.b32.xlu0 %v3264, 107
      %v3405 = vpop.permute.xlu0 %3404
      %3406 = vrot.lane.b32.xlu0 %v3265, 107
      %v3407 = vpop.permute.xlu0 %3406
      %3408 = vrot.lane.b32.xlu0 %v3266, 107
      %v3409 = vpop.permute.xlu0 %3408
      %3410 = vrot.lane.b32.xlu0 %v3255, 107
      %v3411 = vpop.permute.xlu0 %3410
      %3412 = vrot.lane.b32.xlu0 %v3267, 107
      %v3413 = vpop.permute.xlu0 %3412
      %3414 = vrot.lane.b32.xlu0 %v3268, 107
      %v3415 = vpop.permute.xlu0 %3414
      %3416 = vrot.lane.b32.xlu0 %v3269, 107
      %v3417 = vpop.permute.xlu0 %3416
      %3418 = vrot.lane.b32.xlu0 %v3263, 107
      %v3419 = vpop.permute.xlu0 %3418
      %3420 = vrot.lane.b32.xlu0 %v3286, 107
      %v3421 = vpop.permute.xlu0 %3420
      %3422 = vrot.lane.b32.xlu0 %v3287, 107
      %v3423 = vpop.permute.xlu0 %3422
      %3424 = vrot.lane.b32.xlu0 %v3288, 107
      %v3425 = vpop.permute.xlu0 %3424
      %3426 = vrot.lane.b32.xlu0 %v3277, 107
      %v3427 = vpop.permute.xlu0 %3426
      %3428 = vrot.lane.b32.xlu0 %v3289, 107
      %v3429 = vpop.permute.xlu0 %3428
      %3430 = vrot.lane.b32.xlu0 %v3290, 107
      %v3431 = vpop.permute.xlu0 %3430
      %3432 = vrot.lane.b32.xlu0 %v3291, 107
      %v3433 = vpop.permute.xlu0 %3432
      %3434 = vrot.lane.b32.xlu0 %v3285, 107
      %v3435 = vpop.permute.xlu0 %3434
      %v3436 = vsel %vm2698, %v3309, %v3311
      %v3437 = vsel %vm2698, %v3311, %v3313
      %v3438 = vsel %vm2698, %v3313, %v3315
      %v3439 = vsel %vm2698, %v3317, %v3319
      %v3440 = vsel %vm2698, %v3319, %v3321
      %v3441 = vsel %vm2698, %v3321, %v3323
      %v3442 = vsel %vm2698, %v3325, %v3327
      %v3443 = vsel %vm2698, %v3327, %v3329
      %v3444 = vsel %vm2698, %v3329, %v3331
      %v3445 = vsel %vm2698, %v3333, %v3335
      %v3446 = vsel %vm2698, %v3335, %v3337
      %v3447 = vsel %vm2698, %v3337, %v3339
      %v3448 = vsel %vm2698, %v3341, %v3343
      %v3449 = vsel %vm2698, %v3343, %v3345
      %v3450 = vsel %vm2698, %v3345, %v3347
      %v3451 = vsel %vm2698, %v3349, %v3351
      %v3452 = vsel %vm2698, %v3351, %v3353
      %v3453 = vsel %vm2698, %v3353, %v3355
      %v3454 = vsel %vm2698, %v3357, %v3359
      %v3455 = vsel %vm2698, %v3359, %v3361
      %v3456 = vsel %vm2698, %v3361, %v3363
      %v3457 = vsel %vm2698, %v3365, %v3367
      %v3458 = vsel %vm2698, %v3367, %v3369
      %v3459 = vsel %vm2698, %v3369, %v3371
      %v3460 = vsel %vm2698, %v3373, %v3375
      %v3461 = vsel %vm2698, %v3375, %v3377
      %v3462 = vsel %vm2698, %v3377, %v3379
      %v3463 = vsel %vm2698, %v3381, %v3383
      %v3464 = vsel %vm2698, %v3383, %v3385
      %v3465 = vsel %vm2698, %v3385, %v3387
      %v3466 = vsel %vm2698, %v3389, %v3391
      %v3467 = vsel %vm2698, %v3391, %v3393
      %v3468 = vsel %vm2698, %v3393, %v3395
      %v3469 = vsel %vm2698, %v3397, %v3399
      %v3470 = vsel %vm2698, %v3399, %v3401
      %v3471 = vsel %vm2698, %v3401, %v3403
      %v3472 = vsel %vm2698, %v3405, %v3407
      %v3473 = vsel %vm2698, %v3407, %v3409
      %v3474 = vsel %vm2698, %v3409, %v3411
      %v3475 = vsel %vm2698, %v3413, %v3415
      %v3476 = vsel %vm2698, %v3415, %v3417
      %v3477 = vsel %vm2698, %v3417, %v3419
      %v3478 = vsel %vm2698, %v3421, %v3423
      %v3479 = vsel %vm2698, %v3423, %v3425
      %v3480 = vsel %vm2698, %v3425, %v3427
      %v3481 = vsel %vm2698, %v3429, %v3431
      %v3482 = vsel %vm2698, %v3431, %v3433
      %v3483 = vsel %vm2698, %v3433, %v3435
      %v3539 = vsel %vm1272, %v3293, 0
      %v3542 = vsel %vm1272, %v3295, 0
      %3544 = vmatprep.subr.mxu0 %v3199
      %3545 = vmatpush1.msra.mxu0 %v3198
      %3546 = vmatprep.subr.mxu0 %v3202
      %3547 = vmatpush1.msra.mxu0 %v3201
      %3548 = vmatprep.subr.mxu0 %v3437
      %3549 = vmatpush1.msra.mxu0 %v3436
      %3550 = vmatprep.subr.mxu0 %v3440
      %3551 = vmatpush1.msra.mxu0 %v3439
      %3552 = vmatprep.subr.mxu0 %v3443
      %3553 = vmatpush1.msra.mxu0 %v3442
      %3554 = vmatprep.subr.mxu0 %v3446
      %3555 = vmatpush1.msra.mxu0 %v3445
      %3556 = vmatprep.subr.mxu0 %v3449
      %3557 = vmatpush1.msra.mxu0 %v3448
      %3558 = vmatprep.subr.mxu0 %v3452
      %3559 = vmatpush1.msra.mxu0 %v3451
      %3560 = vmatprep.subr.mxu0 %v3455
      %3561 = vmatpush1.msra.mxu0 %v3454
      %3562 = vmatprep.subr.mxu0 %v3458
      %3563 = vmatpush1.msra.mxu0 %v3457
      %3564 = vmatprep.subr.mxu0 %v3461
      %3565 = vmatpush1.msra.mxu0 %v3460
      %3566 = vmatprep.subr.mxu0 %v3464
      %3567 = vmatpush1.msra.mxu0 %v3463
      %3568 = vmatprep.subr.mxu0 %v3467
      %3569 = vmatpush1.msra.mxu0 %v3466
      %3570 = vmatprep.subr.mxu0 %v3470
      %3571 = vmatpush1.msra.mxu0 %v3469
      %3572 = vmatprep.subr.mxu0 %v3473
      %3573 = vmatpush1.msra.mxu0 %v3472
      %3574 = vmatprep.subr.mxu0 %v3476
      %3575 = vmatpush1.msra.mxu0 %v3475
      %3576 = vmatprep.subr.mxu0 %v3479
      %3577 = vmatpush1.msra.mxu0 %v3478
      %3578 = vmatprep.subr.mxu0 %v3482
      %3579 = vmatpush1.msra.mxu0 %v3481
      %3580 = vmatprep.subr.mxu0 0.0
      %3581 = vmatpush1.msra.mxu0 0.0
      %3582 = vmatprep.subr.mxu0 0.0
      %3583 = vmatpush1.msra.mxu0 0.0
      %3584 = vmatprep.subr.mxu0 0.0
      %3585 = vmatpush1.msra.mxu0 0.0
      %3586 = vmatprep.subr.mxu0 0.0
      %3587 = vmatpush1.msra.mxu0 0.0
      %3588 = vmatprep.subr.mxu0 0.0
      %3589 = vmatpush1.msra.mxu0 0.0
      %3590 = vmatprep.subr.mxu0 0.0
      %3591 = vmatpush1.msra.mxu0 0.0
      %3592 = vmatprep.subr.mxu0 0.0
      %3593 = vmatpush1.msra.mxu0 0.0
      %3594 = vmatprep.subr.mxu0 0.0
      %3595 = vmatpush1.msra.mxu0 0.0
      %3596 = vmatprep.subr.mxu0 0.0
      %3597 = vmatpush1.msra.mxu0 0.0
      %3598 = vmatprep.subr.mxu0 0.0
      %3599 = vmatpush1.msra.mxu0 0.0
      %3600 = vmatprep.subr.mxu0 0.0
      %3601 = vmatpush1.msra.mxu0 0.0
      %3602 = vmatprep.subr.mxu0 0.0
      %3603 = vmatpush1.msra.mxu0 0.0
      %3604 = vmatprep.subr.mxu0 0.0
      %3605 = vmatpush1.msra.mxu0 0.0
      %3606 = vmatprep.subr.mxu0 0.0
      %3607 = vmatpush1.msra.mxu0 0.0
      %3608 = vmatprep.mubr.f32.mxu0 %v3539
      %3609 = vmatmul.mubr.f32.gmra.mrb[0].mxu0 %v3292
      %v3610 = vpop.f32.mrb[0].mxu0
      %v3611 = vadd.f32 %v3301, %v3610
      %v3612 = vpop.f32.mrb[0].mxu0
      %v3613 = vadd.f32 %v3301, %v3612
      %3614 = vmatprep.mubr.f32.mxu0 %v3542
      %3615 = vmatmul.mubr.f32.gmra.mrb[0].mxu0 %v3294
      %v3616 = vpop.f32.mrb[0].mxu0
      %v3617 = vadd.f32 %v3306, %v3616
      %v3618 = vpop.f32.mrb[0].mxu0
      %v3619 = vadd.f32 %v3306, %v3618
      %3620 = vdwg.mxu0
      %3621 = vmatprep.subr.mxu0 0.0
      %3622 = vmatpush1.msra.mxu0 %v3200
      %3623 = vmatprep.subr.mxu0 0.0
      %3624 = vmatpush1.msra.mxu0 %v3203
      %3625 = vmatprep.subr.mxu0 0.0
      %3626 = vmatpush1.msra.mxu0 %v3438
      %3627 = vmatprep.subr.mxu0 0.0
      %3628 = vmatpush1.msra.mxu0 %v3441
      %3629 = vmatprep.subr.mxu0 0.0
      %3630 = vmatpush1.msra.mxu0 %v3444
      %3631 = vmatprep.subr.mxu0 0.0
      %3632 = vmatpush1.msra.mxu0 %v3447
      %3633 = vmatprep.subr.mxu0 0.0
      %3634 = vmatpush1.msra.mxu0 %v3450
      %3635 = vmatprep.subr.mxu0 0.0
      %3636 = vmatpush1.msra.mxu0 %v3453
      %3637 = vmatprep.subr.mxu0 0.0
      %3638 = vmatpush1.msra.mxu0 %v3456
      %3639 = vmatprep.subr.mxu0 0.0
      %3640 = vmatpush1.msra.mxu0 %v3459
      %3641 = vmatprep.subr.mxu0 0.0
      %3642 = vmatpush1.msra.mxu0 %v3462
      %3643 = vmatprep.subr.mxu0 0.0
      %3644 = vmatpush1.msra.mxu0 %v3465
      %3645 = vmatprep.subr.mxu0 0.0
      %3646 = vmatpush1.msra.mxu0 %v3468
      %3647 = vmatprep.subr.mxu0 0.0
      %3648 = vmatpush1.msra.mxu0 %v3471
      %3649 = vmatprep.subr.mxu0 0.0
      %3650 = vmatpush1.msra.mxu0 %v3474
      %3651 = vmatprep.subr.mxu0 0.0
      %3652 = vmatpush1.msra.mxu0 %v3477
      %3653 = vmatprep.subr.mxu0 0.0
      %3654 = vmatpush1.msra.mxu0 %v3480
      %3655 = vmatprep.subr.mxu0 0.0
      %3656 = vmatpush1.msra.mxu0 %v3483
      %3657 = vmatprep.subr.mxu0 0.0
      %3658 = vmatpush1.msra.mxu0 0.0
      %3659 = vmatprep.subr.mxu0 0.0
      %3660 = vmatpush1.msra.mxu0 0.0
      %3661 = vmatprep.subr.mxu0 0.0
      %3662 = vmatpush1.msra.mxu0 0.0
      %3663 = vmatprep.subr.mxu0 0.0
      %3664 = vmatpush1.msra.mxu0 0.0
      %3665 = vmatprep.subr.mxu0 0.0
      %3666 = vmatpush1.msra.mxu0 0.0
      %3667 = vmatprep.subr.mxu0 0.0
      %3668 = vmatpush1.msra.mxu0 0.0
      %3669 = vmatprep.subr.mxu0 0.0
      %3670 = vmatpush1.msra.mxu0 0.0
      %3671 = vmatprep.subr.mxu0 0.0
      %3672 = vmatpush1.msra.mxu0 0.0
      %3673 = vmatprep.subr.mxu0 0.0
      %3674 = vmatpush1.msra.mxu0 0.0
      %3675 = vmatprep.subr.mxu0 0.0
      %3676 = vmatpush1.msra.mxu0 0.0
      %3677 = vmatprep.subr.mxu0 0.0
      %3678 = vmatpush1.msra.mxu0 0.0
      %3679 = vmatprep.subr.mxu0 0.0
      %3680 = vmatpush1.msra.mxu0 0.0
      %3681 = vmatprep.subr.mxu0 0.0
      %3682 = vmatpush1.msra.mxu0 0.0
      %3683 = vmatprep.subr.mxu0 0.0
      %3684 = vmatpush1.msra.mxu0 0.0
      %3685 = vmatprep.mubr.f32.mxu0 %v3539
      %3686 = vmatmul.mubr.f32.gmra.mrb[0].mxu0 %v3292
      %v3687 = vpop.f32.mrb[0].mxu0
      %v3688 = vadd.f32 %v3301, %v3687
      %v3689 = vpop.f32.mrb[0].mxu0
      %3690 = vmatprep.mubr.f32.mxu0 %v3542
      %3691 = vmatmul.mubr.f32.gmra.mrb[0].mxu0 %v3294
      %v3692 = vpop.f32.mrb[0].mxu0
      %v3693 = vadd.f32 %v3306, %v3692
      %v3694 = vpop.f32.mrb[0].mxu0
      %3695 = vdwg.mxu0
      %vm3696 = vcmp.ge.f32.partialorder %v3611, 0.0
      %vm3697 = vcmp.ge.f32.partialorder %v3613, 0.0
      %vm3698 = vcmp.ge.f32.partialorder %v3688, 0.0
      %vm3699 = vcmp.ge.f32.partialorder %v3617, 0.0
      %vm3700 = vcmp.ge.f32.partialorder %v3619, 0.0
      %vm3701 = vcmp.ge.f32.partialorder %v3693, 0.0
      %v3702 = vmul.f32 %v3611, 0.01
      %v3703 = vmul.f32 %v3613, 0.01
      %v3704 = vmul.f32 %v3688, 0.01
      %v3705 = vmul.f32 %v3617, 0.01
      %v3706 = vmul.f32 %v3619, 0.01
      %v3707 = vmul.f32 %v3693, 0.01
      %v3708 = vsel %vm3696, %v3611, %v3702
      %v3709 = vsel %vm3697, %v3613, %v3703
      %v3710 = vsel %vm3698, %v3688, %v3704
      %v3711 = vsel %vm3699, %v3617, %v3705
      %v3712 = vsel %vm3700, %v3619, %v3706
      %v3713 = vsel %vm3701, %v3693, %v3707
      %v3714 = vmul.f32 %v3708, %v974
      %v3715 = vmul.f32 %v3709, %v978
      %v3716 = vmul.f32 %v3710, %v982
      %v3717 = vmul.f32 %v3711, %v974
      %v3718 = vmul.f32 %v3712, %v978
      %v3719 = vmul.f32 %v3713, %v982
      %3726 = vrot.lane.b32.xlu0 %v3714, 42
      %v3727 = vpop.permute.xlu0 %3726
      %3728 = vrot.lane.b32.xlu0 %v3715, 42
      %v3729 = vpop.permute.xlu0 %3728
      %3730 = vrot.lane.b32.xlu0 %v3716, 42
      %v3731 = vpop.permute.xlu0 %3730
      %3732 = vrot.lane.b32.xlu0 %v3717, 42
      %v3733 = vpop.permute.xlu0 %3732
      %3734 = vrot.lane.b32.xlu0 %v3718, 42
      %v3735 = vpop.permute.xlu0 %3734
      %3736 = vrot.lane.b32.xlu0 %v3719, 42
      %v3737 = vpop.permute.xlu0 %3736
      %v3738 = vsel %vm989, %v3727, %v3729
      %v3739 = vsel %vm989, %v3729, %v3731
      %v3740 = vsel %vm989, %v3733, %v3735
      %v3741 = vsel %vm989, %v3735, %v3737
      %3750 = vst.msk [vmem:[#allocation4] sm:$0xff] %vm3091, %v3727
      %3751 = vst [vmem:[#allocation4 + $0x8] sm:$0xff] %v3738
      %3752 = vst [vmem:[#allocation4 + $0x10] sm:$0xff] %v3739
      %3753 = vst.msk [vmem:[#allocation4 + $0x18] sm:$0xff] %vm989, %v3731
      %3754 = vst.msk [vmem:[#allocation4 + $0x20] sm:$0xff] %vm3091, %v3733
      %3755 = vst [vmem:[#allocation4 + $0x28] sm:$0xff] %v3740
      %3756 = vst [vmem:[#allocation4 + $0x30] sm:$0xff] %v3741
      %3757 = vst.msk [vmem:[#allocation4 + $0x38] sm:$0xff] %vm989, %v3737
      %v3758 = vld [vmem:[#allocation4] sm:$0xff]
      %v3759 = vld [vmem:[#allocation4 + $0x8] sm:$0xff]
      %v3760 = vld [vmem:[#allocation4 + $0x10] sm:$0xff]
      %v3761 = vld [vmem:[#allocation4 + $0x18] sm:$0xff]
      %v3762 = vld [vmem:[#allocation4 + $0x20] sm:$0xff]
      %v3763 = vld [vmem:[#allocation4 + $0x28] sm:$0xff]
      %v3764 = vld [vmem:[#allocation4 + $0x30] sm:$0xff]
      %v3765 = vld [vmem:[#allocation4 + $0x38] sm:$0xff]
      %v3766 = vld [vmem:[#allocation4 + $0x40] sm:$0xff]
      %v3767 = vld [vmem:[#allocation4 + $0x48] sm:$0xff]
      %v3768 = vld [vmem:[#allocation4 + $0x50] sm:$0xff]
      %v3769 = vld [vmem:[#allocation4 + $0x58] sm:$0xff]
      %3782 = vrot.lane.b32.xlu0 %v3758, 127
      %v3783 = vpop.permute.xlu0 %3782
      %3784 = vrot.lane.b32.xlu0 %v3759, 127
      %v3785 = vpop.permute.xlu0 %3784
      %3786 = vrot.lane.b32.xlu0 %v3760, 127
      %v3787 = vpop.permute.xlu0 %3786
      %3788 = vrot.lane.b32.xlu0 %v3761, 127
      %v3789 = vpop.permute.xlu0 %3788
      %3790 = vrot.lane.b32.xlu0 %v3762, 127
      %v3791 = vpop.permute.xlu0 %3790
      %3792 = vrot.lane.b32.xlu0 %v3763, 127
      %v3793 = vpop.permute.xlu0 %3792
      %3794 = vrot.lane.b32.xlu0 %v3764, 127
      %v3795 = vpop.permute.xlu0 %3794
      %3796 = vrot.lane.b32.xlu0 %v3765, 127
      %v3797 = vpop.permute.xlu0 %3796
      %3798 = vrot.lane.b32.xlu0 %v3766, 127
      %v3799 = vpop.permute.xlu0 %3798
      %3800 = vrot.lane.b32.xlu0 %v3767, 127
      %v3801 = vpop.permute.xlu0 %3800
      %3802 = vrot.lane.b32.xlu0 %v3768, 127
      %v3803 = vpop.permute.xlu0 %3802
      %3804 = vrot.lane.b32.xlu0 %v3769, 127
      %v3805 = vpop.permute.xlu0 %3804
      %v3806 = vsel %vm2662, %v3783, %v3785
      %v3807 = vsel %vm2662, %v3785, %v3787
      %v3808 = vsel %vm2662, %v3787, %v3789
      %v3809 = vsel %vm2662, %v3791, %v3793
      %v3810 = vsel %vm2662, %v3793, %v3795
      %v3811 = vsel %vm2662, %v3795, %v3797
      %v3812 = vsel %vm2662, %v3799, %v3801
      %v3813 = vsel %vm2662, %v3801, %v3803
      %v3814 = vsel %vm2662, %v3803, %v3805
      %3815 = vrot.lane.b32.xlu0 %v3758, 126
      %v3816 = vpop.permute.xlu0 %3815
      %3817 = vrot.lane.b32.xlu0 %v3759, 126
      %v3818 = vpop.permute.xlu0 %3817
      %3819 = vrot.lane.b32.xlu0 %v3760, 126
      %v3820 = vpop.permute.xlu0 %3819
      %3821 = vrot.lane.b32.xlu0 %v3761, 126
      %v3822 = vpop.permute.xlu0 %3821
      %3823 = vrot.lane.b32.xlu0 %v3762, 126
      %v3824 = vpop.permute.xlu0 %3823
      %3825 = vrot.lane.b32.xlu0 %v3763, 126
      %v3826 = vpop.permute.xlu0 %3825
      %3827 = vrot.lane.b32.xlu0 %v3764, 126
      %v3828 = vpop.permute.xlu0 %3827
      %3829 = vrot.lane.b32.xlu0 %v3765, 126
      %v3830 = vpop.permute.xlu0 %3829
      %3831 = vrot.lane.b32.xlu0 %v3766, 126
      %v3832 = vpop.permute.xlu0 %3831
      %3833 = vrot.lane.b32.xlu0 %v3767, 126
      %v3834 = vpop.permute.xlu0 %3833
      %3835 = vrot.lane.b32.xlu0 %v3768, 126
      %v3836 = vpop.permute.xlu0 %3835
      %3837 = vrot.lane.b32.xlu0 %v3769, 126
      %v3838 = vpop.permute.xlu0 %3837
      %v3839 = vsel %vm2674, %v3816, %v3818
      %v3840 = vsel %vm2674, %v3818, %v3820
      %v3841 = vsel %vm2674, %v3820, %v3822
      %v3842 = vsel %vm2674, %v3824, %v3826
      %v3843 = vsel %vm2674, %v3826, %v3828
      %v3844 = vsel %vm2674, %v3828, %v3830
      %v3845 = vsel %vm2674, %v3832, %v3834
      %v3846 = vsel %vm2674, %v3834, %v3836
      %v3847 = vsel %vm2674, %v3836, %v3838
      %3848 = vrot.lane.b32.xlu0 %v3758, 108
      %v3849 = vpop.permute.xlu0 %3848
      %3850 = vrot.lane.b32.xlu0 %v3759, 108
      %v3851 = vpop.permute.xlu0 %3850
      %3852 = vrot.lane.b32.xlu0 %v3760, 108
      %v3853 = vpop.permute.xlu0 %3852
      %3854 = vrot.lane.b32.xlu0 %v3761, 108
      %v3855 = vpop.permute.xlu0 %3854
      %3856 = vrot.lane.b32.xlu0 %v3762, 108
      %v3857 = vpop.permute.xlu0 %3856
      %3858 = vrot.lane.b32.xlu0 %v3763, 108
      %v3859 = vpop.permute.xlu0 %3858
      %3860 = vrot.lane.b32.xlu0 %v3764, 108
      %v3861 = vpop.permute.xlu0 %3860
      %3862 = vrot.lane.b32.xlu0 %v3765, 108
      %v3863 = vpop.permute.xlu0 %3862
      %3864 = vrot.lane.b32.xlu0 %v3766, 108
      %v3865 = vpop.permute.xlu0 %3864
      %3866 = vrot.lane.b32.xlu0 %v3767, 108
      %v3867 = vpop.permute.xlu0 %3866
      %3868 = vrot.lane.b32.xlu0 %v3768, 108
      %v3869 = vpop.permute.xlu0 %3868
      %3870 = vrot.lane.b32.xlu0 %v3769, 108
      %v3871 = vpop.permute.xlu0 %3870
      %v3872 = vsel %vm2686, %v3849, %v3851
      %v3873 = vsel %vm2686, %v3851, %v3853
      %v3874 = vsel %vm2686, %v3853, %v3855
      %v3875 = vsel %vm2686, %v3857, %v3859
      %v3876 = vsel %vm2686, %v3859, %v3861
      %v3877 = vsel %vm2686, %v3861, %v3863
      %v3878 = vsel %vm2686, %v3865, %v3867
      %v3879 = vsel %vm2686, %v3867, %v3869
      %v3880 = vsel %vm2686, %v3869, %v3871
      %3881 = vrot.lane.b32.xlu0 %v3758, 107
      %v3882 = vpop.permute.xlu0 %3881
      %3883 = vrot.lane.b32.xlu0 %v3759, 107
      %v3884 = vpop.permute.xlu0 %3883
      %3885 = vrot.lane.b32.xlu0 %v3760, 107
      %v3886 = vpop.permute.xlu0 %3885
      %3887 = vrot.lane.b32.xlu0 %v3761, 107
      %v3888 = vpop.permute.xlu0 %3887
      %3889 = vrot.lane.b32.xlu0 %v3762, 107
      %v3890 = vpop.permute.xlu0 %3889
      %3891 = vrot.lane.b32.xlu0 %v3763, 107
      %v3892 = vpop.permute.xlu0 %3891
      %3893 = vrot.lane.b32.xlu0 %v3764, 107
      %v3894 = vpop.permute.xlu0 %3893
      %3895 = vrot.lane.b32.xlu0 %v3765, 107
      %v3896 = vpop.permute.xlu0 %3895
      %3897 = vrot.lane.b32.xlu0 %v3766, 107
      %v3898 = vpop.permute.xlu0 %3897
      %3899 = vrot.lane.b32.xlu0 %v3767, 107
      %v3900 = vpop.permute.xlu0 %3899
      %3901 = vrot.lane.b32.xlu0 %v3768, 107
      %v3902 = vpop.permute.xlu0 %3901
      %3903 = vrot.lane.b32.xlu0 %v3769, 107
      %v3904 = vpop.permute.xlu0 %3903
      %v3905 = vsel %vm2698, %v3882, %v3884
      %v3906 = vsel %vm2698, %v3884, %v3886
      %v3907 = vsel %vm2698, %v3886, %v3888
      %v3908 = vsel %vm2698, %v3890, %v3892
      %v3909 = vsel %vm2698, %v3892, %v3894
      %v3910 = vsel %vm2698, %v3894, %v3896
      %v3911 = vsel %vm2698, %v3898, %v3900
      %v3912 = vsel %vm2698, %v3900, %v3902
      %v3913 = vsel %vm2698, %v3902, %v3904
      %3914 = vrot.lane.b32.xlu0 %v3758, 106
      %v3915 = vpop.permute.xlu0 %3914
      %3916 = vrot.lane.b32.xlu0 %v3759, 106
      %v3917 = vpop.permute.xlu0 %3916
      %3918 = vrot.lane.b32.xlu0 %v3760, 106
      %v3919 = vpop.permute.xlu0 %3918
      %3920 = vrot.lane.b32.xlu0 %v3761, 106
      %v3921 = vpop.permute.xlu0 %3920
      %3922 = vrot.lane.b32.xlu0 %v3762, 106
      %v3923 = vpop.permute.xlu0 %3922
      %3924 = vrot.lane.b32.xlu0 %v3763, 106
      %v3925 = vpop.permute.xlu0 %3924
      %3926 = vrot.lane.b32.xlu0 %v3764, 106
      %v3927 = vpop.permute.xlu0 %3926
      %3928 = vrot.lane.b32.xlu0 %v3765, 106
      %v3929 = vpop.permute.xlu0 %3928
      %3930 = vrot.lane.b32.xlu0 %v3766, 106
      %v3931 = vpop.permute.xlu0 %3930
      %3932 = vrot.lane.b32.xlu0 %v3767, 106
      %v3933 = vpop.permute.xlu0 %3932
      %3934 = vrot.lane.b32.xlu0 %v3768, 106
      %v3935 = vpop.permute.xlu0 %3934
      %3936 = vrot.lane.b32.xlu0 %v3769, 106
      %v3937 = vpop.permute.xlu0 %3936
      %v3938 = vsel %vm2710, %v3915, %v3917
      %v3939 = vsel %vm2710, %v3917, %v3919
      %v3940 = vsel %vm2710, %v3919, %v3921
      %v3941 = vsel %vm2710, %v3923, %v3925
      %v3942 = vsel %vm2710, %v3925, %v3927
      %v3943 = vsel %vm2710, %v3927, %v3929
      %v3944 = vsel %vm2710, %v3931, %v3933
      %v3945 = vsel %vm2710, %v3933, %v3935
      %v3946 = vsel %vm2710, %v3935, %v3937
      %3947 = vrot.lane.b32.xlu0 %v3758, 88
      %v3948 = vpop.permute.xlu0 %3947
      %3949 = vrot.lane.b32.xlu0 %v3759, 88
      %v3950 = vpop.permute.xlu0 %3949
      %3951 = vrot.lane.b32.xlu0 %v3760, 88
      %v3952 = vpop.permute.xlu0 %3951
      %3953 = vrot.lane.b32.xlu0 %v3761, 88
      %v3954 = vpop.permute.xlu0 %3953
      %3955 = vrot.lane.b32.xlu0 %v3762, 88
      %v3956 = vpop.permute.xlu0 %3955
      %3957 = vrot.lane.b32.xlu0 %v3763, 88
      %v3958 = vpop.permute.xlu0 %3957
      %3959 = vrot.lane.b32.xlu0 %v3764, 88
      %v3960 = vpop.permute.xlu0 %3959
      %3961 = vrot.lane.b32.xlu0 %v3765, 88
      %v3962 = vpop.permute.xlu0 %3961
      %3963 = vrot.lane.b32.xlu0 %v3766, 88
      %v3964 = vpop.permute.xlu0 %3963
      %3965 = vrot.lane.b32.xlu0 %v3767, 88
      %v3966 = vpop.permute.xlu0 %3965
      %3967 = vrot.lane.b32.xlu0 %v3768, 88
      %v3968 = vpop.permute.xlu0 %3967
      %3969 = vrot.lane.b32.xlu0 %v3769, 88
      %v3970 = vpop.permute.xlu0 %3969
      %v3971 = vsel %vm2722, %v3948, %v3950
      %v3972 = vsel %vm2722, %v3950, %v3952
      %v3973 = vsel %vm2722, %v3952, %v3954
      %v3974 = vsel %vm2722, %v3956, %v3958
      %v3975 = vsel %vm2722, %v3958, %v3960
      %v3976 = vsel %vm2722, %v3960, %v3962
      %v3977 = vsel %vm2722, %v3964, %v3966
      %v3978 = vsel %vm2722, %v3966, %v3968
      %v3979 = vsel %vm2722, %v3968, %v3970
      %3980 = vrot.lane.b32.xlu0 %v3758, 87
      %v3981 = vpop.permute.xlu0 %3980
      %3982 = vrot.lane.b32.xlu0 %v3759, 87
      %v3983 = vpop.permute.xlu0 %3982
      %3984 = vrot.lane.b32.xlu0 %v3760, 87
      %v3985 = vpop.permute.xlu0 %3984
      %3986 = vrot.lane.b32.xlu0 %v3761, 87
      %v3987 = vpop.permute.xlu0 %3986
      %3988 = vrot.lane.b32.xlu0 %v3762, 87
      %v3989 = vpop.permute.xlu0 %3988
      %3990 = vrot.lane.b32.xlu0 %v3763, 87
      %v3991 = vpop.permute.xlu0 %3990
      %3992 = vrot.lane.b32.xlu0 %v3764, 87
      %v3993 = vpop.permute.xlu0 %3992
      %3994 = vrot.lane.b32.xlu0 %v3765, 87
      %v3995 = vpop.permute.xlu0 %3994
      %3996 = vrot.lane.b32.xlu0 %v3766, 87
      %v3997 = vpop.permute.xlu0 %3996
      %3998 = vrot.lane.b32.xlu0 %v3767, 87
      %v3999 = vpop.permute.xlu0 %3998
      %4000 = vrot.lane.b32.xlu0 %v3768, 87
      %v4001 = vpop.permute.xlu0 %4000
      %4002 = vrot.lane.b32.xlu0 %v3769, 87
      %v4003 = vpop.permute.xlu0 %4002
      %v4004 = vsel %vm2734, %v3981, %v3983
      %v4005 = vsel %vm2734, %v3983, %v3985
      %v4006 = vsel %vm2734, %v3985, %v3987
      %v4007 = vsel %vm2734, %v3989, %v3991
      %v4008 = vsel %vm2734, %v3991, %v3993
      %v4009 = vsel %vm2734, %v3993, %v3995
      %v4010 = vsel %vm2734, %v3997, %v3999
      %v4011 = vsel %vm2734, %v3999, %v4001
      %v4012 = vsel %vm2734, %v4001, %v4003
      %4013 = vrot.lane.b32.xlu0 %v3758, 86
      %v4014 = vpop.permute.xlu0 %4013
      %4015 = vrot.lane.b32.xlu0 %v3759, 86
      %v4016 = vpop.permute.xlu0 %4015
      %4017 = vrot.lane.b32.xlu0 %v3760, 86
      %v4018 = vpop.permute.xlu0 %4017
      %4019 = vrot.lane.b32.xlu0 %v3761, 86
      %v4020 = vpop.permute.xlu0 %4019
      %4021 = vrot.lane.b32.xlu0 %v3762, 86
      %v4022 = vpop.permute.xlu0 %4021
      %4023 = vrot.lane.b32.xlu0 %v3763, 86
      %v4024 = vpop.permute.xlu0 %4023
      %4025 = vrot.lane.b32.xlu0 %v3764, 86
      %v4026 = vpop.permute.xlu0 %4025
      %4027 = vrot.lane.b32.xlu0 %v3765, 86
      %v4028 = vpop.permute.xlu0 %4027
      %4029 = vrot.lane.b32.xlu0 %v3766, 86
      %v4030 = vpop.permute.xlu0 %4029
      %4031 = vrot.lane.b32.xlu0 %v3767, 86
      %v4032 = vpop.permute.xlu0 %4031
      %4033 = vrot.lane.b32.xlu0 %v3768, 86
      %v4034 = vpop.permute.xlu0 %4033
      %4035 = vrot.lane.b32.xlu0 %v3769, 86
      %v4036 = vpop.permute.xlu0 %4035
      %v4037 = vsel %vm1012, %v4014, %v4016
      %v4038 = vsel %vm1012, %v4016, %v4018
      %v4039 = vsel %vm1012, %v4018, %v4020
      %v4040 = vsel %vm1012, %v4022, %v4024
      %v4041 = vsel %vm1012, %v4024, %v4026
      %v4042 = vsel %vm1012, %v4026, %v4028
      %v4043 = vsel %vm1012, %v4030, %v4032
      %v4044 = vsel %vm1012, %v4032, %v4034
      %v4045 = vsel %vm1012, %v4034, %v4036
      %v4046 = vld [vmem:[%s18] sm:$0xff]
      %v4047 = vld [vmem:[%s18 + $0x8] sm:$0xff]
      %v4048 = vld [vmem:[%s18 + $0x10] sm:$0xff]
      %v4049 = vld [vmem:[%s18 + $0x18] sm:$0xff]
      %v4050 = vld [vmem:[%s19] sm:$0xff]
      %v4051 = vld [vmem:[%s19 + $0x8] sm:$0xff]
      %4053 = vset.pattern.permute.xlu0 0
      %4054 = vperm.xlu0 %4053, %v4050
      %v4055 = vpop.permute.xlu0 %4054
      %4058 = vset.pattern.permute.xlu0 0
      %4059 = vperm.xlu0 %4058, %v4051
      %v4060 = vpop.permute.xlu0 %4059
      %4062 = vrot.lane.b32.xlu0 %v3806, 107
      %v4063 = vpop.permute.xlu0 %4062
      %4064 = vrot.lane.b32.xlu0 %v3807, 107
      %v4065 = vpop.permute.xlu0 %4064
      %4066 = vrot.lane.b32.xlu0 %v3808, 107
      %v4067 = vpop.permute.xlu0 %4066
      %4068 = vrot.lane.b32.xlu0 %v3789, 107
      %v4069 = vpop.permute.xlu0 %4068
      %4070 = vrot.lane.b32.xlu0 %v3809, 107
      %v4071 = vpop.permute.xlu0 %4070
      %4072 = vrot.lane.b32.xlu0 %v3810, 107
      %v4073 = vpop.permute.xlu0 %4072
      %4074 = vrot.lane.b32.xlu0 %v3811, 107
      %v4075 = vpop.permute.xlu0 %4074
      %4076 = vrot.lane.b32.xlu0 %v3797, 107
      %v4077 = vpop.permute.xlu0 %4076
      %4078 = vrot.lane.b32.xlu0 %v3812, 107
      %v4079 = vpop.permute.xlu0 %4078
      %4080 = vrot.lane.b32.xlu0 %v3813, 107
      %v4081 = vpop.permute.xlu0 %4080
      %4082 = vrot.lane.b32.xlu0 %v3814, 107
      %v4083 = vpop.permute.xlu0 %4082
      %4084 = vrot.lane.b32.xlu0 %v3805, 107
      %v4085 = vpop.permute.xlu0 %4084
      %4086 = vrot.lane.b32.xlu0 %v3839, 107
      %v4087 = vpop.permute.xlu0 %4086
      %4088 = vrot.lane.b32.xlu0 %v3840, 107
      %v4089 = vpop.permute.xlu0 %4088
      %4090 = vrot.lane.b32.xlu0 %v3841, 107
      %v4091 = vpop.permute.xlu0 %4090
      %4092 = vrot.lane.b32.xlu0 %v3822, 107
      %v4093 = vpop.permute.xlu0 %4092
      %4094 = vrot.lane.b32.xlu0 %v3842, 107
      %v4095 = vpop.permute.xlu0 %4094
      %4096 = vrot.lane.b32.xlu0 %v3843, 107
      %v4097 = vpop.permute.xlu0 %4096
      %4098 = vrot.lane.b32.xlu0 %v3844, 107
      %v4099 = vpop.permute.xlu0 %4098
      %4100 = vrot.lane.b32.xlu0 %v3830, 107
      %v4101 = vpop.permute.xlu0 %4100
      %4102 = vrot.lane.b32.xlu0 %v3845, 107
      %v4103 = vpop.permute.xlu0 %4102
      %4104 = vrot.lane.b32.xlu0 %v3846, 107
      %v4105 = vpop.permute.xlu0 %4104
      %4106 = vrot.lane.b32.xlu0 %v3847, 107
      %v4107 = vpop.permute.xlu0 %4106
      %4108 = vrot.lane.b32.xlu0 %v3838, 107
      %v4109 = vpop.permute.xlu0 %4108
      %4110 = vrot.lane.b32.xlu0 %v3872, 107
      %v4111 = vpop.permute.xlu0 %4110
      %4112 = vrot.lane.b32.xlu0 %v3873, 107
      %v4113 = vpop.permute.xlu0 %4112
      %4114 = vrot.lane.b32.xlu0 %v3874, 107
      %v4115 = vpop.permute.xlu0 %4114
      %4116 = vrot.lane.b32.xlu0 %v3855, 107
      %v4117 = vpop.permute.xlu0 %4116
      %4118 = vrot.lane.b32.xlu0 %v3875, 107
      %v4119 = vpop.permute.xlu0 %4118
      %4120 = vrot.lane.b32.xlu0 %v3876, 107
      %v4121 = vpop.permute.xlu0 %4120
      %4122 = vrot.lane.b32.xlu0 %v3877, 107
      %v4123 = vpop.permute.xlu0 %4122
      %4124 = vrot.lane.b32.xlu0 %v3863, 107
      %v4125 = vpop.permute.xlu0 %4124
      %4126 = vrot.lane.b32.xlu0 %v3878, 107
      %v4127 = vpop.permute.xlu0 %4126
      %4128 = vrot.lane.b32.xlu0 %v3879, 107
      %v4129 = vpop.permute.xlu0 %4128
      %4130 = vrot.lane.b32.xlu0 %v3880, 107
      %v4131 = vpop.permute.xlu0 %4130
      %4132 = vrot.lane.b32.xlu0 %v3871, 107
      %v4133 = vpop.permute.xlu0 %4132
      %4134 = vrot.lane.b32.xlu0 %v3905, 107
      %v4135 = vpop.permute.xlu0 %4134
      %4136 = vrot.lane.b32.xlu0 %v3906, 107
      %v4137 = vpop.permute.xlu0 %4136
      %4138 = vrot.lane.b32.xlu0 %v3907, 107
      %v4139 = vpop.permute.xlu0 %4138
      %4140 = vrot.lane.b32.xlu0 %v3888, 107
      %v4141 = vpop.permute.xlu0 %4140
      %4142 = vrot.lane.b32.xlu0 %v3908, 107
      %v4143 = vpop.permute.xlu0 %4142
      %4144 = vrot.lane.b32.xlu0 %v3909, 107
      %v4145 = vpop.permute.xlu0 %4144
      %4146 = vrot.lane.b32.xlu0 %v3910, 107
      %v4147 = vpop.permute.xlu0 %4146
      %4148 = vrot.lane.b32.xlu0 %v3896, 107
      %v4149 = vpop.permute.xlu0 %4148
      %4150 = vrot.lane.b32.xlu0 %v3911, 107
      %v4151 = vpop.permute.xlu0 %4150
      %4152 = vrot.lane.b32.xlu0 %v3912, 107
      %v4153 = vpop.permute.xlu0 %4152
      %4154 = vrot.lane.b32.xlu0 %v3913, 107
      %v4155 = vpop.permute.xlu0 %4154
      %4156 = vrot.lane.b32.xlu0 %v3904, 107
      %v4157 = vpop.permute.xlu0 %4156
      %4158 = vrot.lane.b32.xlu0 %v3938, 107
      %v4159 = vpop.permute.xlu0 %4158
      %4160 = vrot.lane.b32.xlu0 %v3939, 107
      %v4161 = vpop.permute.xlu0 %4160
      %4162 = vrot.lane.b32.xlu0 %v3940, 107
      %v4163 = vpop.permute.xlu0 %4162
      %4164 = vrot.lane.b32.xlu0 %v3921, 107
      %v4165 = vpop.permute.xlu0 %4164
      %4166 = vrot.lane.b32.xlu0 %v3941, 107
      %v4167 = vpop.permute.xlu0 %4166
      %4168 = vrot.lane.b32.xlu0 %v3942, 107
      %v4169 = vpop.permute.xlu0 %4168
      %4170 = vrot.lane.b32.xlu0 %v3943, 107
      %v4171 = vpop.permute.xlu0 %4170
      %4172 = vrot.lane.b32.xlu0 %v3929, 107
      %v4173 = vpop.permute.xlu0 %4172
      %4174 = vrot.lane.b32.xlu0 %v3944, 107
      %v4175 = vpop.permute.xlu0 %4174
      %4176 = vrot.lane.b32.xlu0 %v3945, 107
      %v4177 = vpop.permute.xlu0 %4176
      %4178 = vrot.lane.b32.xlu0 %v3946, 107
      %v4179 = vpop.permute.xlu0 %4178
      %4180 = vrot.lane.b32.xlu0 %v3937, 107
      %v4181 = vpop.permute.xlu0 %4180
      %4182 = vrot.lane.b32.xlu0 %v3971, 107
      %v4183 = vpop.permute.xlu0 %4182
      %4184 = vrot.lane.b32.xlu0 %v3972, 107
      %v4185 = vpop.permute.xlu0 %4184
      %4186 = vrot.lane.b32.xlu0 %v3973, 107
      %v4187 = vpop.permute.xlu0 %4186
      %4188 = vrot.lane.b32.xlu0 %v3954, 107
      %v4189 = vpop.permute.xlu0 %4188
      %4190 = vrot.lane.b32.xlu0 %v3974, 107
      %v4191 = vpop.permute.xlu0 %4190
      %4192 = vrot.lane.b32.xlu0 %v3975, 107
      %v4193 = vpop.permute.xlu0 %4192
      %4194 = vrot.lane.b32.xlu0 %v3976, 107
      %v4195 = vpop.permute.xlu0 %4194
      %4196 = vrot.lane.b32.xlu0 %v3962, 107
      %v4197 = vpop.permute.xlu0 %4196
      %4198 = vrot.lane.b32.xlu0 %v3977, 107
      %v4199 = vpop.permute.xlu0 %4198
      %4200 = vrot.lane.b32.xlu0 %v3978, 107
      %v4201 = vpop.permute.xlu0 %4200
      %4202 = vrot.lane.b32.xlu0 %v3979, 107
      %v4203 = vpop.permute.xlu0 %4202
      %4204 = vrot.lane.b32.xlu0 %v3970, 107
      %v4205 = vpop.permute.xlu0 %4204
      %4206 = vrot.lane.b32.xlu0 %v4004, 107
      %v4207 = vpop.permute.xlu0 %4206
      %4208 = vrot.lane.b32.xlu0 %v4005, 107
      %v4209 = vpop.permute.xlu0 %4208
      %4210 = vrot.lane.b32.xlu0 %v4006, 107
      %v4211 = vpop.permute.xlu0 %4210
      %4212 = vrot.lane.b32.xlu0 %v3987, 107
      %v4213 = vpop.permute.xlu0 %4212
      %4214 = vrot.lane.b32.xlu0 %v4007, 107
      %v4215 = vpop.permute.xlu0 %4214
      %4216 = vrot.lane.b32.xlu0 %v4008, 107
      %v4217 = vpop.permute.xlu0 %4216
      %4218 = vrot.lane.b32.xlu0 %v4009, 107
      %v4219 = vpop.permute.xlu0 %4218
      %4220 = vrot.lane.b32.xlu0 %v3995, 107
      %v4221 = vpop.permute.xlu0 %4220
      %4222 = vrot.lane.b32.xlu0 %v4010, 107
      %v4223 = vpop.permute.xlu0 %4222
      %4224 = vrot.lane.b32.xlu0 %v4011, 107
      %v4225 = vpop.permute.xlu0 %4224
      %4226 = vrot.lane.b32.xlu0 %v4012, 107
      %v4227 = vpop.permute.xlu0 %4226
      %4228 = vrot.lane.b32.xlu0 %v4003, 107
      %v4229 = vpop.permute.xlu0 %4228
      %4230 = vrot.lane.b32.xlu0 %v4037, 107
      %v4231 = vpop.permute.xlu0 %4230
      %4232 = vrot.lane.b32.xlu0 %v4038, 107
      %v4233 = vpop.permute.xlu0 %4232
      %4234 = vrot.lane.b32.xlu0 %v4039, 107
      %v4235 = vpop.permute.xlu0 %4234
      %4236 = vrot.lane.b32.xlu0 %v4020, 107
      %v4237 = vpop.permute.xlu0 %4236
      %4238 = vrot.lane.b32.xlu0 %v4040, 107
      %v4239 = vpop.permute.xlu0 %4238
      %4240 = vrot.lane.b32.xlu0 %v4041, 107
      %v4241 = vpop.permute.xlu0 %4240
      %4242 = vrot.lane.b32.xlu0 %v4042, 107
      %v4243 = vpop.permute.xlu0 %4242
      %4244 = vrot.lane.b32.xlu0 %v4028, 107
      %v4245 = vpop.permute.xlu0 %4244
      %4246 = vrot.lane.b32.xlu0 %v4043, 107
      %v4247 = vpop.permute.xlu0 %4246
      %4248 = vrot.lane.b32.xlu0 %v4044, 107
      %v4249 = vpop.permute.xlu0 %4248
      %4250 = vrot.lane.b32.xlu0 %v4045, 107
      %v4251 = vpop.permute.xlu0 %4250
      %4252 = vrot.lane.b32.xlu0 %v4036, 107
      %v4253 = vpop.permute.xlu0 %4252
      %v4254 = vsel %vm2698, %v4063, %v4065
      %v4255 = vsel %vm2698, %v4065, %v4067
      %v4256 = vsel %vm2698, %v4067, %v4069
      %v4257 = vsel %vm2698, %v4071, %v4073
      %v4258 = vsel %vm2698, %v4073, %v4075
      %v4259 = vsel %vm2698, %v4075, %v4077
      %v4260 = vsel %vm2698, %v4079, %v4081
      %v4261 = vsel %vm2698, %v4081, %v4083
      %v4262 = vsel %vm2698, %v4083, %v4085
      %v4263 = vsel %vm2698, %v4087, %v4089
      %v4264 = vsel %vm2698, %v4089, %v4091
      %v4265 = vsel %vm2698, %v4091, %v4093
      %v4266 = vsel %vm2698, %v4095, %v4097
      %v4267 = vsel %vm2698, %v4097, %v4099
      %v4268 = vsel %vm2698, %v4099, %v4101
      %v4269 = vsel %vm2698, %v4103, %v4105
      %v4270 = vsel %vm2698, %v4105, %v4107
      %v4271 = vsel %vm2698, %v4107, %v4109
      %v4272 = vsel %vm2698, %v4111, %v4113
      %v4273 = vsel %vm2698, %v4113, %v4115
      %v4274 = vsel %vm2698, %v4115, %v4117
      %v4275 = vsel %vm2698, %v4119, %v4121
      %v4276 = vsel %vm2698, %v4121, %v4123
      %v4277 = vsel %vm2698, %v4123, %v4125
      %v4278 = vsel %vm2698, %v4127, %v4129
      %v4279 = vsel %vm2698, %v4129, %v4131
      %v4280 = vsel %vm2698, %v4131, %v4133
      %v4281 = vsel %vm2698, %v4135, %v4137
      %v4282 = vsel %vm2698, %v4137, %v4139
      %v4283 = vsel %vm2698, %v4139, %v4141
      %v4284 = vsel %vm2698, %v4143, %v4145
      %v4285 = vsel %vm2698, %v4145, %v4147
      %v4286 = vsel %vm2698, %v4147, %v4149
      %v4287 = vsel %vm2698, %v4151, %v4153
      %v4288 = vsel %vm2698, %v4153, %v4155
      %v4289 = vsel %vm2698, %v4155, %v4157
      %v4290 = vsel %vm2698, %v4159, %v4161
      %v4291 = vsel %vm2698, %v4161, %v4163
      %v4292 = vsel %vm2698, %v4163, %v4165
      %v4293 = vsel %vm2698, %v4167, %v4169
      %v4294 = vsel %vm2698, %v4169, %v4171
      %v4295 = vsel %vm2698, %v4171, %v4173
      %v4296 = vsel %vm2698, %v4175, %v4177
      %v4297 = vsel %vm2698, %v4177, %v4179
      %v4298 = vsel %vm2698, %v4179, %v4181
      %v4299 = vsel %vm2698, %v4183, %v4185
      %v4300 = vsel %vm2698, %v4185, %v4187
      %v4301 = vsel %vm2698, %v4187, %v4189
      %v4302 = vsel %vm2698, %v4191, %v4193
      %v4303 = vsel %vm2698, %v4193, %v4195
      %v4304 = vsel %vm2698, %v4195, %v4197
      %v4305 = vsel %vm2698, %v4199, %v4201
      %v4306 = vsel %vm2698, %v4201, %v4203
      %v4307 = vsel %vm2698, %v4203, %v4205
      %v4308 = vsel %vm2698, %v4207, %v4209
      %v4309 = vsel %vm2698, %v4209, %v4211
      %v4310 = vsel %vm2698, %v4211, %v4213
      %v4311 = vsel %vm2698, %v4215, %v4217
      %v4312 = vsel %vm2698, %v4217, %v4219
      %v4313 = vsel %vm2698, %v4219, %v4221
      %v4314 = vsel %vm2698, %v4223, %v4225
      %v4315 = vsel %vm2698, %v4225, %v4227
      %v4316 = vsel %vm2698, %v4227, %v4229
      %v4317 = vsel %vm2698, %v4231, %v4233
      %v4318 = vsel %vm2698, %v4233, %v4235
      %v4319 = vsel %vm2698, %v4235, %v4237
      %v4320 = vsel %vm2698, %v4239, %v4241
      %v4321 = vsel %vm2698, %v4241, %v4243
      %v4322 = vsel %vm2698, %v4243, %v4245
      %v4323 = vsel %vm2698, %v4247, %v4249
      %v4324 = vsel %vm2698, %v4249, %v4251
      %v4325 = vsel %vm2698, %v4251, %v4253
      %v4408 = vsel %vm2722, %v4047, 0
      %v4411 = vsel %vm2722, %v4049, 0
      %4413 = vmatprep.subr.mxu0 %v3906
      %4414 = vmatpush1.msra.mxu0 %v3905
      %4415 = vmatprep.subr.mxu0 %v3909
      %4416 = vmatpush1.msra.mxu0 %v3908
      %4417 = vmatprep.subr.mxu0 %v3912
      %4418 = vmatpush1.msra.mxu0 %v3911
      %4419 = vmatprep.subr.mxu0 %v4255
      %4420 = vmatpush1.msra.mxu0 %v4254
      %4421 = vmatprep.subr.mxu0 %v4258
      %4422 = vmatpush1.msra.mxu0 %v4257
      %4423 = vmatprep.subr.mxu0 %v4261
      %4424 = vmatpush1.msra.mxu0 %v4260
      %4425 = vmatprep.subr.mxu0 %v4264
      %4426 = vmatpush1.msra.mxu0 %v4263
      %4427 = vmatprep.subr.mxu0 %v4267
      %4428 = vmatpush1.msra.mxu0 %v4266
      %4429 = vmatprep.subr.mxu0 %v4270
      %4430 = vmatpush1.msra.mxu0 %v4269
      %4431 = vmatprep.subr.mxu0 %v4273
      %4432 = vmatpush1.msra.mxu0 %v4272
      %4433 = vmatprep.subr.mxu0 %v4276
      %4434 = vmatpush1.msra.mxu0 %v4275
      %4435 = vmatprep.subr.mxu0 %v4279
      %4436 = vmatpush1.msra.mxu0 %v4278
      %4437 = vmatprep.subr.mxu0 %v4282
      %4438 = vmatpush1.msra.mxu0 %v4281
      %4439 = vmatprep.subr.mxu0 %v4285
      %4440 = vmatpush1.msra.mxu0 %v4284
      %4441 = vmatprep.subr.mxu0 %v4288
      %4442 = vmatpush1.msra.mxu0 %v4287
      %4443 = vmatprep.subr.mxu0 %v4291
      %4444 = vmatpush1.msra.mxu0 %v4290
      %4445 = vmatprep.subr.mxu0 %v4294
      %4446 = vmatpush1.msra.mxu0 %v4293
      %4447 = vmatprep.subr.mxu0 %v4297
      %4448 = vmatpush1.msra.mxu0 %v4296
      %4449 = vmatprep.subr.mxu0 %v4300
      %4450 = vmatpush1.msra.mxu0 %v4299
      %4451 = vmatprep.subr.mxu0 %v4303
      %4452 = vmatpush1.msra.mxu0 %v4302
      %4453 = vmatprep.subr.mxu0 %v4306
      %4454 = vmatpush1.msra.mxu0 %v4305
      %4455 = vmatprep.subr.mxu0 %v4309
      %4456 = vmatpush1.msra.mxu0 %v4308
      %4457 = vmatprep.subr.mxu0 %v4312
      %4458 = vmatpush1.msra.mxu0 %v4311
      %4459 = vmatprep.subr.mxu0 %v4315
      %4460 = vmatpush1.msra.mxu0 %v4314
      %4461 = vmatprep.subr.mxu0 %v4318
      %4462 = vmatpush1.msra.mxu0 %v4317
      %4463 = vmatprep.subr.mxu0 %v4321
      %4464 = vmatpush1.msra.mxu0 %v4320
      %4465 = vmatprep.subr.mxu0 %v4324
      %4466 = vmatpush1.msra.mxu0 %v4323
      %4467 = vmatprep.subr.mxu0 0.0
      %4468 = vmatpush1.msra.mxu0 0.0
      %4469 = vmatprep.subr.mxu0 0.0
      %4470 = vmatpush1.msra.mxu0 0.0
      %4471 = vmatprep.subr.mxu0 0.0
      %4472 = vmatpush1.msra.mxu0 0.0
      %4473 = vmatprep.subr.mxu0 0.0
      %4474 = vmatpush1.msra.mxu0 0.0
      %4475 = vmatprep.subr.mxu0 0.0
      %4476 = vmatpush1.msra.mxu0 0.0
      %4477 = vmatprep.mubr.f32.mxu0 %v4408
      %4478 = vmatmul.mubr.f32.gmra.mrb[0].mxu0 %v4046
      %v4479 = vpop.f32.mrb[0].mxu0
      %v4480 = vadd.f32 %v4055, %v4479
      %v4481 = vpop.f32.mrb[0].mxu0
      %v4482 = vadd.f32 %v4055, %v4481
      %4483 = vmatprep.mubr.f32.mxu0 %v4411
      %4484 = vmatmul.mubr.f32.gmra.mrb[0].mxu0 %v4048
      %v4485 = vpop.f32.mrb[0].mxu0
      %v4486 = vadd.f32 %v4060, %v4485
      %v4487 = vpop.f32.mrb[0].mxu0
      %v4488 = vadd.f32 %v4060, %v4487
      %4489 = vdwg.mxu0
      %4490 = vmatprep.subr.mxu0 0.0
      %4491 = vmatpush1.msra.mxu0 %v3907
      %4492 = vmatprep.subr.mxu0 0.0
      %4493 = vmatpush1.msra.mxu0 %v3910
      %4494 = vmatprep.subr.mxu0 0.0
      %4495 = vmatpush1.msra.mxu0 %v3913
      %4496 = vmatprep.subr.mxu0 0.0
      %4497 = vmatpush1.msra.mxu0 %v4256
      %4498 = vmatprep.subr.mxu0 0.0
      %4499 = vmatpush1.msra.mxu0 %v4259
      %4500 = vmatprep.subr.mxu0 0.0
      %4501 = vmatpush1.msra.mxu0 %v4262
      %4502 = vmatprep.subr.mxu0 0.0
      %4503 = vmatpush1.msra.mxu0 %v4265
      %4504 = vmatprep.subr.mxu0 0.0
      %4505 = vmatpush1.msra.mxu0 %v4268
      %4506 = vmatprep.subr.mxu0 0.0
      %4507 = vmatpush1.msra.mxu0 %v4271
      %4508 = vmatprep.subr.mxu0 0.0
      %4509 = vmatpush1.msra.mxu0 %v4274
      %4510 = vmatprep.subr.mxu0 0.0
      %4511 = vmatpush1.msra.mxu0 %v4277
      %4512 = vmatprep.subr.mxu0 0.0
      %4513 = vmatpush1.msra.mxu0 %v4280
      %4514 = vmatprep.subr.mxu0 0.0
      %4515 = vmatpush1.msra.mxu0 %v4283
      %4516 = vmatprep.subr.mxu0 0.0
      %4517 = vmatpush1.msra.mxu0 %v4286
      %4518 = vmatprep.subr.mxu0 0.0
      %4519 = vmatpush1.msra.mxu0 %v4289
      %4520 = vmatprep.subr.mxu0 0.0
      %4521 = vmatpush1.msra.mxu0 %v4292
      %4522 = vmatprep.subr.mxu0 0.0
      %4523 = vmatpush1.msra.mxu0 %v4295
      %4524 = vmatprep.subr.mxu0 0.0
      %4525 = vmatpush1.msra.mxu0 %v4298
      %4526 = vmatprep.subr.mxu0 0.0
      %4527 = vmatpush1.msra.mxu0 %v4301
      %4528 = vmatprep.subr.mxu0 0.0
      %4529 = vmatpush1.msra.mxu0 %v4304
      %4530 = vmatprep.subr.mxu0 0.0
      %4531 = vmatpush1.msra.mxu0 %v4307
      %4532 = vmatprep.subr.mxu0 0.0
      %4533 = vmatpush1.msra.mxu0 %v4310
      %4534 = vmatprep.subr.mxu0 0.0
      %4535 = vmatpush1.msra.mxu0 %v4313
      %4536 = vmatprep.subr.mxu0 0.0
      %4537 = vmatpush1.msra.mxu0 %v4316
      %4538 = vmatprep.subr.mxu0 0.0
      %4539 = vmatpush1.msra.mxu0 %v4319
      %4540 = vmatprep.subr.mxu0 0.0
      %4541 = vmatpush1.msra.mxu0 %v4322
      %4542 = vmatprep.subr.mxu0 0.0
      %4543 = vmatpush1.msra.mxu0 %v4325
      %4544 = vmatprep.subr.mxu0 0.0
      %4545 = vmatpush1.msra.mxu0 0.0
      %4546 = vmatprep.subr.mxu0 0.0
      %4547 = vmatpush1.msra.mxu0 0.0
      %4548 = vmatprep.subr.mxu0 0.0
      %4549 = vmatpush1.msra.mxu0 0.0
      %4550 = vmatprep.subr.mxu0 0.0
      %4551 = vmatpush1.msra.mxu0 0.0
      %4552 = vmatprep.subr.mxu0 0.0
      %4553 = vmatpush1.msra.mxu0 0.0
      %4554 = vmatprep.mubr.f32.mxu0 %v4408
      %4555 = vmatmul.mubr.f32.gmra.mrb[0].mxu0 %v4046
      %v4556 = vpop.f32.mrb[0].mxu0
      %v4557 = vadd.f32 %v4055, %v4556
      %v4558 = vpop.f32.mrb[0].mxu0
      %4559 = vmatprep.mubr.f32.mxu0 %v4411
      %4560 = vmatmul.mubr.f32.gmra.mrb[0].mxu0 %v4048
      %v4561 = vpop.f32.mrb[0].mxu0
      %v4562 = vadd.f32 %v4060, %v4561
      %v4563 = vpop.f32.mrb[0].mxu0
      %4564 = vdwg.mxu0
      %vm4565 = vcmp.ge.f32.partialorder %v4480, 0.0
      %vm4566 = vcmp.ge.f32.partialorder %v4482, 0.0
      %vm4567 = vcmp.ge.f32.partialorder %v4557, 0.0
      %vm4568 = vcmp.ge.f32.partialorder %v4486, 0.0
      %vm4569 = vcmp.ge.f32.partialorder %v4488, 0.0
      %vm4570 = vcmp.ge.f32.partialorder %v4562, 0.0
      %v4571 = vmul.f32 %v4480, 0.01
      %v4572 = vmul.f32 %v4482, 0.01
      %v4573 = vmul.f32 %v4557, 0.01
      %v4574 = vmul.f32 %v4486, 0.01
      %v4575 = vmul.f32 %v4488, 0.01
      %v4576 = vmul.f32 %v4562, 0.01
      %v4577 = vsel %vm4565, %v4480, %v4571
      %v4578 = vsel %vm4566, %v4482, %v4572
      %v4579 = vsel %vm4567, %v4557, %v4573
      %v4580 = vsel %vm4568, %v4486, %v4574
      %v4581 = vsel %vm4569, %v4488, %v4575
      %v4582 = vsel %vm4570, %v4562, %v4576
      %v4583 = vmul.f32 %v4577, %v974
      %v4584 = vmul.f32 %v4578, %v978
      %v4585 = vmul.f32 %v4579, %v982
      %v4586 = vmul.f32 %v4580, %v974
      %v4587 = vmul.f32 %v4581, %v978
      %v4588 = vmul.f32 %v4582, %v982
      %4595 = vrot.lane.b32.xlu0 %v4583, 42
      %v4596 = vpop.permute.xlu0 %4595
      %4597 = vrot.lane.b32.xlu0 %v4584, 42
      %v4598 = vpop.permute.xlu0 %4597
      %4599 = vrot.lane.b32.xlu0 %v4585, 42
      %v4600 = vpop.permute.xlu0 %4599
      %4601 = vrot.lane.b32.xlu0 %v4586, 42
      %v4602 = vpop.permute.xlu0 %4601
      %4603 = vrot.lane.b32.xlu0 %v4587, 42
      %v4604 = vpop.permute.xlu0 %4603
      %4605 = vrot.lane.b32.xlu0 %v4588, 42
      %v4606 = vpop.permute.xlu0 %4605
      %v4607 = vsel %vm989, %v4596, %v4598
      %v4608 = vsel %vm989, %v4598, %v4600
      %v4609 = vsel %vm989, %v4602, %v4604
      %v4610 = vsel %vm989, %v4604, %v4606
      %4619 = vst.msk [vmem:[#allocation5] sm:$0xff] %vm3091, %v4596
      %4620 = vst [vmem:[#allocation5 + $0x8] sm:$0xff] %v4607
      %4621 = vst [vmem:[#allocation5 + $0x10] sm:$0xff] %v4608
      %4622 = vst.msk [vmem:[#allocation5 + $0x18] sm:$0xff] %vm989, %v4600
      %4623 = vst.msk [vmem:[#allocation5 + $0x20] sm:$0xff] %vm3091, %v4602
      %4624 = vst [vmem:[#allocation5 + $0x28] sm:$0xff] %v4609
      %4625 = vst [vmem:[#allocation5 + $0x30] sm:$0xff] %v4610
      %4626 = vst.msk [vmem:[#allocation5 + $0x38] sm:$0xff] %vm989, %v4606
      %v4627 = vld [vmem:[#allocation5] sm:$0xff]
      %v4628 = vld [vmem:[#allocation5 + $0x8] sm:$0xff]
      %v4629 = vld [vmem:[#allocation5 + $0x10] sm:$0xff]
      %v4630 = vld [vmem:[#allocation5 + $0x20] sm:$0xff]
      %v4631 = vld [vmem:[#allocation5 + $0x28] sm:$0xff]
      %v4632 = vld [vmem:[#allocation5 + $0x30] sm:$0xff]
      %v4633 = vld [vmem:[#allocation5 + $0x18] sm:$0xff]
      %v4634 = vld [vmem:[#allocation5 + $0x38] sm:$0xff]
      %4643 = vrot.lane.b32.xlu0 %v4627, 126
      %v4644 = vpop.permute.xlu0 %4643
      %4645 = vrot.lane.b32.xlu0 %v4628, 126
      %v4646 = vpop.permute.xlu0 %4645
      %4647 = vrot.lane.b32.xlu0 %v4629, 126
      %v4648 = vpop.permute.xlu0 %4647
      %4649 = vrot.lane.b32.xlu0 %v4633, 126
      %v4650 = vpop.permute.xlu0 %4649
      %4651 = vrot.lane.b32.xlu0 %v4630, 126
      %v4652 = vpop.permute.xlu0 %4651
      %4653 = vrot.lane.b32.xlu0 %v4631, 126
      %v4654 = vpop.permute.xlu0 %4653
      %4655 = vrot.lane.b32.xlu0 %v4632, 126
      %v4656 = vpop.permute.xlu0 %4655
      %4657 = vrot.lane.b32.xlu0 %v4634, 126
      %v4658 = vpop.permute.xlu0 %4657
      %v4659 = vsel %vm2674, %v4644, %v4646
      %v4660 = vsel %vm2674, %v4646, %v4648
      %v4661 = vsel %vm2674, %v4648, %v4650
      %v4662 = vsel %vm2674, %v4652, %v4654
      %v4663 = vsel %vm2674, %v4654, %v4656
      %v4664 = vsel %vm2674, %v4656, %v4658
      %4671 = vrot.lane.b32.xlu0 %v4627, 124
      %v4672 = vpop.permute.xlu0 %4671
      %4673 = vrot.lane.b32.xlu0 %v4628, 124
      %v4674 = vpop.permute.xlu0 %4673
      %4675 = vrot.lane.b32.xlu0 %v4629, 124
      %v4676 = vpop.permute.xlu0 %4675
      %4677 = vrot.lane.b32.xlu0 %v4633, 124
      %v4678 = vpop.permute.xlu0 %4677
      %4679 = vrot.lane.b32.xlu0 %v4630, 124
      %v4680 = vpop.permute.xlu0 %4679
      %4681 = vrot.lane.b32.xlu0 %v4631, 124
      %v4682 = vpop.permute.xlu0 %4681
      %4683 = vrot.lane.b32.xlu0 %v4632, 124
      %v4684 = vpop.permute.xlu0 %4683
      %4685 = vrot.lane.b32.xlu0 %v4634, 124
      %v4686 = vpop.permute.xlu0 %4685
      %vm4687 = vcmask 1014784
      %v4688 = vsel %vm4687, %v4672, %v4674
      %v4689 = vsel %vm4687, %v4674, %v4676
      %v4690 = vsel %vm4687, %v4676, %v4678
      %v4691 = vsel %vm4687, %v4680, %v4682
      %v4692 = vsel %vm4687, %v4682, %v4684
      %v4693 = vsel %vm4687, %v4684, %v4686
      %4700 = vrot.lane.b32.xlu0 %v4627, 88
      %v4701 = vpop.permute.xlu0 %4700
      %4702 = vrot.lane.b32.xlu0 %v4628, 88
      %v4703 = vpop.permute.xlu0 %4702
      %4704 = vrot.lane.b32.xlu0 %v4629, 88
      %v4705 = vpop.permute.xlu0 %4704
      %4706 = vrot.lane.b32.xlu0 %v4633, 88
      %v4707 = vpop.permute.xlu0 %4706
      %4708 = vrot.lane.b32.xlu0 %v4630, 88
      %v4709 = vpop.permute.xlu0 %4708
      %4710 = vrot.lane.b32.xlu0 %v4631, 88
      %v4711 = vpop.permute.xlu0 %4710
      %4712 = vrot.lane.b32.xlu0 %v4632, 88
      %v4713 = vpop.permute.xlu0 %4712
      %4714 = vrot.lane.b32.xlu0 %v4634, 88
      %v4715 = vpop.permute.xlu0 %4714
      %v4716 = vsel %vm2722, %v4701, %v4703
      %v4717 = vsel %vm2722, %v4703, %v4705
      %v4718 = vsel %vm2722, %v4705, %v4707
      %v4719 = vsel %vm2722, %v4709, %v4711
      %v4720 = vsel %vm2722, %v4711, %v4713
      %v4721 = vsel %vm2722, %v4713, %v4715
      %4728 = vrot.lane.b32.xlu0 %v4627, 86
      %v4729 = vpop.permute.xlu0 %4728
      %4730 = vrot.lane.b32.xlu0 %v4628, 86
      %v4731 = vpop.permute.xlu0 %4730
      %4732 = vrot.lane.b32.xlu0 %v4629, 86
      %v4733 = vpop.permute.xlu0 %4732
      %4734 = vrot.lane.b32.xlu0 %v4633, 86
      %v4735 = vpop.permute.xlu0 %4734
      %4736 = vrot.lane.b32.xlu0 %v4630, 86
      %v4737 = vpop.permute.xlu0 %4736
      %4738 = vrot.lane.b32.xlu0 %v4631, 86
      %v4739 = vpop.permute.xlu0 %4738
      %4740 = vrot.lane.b32.xlu0 %v4632, 86
      %v4741 = vpop.permute.xlu0 %4740
      %4742 = vrot.lane.b32.xlu0 %v4634, 86
      %v4743 = vpop.permute.xlu0 %4742
      %v4744 = vsel %vm1012, %v4729, %v4731
      %v4745 = vsel %vm1012, %v4731, %v4733
      %v4746 = vsel %vm1012, %v4733, %v4735
      %v4747 = vsel %vm1012, %v4737, %v4739
      %v4748 = vsel %vm1012, %v4739, %v4741
      %v4749 = vsel %vm1012, %v4741, %v4743
      %4756 = vrot.lane.b32.xlu0 %v4627, 84
      %v4757 = vpop.permute.xlu0 %4756
      %4758 = vrot.lane.b32.xlu0 %v4628, 84
      %v4759 = vpop.permute.xlu0 %4758
      %4760 = vrot.lane.b32.xlu0 %v4629, 84
      %v4761 = vpop.permute.xlu0 %4760
      %4762 = vrot.lane.b32.xlu0 %v4633, 84
      %v4763 = vpop.permute.xlu0 %4762
      %4764 = vrot.lane.b32.xlu0 %v4630, 84
      %v4765 = vpop.permute.xlu0 %4764
      %4766 = vrot.lane.b32.xlu0 %v4631, 84
      %v4767 = vpop.permute.xlu0 %4766
      %4768 = vrot.lane.b32.xlu0 %v4632, 84
      %v4769 = vpop.permute.xlu0 %4768
      %4770 = vrot.lane.b32.xlu0 %v4634, 84
      %v4771 = vpop.permute.xlu0 %4770
      %vm4772 = vcmask 687104
      %v4773 = vsel %vm4772, %v4757, %v4759
      %v4774 = vsel %vm4772, %v4759, %v4761
      %v4775 = vsel %vm4772, %v4761, %v4763
      %v4776 = vsel %vm4772, %v4765, %v4767
      %v4777 = vsel %vm4772, %v4767, %v4769
      %v4778 = vsel %vm4772, %v4769, %v4771
      %4785 = vrot.lane.b32.xlu0 %v4627, 48
      %v4786 = vpop.permute.xlu0 %4785
      %4787 = vrot.lane.b32.xlu0 %v4628, 48
      %v4788 = vpop.permute.xlu0 %4787
      %4789 = vrot.lane.b32.xlu0 %v4629, 48
      %v4790 = vpop.permute.xlu0 %4789
      %4791 = vrot.lane.b32.xlu0 %v4633, 48
      %v4792 = vpop.permute.xlu0 %4791
      %4793 = vrot.lane.b32.xlu0 %v4630, 48
      %v4794 = vpop.permute.xlu0 %4793
      %4795 = vrot.lane.b32.xlu0 %v4631, 48
      %v4796 = vpop.permute.xlu0 %4795
      %4797 = vrot.lane.b32.xlu0 %v4632, 48
      %v4798 = vpop.permute.xlu0 %4797
      %4799 = vrot.lane.b32.xlu0 %v4634, 48
      %v4800 = vpop.permute.xlu0 %4799
      %vm4801 = vcmask 392192
      %v4802 = vsel %vm4801, %v4786, %v4788
      %v4803 = vsel %vm4801, %v4788, %v4790
      %v4804 = vsel %vm4801, %v4790, %v4792
      %v4805 = vsel %vm4801, %v4794, %v4796
      %v4806 = vsel %vm4801, %v4796, %v4798
      %v4807 = vsel %vm4801, %v4798, %v4800
      %4814 = vrot.lane.b32.xlu0 %v4627, 46
      %v4815 = vpop.permute.xlu0 %4814
      %4816 = vrot.lane.b32.xlu0 %v4628, 46
      %v4817 = vpop.permute.xlu0 %4816
      %4818 = vrot.lane.b32.xlu0 %v4629, 46
      %v4819 = vpop.permute.xlu0 %4818
      %4820 = vrot.lane.b32.xlu0 %v4633, 46
      %v4821 = vpop.permute.xlu0 %4820
      %4822 = vrot.lane.b32.xlu0 %v4630, 46
      %v4823 = vpop.permute.xlu0 %4822
      %4824 = vrot.lane.b32.xlu0 %v4631, 46
      %v4825 = vpop.permute.xlu0 %4824
      %4826 = vrot.lane.b32.xlu0 %v4632, 46
      %v4827 = vpop.permute.xlu0 %4826
      %4828 = vrot.lane.b32.xlu0 %v4634, 46
      %v4829 = vpop.permute.xlu0 %4828
      %vm4830 = vcmask 375808
      %v4831 = vsel %vm4830, %v4815, %v4817
      %v4832 = vsel %vm4830, %v4817, %v4819
      %v4833 = vsel %vm4830, %v4819, %v4821
      %v4834 = vsel %vm4830, %v4823, %v4825
      %v4835 = vsel %vm4830, %v4825, %v4827
      %v4836 = vsel %vm4830, %v4827, %v4829
      %4843 = vrot.lane.b32.xlu0 %v4627, 44
      %v4844 = vpop.permute.xlu0 %4843
      %4845 = vrot.lane.b32.xlu0 %v4628, 44
      %v4846 = vpop.permute.xlu0 %4845
      %4847 = vrot.lane.b32.xlu0 %v4629, 44
      %v4848 = vpop.permute.xlu0 %4847
      %4849 = vrot.lane.b32.xlu0 %v4633, 44
      %v4850 = vpop.permute.xlu0 %4849
      %4851 = vrot.lane.b32.xlu0 %v4630, 44
      %v4852 = vpop.permute.xlu0 %4851
      %4853 = vrot.lane.b32.xlu0 %v4631, 44
      %v4854 = vpop.permute.xlu0 %4853
      %4855 = vrot.lane.b32.xlu0 %v4632, 44
      %v4856 = vpop.permute.xlu0 %4855
      %4857 = vrot.lane.b32.xlu0 %v4634, 44
      %v4858 = vpop.permute.xlu0 %4857
      %vm4859 = vcmask 359424
      %v4860 = vsel %vm4859, %v4844, %v4846
      %v4861 = vsel %vm4859, %v4846, %v4848
      %v4862 = vsel %vm4859, %v4848, %v4850
      %v4863 = vsel %vm4859, %v4852, %v4854
      %v4864 = vsel %vm4859, %v4854, %v4856
      %v4865 = vsel %vm4859, %v4856, %v4858
      %v4872 = vld [vmem:[%s20] sm:$0xff]
      %v4873 = vld [vmem:[%s20 + $0x8] sm:$0xff]
      %v4874 = vld [vmem:[%s20 + $0x10] sm:$0xff]
      %v4875 = vld [vmem:[%s20 + $0x18] sm:$0xff]
      %v4876 = vld [vmem:[%s21] sm:$0xff]
      %v4877 = vld [vmem:[%s21 + $0x8] sm:$0xff]
      %4879 = vset.pattern.permute.xlu0 0
      %4880 = vperm.xlu0 %4879, %v4876
      %v4881 = vpop.permute.xlu0 %4880
      %4884 = vset.pattern.permute.xlu0 0
      %4885 = vperm.xlu0 %4884, %v4877
      %v4886 = vpop.permute.xlu0 %4885
      %v4889 = vsel %vm1272, %v4873, 0
      %v4892 = vsel %vm1272, %v4875, 0
      %4894 = vmatprep.subr.mxu0 %v4628
      %4895 = vmatpush1.msra.mxu0 %v4627
      %4896 = vmatprep.subr.mxu0 %v4631
      %4897 = vmatpush1.msra.mxu0 %v4630
      %4898 = vmatprep.subr.mxu0 %v4660
      %4899 = vmatpush1.msra.mxu0 %v4659
      %4900 = vmatprep.subr.mxu0 %v4663
      %4901 = vmatpush1.msra.mxu0 %v4662
      %4902 = vmatprep.subr.mxu0 %v4689
      %4903 = vmatpush1.msra.mxu0 %v4688
      %4904 = vmatprep.subr.mxu0 %v4692
      %4905 = vmatpush1.msra.mxu0 %v4691
      %4906 = vmatprep.subr.mxu0 %v4717
      %4907 = vmatpush1.msra.mxu0 %v4716
      %4908 = vmatprep.subr.mxu0 %v4720
      %4909 = vmatpush1.msra.mxu0 %v4719
      %4910 = vmatprep.subr.mxu0 %v4745
      %4911 = vmatpush1.msra.mxu0 %v4744
      %4912 = vmatprep.subr.mxu0 %v4748
      %4913 = vmatpush1.msra.mxu0 %v4747
      %4914 = vmatprep.subr.mxu0 %v4774
      %4915 = vmatpush1.msra.mxu0 %v4773
      %4916 = vmatprep.subr.mxu0 %v4777
      %4917 = vmatpush1.msra.mxu0 %v4776
      %4918 = vmatprep.subr.mxu0 %v4803
      %4919 = vmatpush1.msra.mxu0 %v4802
      %4920 = vmatprep.subr.mxu0 %v4806
      %4921 = vmatpush1.msra.mxu0 %v4805
      %4922 = vmatprep.subr.mxu0 %v4832
      %4923 = vmatpush1.msra.mxu0 %v4831
      %4924 = vmatprep.subr.mxu0 %v4835
      %4925 = vmatpush1.msra.mxu0 %v4834
      %4926 = vmatprep.subr.mxu0 %v4861
      %4927 = vmatpush1.msra.mxu0 %v4860
      %4928 = vmatprep.subr.mxu0 %v4864
      %4929 = vmatpush1.msra.mxu0 %v4863
      %4930 = vmatprep.subr.mxu0 0.0
      %4931 = vmatpush1.msra.mxu0 0.0
      %4932 = vmatprep.subr.mxu0 0.0
      %4933 = vmatpush1.msra.mxu0 0.0
      %4934 = vmatprep.subr.mxu0 0.0
      %4935 = vmatpush1.msra.mxu0 0.0
      %4936 = vmatprep.subr.mxu0 0.0
      %4937 = vmatpush1.msra.mxu0 0.0
      %4938 = vmatprep.subr.mxu0 0.0
      %4939 = vmatpush1.msra.mxu0 0.0
      %4940 = vmatprep.subr.mxu0 0.0
      %4941 = vmatpush1.msra.mxu0 0.0
      %4942 = vmatprep.subr.mxu0 0.0
      %4943 = vmatpush1.msra.mxu0 0.0
      %4944 = vmatprep.subr.mxu0 0.0
      %4945 = vmatpush1.msra.mxu0 0.0
      %4946 = vmatprep.subr.mxu0 0.0
      %4947 = vmatpush1.msra.mxu0 0.0
      %4948 = vmatprep.subr.mxu0 0.0
      %4949 = vmatpush1.msra.mxu0 0.0
      %4950 = vmatprep.subr.mxu0 0.0
      %4951 = vmatpush1.msra.mxu0 0.0
      %4952 = vmatprep.subr.mxu0 0.0
      %4953 = vmatpush1.msra.mxu0 0.0
      %4954 = vmatprep.subr.mxu0 0.0
      %4955 = vmatpush1.msra.mxu0 0.0
      %4956 = vmatprep.subr.mxu0 0.0
      %4957 = vmatpush1.msra.mxu0 0.0
      %4958 = vmatprep.mubr.f32.mxu0 %v4889
      %4959 = vmatmul.mubr.f32.gmra.mrb[0].mxu0 %v4872
      %v4960 = vpop.f32.mrb[0].mxu0
      %v4961 = vadd.f32 %v4881, %v4960
      %v4962 = vpop.f32.mrb[0].mxu0
      %v4963 = vadd.f32 %v4881, %v4962
      %4964 = vmatprep.mubr.f32.mxu0 %v4892
      %4965 = vmatmul.mubr.f32.gmra.mrb[0].mxu0 %v4874
      %v4966 = vpop.f32.mrb[0].mxu0
      %v4967 = vadd.f32 %v4886, %v4966
      %v4968 = vpop.f32.mrb[0].mxu0
      %v4969 = vadd.f32 %v4886, %v4968
      %4970 = vdwg.mxu0
      %4971 = vmatprep.subr.mxu0 0.0
      %4972 = vmatpush1.msra.mxu0 %v4629
      %4973 = vmatprep.subr.mxu0 0.0
      %4974 = vmatpush1.msra.mxu0 %v4632
      %4975 = vmatprep.subr.mxu0 0.0
      %4976 = vmatpush1.msra.mxu0 %v4661
      %4977 = vmatprep.subr.mxu0 0.0
      %4978 = vmatpush1.msra.mxu0 %v4664
      %4979 = vmatprep.subr.mxu0 0.0
      %4980 = vmatpush1.msra.mxu0 %v4690
      %4981 = vmatprep.subr.mxu0 0.0
      %4982 = vmatpush1.msra.mxu0 %v4693
      %4983 = vmatprep.subr.mxu0 0.0
      %4984 = vmatpush1.msra.mxu0 %v4718
      %4985 = vmatprep.subr.mxu0 0.0
      %4986 = vmatpush1.msra.mxu0 %v4721
      %4987 = vmatprep.subr.mxu0 0.0
      %4988 = vmatpush1.msra.mxu0 %v4746
      %4989 = vmatprep.subr.mxu0 0.0
      %4990 = vmatpush1.msra.mxu0 %v4749
      %4991 = vmatprep.subr.mxu0 0.0
      %4992 = vmatpush1.msra.mxu0 %v4775
      %4993 = vmatprep.subr.mxu0 0.0
      %4994 = vmatpush1.msra.mxu0 %v4778
      %4995 = vmatprep.subr.mxu0 0.0
      %4996 = vmatpush1.msra.mxu0 %v4804
      %4997 = vmatprep.subr.mxu0 0.0
      %4998 = vmatpush1.msra.mxu0 %v4807
      %4999 = vmatprep.subr.mxu0 0.0
      %5000 = vmatpush1.msra.mxu0 %v4833
      %5001 = vmatprep.subr.mxu0 0.0
      %5002 = vmatpush1.msra.mxu0 %v4836
      %5003 = vmatprep.subr.mxu0 0.0
      %5004 = vmatpush1.msra.mxu0 %v4862
      %5005 = vmatprep.subr.mxu0 0.0
      %5006 = vmatpush1.msra.mxu0 %v4865
      %5007 = vmatprep.subr.mxu0 0.0
      %5008 = vmatpush1.msra.mxu0 0.0
      %5009 = vmatprep.subr.mxu0 0.0
      %5010 = vmatpush1.msra.mxu0 0.0
      %5011 = vmatprep.subr.mxu0 0.0
      %5012 = vmatpush1.msra.mxu0 0.0
      %5013 = vmatprep.subr.mxu0 0.0
      %5014 = vmatpush1.msra.mxu0 0.0
      %5015 = vmatprep.subr.mxu0 0.0
      %5016 = vmatpush1.msra.mxu0 0.0
      %5017 = vmatprep.subr.mxu0 0.0
      %5018 = vmatpush1.msra.mxu0 0.0
      %5019 = vmatprep.subr.mxu0 0.0
      %5020 = vmatpush1.msra.mxu0 0.0
      %5021 = vmatprep.subr.mxu0 0.0
      %5022 = vmatpush1.msra.mxu0 0.0
      %5023 = vmatprep.subr.mxu0 0.0
      %5024 = vmatpush1.msra.mxu0 0.0
      %5025 = vmatprep.subr.mxu0 0.0
      %5026 = vmatpush1.msra.mxu0 0.0
      %5027 = vmatprep.subr.mxu0 0.0
      %5028 = vmatpush1.msra.mxu0 0.0
      %5029 = vmatprep.subr.mxu0 0.0
      %5030 = vmatpush1.msra.mxu0 0.0
      %5031 = vmatprep.subr.mxu0 0.0
      %5032 = vmatpush1.msra.mxu0 0.0
      %5033 = vmatprep.subr.mxu0 0.0
      %5034 = vmatpush1.msra.mxu0 0.0
      %5035 = vmatprep.mubr.f32.mxu0 %v4889
      %5036 = vmatmul.mubr.f32.gmra.mrb[0].mxu0 %v4872
      %v5037 = vpop.f32.mrb[0].mxu0
      %v5038 = vadd.f32 %v4881, %v5037
      %v5039 = vpop.f32.mrb[0].mxu0
      %5040 = vmatprep.mubr.f32.mxu0 %v4892
      %5041 = vmatmul.mubr.f32.gmra.mrb[0].mxu0 %v4874
      %v5042 = vpop.f32.mrb[0].mxu0
      %v5043 = vadd.f32 %v4886, %v5042
      %v5044 = vpop.f32.mrb[0].mxu0
      %5045 = vdwg.mxu0
      %vm5046 = vcmp.ge.f32.partialorder %v4961, 0.0
      %vm5047 = vcmp.ge.f32.partialorder %v4963, 0.0
      %vm5048 = vcmp.ge.f32.partialorder %v5038, 0.0
      %vm5049 = vcmp.ge.f32.partialorder %v4967, 0.0
      %vm5050 = vcmp.ge.f32.partialorder %v4969, 0.0
      %vm5051 = vcmp.ge.f32.partialorder %v5043, 0.0
      %v5052 = vmul.f32 %v4961, 0.01
      %v5053 = vmul.f32 %v4963, 0.01
      %v5054 = vmul.f32 %v5038, 0.01
      %v5055 = vmul.f32 %v4967, 0.01
      %v5056 = vmul.f32 %v4969, 0.01
      %v5057 = vmul.f32 %v5043, 0.01
      %v5058 = vsel %vm5046, %v4961, %v5052
      %v5059 = vsel %vm5047, %v4963, %v5053
      %v5060 = vsel %vm5048, %v5038, %v5054
      %v5061 = vsel %vm5049, %v4967, %v5055
      %v5062 = vsel %vm5050, %v4969, %v5056
      %v5063 = vsel %vm5051, %v5043, %v5057
      %v5064 = vmul.f32 %v5058, %v974
      %v5065 = vmul.f32 %v5059, %v978
      %v5066 = vmul.f32 %v5060, %v982
      %v5067 = vmul.f32 %v5061, %v974
      %v5068 = vmul.f32 %v5062, %v978
      %v5069 = vmul.f32 %v5063, %v982
      %5076 = vrot.lane.b32.xlu0 %v5064, 42
      %v5077 = vpop.permute.xlu0 %5076
      %5078 = vrot.lane.b32.xlu0 %v5065, 42
      %v5079 = vpop.permute.xlu0 %5078
      %5080 = vrot.lane.b32.xlu0 %v5066, 42
      %v5081 = vpop.permute.xlu0 %5080
      %5082 = vrot.lane.b32.xlu0 %v5067, 42
      %v5083 = vpop.permute.xlu0 %5082
      %5084 = vrot.lane.b32.xlu0 %v5068, 42
      %v5085 = vpop.permute.xlu0 %5084
      %5086 = vrot.lane.b32.xlu0 %v5069, 42
      %v5087 = vpop.permute.xlu0 %5086
      %v5088 = vsel %vm989, %v5077, %v5079
      %v5089 = vsel %vm989, %v5079, %v5081
      %v5090 = vsel %vm989, %v5083, %v5085
      %v5091 = vsel %vm989, %v5085, %v5087
      %5100 = vst.msk [vmem:[#allocation6] sm:$0xff] %vm3091, %v5077
      %5101 = vst [vmem:[#allocation6 + $0x8] sm:$0xff] %v5088
      %5102 = vst [vmem:[#allocation6 + $0x10] sm:$0xff] %v5089
      %5103 = vst.msk [vmem:[#allocation6 + $0x18] sm:$0xff] %vm989, %v5081
      %5104 = vst.msk [vmem:[#allocation6 + $0x20] sm:$0xff] %vm3091, %v5083
      %5105 = vst [vmem:[#allocation6 + $0x28] sm:$0xff] %v5090
      %5106 = vst [vmem:[#allocation6 + $0x30] sm:$0xff] %v5091
      %5107 = vst.msk [vmem:[#allocation6 + $0x38] sm:$0xff] %vm989, %v5087
      %v5108 = vld [vmem:[#allocation6] sm:$0xff]
      %v5109 = vld [vmem:[#allocation6 + $0x8] sm:$0xff]
      %v5110 = vld [vmem:[#allocation6 + $0x10] sm:$0xff]
      %v5111 = vld [vmem:[#allocation6 + $0x20] sm:$0xff]
      %v5112 = vld [vmem:[#allocation6 + $0x28] sm:$0xff]
      %v5113 = vld [vmem:[#allocation6 + $0x30] sm:$0xff]
      %v5114 = vld [vmem:[#allocation6] sm:$0xff]
      %v5115 = vld [vmem:[#allocation6 + $0x8] sm:$0xff]
      %v5116 = vld [vmem:[#allocation6 + $0x10] sm:$0xff]
      %v5117 = vld [vmem:[#allocation6 + $0x18] sm:$0xff]
      %v5118 = vld [vmem:[#allocation6 + $0x20] sm:$0xff]
      %v5119 = vld [vmem:[#allocation6 + $0x28] sm:$0xff]
      %v5120 = vld [vmem:[#allocation6 + $0x30] sm:$0xff]
      %v5121 = vld [vmem:[#allocation6 + $0x38] sm:$0xff]
      %5130 = vrot.lane.b32.xlu0 %v5114, 126
      %v5131 = vpop.permute.xlu0 %5130
      %5132 = vrot.lane.b32.xlu0 %v5115, 126
      %v5133 = vpop.permute.xlu0 %5132
      %5134 = vrot.lane.b32.xlu0 %v5116, 126
      %v5135 = vpop.permute.xlu0 %5134
      %5136 = vrot.lane.b32.xlu0 %v5117, 126
      %v5137 = vpop.permute.xlu0 %5136
      %5138 = vrot.lane.b32.xlu0 %v5118, 126
      %v5139 = vpop.permute.xlu0 %5138
      %5140 = vrot.lane.b32.xlu0 %v5119, 126
      %v5141 = vpop.permute.xlu0 %5140
      %5142 = vrot.lane.b32.xlu0 %v5120, 126
      %v5143 = vpop.permute.xlu0 %5142
      %5144 = vrot.lane.b32.xlu0 %v5121, 126
      %v5145 = vpop.permute.xlu0 %5144
      %v5146 = vsel %vm2674, %v5131, %v5133
      %v5147 = vsel %vm2674, %v5133, %v5135
      %v5148 = vsel %vm2674, %v5135, %v5137
      %v5149 = vsel %vm2674, %v5139, %v5141
      %v5150 = vsel %vm2674, %v5141, %v5143
      %v5151 = vsel %vm2674, %v5143, %v5145
      %5158 = vrot.lane.b32.xlu0 %v5114, 124
      %v5159 = vpop.permute.xlu0 %5158
      %5160 = vrot.lane.b32.xlu0 %v5115, 124
      %v5161 = vpop.permute.xlu0 %5160
      %5162 = vrot.lane.b32.xlu0 %v5116, 124
      %v5163 = vpop.permute.xlu0 %5162
      %5164 = vrot.lane.b32.xlu0 %v5117, 124
      %v5165 = vpop.permute.xlu0 %5164
      %5166 = vrot.lane.b32.xlu0 %v5118, 124
      %v5167 = vpop.permute.xlu0 %5166
      %5168 = vrot.lane.b32.xlu0 %v5119, 124
      %v5169 = vpop.permute.xlu0 %5168
      %5170 = vrot.lane.b32.xlu0 %v5120, 124
      %v5171 = vpop.permute.xlu0 %5170
      %5172 = vrot.lane.b32.xlu0 %v5121, 124
      %v5173 = vpop.permute.xlu0 %5172
      %v5174 = vsel %vm4687, %v5159, %v5161
      %v5175 = vsel %vm4687, %v5161, %v5163
      %v5176 = vsel %vm4687, %v5163, %v5165
      %v5177 = vsel %vm4687, %v5167, %v5169
      %v5178 = vsel %vm4687, %v5169, %v5171
      %v5179 = vsel %vm4687, %v5171, %v5173
      %5186 = vrot.lane.b32.xlu0 %v5114, 88
      %v5187 = vpop.permute.xlu0 %5186
      %5188 = vrot.lane.b32.xlu0 %v5115, 88
      %v5189 = vpop.permute.xlu0 %5188
      %5190 = vrot.lane.b32.xlu0 %v5116, 88
      %v5191 = vpop.permute.xlu0 %5190
      %5192 = vrot.lane.b32.xlu0 %v5117, 88
      %v5193 = vpop.permute.xlu0 %5192
      %5194 = vrot.lane.b32.xlu0 %v5118, 88
      %v5195 = vpop.permute.xlu0 %5194
      %5196 = vrot.lane.b32.xlu0 %v5119, 88
      %v5197 = vpop.permute.xlu0 %5196
      %5198 = vrot.lane.b32.xlu0 %v5120, 88
      %v5199 = vpop.permute.xlu0 %5198
      %5200 = vrot.lane.b32.xlu0 %v5121, 88
      %v5201 = vpop.permute.xlu0 %5200
      %v5202 = vsel %vm2722, %v5187, %v5189
      %v5203 = vsel %vm2722, %v5189, %v5191
      %v5204 = vsel %vm2722, %v5191, %v5193
      %v5205 = vsel %vm2722, %v5195, %v5197
      %v5206 = vsel %vm2722, %v5197, %v5199
      %v5207 = vsel %vm2722, %v5199, %v5201
      %5214 = vrot.lane.b32.xlu0 %v5114, 86
      %v5215 = vpop.permute.xlu0 %5214
      %5216 = vrot.lane.b32.xlu0 %v5115, 86
      %v5217 = vpop.permute.xlu0 %5216
      %5218 = vrot.lane.b32.xlu0 %v5116, 86
      %v5219 = vpop.permute.xlu0 %5218
      %5220 = vrot.lane.b32.xlu0 %v5117, 86
      %v5221 = vpop.permute.xlu0 %5220
      %5222 = vrot.lane.b32.xlu0 %v5118, 86
      %v5223 = vpop.permute.xlu0 %5222
      %5224 = vrot.lane.b32.xlu0 %v5119, 86
      %v5225 = vpop.permute.xlu0 %5224
      %5226 = vrot.lane.b32.xlu0 %v5120, 86
      %v5227 = vpop.permute.xlu0 %5226
      %5228 = vrot.lane.b32.xlu0 %v5121, 86
      %v5229 = vpop.permute.xlu0 %5228
      %v5230 = vsel %vm1012, %v5215, %v5217
      %v5231 = vsel %vm1012, %v5217, %v5219
      %v5232 = vsel %vm1012, %v5219, %v5221
      %v5233 = vsel %vm1012, %v5223, %v5225
      %v5234 = vsel %vm1012, %v5225, %v5227
      %v5235 = vsel %vm1012, %v5227, %v5229
      %5242 = vrot.lane.b32.xlu0 %v5114, 84
      %v5243 = vpop.permute.xlu0 %5242
      %5244 = vrot.lane.b32.xlu0 %v5115, 84
      %v5245 = vpop.permute.xlu0 %5244
      %5246 = vrot.lane.b32.xlu0 %v5116, 84
      %v5247 = vpop.permute.xlu0 %5246
      %5248 = vrot.lane.b32.xlu0 %v5117, 84
      %v5249 = vpop.permute.xlu0 %5248
      %5250 = vrot.lane.b32.xlu0 %v5118, 84
      %v5251 = vpop.permute.xlu0 %5250
      %5252 = vrot.lane.b32.xlu0 %v5119, 84
      %v5253 = vpop.permute.xlu0 %5252
      %5254 = vrot.lane.b32.xlu0 %v5120, 84
      %v5255 = vpop.permute.xlu0 %5254
      %5256 = vrot.lane.b32.xlu0 %v5121, 84
      %v5257 = vpop.permute.xlu0 %5256
      %v5258 = vsel %vm4772, %v5243, %v5245
      %v5259 = vsel %vm4772, %v5245, %v5247
      %v5260 = vsel %vm4772, %v5247, %v5249
      %v5261 = vsel %vm4772, %v5251, %v5253
      %v5262 = vsel %vm4772, %v5253, %v5255
      %v5263 = vsel %vm4772, %v5255, %v5257
      %5270 = vrot.lane.b32.xlu0 %v5114, 48
      %v5271 = vpop.permute.xlu0 %5270
      %5272 = vrot.lane.b32.xlu0 %v5115, 48
      %v5273 = vpop.permute.xlu0 %5272
      %5274 = vrot.lane.b32.xlu0 %v5116, 48
      %v5275 = vpop.permute.xlu0 %5274
      %5276 = vrot.lane.b32.xlu0 %v5117, 48
      %v5277 = vpop.permute.xlu0 %5276
      %5278 = vrot.lane.b32.xlu0 %v5118, 48
      %v5279 = vpop.permute.xlu0 %5278
      %5280 = vrot.lane.b32.xlu0 %v5119, 48
      %v5281 = vpop.permute.xlu0 %5280
      %5282 = vrot.lane.b32.xlu0 %v5120, 48
      %v5283 = vpop.permute.xlu0 %5282
      %5284 = vrot.lane.b32.xlu0 %v5121, 48
      %v5285 = vpop.permute.xlu0 %5284
      %v5286 = vsel %vm4801, %v5271, %v5273
      %v5287 = vsel %vm4801, %v5273, %v5275
      %v5288 = vsel %vm4801, %v5275, %v5277
      %v5289 = vsel %vm4801, %v5279, %v5281
      %v5290 = vsel %vm4801, %v5281, %v5283
      %v5291 = vsel %vm4801, %v5283, %v5285
      %5298 = vrot.lane.b32.xlu0 %v5114, 46
      %v5299 = vpop.permute.xlu0 %5298
      %5300 = vrot.lane.b32.xlu0 %v5115, 46
      %v5301 = vpop.permute.xlu0 %5300
      %5302 = vrot.lane.b32.xlu0 %v5116, 46
      %v5303 = vpop.permute.xlu0 %5302
      %5304 = vrot.lane.b32.xlu0 %v5117, 46
      %v5305 = vpop.permute.xlu0 %5304
      %5306 = vrot.lane.b32.xlu0 %v5118, 46
      %v5307 = vpop.permute.xlu0 %5306
      %5308 = vrot.lane.b32.xlu0 %v5119, 46
      %v5309 = vpop.permute.xlu0 %5308
      %5310 = vrot.lane.b32.xlu0 %v5120, 46
      %v5311 = vpop.permute.xlu0 %5310
      %5312 = vrot.lane.b32.xlu0 %v5121, 46
      %v5313 = vpop.permute.xlu0 %5312
      %v5314 = vsel %vm4830, %v5299, %v5301
      %v5315 = vsel %vm4830, %v5301, %v5303
      %v5316 = vsel %vm4830, %v5303, %v5305
      %v5317 = vsel %vm4830, %v5307, %v5309
      %v5318 = vsel %vm4830, %v5309, %v5311
      %v5319 = vsel %vm4830, %v5311, %v5313
      %5326 = vrot.lane.b32.xlu0 %v5114, 44
      %v5327 = vpop.permute.xlu0 %5326
      %5328 = vrot.lane.b32.xlu0 %v5115, 44
      %v5329 = vpop.permute.xlu0 %5328
      %5330 = vrot.lane.b32.xlu0 %v5116, 44
      %v5331 = vpop.permute.xlu0 %5330
      %5332 = vrot.lane.b32.xlu0 %v5117, 44
      %v5333 = vpop.permute.xlu0 %5332
      %5334 = vrot.lane.b32.xlu0 %v5118, 44
      %v5335 = vpop.permute.xlu0 %5334
      %5336 = vrot.lane.b32.xlu0 %v5119, 44
      %v5337 = vpop.permute.xlu0 %5336
      %5338 = vrot.lane.b32.xlu0 %v5120, 44
      %v5339 = vpop.permute.xlu0 %5338
      %5340 = vrot.lane.b32.xlu0 %v5121, 44
      %v5341 = vpop.permute.xlu0 %5340
      %v5342 = vsel %vm4859, %v5327, %v5329
      %v5343 = vsel %vm4859, %v5329, %v5331
      %v5344 = vsel %vm4859, %v5331, %v5333
      %v5345 = vsel %vm4859, %v5335, %v5337
      %v5346 = vsel %vm4859, %v5337, %v5339
      %v5347 = vsel %vm4859, %v5339, %v5341
      %v5354 = vld [vmem:[%s22] sm:$0xff]
      %v5355 = vld [vmem:[%s22 + $0x8] sm:$0xff]
      %v5356 = vld [vmem:[%s22 + $0x10] sm:$0xff]
      %v5357 = vld [vmem:[%s22 + $0x18] sm:$0xff]
      %v5358 = vld [vmem:[%s23] sm:$0xff]
      %v5359 = vld [vmem:[%s23 + $0x8] sm:$0xff]
      %5361 = vset.pattern.permute.xlu0 0
      %5362 = vperm.xlu0 %5361, %v5358
      %v5363 = vpop.permute.xlu0 %5362
      %5366 = vset.pattern.permute.xlu0 0
      %5367 = vperm.xlu0 %5366, %v5359
      %v5368 = vpop.permute.xlu0 %5367
      %v5371 = vsel %vm1272, %v5355, 0
      %v5374 = vsel %vm1272, %v5357, 0
      %5376 = vmatprep.subr.mxu0 %v5109
      %5377 = vmatpush1.msra.mxu0 %v5108
      %5378 = vmatprep.subr.mxu0 %v5112
      %5379 = vmatpush1.msra.mxu0 %v5111
      %5380 = vmatprep.subr.mxu0 %v5147
      %5381 = vmatpush1.msra.mxu0 %v5146
      %5382 = vmatprep.subr.mxu0 %v5150
      %5383 = vmatpush1.msra.mxu0 %v5149
      %5384 = vmatprep.subr.mxu0 %v5175
      %5385 = vmatpush1.msra.mxu0 %v5174
      %5386 = vmatprep.subr.mxu0 %v5178
      %5387 = vmatpush1.msra.mxu0 %v5177
      %5388 = vmatprep.subr.mxu0 %v5203
      %5389 = vmatpush1.msra.mxu0 %v5202
      %5390 = vmatprep.subr.mxu0 %v5206
      %5391 = vmatpush1.msra.mxu0 %v5205
      %5392 = vmatprep.subr.mxu0 %v5231
      %5393 = vmatpush1.msra.mxu0 %v5230
      %5394 = vmatprep.subr.mxu0 %v5234
      %5395 = vmatpush1.msra.mxu0 %v5233
      %5396 = vmatprep.subr.mxu0 %v5259
      %5397 = vmatpush1.msra.mxu0 %v5258
      %5398 = vmatprep.subr.mxu0 %v5262
      %5399 = vmatpush1.msra.mxu0 %v5261
      %5400 = vmatprep.subr.mxu0 %v5287
      %5401 = vmatpush1.msra.mxu0 %v5286
      %5402 = vmatprep.subr.mxu0 %v5290
      %5403 = vmatpush1.msra.mxu0 %v5289
      %5404 = vmatprep.subr.mxu0 %v5315
      %5405 = vmatpush1.msra.mxu0 %v5314
      %5406 = vmatprep.subr.mxu0 %v5318
      %5407 = vmatpush1.msra.mxu0 %v5317
      %5408 = vmatprep.subr.mxu0 %v5343
      %5409 = vmatpush1.msra.mxu0 %v5342
      %5410 = vmatprep.subr.mxu0 %v5346
      %5411 = vmatpush1.msra.mxu0 %v5345
      %5412 = vmatprep.subr.mxu0 0.0
      %5413 = vmatpush1.msra.mxu0 0.0
      %5414 = vmatprep.subr.mxu0 0.0
      %5415 = vmatpush1.msra.mxu0 0.0
      %5416 = vmatprep.subr.mxu0 0.0
      %5417 = vmatpush1.msra.mxu0 0.0
      %5418 = vmatprep.subr.mxu0 0.0
      %5419 = vmatpush1.msra.mxu0 0.0
      %5420 = vmatprep.subr.mxu0 0.0
      %5421 = vmatpush1.msra.mxu0 0.0
      %5422 = vmatprep.subr.mxu0 0.0
      %5423 = vmatpush1.msra.mxu0 0.0
      %5424 = vmatprep.subr.mxu0 0.0
      %5425 = vmatpush1.msra.mxu0 0.0
      %5426 = vmatprep.subr.mxu0 0.0
      %5427 = vmatpush1.msra.mxu0 0.0
      %5428 = vmatprep.subr.mxu0 0.0
      %5429 = vmatpush1.msra.mxu0 0.0
      %5430 = vmatprep.subr.mxu0 0.0
      %5431 = vmatpush1.msra.mxu0 0.0
      %5432 = vmatprep.subr.mxu0 0.0
      %5433 = vmatpush1.msra.mxu0 0.0
      %5434 = vmatprep.subr.mxu0 0.0
      %5435 = vmatpush1.msra.mxu0 0.0
      %5436 = vmatprep.subr.mxu0 0.0
      %5437 = vmatpush1.msra.mxu0 0.0
      %5438 = vmatprep.subr.mxu0 0.0
      %5439 = vmatpush1.msra.mxu0 0.0
      %5440 = vmatprep.mubr.f32.mxu0 %v5371
      %5441 = vmatmul.mubr.f32.gmra.mrb[0].mxu0 %v5354
      %v5442 = vpop.f32.mrb[0].mxu0
      %v5443 = vadd.f32 %v5363, %v5442
      %v5444 = vpop.f32.mrb[0].mxu0
      %v5445 = vadd.f32 %v5363, %v5444
      %5446 = vmatprep.mubr.f32.mxu0 %v5374
      %5447 = vmatmul.mubr.f32.gmra.mrb[0].mxu0 %v5356
      %v5448 = vpop.f32.mrb[0].mxu0
      %v5449 = vadd.f32 %v5368, %v5448
      %v5450 = vpop.f32.mrb[0].mxu0
      %v5451 = vadd.f32 %v5368, %v5450
      %5452 = vdwg.mxu0
      %5453 = vmatprep.subr.mxu0 0.0
      %5454 = vmatpush1.msra.mxu0 %v5110
      %5455 = vmatprep.subr.mxu0 0.0
      %5456 = vmatpush1.msra.mxu0 %v5113
      %5457 = vmatprep.subr.mxu0 0.0
      %5458 = vmatpush1.msra.mxu0 %v5148
      %5459 = vmatprep.subr.mxu0 0.0
      %5460 = vmatpush1.msra.mxu0 %v5151
      %5461 = vmatprep.subr.mxu0 0.0
      %5462 = vmatpush1.msra.mxu0 %v5176
      %5463 = vmatprep.subr.mxu0 0.0
      %5464 = vmatpush1.msra.mxu0 %v5179
      %5465 = vmatprep.subr.mxu0 0.0
      %5466 = vmatpush1.msra.mxu0 %v5204
      %5467 = vmatprep.subr.mxu0 0.0
      %5468 = vmatpush1.msra.mxu0 %v5207
      %5469 = vmatprep.subr.mxu0 0.0
      %5470 = vmatpush1.msra.mxu0 %v5232
      %5471 = vmatprep.subr.mxu0 0.0
      %5472 = vmatpush1.msra.mxu0 %v5235
      %5473 = vmatprep.subr.mxu0 0.0
      %5474 = vmatpush1.msra.mxu0 %v5260
      %5475 = vmatprep.subr.mxu0 0.0
      %5476 = vmatpush1.msra.mxu0 %v5263
      %5477 = vmatprep.subr.mxu0 0.0
      %5478 = vmatpush1.msra.mxu0 %v5288
      %5479 = vmatprep.subr.mxu0 0.0
      %5480 = vmatpush1.msra.mxu0 %v5291
      %5481 = vmatprep.subr.mxu0 0.0
      %5482 = vmatpush1.msra.mxu0 %v5316
      %5483 = vmatprep.subr.mxu0 0.0
      %5484 = vmatpush1.msra.mxu0 %v5319
      %5485 = vmatprep.subr.mxu0 0.0
      %5486 = vmatpush1.msra.mxu0 %v5344
      %5487 = vmatprep.subr.mxu0 0.0
      %5488 = vmatpush1.msra.mxu0 %v5347
      %5489 = vmatprep.subr.mxu0 0.0
      %5490 = vmatpush1.msra.mxu0 0.0
      %5491 = vmatprep.subr.mxu0 0.0
      %5492 = vmatpush1.msra.mxu0 0.0
      %5493 = vmatprep.subr.mxu0 0.0
      %5494 = vmatpush1.msra.mxu0 0.0
      %5495 = vmatprep.subr.mxu0 0.0
      %5496 = vmatpush1.msra.mxu0 0.0
      %5497 = vmatprep.subr.mxu0 0.0
      %5498 = vmatpush1.msra.mxu0 0.0
      %5499 = vmatprep.subr.mxu0 0.0
      %5500 = vmatpush1.msra.mxu0 0.0
      %5501 = vmatprep.subr.mxu0 0.0
      %5502 = vmatpush1.msra.mxu0 0.0
      %5503 = vmatprep.subr.mxu0 0.0
      %5504 = vmatpush1.msra.mxu0 0.0
      %5505 = vmatprep.subr.mxu0 0.0
      %5506 = vmatpush1.msra.mxu0 0.0
      %5507 = vmatprep.subr.mxu0 0.0
      %5508 = vmatpush1.msra.mxu0 0.0
      %5509 = vmatprep.subr.mxu0 0.0
      %5510 = vmatpush1.msra.mxu0 0.0
      %5511 = vmatprep.subr.mxu0 0.0
      %5512 = vmatpush1.msra.mxu0 0.0
      %5513 = vmatprep.subr.mxu0 0.0
      %5514 = vmatpush1.msra.mxu0 0.0
      %5515 = vmatprep.subr.mxu0 0.0
      %5516 = vmatpush1.msra.mxu0 0.0
      %5517 = vmatprep.mubr.f32.mxu0 %v5371
      %5518 = vmatmul.mubr.f32.gmra.mrb[0].mxu0 %v5354
      %v5519 = vpop.f32.mrb[0].mxu0
      %v5520 = vadd.f32 %v5363, %v5519
      %v5521 = vpop.f32.mrb[0].mxu0
      %5522 = vmatprep.mubr.f32.mxu0 %v5374
      %5523 = vmatmul.mubr.f32.gmra.mrb[0].mxu0 %v5356
      %v5524 = vpop.f32.mrb[0].mxu0
      %v5525 = vadd.f32 %v5368, %v5524
      %v5526 = vpop.f32.mrb[0].mxu0
      %5527 = vdwg.mxu0
      %vm5528 = vcmp.ge.f32.partialorder %v5443, 0.0
      %vm5529 = vcmp.ge.f32.partialorder %v5445, 0.0
      %vm5530 = vcmp.ge.f32.partialorder %v5520, 0.0
      %vm5531 = vcmp.ge.f32.partialorder %v5449, 0.0
      %vm5532 = vcmp.ge.f32.partialorder %v5451, 0.0
      %vm5533 = vcmp.ge.f32.partialorder %v5525, 0.0
      %v5534 = vmul.f32 %v5443, 0.01
      %v5535 = vmul.f32 %v5445, 0.01
      %v5536 = vmul.f32 %v5520, 0.01
      %v5537 = vmul.f32 %v5449, 0.01
      %v5538 = vmul.f32 %v5451, 0.01
      %v5539 = vmul.f32 %v5525, 0.01
      %v5540 = vsel %vm5528, %v5443, %v5534
      %v5541 = vsel %vm5529, %v5445, %v5535
      %v5542 = vsel %vm5530, %v5520, %v5536
      %v5543 = vsel %vm5531, %v5449, %v5537
      %v5544 = vsel %vm5532, %v5451, %v5538
      %v5545 = vsel %vm5533, %v5525, %v5539
      %v5546 = vmul.f32 %v5540, %v974
      %v5547 = vmul.f32 %v5541, %v978
      %v5548 = vmul.f32 %v5542, %v982
      %v5549 = vmul.f32 %v5543, %v974
      %v5550 = vmul.f32 %v5544, %v978
      %v5551 = vmul.f32 %v5545, %v982
      %5558 = vrot.lane.b32.xlu0 %v5546, 42
      %v5559 = vpop.permute.xlu0 %5558
      %5560 = vrot.lane.b32.xlu0 %v5547, 42
      %v5561 = vpop.permute.xlu0 %5560
      %5562 = vrot.lane.b32.xlu0 %v5548, 42
      %v5563 = vpop.permute.xlu0 %5562
      %5564 = vrot.lane.b32.xlu0 %v5549, 42
      %v5565 = vpop.permute.xlu0 %5564
      %5566 = vrot.lane.b32.xlu0 %v5550, 42
      %v5567 = vpop.permute.xlu0 %5566
      %5568 = vrot.lane.b32.xlu0 %v5551, 42
      %v5569 = vpop.permute.xlu0 %5568
      %v5570 = vsel %vm989, %v5559, %v5561
      %v5571 = vsel %vm989, %v5561, %v5563
      %v5572 = vsel %vm989, %v5565, %v5567
      %v5573 = vsel %vm989, %v5567, %v5569
      %5582 = vst.msk [vmem:[#allocation5 + $0x40] sm:$0xff] %vm3091, %v5559
      %5583 = vst [vmem:[#allocation5 + $0x48] sm:$0xff] %v5570
      %5584 = vst [vmem:[#allocation5 + $0x50] sm:$0xff] %v5571
      %5585 = vst.msk [vmem:[#allocation5 + $0x58] sm:$0xff] %vm989, %v5563
      %5586 = vst.msk [vmem:[#allocation5 + $0x60] sm:$0xff] %vm3091, %v5565
      %5587 = vst [vmem:[#allocation5 + $0x68] sm:$0xff] %v5572
      %5588 = vst [vmem:[#allocation5 + $0x70] sm:$0xff] %v5573
      %5589 = vst.msk [vmem:[#allocation5 + $0x78] sm:$0xff] %vm989, %v5569
      %v5590 = vld [vmem:[#allocation5] sm:$0xff]
      %v5591 = vld [vmem:[#allocation5 + $0x8] sm:$0xff]
      %v5592 = vld [vmem:[#allocation5 + $0x10] sm:$0xff]
      %v5593 = vld [vmem:[#allocation5 + $0x18] sm:$0xff]
      %v5594 = vld [vmem:[#allocation5 + $0x20] sm:$0xff]
      %v5595 = vld [vmem:[#allocation5 + $0x28] sm:$0xff]
      %v5596 = vld [vmem:[#allocation5 + $0x30] sm:$0xff]
      %v5597 = vld [vmem:[#allocation5 + $0x38] sm:$0xff]
      %v5598 = vld [vmem:[#allocation5 + $0x40] sm:$0xff]
      %v5599 = vld [vmem:[#allocation5 + $0x48] sm:$0xff]
      %v5600 = vld [vmem:[#allocation5 + $0x50] sm:$0xff]
      %v5601 = vld [vmem:[#allocation5 + $0x58] sm:$0xff]
      %v5602 = vld [vmem:[#allocation5 + $0x60] sm:$0xff]
      %v5603 = vld [vmem:[#allocation5 + $0x68] sm:$0xff]
      %v5604 = vld [vmem:[#allocation5 + $0x70] sm:$0xff]
      %v5605 = vld [vmem:[#allocation5 + $0x78] sm:$0xff]
      %5622 = vrot.lane.b32.xlu0 %v5590, 127
      %v5623 = vpop.permute.xlu0 %5622
      %5624 = vrot.lane.b32.xlu0 %v5591, 127
      %v5625 = vpop.permute.xlu0 %5624
      %5626 = vrot.lane.b32.xlu0 %v5592, 127
      %v5627 = vpop.permute.xlu0 %5626
      %5628 = vrot.lane.b32.xlu0 %v5593, 127
      %v5629 = vpop.permute.xlu0 %5628
      %5630 = vrot.lane.b32.xlu0 %v5594, 127
      %v5631 = vpop.permute.xlu0 %5630
      %5632 = vrot.lane.b32.xlu0 %v5595, 127
      %v5633 = vpop.permute.xlu0 %5632
      %5634 = vrot.lane.b32.xlu0 %v5596, 127
      %v5635 = vpop.permute.xlu0 %5634
      %5636 = vrot.lane.b32.xlu0 %v5597, 127
      %v5637 = vpop.permute.xlu0 %5636
      %5638 = vrot.lane.b32.xlu0 %v5598, 127
      %v5639 = vpop.permute.xlu0 %5638
      %5640 = vrot.lane.b32.xlu0 %v5599, 127
      %v5641 = vpop.permute.xlu0 %5640
      %5642 = vrot.lane.b32.xlu0 %v5600, 127
      %v5643 = vpop.permute.xlu0 %5642
      %5644 = vrot.lane.b32.xlu0 %v5601, 127
      %v5645 = vpop.permute.xlu0 %5644
      %5646 = vrot.lane.b32.xlu0 %v5602, 127
      %v5647 = vpop.permute.xlu0 %5646
      %5648 = vrot.lane.b32.xlu0 %v5603, 127
      %v5649 = vpop.permute.xlu0 %5648
      %5650 = vrot.lane.b32.xlu0 %v5604, 127
      %v5651 = vpop.permute.xlu0 %5650
      %5652 = vrot.lane.b32.xlu0 %v5605, 127
      %v5653 = vpop.permute.xlu0 %5652
      %v5654 = vsel %vm2662, %v5623, %v5625
      %v5655 = vsel %vm2662, %v5625, %v5627
      %v5656 = vsel %vm2662, %v5627, %v5629
      %v5657 = vsel %vm2662, %v5631, %v5633
      %v5658 = vsel %vm2662, %v5633, %v5635
      %v5659 = vsel %vm2662, %v5635, %v5637
      %v5660 = vsel %vm2662, %v5639, %v5641
      %v5661 = vsel %vm2662, %v5641, %v5643
      %v5662 = vsel %vm2662, %v5643, %v5645
      %v5663 = vsel %vm2662, %v5647, %v5649
      %v5664 = vsel %vm2662, %v5649, %v5651
      %v5665 = vsel %vm2662, %v5651, %v5653
      %5666 = vrot.lane.b32.xlu0 %v5590, 126
      %v5667 = vpop.permute.xlu0 %5666
      %5668 = vrot.lane.b32.xlu0 %v5591, 126
      %v5669 = vpop.permute.xlu0 %5668
      %5670 = vrot.lane.b32.xlu0 %v5592, 126
      %v5671 = vpop.permute.xlu0 %5670
      %5672 = vrot.lane.b32.xlu0 %v5593, 126
      %v5673 = vpop.permute.xlu0 %5672
      %5674 = vrot.lane.b32.xlu0 %v5594, 126
      %v5675 = vpop.permute.xlu0 %5674
      %5676 = vrot.lane.b32.xlu0 %v5595, 126
      %v5677 = vpop.permute.xlu0 %5676
      %5678 = vrot.lane.b32.xlu0 %v5596, 126
      %v5679 = vpop.permute.xlu0 %5678
      %5680 = vrot.lane.b32.xlu0 %v5597, 126
      %v5681 = vpop.permute.xlu0 %5680
      %5682 = vrot.lane.b32.xlu0 %v5598, 126
      %v5683 = vpop.permute.xlu0 %5682
      %5684 = vrot.lane.b32.xlu0 %v5599, 126
      %v5685 = vpop.permute.xlu0 %5684
      %5686 = vrot.lane.b32.xlu0 %v5600, 126
      %v5687 = vpop.permute.xlu0 %5686
      %5688 = vrot.lane.b32.xlu0 %v5601, 126
      %v5689 = vpop.permute.xlu0 %5688
      %5690 = vrot.lane.b32.xlu0 %v5602, 126
      %v5691 = vpop.permute.xlu0 %5690
      %5692 = vrot.lane.b32.xlu0 %v5603, 126
      %v5693 = vpop.permute.xlu0 %5692
      %5694 = vrot.lane.b32.xlu0 %v5604, 126
      %v5695 = vpop.permute.xlu0 %5694
      %5696 = vrot.lane.b32.xlu0 %v5605, 126
      %v5697 = vpop.permute.xlu0 %5696
      %v5698 = vsel %vm2674, %v5667, %v5669
      %v5699 = vsel %vm2674, %v5669, %v5671
      %v5700 = vsel %vm2674, %v5671, %v5673
      %v5701 = vsel %vm2674, %v5675, %v5677
      %v5702 = vsel %vm2674, %v5677, %v5679
      %v5703 = vsel %vm2674, %v5679, %v5681
      %v5704 = vsel %vm2674, %v5683, %v5685
      %v5705 = vsel %vm2674, %v5685, %v5687
      %v5706 = vsel %vm2674, %v5687, %v5689
      %v5707 = vsel %vm2674, %v5691, %v5693
      %v5708 = vsel %vm2674, %v5693, %v5695
      %v5709 = vsel %vm2674, %v5695, %v5697
      %5710 = vrot.lane.b32.xlu0 %v5590, 108
      %v5711 = vpop.permute.xlu0 %5710
      %5712 = vrot.lane.b32.xlu0 %v5591, 108
      %v5713 = vpop.permute.xlu0 %5712
      %5714 = vrot.lane.b32.xlu0 %v5592, 108
      %v5715 = vpop.permute.xlu0 %5714
      %5716 = vrot.lane.b32.xlu0 %v5593, 108
      %v5717 = vpop.permute.xlu0 %5716
      %5718 = vrot.lane.b32.xlu0 %v5594, 108
      %v5719 = vpop.permute.xlu0 %5718
      %5720 = vrot.lane.b32.xlu0 %v5595, 108
      %v5721 = vpop.permute.xlu0 %5720
      %5722 = vrot.lane.b32.xlu0 %v5596, 108
      %v5723 = vpop.permute.xlu0 %5722
      %5724 = vrot.lane.b32.xlu0 %v5597, 108
      %v5725 = vpop.permute.xlu0 %5724
      %5726 = vrot.lane.b32.xlu0 %v5598, 108
      %v5727 = vpop.permute.xlu0 %5726
      %5728 = vrot.lane.b32.xlu0 %v5599, 108
      %v5729 = vpop.permute.xlu0 %5728
      %5730 = vrot.lane.b32.xlu0 %v5600, 108
      %v5731 = vpop.permute.xlu0 %5730
      %5732 = vrot.lane.b32.xlu0 %v5601, 108
      %v5733 = vpop.permute.xlu0 %5732
      %5734 = vrot.lane.b32.xlu0 %v5602, 108
      %v5735 = vpop.permute.xlu0 %5734
      %5736 = vrot.lane.b32.xlu0 %v5603, 108
      %v5737 = vpop.permute.xlu0 %5736
      %5738 = vrot.lane.b32.xlu0 %v5604, 108
      %v5739 = vpop.permute.xlu0 %5738
      %5740 = vrot.lane.b32.xlu0 %v5605, 108
      %v5741 = vpop.permute.xlu0 %5740
      %v5742 = vsel %vm2686, %v5711, %v5713
      %v5743 = vsel %vm2686, %v5713, %v5715
      %v5744 = vsel %vm2686, %v5715, %v5717
      %v5745 = vsel %vm2686, %v5719, %v5721
      %v5746 = vsel %vm2686, %v5721, %v5723
      %v5747 = vsel %vm2686, %v5723, %v5725
      %v5748 = vsel %vm2686, %v5727, %v5729
      %v5749 = vsel %vm2686, %v5729, %v5731
      %v5750 = vsel %vm2686, %v5731, %v5733
      %v5751 = vsel %vm2686, %v5735, %v5737
      %v5752 = vsel %vm2686, %v5737, %v5739
      %v5753 = vsel %vm2686, %v5739, %v5741
      %5754 = vrot.lane.b32.xlu0 %v5590, 107
      %v5755 = vpop.permute.xlu0 %5754
      %5756 = vrot.lane.b32.xlu0 %v5591, 107
      %v5757 = vpop.permute.xlu0 %5756
      %5758 = vrot.lane.b32.xlu0 %v5592, 107
      %v5759 = vpop.permute.xlu0 %5758
      %5760 = vrot.lane.b32.xlu0 %v5593, 107
      %v5761 = vpop.permute.xlu0 %5760
      %5762 = vrot.lane.b32.xlu0 %v5594, 107
      %v5763 = vpop.permute.xlu0 %5762
      %5764 = vrot.lane.b32.xlu0 %v5595, 107
      %v5765 = vpop.permute.xlu0 %5764
      %5766 = vrot.lane.b32.xlu0 %v5596, 107
      %v5767 = vpop.permute.xlu0 %5766
      %5768 = vrot.lane.b32.xlu0 %v5597, 107
      %v5769 = vpop.permute.xlu0 %5768
      %5770 = vrot.lane.b32.xlu0 %v5598, 107
      %v5771 = vpop.permute.xlu0 %5770
      %5772 = vrot.lane.b32.xlu0 %v5599, 107
      %v5773 = vpop.permute.xlu0 %5772
      %5774 = vrot.lane.b32.xlu0 %v5600, 107
      %v5775 = vpop.permute.xlu0 %5774
      %5776 = vrot.lane.b32.xlu0 %v5601, 107
      %v5777 = vpop.permute.xlu0 %5776
      %5778 = vrot.lane.b32.xlu0 %v5602, 107
      %v5779 = vpop.permute.xlu0 %5778
      %5780 = vrot.lane.b32.xlu0 %v5603, 107
      %v5781 = vpop.permute.xlu0 %5780
      %5782 = vrot.lane.b32.xlu0 %v5604, 107
      %v5783 = vpop.permute.xlu0 %5782
      %5784 = vrot.lane.b32.xlu0 %v5605, 107
      %v5785 = vpop.permute.xlu0 %5784
      %v5786 = vsel %vm2698, %v5755, %v5757
      %v5787 = vsel %vm2698, %v5757, %v5759
      %v5788 = vsel %vm2698, %v5759, %v5761
      %v5789 = vsel %vm2698, %v5763, %v5765
      %v5790 = vsel %vm2698, %v5765, %v5767
      %v5791 = vsel %vm2698, %v5767, %v5769
      %v5792 = vsel %vm2698, %v5771, %v5773
      %v5793 = vsel %vm2698, %v5773, %v5775
      %v5794 = vsel %vm2698, %v5775, %v5777
      %v5795 = vsel %vm2698, %v5779, %v5781
      %v5796 = vsel %vm2698, %v5781, %v5783
      %v5797 = vsel %vm2698, %v5783, %v5785
      %5798 = vrot.lane.b32.xlu0 %v5590, 106
      %v5799 = vpop.permute.xlu0 %5798
      %5800 = vrot.lane.b32.xlu0 %v5591, 106
      %v5801 = vpop.permute.xlu0 %5800
      %5802 = vrot.lane.b32.xlu0 %v5592, 106
      %v5803 = vpop.permute.xlu0 %5802
      %5804 = vrot.lane.b32.xlu0 %v5593, 106
      %v5805 = vpop.permute.xlu0 %5804
      %5806 = vrot.lane.b32.xlu0 %v5594, 106
      %v5807 = vpop.permute.xlu0 %5806
      %5808 = vrot.lane.b32.xlu0 %v5595, 106
      %v5809 = vpop.permute.xlu0 %5808
      %5810 = vrot.lane.b32.xlu0 %v5596, 106
      %v5811 = vpop.permute.xlu0 %5810
      %5812 = vrot.lane.b32.xlu0 %v5597, 106
      %v5813 = vpop.permute.xlu0 %5812
      %5814 = vrot.lane.b32.xlu0 %v5598, 106
      %v5815 = vpop.permute.xlu0 %5814
      %5816 = vrot.lane.b32.xlu0 %v5599, 106
      %v5817 = vpop.permute.xlu0 %5816
      %5818 = vrot.lane.b32.xlu0 %v5600, 106
      %v5819 = vpop.permute.xlu0 %5818
      %5820 = vrot.lane.b32.xlu0 %v5601, 106
      %v5821 = vpop.permute.xlu0 %5820
      %5822 = vrot.lane.b32.xlu0 %v5602, 106
      %v5823 = vpop.permute.xlu0 %5822
      %5824 = vrot.lane.b32.xlu0 %v5603, 106
      %v5825 = vpop.permute.xlu0 %5824
      %5826 = vrot.lane.b32.xlu0 %v5604, 106
      %v5827 = vpop.permute.xlu0 %5826
      %5828 = vrot.lane.b32.xlu0 %v5605, 106
      %v5829 = vpop.permute.xlu0 %5828
      %v5830 = vsel %vm2710, %v5799, %v5801
      %v5831 = vsel %vm2710, %v5801, %v5803
      %v5832 = vsel %vm2710, %v5803, %v5805
      %v5833 = vsel %vm2710, %v5807, %v5809
      %v5834 = vsel %vm2710, %v5809, %v5811
      %v5835 = vsel %vm2710, %v5811, %v5813
      %v5836 = vsel %vm2710, %v5815, %v5817
      %v5837 = vsel %vm2710, %v5817, %v5819
      %v5838 = vsel %vm2710, %v5819, %v5821
      %v5839 = vsel %vm2710, %v5823, %v5825
      %v5840 = vsel %vm2710, %v5825, %v5827
      %v5841 = vsel %vm2710, %v5827, %v5829
      %5842 = vrot.lane.b32.xlu0 %v5590, 88
      %v5843 = vpop.permute.xlu0 %5842
      %5844 = vrot.lane.b32.xlu0 %v5591, 88
      %v5845 = vpop.permute.xlu0 %5844
      %5846 = vrot.lane.b32.xlu0 %v5592, 88
      %v5847 = vpop.permute.xlu0 %5846
      %5848 = vrot.lane.b32.xlu0 %v5593, 88
      %v5849 = vpop.permute.xlu0 %5848
      %5850 = vrot.lane.b32.xlu0 %v5594, 88
      %v5851 = vpop.permute.xlu0 %5850
      %5852 = vrot.lane.b32.xlu0 %v5595, 88
      %v5853 = vpop.permute.xlu0 %5852
      %5854 = vrot.lane.b32.xlu0 %v5596, 88
      %v5855 = vpop.permute.xlu0 %5854
      %5856 = vrot.lane.b32.xlu0 %v5597, 88
      %v5857 = vpop.permute.xlu0 %5856
      %5858 = vrot.lane.b32.xlu0 %v5598, 88
      %v5859 = vpop.permute.xlu0 %5858
      %5860 = vrot.lane.b32.xlu0 %v5599, 88
      %v5861 = vpop.permute.xlu0 %5860
      %5862 = vrot.lane.b32.xlu0 %v5600, 88
      %v5863 = vpop.permute.xlu0 %5862
      %5864 = vrot.lane.b32.xlu0 %v5601, 88
      %v5865 = vpop.permute.xlu0 %5864
      %5866 = vrot.lane.b32.xlu0 %v5602, 88
      %v5867 = vpop.permute.xlu0 %5866
      %5868 = vrot.lane.b32.xlu0 %v5603, 88
      %v5869 = vpop.permute.xlu0 %5868
      %5870 = vrot.lane.b32.xlu0 %v5604, 88
      %v5871 = vpop.permute.xlu0 %5870
      %5872 = vrot.lane.b32.xlu0 %v5605, 88
      %v5873 = vpop.permute.xlu0 %5872
      %v5874 = vsel %vm2722, %v5843, %v5845
      %v5875 = vsel %vm2722, %v5845, %v5847
      %v5876 = vsel %vm2722, %v5847, %v5849
      %v5877 = vsel %vm2722, %v5851, %v5853
      %v5878 = vsel %vm2722, %v5853, %v5855
      %v5879 = vsel %vm2722, %v5855, %v5857
      %v5880 = vsel %vm2722, %v5859, %v5861
      %v5881 = vsel %vm2722, %v5861, %v5863
      %v5882 = vsel %vm2722, %v5863, %v5865
      %v5883 = vsel %vm2722, %v5867, %v5869
      %v5884 = vsel %vm2722, %v5869, %v5871
      %v5885 = vsel %vm2722, %v5871, %v5873
      %5886 = vrot.lane.b32.xlu0 %v5590, 87
      %v5887 = vpop.permute.xlu0 %5886
      %5888 = vrot.lane.b32.xlu0 %v5591, 87
      %v5889 = vpop.permute.xlu0 %5888
      %5890 = vrot.lane.b32.xlu0 %v5592, 87
      %v5891 = vpop.permute.xlu0 %5890
      %5892 = vrot.lane.b32.xlu0 %v5593, 87
      %v5893 = vpop.permute.xlu0 %5892
      %5894 = vrot.lane.b32.xlu0 %v5594, 87
      %v5895 = vpop.permute.xlu0 %5894
      %5896 = vrot.lane.b32.xlu0 %v5595, 87
      %v5897 = vpop.permute.xlu0 %5896
      %5898 = vrot.lane.b32.xlu0 %v5596, 87
      %v5899 = vpop.permute.xlu0 %5898
      %5900 = vrot.lane.b32.xlu0 %v5597, 87
      %v5901 = vpop.permute.xlu0 %5900
      %5902 = vrot.lane.b32.xlu0 %v5598, 87
      %v5903 = vpop.permute.xlu0 %5902
      %5904 = vrot.lane.b32.xlu0 %v5599, 87
      %v5905 = vpop.permute.xlu0 %5904
      %5906 = vrot.lane.b32.xlu0 %v5600, 87
      %v5907 = vpop.permute.xlu0 %5906
      %5908 = vrot.lane.b32.xlu0 %v5601, 87
      %v5909 = vpop.permute.xlu0 %5908
      %5910 = vrot.lane.b32.xlu0 %v5602, 87
      %v5911 = vpop.permute.xlu0 %5910
      %5912 = vrot.lane.b32.xlu0 %v5603, 87
      %v5913 = vpop.permute.xlu0 %5912
      %5914 = vrot.lane.b32.xlu0 %v5604, 87
      %v5915 = vpop.permute.xlu0 %5914
      %5916 = vrot.lane.b32.xlu0 %v5605, 87
      %v5917 = vpop.permute.xlu0 %5916
      %v5918 = vsel %vm2734, %v5887, %v5889
      %v5919 = vsel %vm2734, %v5889, %v5891
      %v5920 = vsel %vm2734, %v5891, %v5893
      %v5921 = vsel %vm2734, %v5895, %v5897
      %v5922 = vsel %vm2734, %v5897, %v5899
      %v5923 = vsel %vm2734, %v5899, %v5901
      %v5924 = vsel %vm2734, %v5903, %v5905
      %v5925 = vsel %vm2734, %v5905, %v5907
      %v5926 = vsel %vm2734, %v5907, %v5909
      %v5927 = vsel %vm2734, %v5911, %v5913
      %v5928 = vsel %vm2734, %v5913, %v5915
      %v5929 = vsel %vm2734, %v5915, %v5917
      %5930 = vrot.lane.b32.xlu0 %v5590, 86
      %v5931 = vpop.permute.xlu0 %5930
      %5932 = vrot.lane.b32.xlu0 %v5591, 86
      %v5933 = vpop.permute.xlu0 %5932
      %5934 = vrot.lane.b32.xlu0 %v5592, 86
      %v5935 = vpop.permute.xlu0 %5934
      %5936 = vrot.lane.b32.xlu0 %v5593, 86
      %v5937 = vpop.permute.xlu0 %5936
      %5938 = vrot.lane.b32.xlu0 %v5594, 86
      %v5939 = vpop.permute.xlu0 %5938
      %5940 = vrot.lane.b32.xlu0 %v5595, 86
      %v5941 = vpop.permute.xlu0 %5940
      %5942 = vrot.lane.b32.xlu0 %v5596, 86
      %v5943 = vpop.permute.xlu0 %5942
      %5944 = vrot.lane.b32.xlu0 %v5597, 86
      %v5945 = vpop.permute.xlu0 %5944
      %5946 = vrot.lane.b32.xlu0 %v5598, 86
      %v5947 = vpop.permute.xlu0 %5946
      %5948 = vrot.lane.b32.xlu0 %v5599, 86
      %v5949 = vpop.permute.xlu0 %5948
      %5950 = vrot.lane.b32.xlu0 %v5600, 86
      %v5951 = vpop.permute.xlu0 %5950
      %5952 = vrot.lane.b32.xlu0 %v5601, 86
      %v5953 = vpop.permute.xlu0 %5952
      %5954 = vrot.lane.b32.xlu0 %v5602, 86
      %v5955 = vpop.permute.xlu0 %5954
      %5956 = vrot.lane.b32.xlu0 %v5603, 86
      %v5957 = vpop.permute.xlu0 %5956
      %5958 = vrot.lane.b32.xlu0 %v5604, 86
      %v5959 = vpop.permute.xlu0 %5958
      %5960 = vrot.lane.b32.xlu0 %v5605, 86
      %v5961 = vpop.permute.xlu0 %5960
      %v5962 = vsel %vm1012, %v5931, %v5933
      %v5963 = vsel %vm1012, %v5933, %v5935
      %v5964 = vsel %vm1012, %v5935, %v5937
      %v5965 = vsel %vm1012, %v5939, %v5941
      %v5966 = vsel %vm1012, %v5941, %v5943
      %v5967 = vsel %vm1012, %v5943, %v5945
      %v5968 = vsel %vm1012, %v5947, %v5949
      %v5969 = vsel %vm1012, %v5949, %v5951
      %v5970 = vsel %vm1012, %v5951, %v5953
      %v5971 = vsel %vm1012, %v5955, %v5957
      %v5972 = vsel %vm1012, %v5957, %v5959
      %v5973 = vsel %vm1012, %v5959, %v5961
      %v5974 = vld [vmem:[%s24] sm:$0xff]
      %v5975 = vld [vmem:[%s24 + $0x8] sm:$0xff]
      %v5976 = vld [vmem:[%s24 + $0x10] sm:$0xff]
      %v5977 = vld [vmem:[%s24 + $0x18] sm:$0xff]
      %v5978 = vld [vmem:[%s24 + $0x20] sm:$0xff]
      %v5979 = vld [vmem:[%s24 + $0x28] sm:$0xff]
      %v5980 = vld [vmem:[%s25] sm:$0xff]
      %v5981 = vld [vmem:[%s25 + $0x8] sm:$0xff]
      %5983 = vset.pattern.permute.xlu0 0
      %5984 = vperm.xlu0 %5983, %v5980
      %v5985 = vpop.permute.xlu0 %5984
      %5988 = vset.pattern.permute.xlu0 0
      %5989 = vperm.xlu0 %5988, %v5981
      %v5990 = vpop.permute.xlu0 %5989
      %5992 = vrot.lane.b32.xlu0 %v5654, 107
      %v5993 = vpop.permute.xlu0 %5992
      %5994 = vrot.lane.b32.xlu0 %v5655, 107
      %v5995 = vpop.permute.xlu0 %5994
      %5996 = vrot.lane.b32.xlu0 %v5656, 107
      %v5997 = vpop.permute.xlu0 %5996
      %5998 = vrot.lane.b32.xlu0 %v5629, 107
      %v5999 = vpop.permute.xlu0 %5998
      %6000 = vrot.lane.b32.xlu0 %v5657, 107
      %v6001 = vpop.permute.xlu0 %6000
      %6002 = vrot.lane.b32.xlu0 %v5658, 107
      %v6003 = vpop.permute.xlu0 %6002
      %6004 = vrot.lane.b32.xlu0 %v5659, 107
      %v6005 = vpop.permute.xlu0 %6004
      %6006 = vrot.lane.b32.xlu0 %v5637, 107
      %v6007 = vpop.permute.xlu0 %6006
      %6008 = vrot.lane.b32.xlu0 %v5660, 107
      %v6009 = vpop.permute.xlu0 %6008
      %6010 = vrot.lane.b32.xlu0 %v5661, 107
      %v6011 = vpop.permute.xlu0 %6010
      %6012 = vrot.lane.b32.xlu0 %v5662, 107
      %v6013 = vpop.permute.xlu0 %6012
      %6014 = vrot.lane.b32.xlu0 %v5645, 107
      %v6015 = vpop.permute.xlu0 %6014
      %6016 = vrot.lane.b32.xlu0 %v5663, 107
      %v6017 = vpop.permute.xlu0 %6016
      %6018 = vrot.lane.b32.xlu0 %v5664, 107
      %v6019 = vpop.permute.xlu0 %6018
      %6020 = vrot.lane.b32.xlu0 %v5665, 107
      %v6021 = vpop.permute.xlu0 %6020
      %6022 = vrot.lane.b32.xlu0 %v5653, 107
      %v6023 = vpop.permute.xlu0 %6022
      %6024 = vrot.lane.b32.xlu0 %v5698, 107
      %v6025 = vpop.permute.xlu0 %6024
      %6026 = vrot.lane.b32.xlu0 %v5699, 107
      %v6027 = vpop.permute.xlu0 %6026
      %6028 = vrot.lane.b32.xlu0 %v5700, 107
      %v6029 = vpop.permute.xlu0 %6028
      %6030 = vrot.lane.b32.xlu0 %v5673, 107
      %v6031 = vpop.permute.xlu0 %6030
      %6032 = vrot.lane.b32.xlu0 %v5701, 107
      %v6033 = vpop.permute.xlu0 %6032
      %6034 = vrot.lane.b32.xlu0 %v5702, 107
      %v6035 = vpop.permute.xlu0 %6034
      %6036 = vrot.lane.b32.xlu0 %v5703, 107
      %v6037 = vpop.permute.xlu0 %6036
      %6038 = vrot.lane.b32.xlu0 %v5681, 107
      %v6039 = vpop.permute.xlu0 %6038
      %6040 = vrot.lane.b32.xlu0 %v5704, 107
      %v6041 = vpop.permute.xlu0 %6040
      %6042 = vrot.lane.b32.xlu0 %v5705, 107
      %v6043 = vpop.permute.xlu0 %6042
      %6044 = vrot.lane.b32.xlu0 %v5706, 107
      %v6045 = vpop.permute.xlu0 %6044
      %6046 = vrot.lane.b32.xlu0 %v5689, 107
      %v6047 = vpop.permute.xlu0 %6046
      %6048 = vrot.lane.b32.xlu0 %v5707, 107
      %v6049 = vpop.permute.xlu0 %6048
      %6050 = vrot.lane.b32.xlu0 %v5708, 107
      %v6051 = vpop.permute.xlu0 %6050
      %6052 = vrot.lane.b32.xlu0 %v5709, 107
      %v6053 = vpop.permute.xlu0 %6052
      %6054 = vrot.lane.b32.xlu0 %v5697, 107
      %v6055 = vpop.permute.xlu0 %6054
      %6056 = vrot.lane.b32.xlu0 %v5742, 107
      %v6057 = vpop.permute.xlu0 %6056
      %6058 = vrot.lane.b32.xlu0 %v5743, 107
      %v6059 = vpop.permute.xlu0 %6058
      %6060 = vrot.lane.b32.xlu0 %v5744, 107
      %v6061 = vpop.permute.xlu0 %6060
      %6062 = vrot.lane.b32.xlu0 %v5717, 107
      %v6063 = vpop.permute.xlu0 %6062
      %6064 = vrot.lane.b32.xlu0 %v5745, 107
      %v6065 = vpop.permute.xlu0 %6064
      %6066 = vrot.lane.b32.xlu0 %v5746, 107
      %v6067 = vpop.permute.xlu0 %6066
      %6068 = vrot.lane.b32.xlu0 %v5747, 107
      %v6069 = vpop.permute.xlu0 %6068
      %6070 = vrot.lane.b32.xlu0 %v5725, 107
      %v6071 = vpop.permute.xlu0 %6070
      %6072 = vrot.lane.b32.xlu0 %v5748, 107
      %v6073 = vpop.permute.xlu0 %6072
      %6074 = vrot.lane.b32.xlu0 %v5749, 107
      %v6075 = vpop.permute.xlu0 %6074
      %6076 = vrot.lane.b32.xlu0 %v5750, 107
      %v6077 = vpop.permute.xlu0 %6076
      %6078 = vrot.lane.b32.xlu0 %v5733, 107
      %v6079 = vpop.permute.xlu0 %6078
      %6080 = vrot.lane.b32.xlu0 %v5751, 107
      %v6081 = vpop.permute.xlu0 %6080
      %6082 = vrot.lane.b32.xlu0 %v5752, 107
      %v6083 = vpop.permute.xlu0 %6082
      %6084 = vrot.lane.b32.xlu0 %v5753, 107
      %v6085 = vpop.permute.xlu0 %6084
      %6086 = vrot.lane.b32.xlu0 %v5741, 107
      %v6087 = vpop.permute.xlu0 %6086
      %6088 = vrot.lane.b32.xlu0 %v5786, 107
      %v6089 = vpop.permute.xlu0 %6088
      %6090 = vrot.lane.b32.xlu0 %v5787, 107
      %v6091 = vpop.permute.xlu0 %6090
      %6092 = vrot.lane.b32.xlu0 %v5788, 107
      %v6093 = vpop.permute.xlu0 %6092
      %6094 = vrot.lane.b32.xlu0 %v5761, 107
      %v6095 = vpop.permute.xlu0 %6094
      %6096 = vrot.lane.b32.xlu0 %v5789, 107
      %v6097 = vpop.permute.xlu0 %6096
      %6098 = vrot.lane.b32.xlu0 %v5790, 107
      %v6099 = vpop.permute.xlu0 %6098
      %6100 = vrot.lane.b32.xlu0 %v5791, 107
      %v6101 = vpop.permute.xlu0 %6100
      %6102 = vrot.lane.b32.xlu0 %v5769, 107
      %v6103 = vpop.permute.xlu0 %6102
      %6104 = vrot.lane.b32.xlu0 %v5792, 107
      %v6105 = vpop.permute.xlu0 %6104
      %6106 = vrot.lane.b32.xlu0 %v5793, 107
      %v6107 = vpop.permute.xlu0 %6106
      %6108 = vrot.lane.b32.xlu0 %v5794, 107
      %v6109 = vpop.permute.xlu0 %6108
      %6110 = vrot.lane.b32.xlu0 %v5777, 107
      %v6111 = vpop.permute.xlu0 %6110
      %6112 = vrot.lane.b32.xlu0 %v5795, 107
      %v6113 = vpop.permute.xlu0 %6112
      %6114 = vrot.lane.b32.xlu0 %v5796, 107
      %v6115 = vpop.permute.xlu0 %6114
      %6116 = vrot.lane.b32.xlu0 %v5797, 107
      %v6117 = vpop.permute.xlu0 %6116
      %6118 = vrot.lane.b32.xlu0 %v5785, 107
      %v6119 = vpop.permute.xlu0 %6118
      %6120 = vrot.lane.b32.xlu0 %v5830, 107
      %v6121 = vpop.permute.xlu0 %6120
      %6122 = vrot.lane.b32.xlu0 %v5831, 107
      %v6123 = vpop.permute.xlu0 %6122
      %6124 = vrot.lane.b32.xlu0 %v5832, 107
      %v6125 = vpop.permute.xlu0 %6124
      %6126 = vrot.lane.b32.xlu0 %v5805, 107
      %v6127 = vpop.permute.xlu0 %6126
      %6128 = vrot.lane.b32.xlu0 %v5833, 107
      %v6129 = vpop.permute.xlu0 %6128
      %6130 = vrot.lane.b32.xlu0 %v5834, 107
      %v6131 = vpop.permute.xlu0 %6130
      %6132 = vrot.lane.b32.xlu0 %v5835, 107
      %v6133 = vpop.permute.xlu0 %6132
      %6134 = vrot.lane.b32.xlu0 %v5813, 107
      %v6135 = vpop.permute.xlu0 %6134
      %6136 = vrot.lane.b32.xlu0 %v5836, 107
      %v6137 = vpop.permute.xlu0 %6136
      %6138 = vrot.lane.b32.xlu0 %v5837, 107
      %v6139 = vpop.permute.xlu0 %6138
      %6140 = vrot.lane.b32.xlu0 %v5838, 107
      %v6141 = vpop.permute.xlu0 %6140
      %6142 = vrot.lane.b32.xlu0 %v5821, 107
      %v6143 = vpop.permute.xlu0 %6142
      %6144 = vrot.lane.b32.xlu0 %v5839, 107
      %v6145 = vpop.permute.xlu0 %6144
      %6146 = vrot.lane.b32.xlu0 %v5840, 107
      %v6147 = vpop.permute.xlu0 %6146
      %6148 = vrot.lane.b32.xlu0 %v5841, 107
      %v6149 = vpop.permute.xlu0 %6148
      %6150 = vrot.lane.b32.xlu0 %v5829, 107
      %v6151 = vpop.permute.xlu0 %6150
      %6152 = vrot.lane.b32.xlu0 %v5874, 107
      %v6153 = vpop.permute.xlu0 %6152
      %6154 = vrot.lane.b32.xlu0 %v5875, 107
      %v6155 = vpop.permute.xlu0 %6154
      %6156 = vrot.lane.b32.xlu0 %v5876, 107
      %v6157 = vpop.permute.xlu0 %6156
      %6158 = vrot.lane.b32.xlu0 %v5849, 107
      %v6159 = vpop.permute.xlu0 %6158
      %6160 = vrot.lane.b32.xlu0 %v5877, 107
      %v6161 = vpop.permute.xlu0 %6160
      %6162 = vrot.lane.b32.xlu0 %v5878, 107
      %v6163 = vpop.permute.xlu0 %6162
      %6164 = vrot.lane.b32.xlu0 %v5879, 107
      %v6165 = vpop.permute.xlu0 %6164
      %6166 = vrot.lane.b32.xlu0 %v5857, 107
      %v6167 = vpop.permute.xlu0 %6166
      %6168 = vrot.lane.b32.xlu0 %v5880, 107
      %v6169 = vpop.permute.xlu0 %6168
      %6170 = vrot.lane.b32.xlu0 %v5881, 107
      %v6171 = vpop.permute.xlu0 %6170
      %6172 = vrot.lane.b32.xlu0 %v5882, 107
      %v6173 = vpop.permute.xlu0 %6172
      %6174 = vrot.lane.b32.xlu0 %v5865, 107
      %v6175 = vpop.permute.xlu0 %6174
      %6176 = vrot.lane.b32.xlu0 %v5883, 107
      %v6177 = vpop.permute.xlu0 %6176
      %6178 = vrot.lane.b32.xlu0 %v5884, 107
      %v6179 = vpop.permute.xlu0 %6178
      %6180 = vrot.lane.b32.xlu0 %v5885, 107
      %v6181 = vpop.permute.xlu0 %6180
      %6182 = vrot.lane.b32.xlu0 %v5873, 107
      %v6183 = vpop.permute.xlu0 %6182
      %6184 = vrot.lane.b32.xlu0 %v5918, 107
      %v6185 = vpop.permute.xlu0 %6184
      %6186 = vrot.lane.b32.xlu0 %v5919, 107
      %v6187 = vpop.permute.xlu0 %6186
      %6188 = vrot.lane.b32.xlu0 %v5920, 107
      %v6189 = vpop.permute.xlu0 %6188
      %6190 = vrot.lane.b32.xlu0 %v5893, 107
      %v6191 = vpop.permute.xlu0 %6190
      %6192 = vrot.lane.b32.xlu0 %v5921, 107
      %v6193 = vpop.permute.xlu0 %6192
      %6194 = vrot.lane.b32.xlu0 %v5922, 107
      %v6195 = vpop.permute.xlu0 %6194
      %6196 = vrot.lane.b32.xlu0 %v5923, 107
      %v6197 = vpop.permute.xlu0 %6196
      %6198 = vrot.lane.b32.xlu0 %v5901, 107
      %v6199 = vpop.permute.xlu0 %6198
      %6200 = vrot.lane.b32.xlu0 %v5924, 107
      %v6201 = vpop.permute.xlu0 %6200
      %6202 = vrot.lane.b32.xlu0 %v5925, 107
      %v6203 = vpop.permute.xlu0 %6202
      %6204 = vrot.lane.b32.xlu0 %v5926, 107
      %v6205 = vpop.permute.xlu0 %6204
      %6206 = vrot.lane.b32.xlu0 %v5909, 107
      %v6207 = vpop.permute.xlu0 %6206
      %6208 = vrot.lane.b32.xlu0 %v5927, 107
      %v6209 = vpop.permute.xlu0 %6208
      %6210 = vrot.lane.b32.xlu0 %v5928, 107
      %v6211 = vpop.permute.xlu0 %6210
      %6212 = vrot.lane.b32.xlu0 %v5929, 107
      %v6213 = vpop.permute.xlu0 %6212
      %6214 = vrot.lane.b32.xlu0 %v5917, 107
      %v6215 = vpop.permute.xlu0 %6214
      %6216 = vrot.lane.b32.xlu0 %v5962, 107
      %v6217 = vpop.permute.xlu0 %6216
      %6218 = vrot.lane.b32.xlu0 %v5963, 107
      %v6219 = vpop.permute.xlu0 %6218
      %6220 = vrot.lane.b32.xlu0 %v5964, 107
      %v6221 = vpop.permute.xlu0 %6220
      %6222 = vrot.lane.b32.xlu0 %v5937, 107
      %v6223 = vpop.permute.xlu0 %6222
      %6224 = vrot.lane.b32.xlu0 %v5965, 107
      %v6225 = vpop.permute.xlu0 %6224
      %6226 = vrot.lane.b32.xlu0 %v5966, 107
      %v6227 = vpop.permute.xlu0 %6226
      %6228 = vrot.lane.b32.xlu0 %v5967, 107
      %v6229 = vpop.permute.xlu0 %6228
      %6230 = vrot.lane.b32.xlu0 %v5945, 107
      %v6231 = vpop.permute.xlu0 %6230
      %6232 = vrot.lane.b32.xlu0 %v5968, 107
      %v6233 = vpop.permute.xlu0 %6232
      %6234 = vrot.lane.b32.xlu0 %v5969, 107
      %v6235 = vpop.permute.xlu0 %6234
      %6236 = vrot.lane.b32.xlu0 %v5970, 107
      %v6237 = vpop.permute.xlu0 %6236
      %6238 = vrot.lane.b32.xlu0 %v5953, 107
      %v6239 = vpop.permute.xlu0 %6238
      %6240 = vrot.lane.b32.xlu0 %v5971, 107
      %v6241 = vpop.permute.xlu0 %6240
      %6242 = vrot.lane.b32.xlu0 %v5972, 107
      %v6243 = vpop.permute.xlu0 %6242
      %6244 = vrot.lane.b32.xlu0 %v5973, 107
      %v6245 = vpop.permute.xlu0 %6244
      %6246 = vrot.lane.b32.xlu0 %v5961, 107
      %v6247 = vpop.permute.xlu0 %6246
      %v6248 = vsel %vm2698, %v5993, %v5995
      %v6249 = vsel %vm2698, %v5995, %v5997
      %v6250 = vsel %vm2698, %v5997, %v5999
      %v6251 = vsel %vm2698, %v6001, %v6003
      %v6252 = vsel %vm2698, %v6003, %v6005
      %v6253 = vsel %vm2698, %v6005, %v6007
      %v6254 = vsel %vm2698, %v6009, %v6011
      %v6255 = vsel %vm2698, %v6011, %v6013
      %v6256 = vsel %vm2698, %v6013, %v6015
      %v6257 = vsel %vm2698, %v6017, %v6019
      %v6258 = vsel %vm2698, %v6019, %v6021
      %v6259 = vsel %vm2698, %v6021, %v6023
      %v6260 = vsel %vm2698, %v6025, %v6027
      %v6261 = vsel %vm2698, %v6027, %v6029
      %v6262 = vsel %vm2698, %v6029, %v6031
      %v6263 = vsel %vm2698, %v6033, %v6035
      %v6264 = vsel %vm2698, %v6035, %v6037
      %v6265 = vsel %vm2698, %v6037, %v6039
      %v6266 = vsel %vm2698, %v6041, %v6043
      %v6267 = vsel %vm2698, %v6043, %v6045
      %v6268 = vsel %vm2698, %v6045, %v6047
      %v6269 = vsel %vm2698, %v6049, %v6051
      %v6270 = vsel %vm2698, %v6051, %v6053
      %v6271 = vsel %vm2698, %v6053, %v6055
      %v6272 = vsel %vm2698, %v6057, %v6059
      %v6273 = vsel %vm2698, %v6059, %v6061
      %v6274 = vsel %vm2698, %v6061, %v6063
      %v6275 = vsel %vm2698, %v6065, %v6067
      %v6276 = vsel %vm2698, %v6067, %v6069
      %v6277 = vsel %vm2698, %v6069, %v6071
      %v6278 = vsel %vm2698, %v6073, %v6075
      %v6279 = vsel %vm2698, %v6075, %v6077
      %v6280 = vsel %vm2698, %v6077, %v6079
      %v6281 = vsel %vm2698, %v6081, %v6083
      %v6282 = vsel %vm2698, %v6083, %v6085
      %v6283 = vsel %vm2698, %v6085, %v6087
      %v6284 = vsel %vm2698, %v6089, %v6091
      %v6285 = vsel %vm2698, %v6091, %v6093
      %v6286 = vsel %vm2698, %v6093, %v6095
      %v6287 = vsel %vm2698, %v6097, %v6099
      %v6288 = vsel %vm2698, %v6099, %v6101
      %v6289 = vsel %vm2698, %v6101, %v6103
      %v6290 = vsel %vm2698, %v6105, %v6107
      %v6291 = vsel %vm2698, %v6107, %v6109
      %v6292 = vsel %vm2698, %v6109, %v6111
      %v6293 = vsel %vm2698, %v6113, %v6115
      %v6294 = vsel %vm2698, %v6115, %v6117
      %v6295 = vsel %vm2698, %v6117, %v6119
      %v6296 = vsel %vm2698, %v6121, %v6123
      %v6297 = vsel %vm2698, %v6123, %v6125
      %v6298 = vsel %vm2698, %v6125, %v6127
      %v6299 = vsel %vm2698, %v6129, %v6131
      %v6300 = vsel %vm2698, %v6131, %v6133
      %v6301 = vsel %vm2698, %v6133, %v6135
      %v6302 = vsel %vm2698, %v6137, %v6139
      %v6303 = vsel %vm2698, %v6139, %v6141
      %v6304 = vsel %vm2698, %v6141, %v6143
      %v6305 = vsel %vm2698, %v6145, %v6147
      %v6306 = vsel %vm2698, %v6147, %v6149
      %v6307 = vsel %vm2698, %v6149, %v6151
      %v6308 = vsel %vm2698, %v6153, %v6155
      %v6309 = vsel %vm2698, %v6155, %v6157
      %v6310 = vsel %vm2698, %v6157, %v6159
      %v6311 = vsel %vm2698, %v6161, %v6163
      %v6312 = vsel %vm2698, %v6163, %v6165
      %v6313 = vsel %vm2698, %v6165, %v6167
      %v6314 = vsel %vm2698, %v6169, %v6171
      %v6315 = vsel %vm2698, %v6171, %v6173
      %v6316 = vsel %vm2698, %v6173, %v6175
      %v6317 = vsel %vm2698, %v6177, %v6179
      %v6318 = vsel %vm2698, %v6179, %v6181
      %v6319 = vsel %vm2698, %v6181, %v6183
      %v6320 = vsel %vm2698, %v6185, %v6187
      %v6321 = vsel %vm2698, %v6187, %v6189
      %v6322 = vsel %vm2698, %v6189, %v6191
      %v6323 = vsel %vm2698, %v6193, %v6195
      %v6324 = vsel %vm2698, %v6195, %v6197
      %v6325 = vsel %vm2698, %v6197, %v6199
      %v6326 = vsel %vm2698, %v6201, %v6203
      %v6327 = vsel %vm2698, %v6203, %v6205
      %v6328 = vsel %vm2698, %v6205, %v6207
      %v6329 = vsel %vm2698, %v6209, %v6211
      %v6330 = vsel %vm2698, %v6211, %v6213
      %v6331 = vsel %vm2698, %v6213, %v6215
      %v6332 = vsel %vm2698, %v6217, %v6219
      %v6333 = vsel %vm2698, %v6219, %v6221
      %v6334 = vsel %vm2698, %v6221, %v6223
      %v6335 = vsel %vm2698, %v6225, %v6227
      %v6336 = vsel %vm2698, %v6227, %v6229
      %v6337 = vsel %vm2698, %v6229, %v6231
      %v6338 = vsel %vm2698, %v6233, %v6235
      %v6339 = vsel %vm2698, %v6235, %v6237
      %v6340 = vsel %vm2698, %v6237, %v6239
      %v6341 = vsel %vm2698, %v6241, %v6243
      %v6342 = vsel %vm2698, %v6243, %v6245
      %v6343 = vsel %vm2698, %v6245, %v6247
      %vm6452 = vcmask 261120
      %v6454 = vsel %vm6452, %v5976, 0
      %v6457 = vsel %vm6452, %v5979, 0
      %6459 = vmatprep.subr.mxu0 %v5787
      %6460 = vmatpush1.msra.mxu0 %v5786
      %6461 = vmatprep.subr.mxu0 %v5790
      %6462 = vmatpush1.msra.mxu0 %v5789
      %6463 = vmatprep.subr.mxu0 %v5793
      %6464 = vmatpush1.msra.mxu0 %v5792
      %6465 = vmatprep.subr.mxu0 %v5796
      %6466 = vmatpush1.msra.mxu0 %v5795
      %6467 = vmatprep.subr.mxu0 %v6249
      %6468 = vmatpush1.msra.mxu0 %v6248
      %6469 = vmatprep.subr.mxu0 %v6252
      %6470 = vmatpush1.msra.mxu0 %v6251
      %6471 = vmatprep.subr.mxu0 %v6255
      %6472 = vmatpush1.msra.mxu0 %v6254
      %6473 = vmatprep.subr.mxu0 %v6258
      %6474 = vmatpush1.msra.mxu0 %v6257
      %6475 = vmatprep.subr.mxu0 %v6261
      %6476 = vmatpush1.msra.mxu0 %v6260
      %6477 = vmatprep.subr.mxu0 %v6264
      %6478 = vmatpush1.msra.mxu0 %v6263
      %6479 = vmatprep.subr.mxu0 %v6267
      %6480 = vmatpush1.msra.mxu0 %v6266
      %6481 = vmatprep.subr.mxu0 %v6270
      %6482 = vmatpush1.msra.mxu0 %v6269
      %6483 = vmatprep.subr.mxu0 %v6273
      %6484 = vmatpush1.msra.mxu0 %v6272
      %6485 = vmatprep.subr.mxu0 %v6276
      %6486 = vmatpush1.msra.mxu0 %v6275
      %6487 = vmatprep.subr.mxu0 %v6279
      %6488 = vmatpush1.msra.mxu0 %v6278
      %6489 = vmatprep.subr.mxu0 %v6282
      %6490 = vmatpush1.msra.mxu0 %v6281
      %6491 = vmatprep.subr.mxu0 %v6285
      %6492 = vmatpush1.msra.mxu0 %v6284
      %6493 = vmatprep.subr.mxu0 %v6288
      %6494 = vmatpush1.msra.mxu0 %v6287
      %6495 = vmatprep.subr.mxu0 %v6291
      %6496 = vmatpush1.msra.mxu0 %v6290
      %6497 = vmatprep.subr.mxu0 %v6294
      %6498 = vmatpush1.msra.mxu0 %v6293
      %6499 = vmatprep.subr.mxu0 %v6297
      %6500 = vmatpush1.msra.mxu0 %v6296
      %6501 = vmatprep.subr.mxu0 %v6300
      %6502 = vmatpush1.msra.mxu0 %v6299
      %6503 = vmatprep.subr.mxu0 %v6303
      %6504 = vmatpush1.msra.mxu0 %v6302
      %6505 = vmatprep.subr.mxu0 %v6306
      %6506 = vmatpush1.msra.mxu0 %v6305
      %6507 = vmatprep.subr.mxu0 %v6309
      %6508 = vmatpush1.msra.mxu0 %v6308
      %6509 = vmatprep.subr.mxu0 %v6312
      %6510 = vmatpush1.msra.mxu0 %v6311
      %6511 = vmatprep.subr.mxu0 %v6315
      %6512 = vmatpush1.msra.mxu0 %v6314
      %6513 = vmatprep.subr.mxu0 %v6318
      %6514 = vmatpush1.msra.mxu0 %v6317
      %6515 = vmatprep.subr.mxu0 %v6321
      %6516 = vmatpush1.msra.mxu0 %v6320
      %6517 = vmatprep.subr.mxu0 %v6324
      %6518 = vmatpush1.msra.mxu0 %v6323
      %6519 = vmatprep.subr.mxu0 %v6327
      %6520 = vmatpush1.msra.mxu0 %v6326
      %6521 = vmatprep.subr.mxu0 %v6330
      %6522 = vmatpush1.msra.mxu0 %v6329
      %6523 = vmatprep.mubr.f32.mxu0 %v5975
      %6524 = vmatmul.mubr.f32.gmra.mrb[0].mxu0 %v5974
      %v6525 = vpop.f32.mrb[0].mxu0
      %v6526 = vadd.f32 %v5985, %v6525
      %v6527 = vpop.f32.mrb[0].mxu0
      %v6528 = vadd.f32 %v5985, %v6527
      %6529 = vmatprep.mubr.f32.mxu0 %v5978
      %6530 = vmatmul.mubr.f32.gmra.mrb[0].mxu0 %v5977
      %v6531 = vpop.f32.mrb[0].mxu0
      %v6532 = vadd.f32 %v5990, %v6531
      %v6533 = vpop.f32.mrb[0].mxu0
      %v6534 = vadd.f32 %v5990, %v6533
      %6535 = vdwg.mxu0
      %6536 = vmatprep.subr.mxu0 %v6333
      %6537 = vmatpush1.msra.mxu0 %v6332
      %6538 = vmatprep.subr.mxu0 %v6336
      %6539 = vmatpush1.msra.mxu0 %v6335
      %6540 = vmatprep.subr.mxu0 %v6339
      %6541 = vmatpush1.msra.mxu0 %v6338
      %6542 = vmatprep.subr.mxu0 %v6342
      %6543 = vmatpush1.msra.mxu0 %v6341
      %6544 = vmatprep.subr.mxu0 0.0
      %6545 = vmatpush1.msra.mxu0 0.0
      %6546 = vmatprep.subr.mxu0 0.0
      %6547 = vmatpush1.msra.mxu0 0.0
      %6548 = vmatprep.subr.mxu0 0.0
      %6549 = vmatpush1.msra.mxu0 0.0
      %6550 = vmatprep.subr.mxu0 0.0
      %6551 = vmatpush1.msra.mxu0 0.0
      %6552 = vmatprep.subr.mxu0 0.0
      %6553 = vmatpush1.msra.mxu0 0.0
      %6554 = vmatprep.subr.mxu0 0.0
      %6555 = vmatpush1.msra.mxu0 0.0
      %6556 = vmatprep.subr.mxu0 0.0
      %6557 = vmatpush1.msra.mxu0 0.0
      %6558 = vmatprep.subr.mxu0 0.0
      %6559 = vmatpush1.msra.mxu0 0.0
      %6560 = vmatprep.subr.mxu0 0.0
      %6561 = vmatpush1.msra.mxu0 0.0
      %6562 = vmatprep.subr.mxu0 0.0
      %6563 = vmatpush1.msra.mxu0 0.0
      %6564 = vmatprep.subr.mxu0 0.0
      %6565 = vmatpush1.msra.mxu0 0.0
      %6566 = vmatprep.subr.mxu0 0.0
      %6567 = vmatpush1.msra.mxu0 0.0
      %6568 = vmatprep.subr.mxu0 0.0
      %6569 = vmatpush1.msra.mxu0 0.0
      %6570 = vmatprep.subr.mxu0 0.0
      %6571 = vmatpush1.msra.mxu0 0.0
      %6572 = vmatprep.subr.mxu0 0.0
      %6573 = vmatpush1.msra.mxu0 0.0
      %6574 = vmatprep.subr.mxu0 0.0
      %6575 = vmatpush1.msra.mxu0 0.0
      %6576 = vmatprep.subr.mxu0 0.0
      %6577 = vmatpush1.msra.mxu0 0.0
      %6578 = vmatprep.subr.mxu0 0.0
      %6579 = vmatpush1.msra.mxu0 0.0
      %6580 = vmatprep.subr.mxu0 0.0
      %6581 = vmatpush1.msra.mxu0 0.0
      %6582 = vmatprep.subr.mxu0 0.0
      %6583 = vmatpush1.msra.mxu0 0.0
      %6584 = vmatprep.subr.mxu0 0.0
      %6585 = vmatpush1.msra.mxu0 0.0
      %6586 = vmatprep.subr.mxu0 0.0
      %6587 = vmatpush1.msra.mxu0 0.0
      %6588 = vmatprep.subr.mxu0 0.0
      %6589 = vmatpush1.msra.mxu0 0.0
      %6590 = vmatprep.subr.mxu0 0.0
      %6591 = vmatpush1.msra.mxu0 0.0
      %6592 = vmatprep.subr.mxu0 0.0
      %6593 = vmatpush1.msra.mxu0 0.0
      %6594 = vmatprep.subr.mxu0 0.0
      %6595 = vmatpush1.msra.mxu0 0.0
      %6596 = vmatprep.subr.mxu0 0.0
      %6597 = vmatpush1.msra.mxu0 0.0
      %6598 = vmatprep.subr.mxu0 0.0
      %6599 = vmatpush1.msra.mxu0 0.0
      %6600 = vmatprep.mubr.f32.mxu0 0.0
      %6601 = vmatmul.mubr.f32.gmra.mrb[0].mxu0 %v6454
      %v6602 = vpop.f32.mrb[0].mxu0
      %v6603 = vadd.f32 %v6526, %v6602
      %v6604 = vpop.f32.mrb[0].mxu0
      %v6605 = vadd.f32 %v6528, %v6604
      %6606 = vmatprep.mubr.f32.mxu0 0.0
      %6607 = vmatmul.mubr.f32.gmra.mrb[0].mxu0 %v6457
      %v6608 = vpop.f32.mrb[0].mxu0
      %v6609 = vadd.f32 %v6532, %v6608
      %v6610 = vpop.f32.mrb[0].mxu0
      %v6611 = vadd.f32 %v6534, %v6610
      %6612 = vdwg.mxu0
      %6613 = vmatprep.subr.mxu0 0.0
      %6614 = vmatpush1.msra.mxu0 %v5788
      %6615 = vmatprep.subr.mxu0 0.0
      %6616 = vmatpush1.msra.mxu0 %v5791
      %6617 = vmatprep.subr.mxu0 0.0
      %6618 = vmatpush1.msra.mxu0 %v5794
      %6619 = vmatprep.subr.mxu0 0.0
      %6620 = vmatpush1.msra.mxu0 %v5797
      %6621 = vmatprep.subr.mxu0 0.0
      %6622 = vmatpush1.msra.mxu0 %v6250
      %6623 = vmatprep.subr.mxu0 0.0
      %6624 = vmatpush1.msra.mxu0 %v6253
      %6625 = vmatprep.subr.mxu0 0.0
      %6626 = vmatpush1.msra.mxu0 %v6256
      %6627 = vmatprep.subr.mxu0 0.0
      %6628 = vmatpush1.msra.mxu0 %v6259
      %6629 = vmatprep.subr.mxu0 0.0
      %6630 = vmatpush1.msra.mxu0 %v6262
      %6631 = vmatprep.subr.mxu0 0.0
      %6632 = vmatpush1.msra.mxu0 %v6265
      %6633 = vmatprep.subr.mxu0 0.0
      %6634 = vmatpush1.msra.mxu0 %v6268
      %6635 = vmatprep.subr.mxu0 0.0
      %6636 = vmatpush1.msra.mxu0 %v6271
      %6637 = vmatprep.subr.mxu0 0.0
      %6638 = vmatpush1.msra.mxu0 %v6274
      %6639 = vmatprep.subr.mxu0 0.0
      %6640 = vmatpush1.msra.mxu0 %v6277
      %6641 = vmatprep.subr.mxu0 0.0
      %6642 = vmatpush1.msra.mxu0 %v6280
      %6643 = vmatprep.subr.mxu0 0.0
      %6644 = vmatpush1.msra.mxu0 %v6283
      %6645 = vmatprep.subr.mxu0 0.0
      %6646 = vmatpush1.msra.mxu0 %v6286
      %6647 = vmatprep.subr.mxu0 0.0
      %6648 = vmatpush1.msra.mxu0 %v6289
      %6649 = vmatprep.subr.mxu0 0.0
      %6650 = vmatpush1.msra.mxu0 %v6292
      %6651 = vmatprep.subr.mxu0 0.0
      %6652 = vmatpush1.msra.mxu0 %v6295
      %6653 = vmatprep.subr.mxu0 0.0
      %6654 = vmatpush1.msra.mxu0 %v6298
      %6655 = vmatprep.subr.mxu0 0.0
      %6656 = vmatpush1.msra.mxu0 %v6301
      %6657 = vmatprep.subr.mxu0 0.0
      %6658 = vmatpush1.msra.mxu0 %v6304
      %6659 = vmatprep.subr.mxu0 0.0
      %6660 = vmatpush1.msra.mxu0 %v6307
      %6661 = vmatprep.subr.mxu0 0.0
      %6662 = vmatpush1.msra.mxu0 %v6310
      %6663 = vmatprep.subr.mxu0 0.0
      %6664 = vmatpush1.msra.mxu0 %v6313
      %6665 = vmatprep.subr.mxu0 0.0
      %6666 = vmatpush1.msra.mxu0 %v6316
      %6667 = vmatprep.subr.mxu0 0.0
      %6668 = vmatpush1.msra.mxu0 %v6319
      %6669 = vmatprep.subr.mxu0 0.0
      %6670 = vmatpush1.msra.mxu0 %v6322
      %6671 = vmatprep.subr.mxu0 0.0
      %6672 = vmatpush1.msra.mxu0 %v6325
      %6673 = vmatprep.subr.mxu0 0.0
      %6674 = vmatpush1.msra.mxu0 %v6328
      %6675 = vmatprep.subr.mxu0 0.0
      %6676 = vmatpush1.msra.mxu0 %v6331
      %6677 = vmatprep.mubr.f32.mxu0 %v5975
      %6678 = vmatmul.mubr.f32.gmra.mrb[0].mxu0 %v5974
      %v6679 = vpop.f32.mrb[0].mxu0
      %v6680 = vadd.f32 %v5985, %v6679
      %v6681 = vpop.f32.mrb[0].mxu0
      %6682 = vmatprep.mubr.f32.mxu0 %v5978
      %6683 = vmatmul.mubr.f32.gmra.mrb[0].mxu0 %v5977
      %v6684 = vpop.f32.mrb[0].mxu0
      %v6685 = vadd.f32 %v5990, %v6684
      %v6686 = vpop.f32.mrb[0].mxu0
      %6687 = vdwg.mxu0
      %6688 = vmatprep.subr.mxu0 0.0
      %6689 = vmatpush1.msra.mxu0 %v6334
      %6690 = vmatprep.subr.mxu0 0.0
      %6691 = vmatpush1.msra.mxu0 %v6337
      %6692 = vmatprep.subr.mxu0 0.0
      %6693 = vmatpush1.msra.mxu0 %v6340
      %6694 = vmatprep.subr.mxu0 0.0
      %6695 = vmatpush1.msra.mxu0 %v6343
      %6696 = vmatprep.subr.mxu0 0.0
      %6697 = vmatpush1.msra.mxu0 0.0
      %6698 = vmatprep.subr.mxu0 0.0
      %6699 = vmatpush1.msra.mxu0 0.0
      %6700 = vmatprep.subr.mxu0 0.0
      %6701 = vmatpush1.msra.mxu0 0.0
      %6702 = vmatprep.subr.mxu0 0.0
      %6703 = vmatpush1.msra.mxu0 0.0
      %6704 = vmatprep.subr.mxu0 0.0
      %6705 = vmatpush1.msra.mxu0 0.0
      %6706 = vmatprep.subr.mxu0 0.0
      %6707 = vmatpush1.msra.mxu0 0.0
      %6708 = vmatprep.subr.mxu0 0.0
      %6709 = vmatpush1.msra.mxu0 0.0
      %6710 = vmatprep.subr.mxu0 0.0
      %6711 = vmatpush1.msra.mxu0 0.0
      %6712 = vmatprep.subr.mxu0 0.0
      %6713 = vmatpush1.msra.mxu0 0.0
      %6714 = vmatprep.subr.mxu0 0.0
      %6715 = vmatpush1.msra.mxu0 0.0
      %6716 = vmatprep.subr.mxu0 0.0
      %6717 = vmatpush1.msra.mxu0 0.0
      %6718 = vmatprep.subr.mxu0 0.0
      %6719 = vmatpush1.msra.mxu0 0.0
      %6720 = vmatprep.subr.mxu0 0.0
      %6721 = vmatpush1.msra.mxu0 0.0
      %6722 = vmatprep.subr.mxu0 0.0
      %6723 = vmatpush1.msra.mxu0 0.0
      %6724 = vmatprep.subr.mxu0 0.0
      %6725 = vmatpush1.msra.mxu0 0.0
      %6726 = vmatprep.subr.mxu0 0.0
      %6727 = vmatpush1.msra.mxu0 0.0
      %6728 = vmatprep.subr.mxu0 0.0
      %6729 = vmatpush1.msra.mxu0 0.0
      %6730 = vmatprep.subr.mxu0 0.0
      %6731 = vmatpush1.msra.mxu0 0.0
      %6732 = vmatprep.subr.mxu0 0.0
      %6733 = vmatpush1.msra.mxu0 0.0
      %6734 = vmatprep.subr.mxu0 0.0
      %6735 = vmatpush1.msra.mxu0 0.0
      %6736 = vmatprep.subr.mxu0 0.0
      %6737 = vmatpush1.msra.mxu0 0.0
      %6738 = vmatprep.subr.mxu0 0.0
      %6739 = vmatpush1.msra.mxu0 0.0
      %6740 = vmatprep.subr.mxu0 0.0
      %6741 = vmatpush1.msra.mxu0 0.0
      %6742 = vmatprep.subr.mxu0 0.0
      %6743 = vmatpush1.msra.mxu0 0.0
      %6744 = vmatprep.subr.mxu0 0.0
      %6745 = vmatpush1.msra.mxu0 0.0
      %6746 = vmatprep.subr.mxu0 0.0
      %6747 = vmatpush1.msra.mxu0 0.0
      %6748 = vmatprep.subr.mxu0 0.0
      %6749 = vmatpush1.msra.mxu0 0.0
      %6750 = vmatprep.subr.mxu0 0.0
      %6751 = vmatpush1.msra.mxu0 0.0
      %6752 = vmatprep.mubr.f32.mxu0 0.0
      %6753 = vmatmul.mubr.f32.gmra.mrb[0].mxu0 %v6454
      %v6754 = vpop.f32.mrb[0].mxu0
      %v6755 = vadd.f32 %v6680, %v6754
      %v6756 = vpop.f32.mrb[0].mxu0
      %6757 = vmatprep.mubr.f32.mxu0 0.0
      %6758 = vmatmul.mubr.f32.gmra.mrb[0].mxu0 %v6457
      %v6759 = vpop.f32.mrb[0].mxu0
      %v6760 = vadd.f32 %v6685, %v6759
      %v6761 = vpop.f32.mrb[0].mxu0
      %6762 = vdwg.mxu0
      %vm6763 = vcmp.ge.f32.partialorder %v6603, 0.0
      %vm6764 = vcmp.ge.f32.partialorder %v6605, 0.0
      %vm6765 = vcmp.ge.f32.partialorder %v6755, 0.0
      %vm6766 = vcmp.ge.f32.partialorder %v6609, 0.0
      %vm6767 = vcmp.ge.f32.partialorder %v6611, 0.0
      %vm6768 = vcmp.ge.f32.partialorder %v6760, 0.0
      %v6769 = vmul.f32 %v6603, 0.01
      %v6770 = vmul.f32 %v6605, 0.01
      %v6771 = vmul.f32 %v6755, 0.01
      %v6772 = vmul.f32 %v6609, 0.01
      %v6773 = vmul.f32 %v6611, 0.01
      %v6774 = vmul.f32 %v6760, 0.01
      %v6775 = vsel %vm6763, %v6603, %v6769
      %v6776 = vsel %vm6764, %v6605, %v6770
      %v6777 = vsel %vm6765, %v6755, %v6771
      %v6778 = vsel %vm6766, %v6609, %v6772
      %v6779 = vsel %vm6767, %v6611, %v6773
      %v6780 = vsel %vm6768, %v6760, %v6774
      %v6781 = vmul.f32 %v6775, %v974
      %v6782 = vmul.f32 %v6776, %v978
      %v6783 = vmul.f32 %v6777, %v982
      %v6784 = vmul.f32 %v6778, %v974
      %v6785 = vmul.f32 %v6779, %v978
      %v6786 = vmul.f32 %v6780, %v982
      %6793 = vrot.lane.b32.xlu0 %v6781, 42
      %v6794 = vpop.permute.xlu0 %6793
      %6795 = vrot.lane.b32.xlu0 %v6782, 42
      %v6796 = vpop.permute.xlu0 %6795
      %6797 = vrot.lane.b32.xlu0 %v6783, 42
      %v6798 = vpop.permute.xlu0 %6797
      %6799 = vrot.lane.b32.xlu0 %v6784, 42
      %v6800 = vpop.permute.xlu0 %6799
      %6801 = vrot.lane.b32.xlu0 %v6785, 42
      %v6802 = vpop.permute.xlu0 %6801
      %6803 = vrot.lane.b32.xlu0 %v6786, 42
      %v6804 = vpop.permute.xlu0 %6803
      %v6805 = vsel %vm989, %v6794, %v6796
      %v6806 = vsel %vm989, %v6796, %v6798
      %v6807 = vsel %vm989, %v6800, %v6802
      %v6808 = vsel %vm989, %v6802, %v6804
      %6817 = vst.msk [vmem:[#allocation7] sm:$0xff] %vm3091, %v6794
      %6818 = vst [vmem:[#allocation7 + $0x8] sm:$0xff] %v6805
      %6819 = vst [vmem:[#allocation7 + $0x10] sm:$0xff] %v6806
      %6820 = vst.msk [vmem:[#allocation7 + $0x18] sm:$0xff] %vm989, %v6798
      %6821 = vst.msk [vmem:[#allocation7 + $0x20] sm:$0xff] %vm3091, %v6800
      %6822 = vst [vmem:[#allocation7 + $0x28] sm:$0xff] %v6807
      %6823 = vst [vmem:[#allocation7 + $0x30] sm:$0xff] %v6808
      %6824 = vst.msk [vmem:[#allocation7 + $0x38] sm:$0xff] %vm989, %v6804
      %v6825 = vld [vmem:[#allocation7] sm:$0xff]
      %v6826 = vld [vmem:[#allocation7 + $0x8] sm:$0xff]
      %v6827 = vld [vmem:[#allocation7 + $0x10] sm:$0xff]
      %v6828 = vld [vmem:[#allocation7 + $0x18] sm:$0xff]
      %v6829 = vld [vmem:[#allocation7 + $0x20] sm:$0xff]
      %v6830 = vld [vmem:[#allocation7 + $0x28] sm:$0xff]
      %v6831 = vld [vmem:[#allocation7 + $0x30] sm:$0xff]
      %v6832 = vld [vmem:[#allocation7 + $0x38] sm:$0xff]
      %6841 = vrot.lane.b32.xlu0 %v6825, 127
      %v6842 = vpop.permute.xlu0 %6841
      %6843 = vrot.lane.b32.xlu0 %v6826, 127
      %v6844 = vpop.permute.xlu0 %6843
      %6845 = vrot.lane.b32.xlu0 %v6827, 127
      %v6846 = vpop.permute.xlu0 %6845
      %6847 = vrot.lane.b32.xlu0 %v6828, 127
      %v6848 = vpop.permute.xlu0 %6847
      %6849 = vrot.lane.b32.xlu0 %v6829, 127
      %v6850 = vpop.permute.xlu0 %6849
      %6851 = vrot.lane.b32.xlu0 %v6830, 127
      %v6852 = vpop.permute.xlu0 %6851
      %6853 = vrot.lane.b32.xlu0 %v6831, 127
      %v6854 = vpop.permute.xlu0 %6853
      %6855 = vrot.lane.b32.xlu0 %v6832, 127
      %v6856 = vpop.permute.xlu0 %6855
      %v6857 = vsel %vm2662, %v6842, %v6844
      %v6858 = vsel %vm2662, %v6844, %v6846
      %v6859 = vsel %vm2662, %v6846, %v6848
      %v6860 = vsel %vm2662, %v6850, %v6852
      %v6861 = vsel %vm2662, %v6852, %v6854
      %v6862 = vsel %vm2662, %v6854, %v6856
      %6863 = vrot.lane.b32.xlu0 %v6825, 126
      %v6864 = vpop.permute.xlu0 %6863
      %6865 = vrot.lane.b32.xlu0 %v6826, 126
      %v6866 = vpop.permute.xlu0 %6865
      %6867 = vrot.lane.b32.xlu0 %v6827, 126
      %v6868 = vpop.permute.xlu0 %6867
      %6869 = vrot.lane.b32.xlu0 %v6828, 126
      %v6870 = vpop.permute.xlu0 %6869
      %6871 = vrot.lane.b32.xlu0 %v6829, 126
      %v6872 = vpop.permute.xlu0 %6871
      %6873 = vrot.lane.b32.xlu0 %v6830, 126
      %v6874 = vpop.permute.xlu0 %6873
      %6875 = vrot.lane.b32.xlu0 %v6831, 126
      %v6876 = vpop.permute.xlu0 %6875
      %6877 = vrot.lane.b32.xlu0 %v6832, 126
      %v6878 = vpop.permute.xlu0 %6877
      %v6879 = vsel %vm2674, %v6864, %v6866
      %v6880 = vsel %vm2674, %v6866, %v6868
      %v6881 = vsel %vm2674, %v6868, %v6870
      %v6882 = vsel %vm2674, %v6872, %v6874
      %v6883 = vsel %vm2674, %v6874, %v6876
      %v6884 = vsel %vm2674, %v6876, %v6878
      %6885 = vrot.lane.b32.xlu0 %v6825, 108
      %v6886 = vpop.permute.xlu0 %6885
      %6887 = vrot.lane.b32.xlu0 %v6826, 108
      %v6888 = vpop.permute.xlu0 %6887
      %6889 = vrot.lane.b32.xlu0 %v6827, 108
      %v6890 = vpop.permute.xlu0 %6889
      %6891 = vrot.lane.b32.xlu0 %v6828, 108
      %v6892 = vpop.permute.xlu0 %6891
      %6893 = vrot.lane.b32.xlu0 %v6829, 108
      %v6894 = vpop.permute.xlu0 %6893
      %6895 = vrot.lane.b32.xlu0 %v6830, 108
      %v6896 = vpop.permute.xlu0 %6895
      %6897 = vrot.lane.b32.xlu0 %v6831, 108
      %v6898 = vpop.permute.xlu0 %6897
      %6899 = vrot.lane.b32.xlu0 %v6832, 108
      %v6900 = vpop.permute.xlu0 %6899
      %v6901 = vsel %vm2686, %v6886, %v6888
      %v6902 = vsel %vm2686, %v6888, %v6890
      %v6903 = vsel %vm2686, %v6890, %v6892
      %v6904 = vsel %vm2686, %v6894, %v6896
      %v6905 = vsel %vm2686, %v6896, %v6898
      %v6906 = vsel %vm2686, %v6898, %v6900
      %6907 = vrot.lane.b32.xlu0 %v6825, 107
      %v6908 = vpop.permute.xlu0 %6907
      %6909 = vrot.lane.b32.xlu0 %v6826, 107
      %v6910 = vpop.permute.xlu0 %6909
      %6911 = vrot.lane.b32.xlu0 %v6827, 107
      %v6912 = vpop.permute.xlu0 %6911
      %6913 = vrot.lane.b32.xlu0 %v6828, 107
      %v6914 = vpop.permute.xlu0 %6913
      %6915 = vrot.lane.b32.xlu0 %v6829, 107
      %v6916 = vpop.permute.xlu0 %6915
      %6917 = vrot.lane.b32.xlu0 %v6830, 107
      %v6918 = vpop.permute.xlu0 %6917
      %6919 = vrot.lane.b32.xlu0 %v6831, 107
      %v6920 = vpop.permute.xlu0 %6919
      %6921 = vrot.lane.b32.xlu0 %v6832, 107
      %v6922 = vpop.permute.xlu0 %6921
      %v6923 = vsel %vm2698, %v6908, %v6910
      %v6924 = vsel %vm2698, %v6910, %v6912
      %v6925 = vsel %vm2698, %v6912, %v6914
      %v6926 = vsel %vm2698, %v6916, %v6918
      %v6927 = vsel %vm2698, %v6918, %v6920
      %v6928 = vsel %vm2698, %v6920, %v6922
      %6929 = vrot.lane.b32.xlu0 %v6825, 106
      %v6930 = vpop.permute.xlu0 %6929
      %6931 = vrot.lane.b32.xlu0 %v6826, 106
      %v6932 = vpop.permute.xlu0 %6931
      %6933 = vrot.lane.b32.xlu0 %v6827, 106
      %v6934 = vpop.permute.xlu0 %6933
      %6935 = vrot.lane.b32.xlu0 %v6828, 106
      %v6936 = vpop.permute.xlu0 %6935
      %6937 = vrot.lane.b32.xlu0 %v6829, 106
      %v6938 = vpop.permute.xlu0 %6937
      %6939 = vrot.lane.b32.xlu0 %v6830, 106
      %v6940 = vpop.permute.xlu0 %6939
      %6941 = vrot.lane.b32.xlu0 %v6831, 106
      %v6942 = vpop.permute.xlu0 %6941
      %6943 = vrot.lane.b32.xlu0 %v6832, 106
      %v6944 = vpop.permute.xlu0 %6943
      %v6945 = vsel %vm2710, %v6930, %v6932
      %v6946 = vsel %vm2710, %v6932, %v6934
      %v6947 = vsel %vm2710, %v6934, %v6936
      %v6948 = vsel %vm2710, %v6938, %v6940
      %v6949 = vsel %vm2710, %v6940, %v6942
      %v6950 = vsel %vm2710, %v6942, %v6944
      %6951 = vrot.lane.b32.xlu0 %v6825, 88
      %v6952 = vpop.permute.xlu0 %6951
      %6953 = vrot.lane.b32.xlu0 %v6826, 88
      %v6954 = vpop.permute.xlu0 %6953
      %6955 = vrot.lane.b32.xlu0 %v6827, 88
      %v6956 = vpop.permute.xlu0 %6955
      %6957 = vrot.lane.b32.xlu0 %v6828, 88
      %v6958 = vpop.permute.xlu0 %6957
      %6959 = vrot.lane.b32.xlu0 %v6829, 88
      %v6960 = vpop.permute.xlu0 %6959
      %6961 = vrot.lane.b32.xlu0 %v6830, 88
      %v6962 = vpop.permute.xlu0 %6961
      %6963 = vrot.lane.b32.xlu0 %v6831, 88
      %v6964 = vpop.permute.xlu0 %6963
      %6965 = vrot.lane.b32.xlu0 %v6832, 88
      %v6966 = vpop.permute.xlu0 %6965
      %v6967 = vsel %vm2722, %v6952, %v6954
      %v6968 = vsel %vm2722, %v6954, %v6956
      %v6969 = vsel %vm2722, %v6956, %v6958
      %v6970 = vsel %vm2722, %v6960, %v6962
      %v6971 = vsel %vm2722, %v6962, %v6964
      %v6972 = vsel %vm2722, %v6964, %v6966
      %6973 = vrot.lane.b32.xlu0 %v6825, 87
      %v6974 = vpop.permute.xlu0 %6973
      %6975 = vrot.lane.b32.xlu0 %v6826, 87
      %v6976 = vpop.permute.xlu0 %6975
      %6977 = vrot.lane.b32.xlu0 %v6827, 87
      %v6978 = vpop.permute.xlu0 %6977
      %6979 = vrot.lane.b32.xlu0 %v6828, 87
      %v6980 = vpop.permute.xlu0 %6979
      %6981 = vrot.lane.b32.xlu0 %v6829, 87
      %v6982 = vpop.permute.xlu0 %6981
      %6983 = vrot.lane.b32.xlu0 %v6830, 87
      %v6984 = vpop.permute.xlu0 %6983
      %6985 = vrot.lane.b32.xlu0 %v6831, 87
      %v6986 = vpop.permute.xlu0 %6985
      %6987 = vrot.lane.b32.xlu0 %v6832, 87
      %v6988 = vpop.permute.xlu0 %6987
      %v6989 = vsel %vm2734, %v6974, %v6976
      %v6990 = vsel %vm2734, %v6976, %v6978
      %v6991 = vsel %vm2734, %v6978, %v6980
      %v6992 = vsel %vm2734, %v6982, %v6984
      %v6993 = vsel %vm2734, %v6984, %v6986
      %v6994 = vsel %vm2734, %v6986, %v6988
      %6995 = vrot.lane.b32.xlu0 %v6825, 86
      %v6996 = vpop.permute.xlu0 %6995
      %6997 = vrot.lane.b32.xlu0 %v6826, 86
      %v6998 = vpop.permute.xlu0 %6997
      %6999 = vrot.lane.b32.xlu0 %v6827, 86
      %v7000 = vpop.permute.xlu0 %6999
      %7001 = vrot.lane.b32.xlu0 %v6828, 86
      %v7002 = vpop.permute.xlu0 %7001
      %7003 = vrot.lane.b32.xlu0 %v6829, 86
      %v7004 = vpop.permute.xlu0 %7003
      %7005 = vrot.lane.b32.xlu0 %v6830, 86
      %v7006 = vpop.permute.xlu0 %7005
      %7007 = vrot.lane.b32.xlu0 %v6831, 86
      %v7008 = vpop.permute.xlu0 %7007
      %7009 = vrot.lane.b32.xlu0 %v6832, 86
      %v7010 = vpop.permute.xlu0 %7009
      %v7011 = vsel %vm1012, %v6996, %v6998
      %v7012 = vsel %vm1012, %v6998, %v7000
      %v7013 = vsel %vm1012, %v7000, %v7002
      %v7014 = vsel %vm1012, %v7004, %v7006
      %v7015 = vsel %vm1012, %v7006, %v7008
      %v7016 = vsel %vm1012, %v7008, %v7010
      %v7017 = vld [vmem:[%s26] sm:$0x77]
      %v7018 = vld [vmem:[%s27] sm:$0x7]
      %7020 = vset.pattern.permute.xlu0 0
      %7021 = vperm.xlu0 %7020, %v7018
      %v7022 = vpop.permute.xlu0 %7021
      %v7025 = vcombine.high %v7017, %v7017
      %7026 = vrot.lane.b32.xlu0 %v6857, 107
      %v7027 = vpop.permute.xlu0 %7026
      %7028 = vrot.lane.b32.xlu0 %v6858, 107
      %v7029 = vpop.permute.xlu0 %7028
      %7030 = vrot.lane.b32.xlu0 %v6859, 107
      %v7031 = vpop.permute.xlu0 %7030
      %7032 = vrot.lane.b32.xlu0 %v6848, 107
      %v7033 = vpop.permute.xlu0 %7032
      %7034 = vrot.lane.b32.xlu0 %v6860, 107
      %v7035 = vpop.permute.xlu0 %7034
      %7036 = vrot.lane.b32.xlu0 %v6861, 107
      %v7037 = vpop.permute.xlu0 %7036
      %7038 = vrot.lane.b32.xlu0 %v6862, 107
      %v7039 = vpop.permute.xlu0 %7038
      %7040 = vrot.lane.b32.xlu0 %v6856, 107
      %v7041 = vpop.permute.xlu0 %7040
      %7042 = vrot.lane.b32.xlu0 %v6879, 107
      %v7043 = vpop.permute.xlu0 %7042
      %7044 = vrot.lane.b32.xlu0 %v6880, 107
      %v7045 = vpop.permute.xlu0 %7044
      %7046 = vrot.lane.b32.xlu0 %v6881, 107
      %v7047 = vpop.permute.xlu0 %7046
      %7048 = vrot.lane.b32.xlu0 %v6870, 107
      %v7049 = vpop.permute.xlu0 %7048
      %7050 = vrot.lane.b32.xlu0 %v6882, 107
      %v7051 = vpop.permute.xlu0 %7050
      %7052 = vrot.lane.b32.xlu0 %v6883, 107
      %v7053 = vpop.permute.xlu0 %7052
      %7054 = vrot.lane.b32.xlu0 %v6884, 107
      %v7055 = vpop.permute.xlu0 %7054
      %7056 = vrot.lane.b32.xlu0 %v6878, 107
      %v7057 = vpop.permute.xlu0 %7056
      %7058 = vrot.lane.b32.xlu0 %v6901, 107
      %v7059 = vpop.permute.xlu0 %7058
      %7060 = vrot.lane.b32.xlu0 %v6902, 107
      %v7061 = vpop.permute.xlu0 %7060
      %7062 = vrot.lane.b32.xlu0 %v6903, 107
      %v7063 = vpop.permute.xlu0 %7062
      %7064 = vrot.lane.b32.xlu0 %v6892, 107
      %v7065 = vpop.permute.xlu0 %7064
      %7066 = vrot.lane.b32.xlu0 %v6904, 107
      %v7067 = vpop.permute.xlu0 %7066
      %7068 = vrot.lane.b32.xlu0 %v6905, 107
      %v7069 = vpop.permute.xlu0 %7068
      %7070 = vrot.lane.b32.xlu0 %v6906, 107
      %v7071 = vpop.permute.xlu0 %7070
      %7072 = vrot.lane.b32.xlu0 %v6900, 107
      %v7073 = vpop.permute.xlu0 %7072
      %7074 = vrot.lane.b32.xlu0 %v6923, 107
      %v7075 = vpop.permute.xlu0 %7074
      %7076 = vrot.lane.b32.xlu0 %v6924, 107
      %v7077 = vpop.permute.xlu0 %7076
      %7078 = vrot.lane.b32.xlu0 %v6925, 107
      %v7079 = vpop.permute.xlu0 %7078
      %7080 = vrot.lane.b32.xlu0 %v6914, 107
      %v7081 = vpop.permute.xlu0 %7080
      %7082 = vrot.lane.b32.xlu0 %v6926, 107
      %v7083 = vpop.permute.xlu0 %7082
      %7084 = vrot.lane.b32.xlu0 %v6927, 107
      %v7085 = vpop.permute.xlu0 %7084
      %7086 = vrot.lane.b32.xlu0 %v6928, 107
      %v7087 = vpop.permute.xlu0 %7086
      %7088 = vrot.lane.b32.xlu0 %v6922, 107
      %v7089 = vpop.permute.xlu0 %7088
      %7090 = vrot.lane.b32.xlu0 %v6945, 107
      %v7091 = vpop.permute.xlu0 %7090
      %7092 = vrot.lane.b32.xlu0 %v6946, 107
      %v7093 = vpop.permute.xlu0 %7092
      %7094 = vrot.lane.b32.xlu0 %v6947, 107
      %v7095 = vpop.permute.xlu0 %7094
      %7096 = vrot.lane.b32.xlu0 %v6936, 107
      %v7097 = vpop.permute.xlu0 %7096
      %7098 = vrot.lane.b32.xlu0 %v6948, 107
      %v7099 = vpop.permute.xlu0 %7098
      %7100 = vrot.lane.b32.xlu0 %v6949, 107
      %v7101 = vpop.permute.xlu0 %7100
      %7102 = vrot.lane.b32.xlu0 %v6950, 107
      %v7103 = vpop.permute.xlu0 %7102
      %7104 = vrot.lane.b32.xlu0 %v6944, 107
      %v7105 = vpop.permute.xlu0 %7104
      %7106 = vrot.lane.b32.xlu0 %v6967, 107
      %v7107 = vpop.permute.xlu0 %7106
      %7108 = vrot.lane.b32.xlu0 %v6968, 107
      %v7109 = vpop.permute.xlu0 %7108
      %7110 = vrot.lane.b32.xlu0 %v6969, 107
      %v7111 = vpop.permute.xlu0 %7110
      %7112 = vrot.lane.b32.xlu0 %v6958, 107
      %v7113 = vpop.permute.xlu0 %7112
      %7114 = vrot.lane.b32.xlu0 %v6970, 107
      %v7115 = vpop.permute.xlu0 %7114
      %7116 = vrot.lane.b32.xlu0 %v6971, 107
      %v7117 = vpop.permute.xlu0 %7116
      %7118 = vrot.lane.b32.xlu0 %v6972, 107
      %v7119 = vpop.permute.xlu0 %7118
      %7120 = vrot.lane.b32.xlu0 %v6966, 107
      %v7121 = vpop.permute.xlu0 %7120
      %7122 = vrot.lane.b32.xlu0 %v6989, 107
      %v7123 = vpop.permute.xlu0 %7122
      %7124 = vrot.lane.b32.xlu0 %v6990, 107
      %v7125 = vpop.permute.xlu0 %7124
      %7126 = vrot.lane.b32.xlu0 %v6991, 107
      %v7127 = vpop.permute.xlu0 %7126
      %7128 = vrot.lane.b32.xlu0 %v6980, 107
      %v7129 = vpop.permute.xlu0 %7128
      %7130 = vrot.lane.b32.xlu0 %v6992, 107
      %v7131 = vpop.permute.xlu0 %7130
      %7132 = vrot.lane.b32.xlu0 %v6993, 107
      %v7133 = vpop.permute.xlu0 %7132
      %7134 = vrot.lane.b32.xlu0 %v6994, 107
      %v7135 = vpop.permute.xlu0 %7134
      %7136 = vrot.lane.b32.xlu0 %v6988, 107
      %v7137 = vpop.permute.xlu0 %7136
      %7138 = vrot.lane.b32.xlu0 %v7011, 107
      %v7139 = vpop.permute.xlu0 %7138
      %7140 = vrot.lane.b32.xlu0 %v7012, 107
      %v7141 = vpop.permute.xlu0 %7140
      %7142 = vrot.lane.b32.xlu0 %v7013, 107
      %v7143 = vpop.permute.xlu0 %7142
      %7144 = vrot.lane.b32.xlu0 %v7002, 107
      %v7145 = vpop.permute.xlu0 %7144
      %7146 = vrot.lane.b32.xlu0 %v7014, 107
      %v7147 = vpop.permute.xlu0 %7146
      %7148 = vrot.lane.b32.xlu0 %v7015, 107
      %v7149 = vpop.permute.xlu0 %7148
      %7150 = vrot.lane.b32.xlu0 %v7016, 107
      %v7151 = vpop.permute.xlu0 %7150
      %7152 = vrot.lane.b32.xlu0 %v7010, 107
      %v7153 = vpop.permute.xlu0 %7152
      %v7154 = vsel %vm2698, %v7027, %v7029
      %v7155 = vsel %vm2698, %v7029, %v7031
      %v7156 = vsel %vm2698, %v7031, %v7033
      %v7157 = vsel %vm2698, %v7035, %v7037
      %v7158 = vsel %vm2698, %v7037, %v7039
      %v7159 = vsel %vm2698, %v7039, %v7041
      %v7160 = vsel %vm2698, %v7043, %v7045
      %v7161 = vsel %vm2698, %v7045, %v7047
      %v7162 = vsel %vm2698, %v7047, %v7049
      %v7163 = vsel %vm2698, %v7051, %v7053
      %v7164 = vsel %vm2698, %v7053, %v7055
      %v7165 = vsel %vm2698, %v7055, %v7057
      %v7166 = vsel %vm2698, %v7059, %v7061
      %v7167 = vsel %vm2698, %v7061, %v7063
      %v7168 = vsel %vm2698, %v7063, %v7065
      %v7169 = vsel %vm2698, %v7067, %v7069
      %v7170 = vsel %vm2698, %v7069, %v7071
      %v7171 = vsel %vm2698, %v7071, %v7073
      %v7172 = vsel %vm2698, %v7075, %v7077
      %v7173 = vsel %vm2698, %v7077, %v7079
      %v7174 = vsel %vm2698, %v7079, %v7081
      %v7175 = vsel %vm2698, %v7083, %v7085
      %v7176 = vsel %vm2698, %v7085, %v7087
      %v7177 = vsel %vm2698, %v7087, %v7089
      %v7178 = vsel %vm2698, %v7091, %v7093
      %v7179 = vsel %vm2698, %v7093, %v7095
      %v7180 = vsel %vm2698, %v7095, %v7097
      %v7181 = vsel %vm2698, %v7099, %v7101
      %v7182 = vsel %vm2698, %v7101, %v7103
      %v7183 = vsel %vm2698, %v7103, %v7105
      %v7184 = vsel %vm2698, %v7107, %v7109
      %v7185 = vsel %vm2698, %v7109, %v7111
      %v7186 = vsel %vm2698, %v7111, %v7113
      %v7187 = vsel %vm2698, %v7115, %v7117
      %v7188 = vsel %vm2698, %v7117, %v7119
      %v7189 = vsel %vm2698, %v7119, %v7121
      %v7190 = vsel %vm2698, %v7123, %v7125
      %v7191 = vsel %vm2698, %v7125, %v7127
      %v7192 = vsel %vm2698, %v7127, %v7129
      %v7193 = vsel %vm2698, %v7131, %v7133
      %v7194 = vsel %vm2698, %v7133, %v7135
      %v7195 = vsel %vm2698, %v7135, %v7137
      %v7196 = vsel %vm2698, %v7139, %v7141
      %v7197 = vsel %vm2698, %v7141, %v7143
      %v7198 = vsel %vm2698, %v7143, %v7145
      %v7199 = vsel %vm2698, %v7147, %v7149
      %v7200 = vsel %vm2698, %v7149, %v7151
      %v7201 = vsel %vm2698, %v7151, %v7153
      %v7256 = vsel %vm1272, %v7025, 0
      %7258 = vmatprep.subr.mxu0 %v6924
      %7259 = vmatpush1.msra.mxu0 %v6923
      %7260 = vmatprep.subr.mxu0 %v6927
      %7261 = vmatpush1.msra.mxu0 %v6926
      %7262 = vmatprep.subr.mxu0 %v7155
      %7263 = vmatpush1.msra.mxu0 %v7154
      %7264 = vmatprep.subr.mxu0 %v7158
      %7265 = vmatpush1.msra.mxu0 %v7157
      %7266 = vmatprep.subr.mxu0 %v7161
      %7267 = vmatpush1.msra.mxu0 %v7160
      %7268 = vmatprep.subr.mxu0 %v7164
      %7269 = vmatpush1.msra.mxu0 %v7163
      %7270 = vmatprep.subr.mxu0 %v7167
      %7271 = vmatpush1.msra.mxu0 %v7166
      %7272 = vmatprep.subr.mxu0 %v7170
      %7273 = vmatpush1.msra.mxu0 %v7169
      %7274 = vmatprep.subr.mxu0 %v7173
      %7275 = vmatpush1.msra.mxu0 %v7172
      %7276 = vmatprep.subr.mxu0 %v7176
      %7277 = vmatpush1.msra.mxu0 %v7175
      %7278 = vmatprep.subr.mxu0 %v7179
      %7279 = vmatpush1.msra.mxu0 %v7178
      %7280 = vmatprep.subr.mxu0 %v7182
      %7281 = vmatpush1.msra.mxu0 %v7181
      %7282 = vmatprep.subr.mxu0 %v7185
      %7283 = vmatpush1.msra.mxu0 %v7184
      %7284 = vmatprep.subr.mxu0 %v7188
      %7285 = vmatpush1.msra.mxu0 %v7187
      %7286 = vmatprep.subr.mxu0 %v7191
      %7287 = vmatpush1.msra.mxu0 %v7190
      %7288 = vmatprep.subr.mxu0 %v7194
      %7289 = vmatpush1.msra.mxu0 %v7193
      %7290 = vmatprep.subr.mxu0 %v7197
      %7291 = vmatpush1.msra.mxu0 %v7196
      %7292 = vmatprep.subr.mxu0 %v7200
      %7293 = vmatpush1.msra.mxu0 %v7199
      %7294 = vmatprep.subr.mxu0 0.0
      %7295 = vmatpush1.msra.mxu0 0.0
      %7296 = vmatprep.subr.mxu0 0.0
      %7297 = vmatpush1.msra.mxu0 0.0
      %7298 = vmatprep.subr.mxu0 0.0
      %7299 = vmatpush1.msra.mxu0 0.0
      %7300 = vmatprep.subr.mxu0 0.0
      %7301 = vmatpush1.msra.mxu0 0.0
      %7302 = vmatprep.subr.mxu0 0.0
      %7303 = vmatpush1.msra.mxu0 0.0
      %7304 = vmatprep.subr.mxu0 0.0
      %7305 = vmatpush1.msra.mxu0 0.0
      %7306 = vmatprep.subr.mxu0 0.0
      %7307 = vmatpush1.msra.mxu0 0.0
      %7308 = vmatprep.subr.mxu0 0.0
      %7309 = vmatpush1.msra.mxu0 0.0
      %7310 = vmatprep.subr.mxu0 0.0
      %7311 = vmatpush1.msra.mxu0 0.0
      %7312 = vmatprep.subr.mxu0 0.0
      %7313 = vmatpush1.msra.mxu0 0.0
      %7314 = vmatprep.subr.mxu0 0.0
      %7315 = vmatpush1.msra.mxu0 0.0
      %7316 = vmatprep.subr.mxu0 0.0
      %7317 = vmatpush1.msra.mxu0 0.0
      %7318 = vmatprep.subr.mxu0 0.0
      %7319 = vmatpush1.msra.mxu0 0.0
      %7320 = vmatprep.subr.mxu0 0.0
      %7321 = vmatpush1.msra.mxu0 0.0
      %7322 = vmatprep.mubr.f32.mxu0 %v7256
      %7323 = vmatmul.mubr.f32.gmra.mrb[0].mxu0 %v7017
      %v7324 = vpop.f32.mrb[0].mxu0
      %v7325 = vadd.f32 %v7022, %v7324
      %v7326 = vpop.f32.mrb[0].mxu0
      %v7327 = vadd.f32 %v7022, %v7326
      %7328 = vdwg.mxu0
      %7329 = vmatprep.subr.mxu0 0.0
      %7330 = vmatpush1.msra.mxu0 %v6925
      %7331 = vmatprep.subr.mxu0 0.0
      %7332 = vmatpush1.msra.mxu0 %v6928
      %7333 = vmatprep.subr.mxu0 0.0
      %7334 = vmatpush1.msra.mxu0 %v7156
      %7335 = vmatprep.subr.mxu0 0.0
      %7336 = vmatpush1.msra.mxu0 %v7159
      %7337 = vmatprep.subr.mxu0 0.0
      %7338 = vmatpush1.msra.mxu0 %v7162
      %7339 = vmatprep.subr.mxu0 0.0
      %7340 = vmatpush1.msra.mxu0 %v7165
      %7341 = vmatprep.subr.mxu0 0.0
      %7342 = vmatpush1.msra.mxu0 %v7168
      %7343 = vmatprep.subr.mxu0 0.0
      %7344 = vmatpush1.msra.mxu0 %v7171
      %7345 = vmatprep.subr.mxu0 0.0
      %7346 = vmatpush1.msra.mxu0 %v7174
      %7347 = vmatprep.subr.mxu0 0.0
      %7348 = vmatpush1.msra.mxu0 %v7177
      %7349 = vmatprep.subr.mxu0 0.0
      %7350 = vmatpush1.msra.mxu0 %v7180
      %7351 = vmatprep.subr.mxu0 0.0
      %7352 = vmatpush1.msra.mxu0 %v7183
      %7353 = vmatprep.subr.mxu0 0.0
      %7354 = vmatpush1.msra.mxu0 %v7186
      %7355 = vmatprep.subr.mxu0 0.0
      %7356 = vmatpush1.msra.mxu0 %v7189
      %7357 = vmatprep.subr.mxu0 0.0
      %7358 = vmatpush1.msra.mxu0 %v7192
      %7359 = vmatprep.subr.mxu0 0.0
      %7360 = vmatpush1.msra.mxu0 %v7195
      %7361 = vmatprep.subr.mxu0 0.0
      %7362 = vmatpush1.msra.mxu0 %v7198
      %7363 = vmatprep.subr.mxu0 0.0
      %7364 = vmatpush1.msra.mxu0 %v7201
      %7365 = vmatprep.subr.mxu0 0.0
      %7366 = vmatpush1.msra.mxu0 0.0
      %7367 = vmatprep.subr.mxu0 0.0
      %7368 = vmatpush1.msra.mxu0 0.0
      %7369 = vmatprep.subr.mxu0 0.0
      %7370 = vmatpush1.msra.mxu0 0.0
      %7371 = vmatprep.subr.mxu0 0.0
      %7372 = vmatpush1.msra.mxu0 0.0
      %7373 = vmatprep.subr.mxu0 0.0
      %7374 = vmatpush1.msra.mxu0 0.0
      %7375 = vmatprep.subr.mxu0 0.0
      %7376 = vmatpush1.msra.mxu0 0.0
      %7377 = vmatprep.subr.mxu0 0.0
      %7378 = vmatpush1.msra.mxu0 0.0
      %7379 = vmatprep.subr.mxu0 0.0
      %7380 = vmatpush1.msra.mxu0 0.0
      %7381 = vmatprep.subr.mxu0 0.0
      %7382 = vmatpush1.msra.mxu0 0.0
      %7383 = vmatprep.subr.mxu0 0.0
      %7384 = vmatpush1.msra.mxu0 0.0
      %7385 = vmatprep.subr.mxu0 0.0
      %7386 = vmatpush1.msra.mxu0 0.0
      %7387 = vmatprep.subr.mxu0 0.0
      %7388 = vmatpush1.msra.mxu0 0.0
      %7389 = vmatprep.subr.mxu0 0.0
      %7390 = vmatpush1.msra.mxu0 0.0
      %7391 = vmatprep.subr.mxu0 0.0
      %7392 = vmatpush1.msra.mxu0 0.0
      %7393 = vmatprep.mubr.f32.mxu0 %v7256
      %7394 = vmatmul.mubr.f32.gmra.mrb[0].mxu0 %v7017
      %v7395 = vpop.f32.mrb[0].mxu0
      %v7396 = vadd.f32 %v7022, %v7395
      %v7397 = vpop.f32.mrb[0].mxu0
      %7398 = vdwg.mxu0
      %vm7399 = vcmp.gt.f32.partialorder %v7325, 20.0
      %vm7400 = vcmp.gt.f32.partialorder %v7327, 20.0
      %vm7401 = vcmp.gt.f32.partialorder %v7396, 20.0
      %v7402 = vmin.f32 %v7325, 20.0
      %v7403 = vmin.f32 %v7327, 20.0
      %v7404 = vmin.f32 %v7396, 20.0
      %v7405 = vmul.f32 %v7402, 1.442695
      %v7406 = vpow.pop %v7405
      %v7407 = vmul.f32 %v7403, 1.442695
      %v7408 = vpow.pop %v7407
      %v7409 = vmul.f32 %v7404, 1.442695
      %v7410 = vpow.pop %v7409
      %v7411 = vadd.f32 %v7406, 1.0
      %v7412 = vlog2.pop %v7411
      %v7413 = vmul.f32 %v7412, 0.6931472
      %v7414 = vmul.f32 -0.5, %v7406
      %v7415 = vadd.f32 %v7414, 1.0
      %v7416 = vmul.f32 %v7415, %v7406
      %v7417 = vand.u32 2147483647, %v7406
      %vm7418 = vcmp.lt.f32.partialorder %v7417, 0.0004427343
      %v7419 = vsel %vm7418, %v7416, %v7413
      %v7420 = vadd.f32 %v7408, 1.0
      %v7421 = vlog2.pop %v7420
      %v7422 = vmul.f32 %v7421, 0.6931472
      %v7423 = vmul.f32 -0.5, %v7408
      %v7424 = vadd.f32 %v7423, 1.0
      %v7425 = vmul.f32 %v7424, %v7408
      %v7426 = vand.u32 2147483647, %v7408
      %vm7427 = vcmp.lt.f32.partialorder %v7426, 0.0004427343
      %v7428 = vsel %vm7427, %v7425, %v7422
      %v7429 = vadd.f32 %v7410, 1.0
      %v7430 = vlog2.pop %v7429
      %v7431 = vmul.f32 %v7430, 0.6931472
      %v7432 = vmul.f32 -0.5, %v7410
      %v7433 = vadd.f32 %v7432, 1.0
      %v7434 = vmul.f32 %v7433, %v7410
      %v7435 = vand.u32 2147483647, %v7410
      %vm7436 = vcmp.lt.f32.partialorder %v7435, 0.0004427343
      %v7437 = vsel %vm7436, %v7434, %v7431
      %v7438 = vsel %vm7399, %v7325, %v7419
      %v7439 = vsel %vm7400, %v7327, %v7428
      %v7440 = vsel %vm7401, %v7396, %v7437
      %v7441 = vmul.f32 %v7438, %v974
      %v7442 = vmul.f32 %v7439, %v978
      %v7443 = vmul.f32 %v7440, %v982
      %v7446 = vcombine.low %v7441, %v7442
      %7448 = vst [vmem:[%s865] sm:$0x77] %v7446
      %7449 = vst [vmem:[%s865 + $0x8] sm:$0x7] %v7443
      %p7450 = scmp.lt.s32.totalorder %s39, 1
      %s7451 = scalar_select %p7450, %s39, 1
      %s7452 = smul.addr %s7451, 3
      %s7453 = smul.addr %s7452, 4
      %s7454 = scalar_lea.vmem %s28, %s7453
      // Predicated region
      $region133: #{_lambda_.1} parent=131 // pred_check
        %p7455 = pneg %p655
      $region134: #{_lambda_.1} parent=131 // pred_check_branch
        %7457 = sbr.rel (%p7455) target = $region136
      $region135: #{_lambda_.1} parent=131 // pred_region
        _
      $region136: #{_lambda_.1} parent=131 // pred_fallthru
        _
    $region132: #{_lambda_.1} parent=5 // pred_fallthru
      _
    %p7458 = scmp.le.s32.totalorder 2, %s34
    // Predicated region
    $region137: #{_lambda_.1} parent=5 // pred_check
      %p7459 = pneg %p7458
    $region138: #{_lambda_.1} parent=5 // pred_check_branch
      %7461 = sbr.rel (%p7459) target = $region140
    $region139: #{_lambda_.1} parent=5 // pred_region
      %s7462 = ssub.s32 %s34, 2
      // Predicated region
      $region141: #{_lambda_.1} parent=139 // pred_check
        %p7463 = pneg %p661
      $region142: #{_lambda_.1} parent=139 // pred_check_branch
        %7465 = sbr.rel (%p7463) target = $region144
      $region143: #{_lambda_.1} parent=139 // pred_region
        %p7466 = scmp.lt.s32.totalorder %s40, 1
        %s7467 = scalar_select %p7466, %s40, 1
        %s7468 = smul.addr %s7467, 3
        %s7469 = smul.addr %s7468, 4
        %s7470 = scalar_lea.vmem %s28, %s7469
      $region144: #{_lambda_.1} parent=139 // pred_fallthru
        _
    $region140: #{_lambda_.1} parent=5 // pred_fallthru
      _
  $region6: #{_lambda_.1} parent=0 // loop_footer
    %s38 = sadd.s32 1, %s34
  $region7: #{_lambda_.1} parent=0 // loop_footer_branch
    %33 = sbr.rel target = $region3
  $region8: #{_lambda_.1} parent=0 // loop_exit
    _

</llo_original>
